<compile_context>
chip_gen: v7x
topology: tpu7x:2x2x1
jax: 0.10.0
libtpu: 0.0.40
codegen_flags: <defaults>
</compile_context>

<pallas_src>
import numpy as np
import jax
import jax.numpy as jnp
from jax.experimental import pallas as pl
from jax.experimental.pallas import tpu as pltpu

POOL_K = 5
POOL_S = 3
IN_HW = 14                                  # 14x14 input => 128*4*4 == 2048 fc1 inputs
OUT_HW = (IN_HW - POOL_K) // POOL_S + 1     # 4
NPOS = OUT_HW * OUT_HW                      # 16 pooled positions
SPATIAL = IN_HW * IN_HW                     # 196
CONV_OUT = 128
FC1_IN = CONV_OUT * NPOS                    # 2048
FC1_OUT = 1024
OUT_PAD = 128                               # num_classes padded to a full lane slab


def _round_up(v, m):
    return ((v + m - 1) // m) * m


def _pool_matrix():
    """(196, 16) bf16 0/1 matrix: column (oh*4+ow) marks its 5x5 window pixels.

    The 1/25 averaging factor is folded into the conv weights (pool and conv are
    both linear with no nonlinearity in between), so the entries stay exact in
    bfloat16 and the pool matmul computes exact window sums.
    """
    p = np.zeros((SPATIAL, NPOS), np.float32)
    for oh in range(OUT_HW):
        for ow in range(OUT_HW):
            for kh in range(POOL_K):
                for kw in range(POOL_K):
                    p[(oh * POOL_S + kh) * IN_HW + (ow * POOL_S + kw),
                      oh * OUT_HW + ow] = 1.0
    return jnp.asarray(p).astype(jnp.bfloat16)


def inception_aux_kernel(x_ref, pmat_ref, cw_ref, cb_ref, w1_ref, b1_ref,
                         w2_ref, b2_ref, out_ref):
    tn, cin, s = x_ref.shape                                # (TN, Cin, 196) bf16

    # ---- AvgPool2d(5, stride=3): ONE MXU contraction over the 196 pixels ----
    # bf16 x bf16 -> f32 accumulation; exact window SUMS (0/1 pool matrix).
    x2 = x_ref[...].reshape(tn * cin, s)                    # (TN*Cin, 196)
    pooled = jnp.dot(x2, pmat_ref[...],
                     preferred_element_type=jnp.float32)    # (TN*Cin, 16) f32

    # rearrange to (TN*16, Cin) so the 1x1 conv is ONE matmul for all positions
    pooled = pooled.reshape(tn, cin, NPOS)
    pooled = jnp.transpose(pooled, (0, 2, 1)).reshape(tn * NPOS, cin)

    # ---- 1x1 conv + bias + ReLU (conv weights carry the 1/25 pool scale) ----
    y = jnp.dot(pooled, cw_ref[...], preferred_element_type=jnp.float32)
    y = jnp.maximum(y + cb_ref[...], 0.0)                   # (TN*16, 128) f32

    # ---- flatten: h[n, pos*128 + c] matches the pre-reordered w1 rows ----
    h = y.reshape(tn, NPOS * CONV_OUT)                      # (TN, 2048)

    # TODO(synk): F.dropout(0.5) is identity here (eval-mode semantics).
    h1 = jnp.dot(h.astype(jnp.bfloat16), w1_ref[...],
                 preferred_element_type=jnp.float32) + b1_ref[...]
    h1 = jnp.maximum(h1, 0.0)                               # (TN, 1024)

    out = jnp.dot(h1.astype(jnp.bfloat16), w2_ref[...],
                  preferred_element_type=jnp.float32) + b2_ref[...]
    out_ref[...] = out                                      # (TN, 128) lane-dense


def inception_aux_forward(x_nchw, params, *, batch_tile=None):
    """x_nchw: (N, Cin, 14, 14) float32. params follow the PyTorch shapes."""
    conv_w, conv_b, fc1_w, fc1_b, fc2_w, fc2_b = params
    n, cin, h, w = x_nchw.shape
    assert h == IN_HW and w == IN_HW, "fc1=2048 requires 14x14 spatial input"
    num_classes = fc2_w.shape[0]
    assert num_classes <= OUT_PAD

    # Adaptive batch tile: bigger M for the fc1 matmul (dominant FLOPs) while
    # keeping the bf16 x tile small in VMEM even for Cin=512/528.
    if batch_tile is None:
        batch_tile = min(32, max(8, _round_up(n, 8)))
    tn = batch_tile
    n_pad = _round_up(n, tn)

    # input: (N, Cin, 14, 14) -> (N_pad, Cin, 196) bf16 (spatial folded into lanes)
    x_r = x_nchw.reshape(n, cin, SPATIAL).astype(jnp.bfloat16)
    if n_pad != n:
        x_r = jnp.pad(x_r, ((0, n_pad - n), (0, 0), (0, 0)))

    pmat = _pool_matrix()                                        # (196, 16) bf16 0/1

    # 1x1 conv weight (128, Cin, 1, 1) -> (Cin, 128) * (1/25); bias -> (1, 128)
    cw = (jnp.transpose(conv_w.reshape(CONV_OUT, cin), (1, 0))
          * (1.0 / (POOL_K * POOL_K))).astype(jnp.float32)
    cb = conv_b.reshape(1, CONV_OUT).astype(jnp.float32)

    # fc1 (1024, 2048) acts on torch.flatten order k = c*16 + pos; reorder rows of
    # W1^T to pos*128 + c so they match the kernel's (TN, 16, 128) flatten. bf16.
    w1 = jnp.transpose(fc1_w, (1, 0)).reshape(CONV_OUT, NPOS, FC1_OUT)
    w1 = jnp.transpose(w1, (1, 0, 2)).reshape(FC1_IN, FC1_OUT).astype(jnp.bfloat16)
    b1 = fc1_b.reshape(1, FC1_OUT).astype(jnp.float32)

    # fc2: pad classes to 128 lanes (lane-dense matmul + store). bf16 weights.
    w2 = jnp.zeros((FC1_OUT, OUT_PAD), jnp.float32)
    w2 = w2.at[:, :num_classes].set(jnp.transpose(fc2_w, (1, 0))).astype(jnp.bfloat16)
    b2 = jnp.zeros((1, OUT_PAD), jnp.float32)
    b2 = b2.at[:, :num_classes].set(fc2_b.reshape(1, num_classes))

    grid = (n_pad // tn,)
    flops = 2 * n_pad * (cin * SPATIAL * NPOS + NPOS * cin * CONV_OUT
                         + FC1_IN * FC1_OUT + FC1_OUT * OUT_PAD)
    bytes_accessed = int(x_r.size * 2 + pmat.size * 2 + cw.size * 4 + cb.size * 4
                         + w1.size * 2 + b1.size * 4 + w2.size * 2 + b2.size * 4
                         + n_pad * OUT_PAD * 4)

    out = pl.pallas_call(
        inception_aux_kernel,
        out_shape=jax.ShapeDtypeStruct((n_pad, OUT_PAD), jnp.float32),
        grid_spec=pltpu.PrefetchScalarGridSpec(
            num_scalar_prefetch=0,
            grid=grid,
            in_specs=[
                pl.BlockSpec((tn, cin, SPATIAL), lambda b: (b, 0, 0)),  # x tile (bf16)
                pl.BlockSpec((SPATIAL, NPOS), lambda b: (0, 0)),        # pool mat
                pl.BlockSpec((cin, CONV_OUT), lambda b: (0, 0)),        # conv w (scaled)
                pl.BlockSpec((1, CONV_OUT), lambda b: (0, 0)),          # conv b
                pl.BlockSpec((FC1_IN, FC1_OUT), lambda b: (0, 0)),      # w1 (resident)
                pl.BlockSpec((1, FC1_OUT), lambda b: (0, 0)),           # b1
                pl.BlockSpec((FC1_OUT, OUT_PAD), lambda b: (0, 0)),     # w2 (resident)
                pl.BlockSpec((1, OUT_PAD), lambda b: (0, 0)),           # b2
            ],
            out_specs=pl.BlockSpec((tn, OUT_PAD), lambda b: (b, 0)),
        ),
        compiler_params=pltpu.CompilerParams(
            dimension_semantics=("parallel",),
            vmem_limit_bytes=32 * 1024 * 1024,
        ),
        cost_estimate=pl.CostEstimate(
            flops=flops, transcendentals=0, bytes_accessed=bytes_accessed),
    )(x_r, pmat, cw, cb, w1, b1, w2, b2)

    return out[:n, :num_classes]


def reference_forward(x_nchw, params):
    """Plain-JAX f32 reference matching PyTorch InceptionAux.eval() semantics."""
    conv_w, conv_b, fc1_w, fc1_b, fc2_w, fc2_b = params
    n, cin, _, _ = x_nchw.shape
    pooled = jnp.stack([
        jnp.stack([
            jnp.mean(x_nchw[:, :, oh * 3:oh * 3 + 5, ow * 3:ow * 3 + 5],
                     axis=(2, 3))
            for ow in range(OUT_HW)], axis=-1)
        for oh in range(OUT_HW)], axis=-2)                   # (N, Cin, 4, 4)
    conv = jnp.einsum('nchw,oc->nohw', pooled, conv_w.reshape(CONV_OUT, cin))
    conv = jnp.maximum(conv + conv_b[None, :, None, None], 0.0)
    flat = conv.reshape(n, -1)                               # (N, 2048)
    h1 = jnp.maximum(flat @ fc1_w.T + fc1_b, 0.0)
    return h1 @ fc2_w.T + fc2_b


if __name__ == "__main__":
    N = 2
    IN_CHANNELS = 16
    NUM_CLASSES = 10

    key = jax.random.PRNGKey(0)
    kx, k1, k2, k3, k4, k5, k6 = jax.random.split(key, 7)

    x = jax.random.normal(kx, (N, IN_CHANNELS, IN_HW, IN_HW), jnp.float32)
    conv_w = 0.05 * jax.random.normal(k1, (CONV_OUT, IN_CHANNELS, 1, 1), jnp.float32)
    conv_b = 0.05 * jax.random.normal(k2, (CONV_OUT,), jnp.float32)
    fc1_w = 0.02 * jax.random.normal(k3, (FC1_OUT, FC1_IN), jnp.float32)
    fc1_b = 0.02 * jax.random.normal(k4, (FC1_OUT,), jnp.float32)
    fc2_w = 0.02 * jax.random.normal(k5, (NUM_CLASSES, FC1_OUT), jnp.float32)
    fc2_b = 0.02 * jax.random.normal(k6, (NUM_CLASSES,), jnp.float32)
    params = (conv_w, conv_b, fc1_w, fc1_b, fc2_w, fc2_b)

    out = jax.block_until_ready(inception_aux_forward(x, params))
    ref = jax.block_until_ready(reference_forward(x, params))

    assert out.shape == (N, NUM_CLASSES)
    max_err = float(jnp.max(jnp.abs(out - ref)))
    # x, fc1/fc2 weights and activations go through bf16 on the MXU (f32
    # accumulation), so allow a small tolerance vs the pure-f32 reference.
    assert jnp.allclose(out, ref, rtol=5e-2, atol=1e-2), f"mismatch: max abs err = {max_err}"
    print("KERNEL_OK")
</pallas_src>

<mosaic_0001>
module attributes {stable_mosaic.version = 11 : i64} {
  func.func @inception_aux_kernel(%arg0: i32, %arg1: memref<8x16x196xbf16, #tpu.memory_space<vmem>>, %arg2: memref<196x16xbf16, #tpu.memory_space<vmem>>, %arg3: memref<16x128xf32, #tpu.memory_space<vmem>>, %arg4: memref<1x128xf32, #tpu.memory_space<vmem>>, %arg5: memref<2048x1024xbf16, #tpu.memory_space<vmem>>, %arg6: memref<1x1024xf32, #tpu.memory_space<vmem>>, %arg7: memref<1024x128xbf16, #tpu.memory_space<vmem>>, %arg8: memref<1x128xf32, #tpu.memory_space<vmem>>, %arg9: memref<8x128xf32, #tpu.memory_space<vmem>>) attributes {dimension_semantics = [#tpu.dimension_semantics<parallel>], iteration_bounds = array<i64: 1>, scalar_prefetch = 0 : i64, scratch_operands = 0 : i64, tpu.core_type = #tpu.core_type<tc>, window_params = [{transform_indices = @transform_0, window_bounds = array<i64: 8, 16, 196>}, {pipeline_mode = #tpu.pipeline_mode<synchronous>, transform_indices = @transform_1, window_bounds = array<i64: 196, 16>}, {pipeline_mode = #tpu.pipeline_mode<synchronous>, transform_indices = @transform_2, window_bounds = array<i64: 16, 128>}, {pipeline_mode = #tpu.pipeline_mode<synchronous>, transform_indices = @transform_3, window_bounds = array<i64: 1, 128>}, {pipeline_mode = #tpu.pipeline_mode<synchronous>, transform_indices = @transform_4, window_bounds = array<i64: 2048, 1024>}, {pipeline_mode = #tpu.pipeline_mode<synchronous>, transform_indices = @transform_5, window_bounds = array<i64: 1, 1024>}, {pipeline_mode = #tpu.pipeline_mode<synchronous>, transform_indices = @transform_6, window_bounds = array<i64: 1024, 128>}, {pipeline_mode = #tpu.pipeline_mode<synchronous>, transform_indices = @transform_7, window_bounds = array<i64: 1, 128>}, {transform_indices = @transform_8, window_bounds = array<i64: 8, 128>}]} {
    %c0 = arith.constant 0 : index
    %c0_0 = arith.constant 0 : index
    %c0_1 = arith.constant 0 : index
    %0 = vector.load %arg1[%c0, %c0_0, %c0_1] : memref<8x16x196xbf16, #tpu.memory_space<vmem>>, vector<8x16x196xbf16>
    %1 = vector.shape_cast %0 : vector<8x16x196xbf16> to vector<128x196xbf16>
    %c0_2 = arith.constant 0 : index
    %c0_3 = arith.constant 0 : index
    %2 = vector.load %arg2[%c0_2, %c0_3] : memref<196x16xbf16, #tpu.memory_space<vmem>>, vector<196x16xbf16>
    %cst = arith.constant dense<0.000000e+00> : vector<128x16xf32>
    %3 = tpu.matmul %1, %2, %cst {dimension_numbers = #tpu.dot_dimension_numbers<[1], [0], [0], [1], [0, 0, 1, 1], [], []>} : vector<128x196xbf16>, vector<196x16xbf16>, vector<128x16xf32> -> vector<128x16xf32>
    %4 = vector.shape_cast %3 : vector<128x16xf32> to vector<8x16x16xf32>
    %5 = tpu.transpose %4, [0, 2, 1] : vector<8x16x16xf32> -> vector<8x16x16xf32>
    %6 = vector.shape_cast %5 : vector<8x16x16xf32> to vector<128x16xf32>
    %c0_4 = arith.constant 0 : index
    %c0_5 = arith.constant 0 : index
    %7 = vector.load %arg3[%c0_4, %c0_5] : memref<16x128xf32, #tpu.memory_space<vmem>>, vector<16x128xf32>
    %cst_6 = arith.constant dense<0.000000e+00> : vector<128x128xf32>
    %8 = tpu.matmul %6, %7, %cst_6 {dimension_numbers = #tpu.dot_dimension_numbers<[1], [0], [0], [1], [0, 0, 1, 1], [], []>} : vector<128x16xf32>, vector<16x128xf32>, vector<128x128xf32> -> vector<128x128xf32>
    %c0_7 = arith.constant 0 : index
    %c0_8 = arith.constant 0 : index
    %9 = vector.load %arg4[%c0_7, %c0_8] : memref<1x128xf32, #tpu.memory_space<vmem>>, vector<1x128xf32>
    %10 = vector.broadcast %9 : vector<1x128xf32> to vector<128x128xf32>
    %11 = arith.addf %8, %10 : vector<128x128xf32>
    %cst_9 = arith.constant 0.000000e+00 : f32
    %12 = vector.broadcast %cst_9 : f32 to vector<128x128xf32>
    %13 = arith.maximumf %11, %12 : vector<128x128xf32>
    %14 = vector.shape_cast %13 : vector<128x128xf32> to vector<8x2048xf32>
    %15 = arith.truncf %14 : vector<8x2048xf32> to vector<8x2048xbf16>
    %c0_10 = arith.constant 0 : index
    %c0_11 = arith.constant 0 : index
    %16 = vector.load %arg5[%c0_10, %c0_11] : memref<2048x1024xbf16, #tpu.memory_space<vmem>>, vector<2048x1024xbf16>
    %cst_12 = arith.constant dense<0.000000e+00> : vector<8x1024xf32>
    %17 = tpu.matmul %15, %16, %cst_12 {dimension_numbers = #tpu.dot_dimension_numbers<[1], [0], [0], [1], [0, 0, 1, 1], [], []>} : vector<8x2048xbf16>, vector<2048x1024xbf16>, vector<8x1024xf32> -> vector<8x1024xf32>
    %c0_13 = arith.constant 0 : index
    %c0_14 = arith.constant 0 : index
    %18 = vector.load %arg6[%c0_13, %c0_14] : memref<1x1024xf32, #tpu.memory_space<vmem>>, vector<1x1024xf32>
    %19 = vector.broadcast %18 : vector<1x1024xf32> to vector<8x1024xf32>
    %20 = arith.addf %17, %19 : vector<8x1024xf32>
    %cst_15 = arith.constant 0.000000e+00 : f32
    %21 = vector.broadcast %cst_15 : f32 to vector<8x1024xf32>
    %22 = arith.maximumf %20, %21 : vector<8x1024xf32>
    %23 = arith.truncf %22 : vector<8x1024xf32> to vector<8x1024xbf16>
    %c0_16 = arith.constant 0 : index
    %c0_17 = arith.constant 0 : index
    %24 = vector.load %arg7[%c0_16, %c0_17] : memref<1024x128xbf16, #tpu.memory_space<vmem>>, vector<1024x128xbf16>
    %cst_18 = arith.constant dense<0.000000e+00> : vector<8x128xf32>
    %25 = tpu.matmul %23, %24, %cst_18 {dimension_numbers = #tpu.dot_dimension_numbers<[1], [0], [0], [1], [0, 0, 1, 1], [], []>} : vector<8x1024xbf16>, vector<1024x128xbf16>, vector<8x128xf32> -> vector<8x128xf32>
    %c0_19 = arith.constant 0 : index
    %c0_20 = arith.constant 0 : index
    %26 = vector.load %arg8[%c0_19, %c0_20] : memref<1x128xf32, #tpu.memory_space<vmem>>, vector<1x128xf32>
    %27 = vector.broadcast %26 : vector<1x128xf32> to vector<8x128xf32>
    %28 = arith.addf %25, %27 : vector<8x128xf32>
    %c0_21 = arith.constant 0 : index
    %c0_22 = arith.constant 0 : index
    %29 = vector.load %arg9[%c0_21, %c0_22] : memref<8x128xf32, #tpu.memory_space<vmem>>, vector<8x128xf32>
    tpu.vector_store %arg9[%c0_21, %c0_22], %28 {strides = array<i32>} : memref<8x128xf32, #tpu.memory_space<vmem>>, vector<8x128xf32>,
    return
  }
  func.func @transform_0(%arg0: i32) -> (i32, i32, i32) {
    %c0_i32 = arith.constant 0 : i32
    %c0_i32_0 = arith.constant 0 : i32
    %c0_i32_1 = arith.constant 0 : i32
    return %arg0, %c0_i32, %c0_i32_0 : i32, i32, i32
  }
  func.func @transform_1(%arg0: i32) -> (i32, i32) {
    %c0_i32 = arith.constant 0 : i32
    %c0_i32_0 = arith.constant 0 : i32
    %c0_i32_1 = arith.constant 0 : i32
    return %c0_i32, %c0_i32_0 : i32, i32
  }
  func.func @transform_2(%arg0: i32) -> (i32, i32) {
    %c0_i32 = arith.constant 0 : i32
    %c0_i32_0 = arith.constant 0 : i32
    %c0_i32_1 = arith.constant 0 : i32
    return %c0_i32, %c0_i32_0 : i32, i32
  }
  func.func @transform_3(%arg0: i32) -> (i32, i32) {
    %c0_i32 = arith.constant 0 : i32
    %c0_i32_0 = arith.constant 0 : i32
    %c0_i32_1 = arith.constant 0 : i32
    return %c0_i32, %c0_i32_0 : i32, i32
  }
  func.func @transform_4(%arg0: i32) -> (i32, i32) {
    %c0_i32 = arith.constant 0 : i32
    %c0_i32_0 = arith.constant 0 : i32
    %c0_i32_1 = arith.constant 0 : i32
    return %c0_i32, %c0_i32_0 : i32, i32
  }
  func.func @transform_5(%arg0: i32) -> (i32, i32) {
    %c0_i32 = arith.constant 0 : i32
    %c0_i32_0 = arith.constant 0 : i32
    %c0_i32_1 = arith.constant 0 : i32
    return %c0_i32, %c0_i32_0 : i32, i32
  }
  func.func @transform_6(%arg0: i32) -> (i32, i32) {
    %c0_i32 = arith.constant 0 : i32
    %c0_i32_0 = arith.constant 0 : i32
    %c0_i32_1 = arith.constant 0 : i32
    return %c0_i32, %c0_i32_0 : i32, i32
  }
  func.func @transform_7(%arg0: i32) -> (i32, i32) {
    %c0_i32 = arith.constant 0 : i32
    %c0_i32_0 = arith.constant 0 : i32
    %c0_i32_1 = arith.constant 0 : i32
    return %c0_i32, %c0_i32_0 : i32, i32
  }
  func.func @transform_8(%arg0: i32) -> (i32, i32) {
    %c0_i32 = arith.constant 0 : i32
    %c0_i32_0 = arith.constant 0 : i32
    return %arg0, %c0_i32 : i32, i32
  }
}

</mosaic_0001>

<llo_original>
// kernel: tpu_custom_call.1
$region0: #{tpu_custom_call.1}
  #allocation0 [shape = 'u32[]', space=smem, size = 0x4, offset = 0x4, fixed_abs, tag = 'smem constant byte address 0x4 - core index']
  #allocation1 [shape = 'u32[144,128]{1,0:T(1,128)}', space=vmem, size = 0x12000, scoped, tag = 'internal scratch']
  %s0 = inlined_call_operand.hbm [shape: bf16[8,16,196], index: 0, kind: input, shape index: {}]
  %s1 = inlined_call_operand.vmem [shape: bf16[196,16], index: 1, kind: input, shape index: {}]
  %s2 = inlined_call_operand.hbm [shape: f32[16,128], index: 2, kind: input, shape index: {}]
  %s3 = inlined_call_operand.hbm [shape: f32[1,128], index: 3, kind: input, shape index: {}]
  %s4 = inlined_call_operand.hbm [shape: bf16[2048,1024], index: 4, kind: input, shape index: {}]
  %s5 = inlined_call_operand.hbm [shape: f32[1,1024], index: 5, kind: input, shape index: {}]
  %s6 = inlined_call_operand.hbm [shape: bf16[1024,128], index: 6, kind: input, shape index: {}]
  %s7 = inlined_call_operand.hbm [shape: f32[1,128], index: 7, kind: input, shape index: {}]
  %s8 = inlined_call_operand.hbm [shape: f32[8,128], index: 8, kind: output, shape index: {}]
  %s9 = sld [smem:[#allocation0]]
  $region70: #{tpu_custom_call.1} parent=0
    _
  %s11 = ssub.s32 1, %s9
  %s12 = scalar_select 0, %s11, %s9
  $region1: #{tpu_custom_call.1} parent=0
    #allocation2 [shape = 'u8[65536]{0}', space=vmem, size = 0x10000, scoped, tag = 'input window, operand 0, single buffered']
    #allocation3 [shape = 's32[1]{0}', space=sflag, size = 0x4, scoped, tag = 'scoped memory for tpu_custom_call.1']
    #allocation4 [shape = 's32[1]{0}', space=sflag, size = 0x4, scoped, tag = 'scoped memory for tpu_custom_call.1']
    #allocation5 [shape = 'u8[8192]{0}', space=vmem, size = 0x2000, scoped, tag = 'input window, operand 2, single buffered']
    #allocation6 [shape = 's32[1]{0}', space=sflag, size = 0x4, scoped, tag = 'scoped memory for tpu_custom_call.1']
    #allocation7 [shape = 'u8[512]{0}', space=vmem, size = 0x400, scoped, tag = 'input window, operand 3, single buffered']
    #allocation8 [shape = 'u8[4194304]{0}', space=vmem, size = 0x400000, scoped, tag = 'input window, operand 4, single buffered']
    #allocation9 [shape = 's32[1]{0}', space=sflag, size = 0x4, scoped, tag = 'scoped memory for tpu_custom_call.1']
    #allocation10 [shape = 'u8[4096]{0}', space=vmem, size = 0x1000, scoped, tag = 'input window, operand 5, single buffered']
    #allocation11 [shape = 'u8[262144]{0}', space=vmem, size = 0x40000, scoped, tag = 'input window, operand 6, single buffered']
    #allocation12 [shape = 's32[1]{0}', space=sflag, size = 0x4, scoped, tag = 'scoped memory for tpu_custom_call.1']
    #allocation13 [shape = 'u8[512]{0}', space=vmem, size = 0x400, scoped, tag = 'input window, operand 7, single buffered']
    #allocation14 [shape = 'u8[4096]{0}', space=vmem, size = 0x1000, scoped, tag = 'output window, operand 0, single buffered']
    %13 = vsyncpa [#allocation3], 0
    %14 = vsyncpa [#allocation6], 0
    %15 = vsyncpa [#allocation9], 0
    %16 = vsyncpa [#allocation12], 0
    %17 = vsyncpa [#allocation4], 0
    // Predicated region
    $region2: #{tpu_custom_call.1} parent=1 // pred_check
      _
    $region3: #{tpu_custom_call.1} parent=1 // pred_check_branch
      %19 = sbr.rel (0) target = $region5
    $region4: #{tpu_custom_call.1} parent=1 // pred_region
      %s21 = ssub.s32 2048, 2048
      %22 = vsyncadd [#allocation3], %s21
      %s23 = sshll.u32 [#allocation2], 4
      %s24 = int_to_ptr.vmem [resolvable:$true] %s23
      %29 = dma.hbm_to_vmem [thread:$0]  %s0, 2048, %s24, [#allocation3], 128, 128, 8
    $region5: #{tpu_custom_call.1} parent=1 // pred_fallthru
      _
    // Predicated region
    $region6: #{tpu_custom_call.1} parent=1 // pred_check
      _
    $region7: #{tpu_custom_call.1} parent=1 // pred_check_branch
      %31 = sbr.rel (0) target = $region9
    $region8: #{tpu_custom_call.1} parent=1 // pred_region
      _
    $region9: #{tpu_custom_call.1} parent=1 // pred_fallthru
      _
    // Predicated region
    $region10: #{tpu_custom_call.1} parent=1 // pred_check
      _
    $region11: #{tpu_custom_call.1} parent=1 // pred_check_branch
      %33 = sbr.rel (0) target = $region13
    $region12: #{tpu_custom_call.1} parent=1 // pred_region
      %s35 = ssub.s32 256, 256
      %36 = vsyncadd [#allocation6], %s35
      %s37 = sshll.u32 [#allocation5], 4
      %s38 = int_to_ptr.vmem [resolvable:$true] %s37
      %43 = dma.hbm_to_vmem [thread:$0]  %s2, 256, %s38, [#allocation6], 128, 128, 8
    $region13: #{tpu_custom_call.1} parent=1 // pred_fallthru
      _
    // Predicated region
    $region14: #{tpu_custom_call.1} parent=1 // pred_check
      _
    $region15: #{tpu_custom_call.1} parent=1 // pred_check_branch
      %45 = sbr.rel (0) target = $region17
    $region16: #{tpu_custom_call.1} parent=1 // pred_region
      %s47 = ssub.s32 16, 16
      %48 = vsyncadd [#allocation6], %s47
      %s50 = sshll.u32 [#allocation7], 4
      %s51 = int_to_ptr.vmem [resolvable:$true] %s50
      %53 = dma.hbm_to_vmem [thread:$0]  %s3, 16, %s51, [#allocation6]
    $region17: #{tpu_custom_call.1} parent=1 // pred_fallthru
      _
    // Predicated region
    $region18: #{tpu_custom_call.1} parent=1 // pred_check
      _
    $region19: #{tpu_custom_call.1} parent=1 // pred_check_branch
      %55 = sbr.rel (0) target = $region21
    $region20: #{tpu_custom_call.1} parent=1 // pred_region
      %s57 = ssub.s32 131072, 131072
      %58 = vsyncadd [#allocation9], %s57
      %s59 = sshll.u32 [#allocation8], 4
      %s60 = int_to_ptr.vmem [resolvable:$true] %s59
      %65 = dma.hbm_to_vmem [thread:$0]  %s4, 131072, %s60, [#allocation9], 512, 512, 32
    $region21: #{tpu_custom_call.1} parent=1 // pred_fallthru
      _
    // Predicated region
    $region22: #{tpu_custom_call.1} parent=1 // pred_check
      _
    $region23: #{tpu_custom_call.1} parent=1 // pred_check_branch
      %67 = sbr.rel (0) target = $region25
    $region24: #{tpu_custom_call.1} parent=1 // pred_region
      %s69 = ssub.s32 128, 128
      %70 = vsyncadd [#allocation9], %s69
      %s72 = sshll.u32 [#allocation10], 4
      %s73 = int_to_ptr.vmem [resolvable:$true] %s72
      %75 = dma.hbm_to_vmem [thread:$0]  %s5, 128, %s73, [#allocation9]
    $region25: #{tpu_custom_call.1} parent=1 // pred_fallthru
      _
    // Predicated region
    $region26: #{tpu_custom_call.1} parent=1 // pred_check
      _
    $region27: #{tpu_custom_call.1} parent=1 // pred_check_branch
      %77 = sbr.rel (0) target = $region29
    $region28: #{tpu_custom_call.1} parent=1 // pred_region
      %s79 = ssub.s32 8192, 8192
      %80 = vsyncadd [#allocation12], %s79
      %s81 = sshll.u32 [#allocation11], 4
      %s82 = int_to_ptr.vmem [resolvable:$true] %s81
      %87 = dma.hbm_to_vmem [thread:$0]  %s6, 8192, %s82, [#allocation12], 64, 64, 4
    $region29: #{tpu_custom_call.1} parent=1 // pred_fallthru
      _
    // Predicated region
    $region30: #{tpu_custom_call.1} parent=1 // pred_check
      _
    $region31: #{tpu_custom_call.1} parent=1 // pred_check_branch
      %89 = sbr.rel (0) target = $region33
    $region32: #{tpu_custom_call.1} parent=1 // pred_region
      %s91 = ssub.s32 16, 16
      %92 = vsyncadd [#allocation12], %s91
      %s94 = sshll.u32 [#allocation13], 4
      %s95 = int_to_ptr.vmem [resolvable:$true] %s94
      %97 = dma.hbm_to_vmem [thread:$0]  %s7, 16, %s95, [#allocation12]
    $region33: #{tpu_custom_call.1} parent=1 // pred_fallthru
      _
    // Predicated region
    $region34: #{tpu_custom_call.1} parent=1 // pred_check
      _
    $region35: #{tpu_custom_call.1} parent=1 // pred_check_branch
      %99 = sbr.rel (0) target = $region37
    $region36: #{tpu_custom_call.1} parent=1 // pred_region
      %100 = dma.done [#allocation3], 2048
    $region37: #{tpu_custom_call.1} parent=1 // pred_fallthru
      _
    // Predicated region
    $region38: #{tpu_custom_call.1} parent=1 // pred_check
      _
    $region39: #{tpu_custom_call.1} parent=1 // pred_check_branch
      %102 = sbr.rel (0) target = $region41
    $region40: #{tpu_custom_call.1} parent=1 // pred_region
      %103 = dma.done [#allocation6], 256
    $region41: #{tpu_custom_call.1} parent=1 // pred_fallthru
      _
    // Predicated region
    $region42: #{tpu_custom_call.1} parent=1 // pred_check
      _
    $region43: #{tpu_custom_call.1} parent=1 // pred_check_branch
      %105 = sbr.rel (0) target = $region45
    $region44: #{tpu_custom_call.1} parent=1 // pred_region
      %106 = dma.done [#allocation6], 16
    $region45: #{tpu_custom_call.1} parent=1 // pred_fallthru
      _
    // Predicated region
    $region46: #{tpu_custom_call.1} parent=1 // pred_check
      _
    $region47: #{tpu_custom_call.1} parent=1 // pred_check_branch
      %108 = sbr.rel (0) target = $region49
    $region48: #{tpu_custom_call.1} parent=1 // pred_region
      %109 = dma.done [#allocation9], 131072
    $region49: #{tpu_custom_call.1} parent=1 // pred_fallthru
      _
    // Predicated region
    $region50: #{tpu_custom_call.1} parent=1 // pred_check
      _
    $region51: #{tpu_custom_call.1} parent=1 // pred_check_branch
      %111 = sbr.rel (0) target = $region53
    $region52: #{tpu_custom_call.1} parent=1 // pred_region
      %112 = dma.done [#allocation9], 128
    $region53: #{tpu_custom_call.1} parent=1 // pred_fallthru
      _
    // Predicated region
    $region54: #{tpu_custom_call.1} parent=1 // pred_check
      _
    $region55: #{tpu_custom_call.1} parent=1 // pred_check_branch
      %114 = sbr.rel (0) target = $region57
    $region56: #{tpu_custom_call.1} parent=1 // pred_region
      %115 = dma.done [#allocation12], 8192
    $region57: #{tpu_custom_call.1} parent=1 // pred_fallthru
      _
    // Predicated region
    $region58: #{tpu_custom_call.1} parent=1 // pred_check
      _
    $region59: #{tpu_custom_call.1} parent=1 // pred_check_branch
      %117 = sbr.rel (0) target = $region61
    $region60: #{tpu_custom_call.1} parent=1 // pred_region
      %118 = dma.done [#allocation12], 16
    $region61: #{tpu_custom_call.1} parent=1 // pred_fallthru
      _
    %v120 = vld [vmem:[#allocation2] sm:$0xff]
    %v121 = vld [vmem:[#allocation2 + $0x8] sm:$0xff]
    %v122 = vld [vmem:[#allocation2 + $0x10] sm:$0xff]
    %v123 = vld [vmem:[#allocation2 + $0x18] sm:$0xff]
    %v124 = vld [vmem:[#allocation2 + $0x20] sm:$0xff]
    %v125 = vld [vmem:[#allocation2 + $0x28] sm:$0xff]
    %v126 = vld [vmem:[#allocation2 + $0x30] sm:$0xff]
    %v127 = vld [vmem:[#allocation2 + $0x38] sm:$0xff]
    %v128 = vld [vmem:[#allocation2 + $0x40] sm:$0xff]
    %v129 = vld [vmem:[#allocation2 + $0x48] sm:$0xff]
    %v130 = vld [vmem:[#allocation2 + $0x50] sm:$0xff]
    %v131 = vld [vmem:[#allocation2 + $0x58] sm:$0xff]
    %v132 = vld [vmem:[#allocation2 + $0x60] sm:$0xff]
    %v133 = vld [vmem:[#allocation2 + $0x68] sm:$0xff]
    %v134 = vld [vmem:[#allocation2 + $0x70] sm:$0xff]
    %v135 = vld [vmem:[#allocation2 + $0x78] sm:$0xff]
    %v136 = vld [vmem:[%s1] sm:$0xf]
    %v137 = vld [vmem:[%s1 + $0x4] sm:$0xf]
    %v138 = vld [vmem:[%s1 + $0x8] sm:$0xf]
    %v139 = vld [vmem:[%s1 + $0xc] sm:$0xf]
    %v140 = vld [vmem:[%s1 + $0x10] sm:$0xf]
    %v141 = vld [vmem:[%s1 + $0x14] sm:$0xf]
    %v142 = vld [vmem:[%s1 + $0x18] sm:$0xf]
    %v143 = vld [vmem:[%s1 + $0x1c] sm:$0xf]
    %v144 = vld [vmem:[%s1 + $0x20] sm:$0xf]
    %v145 = vld [vmem:[%s1 + $0x24] sm:$0xf]
    %v146 = vld [vmem:[%s1 + $0x28] sm:$0xf]
    %v147 = vld [vmem:[%s1 + $0x2c] sm:$0xf]
    %v148 = vld [vmem:[%s1 + $0x30] sm:$0xf]
    %v149 = vld [vmem:[%s1 + $0x34] sm:$0xf]
    %v150 = vld [vmem:[%s1 + $0x38] sm:$0xf]
    %v151 = vld [vmem:[%s1 + $0x3c] sm:$0xf]
    %v152 = vld [vmem:[%s1 + $0x40] sm:$0xf]
    %v153 = vld [vmem:[%s1 + $0x44] sm:$0xf]
    %v154 = vld [vmem:[%s1 + $0x48] sm:$0xf]
    %v155 = vld [vmem:[%s1 + $0x4c] sm:$0xf]
    %v156 = vld [vmem:[%s1 + $0x50] sm:$0xf]
    %v157 = vld [vmem:[%s1 + $0x54] sm:$0xf]
    %v158 = vld [vmem:[%s1 + $0x58] sm:$0xf]
    %v159 = vld [vmem:[%s1 + $0x5c] sm:$0xf]
    %v160 = vld [vmem:[%s1 + $0x60] sm:$0x3]
    %v177 = vunpack.c.l.b16 %v120
    %v178 = vunpack.c.h.b16 %v120
    %v179 = vunpack.c.l.b16 %v121
    %v180 = vunpack.c.h.b16 %v121
    %v181 = vunpack.c.l.b16 %v122
    %v182 = vunpack.c.h.b16 %v122
    %v183 = vunpack.c.l.b16 %v123
    %v184 = vunpack.c.h.b16 %v123
    %v185 = vunpack.c.l.b16 %v124
    %v186 = vunpack.c.h.b16 %v124
    %v187 = vunpack.c.l.b16 %v125
    %v188 = vunpack.c.h.b16 %v125
    %v189 = vunpack.c.l.b16 %v126
    %v190 = vunpack.c.h.b16 %v126
    %v191 = vunpack.c.l.b16 %v127
    %v192 = vunpack.c.h.b16 %v127
    %v193 = vunpack.c.l.b16 %v128
    %v194 = vunpack.c.h.b16 %v128
    %v195 = vunpack.c.l.b16 %v129
    %v196 = vunpack.c.h.b16 %v129
    %v197 = vunpack.c.l.b16 %v130
    %v198 = vunpack.c.h.b16 %v130
    %v199 = vunpack.c.l.b16 %v131
    %v200 = vunpack.c.h.b16 %v131
    %v201 = vunpack.c.l.b16 %v132
    %v202 = vunpack.c.h.b16 %v132
    %v203 = vunpack.c.l.b16 %v133
    %v204 = vunpack.c.h.b16 %v133
    %v205 = vunpack.c.l.b16 %v134
    %v206 = vunpack.c.h.b16 %v134
    %v207 = vunpack.c.l.b16 %v135
    %v208 = vunpack.c.h.b16 %v135
    %v209 = vpack.c.b16 %v179, %v177
    %v210 = vpack.c.b16 %v180, %v178
    %v211 = vpack.c.b16 %v183, %v181
    %v212 = vpack.c.b16 %v184, %v182
    %v213 = vpack.c.b16 %v187, %v185
    %v214 = vpack.c.b16 %v188, %v186
    %v215 = vpack.c.b16 %v191, %v189
    %v216 = vpack.c.b16 %v192, %v190
    %v217 = vpack.c.b16 %v195, %v193
    %v218 = vpack.c.b16 %v196, %v194
    %v219 = vpack.c.b16 %v199, %v197
    %v220 = vpack.c.b16 %v200, %v198
    %v221 = vpack.c.b16 %v203, %v201
    %v222 = vpack.c.b16 %v204, %v202
    %v223 = vpack.c.b16 %v207, %v205
    %v224 = vpack.c.b16 %v208, %v206
    %v258 = vunpack.c.l.b16 %v136
    %v259 = vunpack.c.l.b16 %v137
    %v260 = vunpack.c.l.b16 %v138
    %v261 = vunpack.c.l.b16 %v139
    %v262 = vunpack.c.l.b16 %v140
    %v263 = vunpack.c.l.b16 %v141
    %v264 = vunpack.c.l.b16 %v142
    %v265 = vunpack.c.l.b16 %v143
    %v266 = vunpack.c.l.b16 %v144
    %v267 = vunpack.c.l.b16 %v145
    %v268 = vunpack.c.l.b16 %v146
    %v269 = vunpack.c.l.b16 %v147
    %v270 = vunpack.c.l.b16 %v148
    %v271 = vunpack.c.l.b16 %v149
    %v272 = vunpack.c.l.b16 %v150
    %v273 = vunpack.c.l.b16 %v151
    %v274 = vunpack.c.l.b16 %v152
    %v275 = vunpack.c.l.b16 %v153
    %v276 = vunpack.c.l.b16 %v154
    %v277 = vunpack.c.l.b16 %v155
    %v278 = vunpack.c.l.b16 %v156
    %v279 = vunpack.c.l.b16 %v157
    %v280 = vunpack.c.l.b16 %v158
    %v281 = vunpack.c.l.b16 %v159
    %v282 = vunpack.c.l.b16 %v160
    %v283 = vpack.c.b16 %v259, %v258
    %v284 = vpack.c.b16 %v261, %v260
    %v285 = vpack.c.b16 %v263, %v262
    %v286 = vpack.c.b16 %v265, %v264
    %v287 = vpack.c.b16 %v267, %v266
    %v288 = vpack.c.b16 %v269, %v268
    %v289 = vpack.c.b16 %v271, %v270
    %v290 = vpack.c.b16 %v273, %v272
    %v291 = vpack.c.b16 %v275, %v274
    %v292 = vpack.c.b16 %v277, %v276
    %v293 = vpack.c.b16 %v279, %v278
    %v294 = vpack.c.b16 %v281, %v280
    %v295 = vpack.c.b16 %v282, %v282
    %vm308 = vcmask 556032
    %v310 = vsel %vm308, %v210, 0
    %v313 = vsel %vm308, %v212, 0
    %v316 = vsel %vm308, %v214, 0
    %v319 = vsel %vm308, %v216, 0
    %v322 = vsel %vm308, %v218, 0
    %v325 = vsel %vm308, %v220, 0
    %v328 = vsel %vm308, %v222, 0
    %v331 = vsel %vm308, %v224, 0
    %vm333 = vcmask 1041408
    %v335 = vsel %vm333, %v295, 0
    %337 = vmatprep.subr.bf16.mxu0 0
    %338 = vmatpush1.bf16.msra.mxu0 %v283
    %339 = vmatprep.subr.bf16.mxu0 0
    %340 = vmatpush1.bf16.msra.mxu0 %v284
    %341 = vmatprep.subr.bf16.mxu0 0
    %342 = vmatpush1.bf16.msra.mxu0 %v285
    %343 = vmatprep.subr.bf16.mxu0 0
    %344 = vmatpush1.bf16.msra.mxu0 %v286
    %345 = vmatprep.subr.bf16.mxu0 0
    %346 = vmatpush1.bf16.msra.mxu0 %v287
    %347 = vmatprep.subr.bf16.mxu0 0
    %348 = vmatpush1.bf16.msra.mxu0 %v288
    %349 = vmatprep.subr.bf16.mxu0 0
    %350 = vmatpush1.bf16.msra.mxu0 %v289
    %351 = vmatprep.subr.bf16.mxu0 0
    %352 = vmatpush1.bf16.msra.mxu0 %v290
    %353 = vmatprep.subr.bf16.mxu0 0
    %354 = vmatpush1.bf16.msra.mxu0 %v291
    %355 = vmatprep.subr.bf16.mxu0 0
    %356 = vmatpush1.bf16.msra.mxu0 %v292
    %357 = vmatprep.subr.bf16.mxu0 0
    %358 = vmatpush1.bf16.msra.mxu0 %v293
    %359 = vmatprep.subr.bf16.mxu0 0
    %360 = vmatpush1.bf16.msra.mxu0 %v294
    %361 = vmatprep.subr.bf16.mxu0 0
    %362 = vmatpush1.bf16.msra.mxu0 %v335
    %363 = vmatprep.subr.bf16.mxu0 0
    %364 = vmatpush1.bf16.msra.mxu0 0
    %365 = vmatprep.subr.bf16.mxu0 0
    %366 = vmatpush1.bf16.msra.mxu0 0
    %367 = vmatprep.subr.bf16.mxu0 0
    %368 = vmatpush1.bf16.msra.mxu0 0
    %369 = vmatprep.mubr.bf16.mxu0 %v310
    %370 = vmatmul.mubr.bf16.gmra.mrb[0].mxu0 %v209
    %v371 = vpop.f32.mrb[0].mxu0
    %v372 = vadd.f32 0.0, %v371
    %v373 = vpop.f32.mrb[0].mxu0
    %v374 = vpop.f32.mrb[0].mxu0
    %v375 = vadd.f32 0.0, %v374
    %v376 = vpop.f32.mrb[0].mxu0
    %377 = vmatprep.mubr.bf16.mxu0 %v313
    %378 = vmatmul.mubr.bf16.gmra.mrb[0].mxu0 %v211
    %v379 = vpop.f32.mrb[0].mxu0
    %v380 = vadd.f32 0.0, %v379
    %v381 = vpop.f32.mrb[0].mxu0
    %v382 = vpop.f32.mrb[0].mxu0
    %v383 = vadd.f32 0.0, %v382
    %v384 = vpop.f32.mrb[0].mxu0
    %385 = vmatprep.mubr.bf16.mxu0 %v316
    %386 = vmatmul.mubr.bf16.gmra.mrb[0].mxu0 %v213
    %v387 = vpop.f32.mrb[0].mxu0
    %v388 = vadd.f32 0.0, %v387
    %v389 = vpop.f32.mrb[0].mxu0
    %v390 = vpop.f32.mrb[0].mxu0
    %v391 = vadd.f32 0.0, %v390
    %v392 = vpop.f32.mrb[0].mxu0
    %393 = vmatprep.mubr.bf16.mxu0 %v319
    %394 = vmatmul.mubr.bf16.gmra.mrb[0].mxu0 %v215
    %v395 = vpop.f32.mrb[0].mxu0
    %v396 = vadd.f32 0.0, %v395
    %v397 = vpop.f32.mrb[0].mxu0
    %v398 = vpop.f32.mrb[0].mxu0
    %v399 = vadd.f32 0.0, %v398
    %v400 = vpop.f32.mrb[0].mxu0
    %401 = vmatprep.mubr.bf16.mxu0 %v322
    %402 = vmatmul.mubr.bf16.gmra.mrb[0].mxu0 %v217
    %v403 = vpop.f32.mrb[0].mxu0
    %v404 = vadd.f32 0.0, %v403
    %v405 = vpop.f32.mrb[0].mxu0
    %v406 = vpop.f32.mrb[0].mxu0
    %v407 = vadd.f32 0.0, %v406
    %v408 = vpop.f32.mrb[0].mxu0
    %409 = vmatprep.mubr.bf16.mxu0 %v325
    %410 = vmatmul.mubr.bf16.gmra.mrb[0].mxu0 %v219
    %v411 = vpop.f32.mrb[0].mxu0
    %v412 = vadd.f32 0.0, %v411
    %v413 = vpop.f32.mrb[0].mxu0
    %v414 = vpop.f32.mrb[0].mxu0
    %v415 = vadd.f32 0.0, %v414
    %v416 = vpop.f32.mrb[0].mxu0
    %417 = vmatprep.mubr.bf16.mxu0 %v328
    %418 = vmatmul.mubr.bf16.gmra.mrb[0].mxu0 %v221
    %v419 = vpop.f32.mrb[0].mxu0
    %v420 = vadd.f32 0.0, %v419
    %v421 = vpop.f32.mrb[0].mxu0
    %v422 = vpop.f32.mrb[0].mxu0
    %v423 = vadd.f32 0.0, %v422
    %v424 = vpop.f32.mrb[0].mxu0
    %425 = vmatprep.mubr.bf16.mxu0 %v331
    %426 = vmatmul.mubr.bf16.gmra.mrb[0].mxu0 %v223
    %v427 = vpop.f32.mrb[0].mxu0
    %v428 = vadd.f32 0.0, %v427
    %v429 = vpop.f32.mrb[0].mxu0
    %v430 = vpop.f32.mrb[0].mxu0
    %v431 = vadd.f32 0.0, %v430
    %v432 = vpop.f32.mrb[0].mxu0
    %433 = vdwg.mxu0
    %434 = vxpose.xlu0.b32.start [1/16] %v372, 128
    %435 = vxpose.xlu0.b32.cont [2/16] %v375, 128
    %436 = vxpose.xlu0.b32.cont [3/16] 0.0, 128
    %437 = vxpose.xlu0.b32.cont [4/16] 0.0, 128
    %438 = vxpose.xlu0.b32.cont [5/16] 0.0, 128
    %439 = vxpose.xlu0.b32.cont [6/16] 0.0, 128
    %440 = vxpose.xlu0.b32.cont [7/16] 0.0, 128
    %441 = vxpose.xlu0.b32.cont [8/16] 0.0, 128
    %442 = vxpose.xlu0.b32.cont [9/16] 0.0, 128
    %443 = vxpose.xlu0.b32.cont [10/16] 0.0, 128
    %444 = vxpose.xlu0.b32.cont [11/16] 0.0, 128
    %445 = vxpose.xlu0.b32.cont [12/16] 0.0, 128
    %446 = vxpose.xlu0.b32.cont [13/16] 0.0, 128
    %447 = vxpose.xlu0.b32.cont [14/16] 0.0, 128
    %448 = vxpose.xlu0.b32.cont [15/16] 0.0, 128
    %449 = vxpose.xlu0.b32.end [16/16] 0.0, 128
    %v450 = vpop.trf.xlu0
    %v451 = vpop.trf.xlu0
    %v452 = vpop.trf.xlu0
    %v453 = vpop.trf.xlu0
    %v454 = vpop.trf.xlu0
    %v455 = vpop.trf.xlu0
    %v456 = vpop.trf.xlu0
    %v457 = vpop.trf.xlu0
    %v458 = vpop.trf.xlu0
    %v459 = vpop.trf.xlu0
    %v460 = vpop.trf.xlu0
    %v461 = vpop.trf.xlu0
    %v462 = vpop.trf.xlu0
    %v463 = vpop.trf.xlu0
    %v464 = vpop.trf.xlu0
    %v465 = vpop.trf.xlu0
    %466 = vxpose.xlu0.b32.start [1/16] %v380, 128
    %467 = vxpose.xlu0.b32.cont [2/16] %v383, 128
    %468 = vxpose.xlu0.b32.cont [3/16] 0.0, 128
    %469 = vxpose.xlu0.b32.cont [4/16] 0.0, 128
    %470 = vxpose.xlu0.b32.cont [5/16] 0.0, 128
    %471 = vxpose.xlu0.b32.cont [6/16] 0.0, 128
    %472 = vxpose.xlu0.b32.cont [7/16] 0.0, 128
    %473 = vxpose.xlu0.b32.cont [8/16] 0.0, 128
    %474 = vxpose.xlu0.b32.cont [9/16] 0.0, 128
    %475 = vxpose.xlu0.b32.cont [10/16] 0.0, 128
    %476 = vxpose.xlu0.b32.cont [11/16] 0.0, 128
    %477 = vxpose.xlu0.b32.cont [12/16] 0.0, 128
    %478 = vxpose.xlu0.b32.cont [13/16] 0.0, 128
    %479 = vxpose.xlu0.b32.cont [14/16] 0.0, 128
    %480 = vxpose.xlu0.b32.cont [15/16] 0.0, 128
    %481 = vxpose.xlu0.b32.end [16/16] 0.0, 128
    %v482 = vpop.trf.xlu0
    %v483 = vpop.trf.xlu0
    %v484 = vpop.trf.xlu0
    %v485 = vpop.trf.xlu0
    %v486 = vpop.trf.xlu0
    %v487 = vpop.trf.xlu0
    %v488 = vpop.trf.xlu0
    %v489 = vpop.trf.xlu0
    %v490 = vpop.trf.xlu0
    %v491 = vpop.trf.xlu0
    %v492 = vpop.trf.xlu0
    %v493 = vpop.trf.xlu0
    %v494 = vpop.trf.xlu0
    %v495 = vpop.trf.xlu0
    %v496 = vpop.trf.xlu0
    %v497 = vpop.trf.xlu0
    %498 = vxpose.xlu0.b32.start [1/16] %v388, 128
    %499 = vxpose.xlu0.b32.cont [2/16] %v391, 128
    %500 = vxpose.xlu0.b32.cont [3/16] 0.0, 128
    %501 = vxpose.xlu0.b32.cont [4/16] 0.0, 128
    %502 = vxpose.xlu0.b32.cont [5/16] 0.0, 128
    %503 = vxpose.xlu0.b32.cont [6/16] 0.0, 128
    %504 = vxpose.xlu0.b32.cont [7/16] 0.0, 128
    %505 = vxpose.xlu0.b32.cont [8/16] 0.0, 128
    %506 = vxpose.xlu0.b32.cont [9/16] 0.0, 128
    %507 = vxpose.xlu0.b32.cont [10/16] 0.0, 128
    %508 = vxpose.xlu0.b32.cont [11/16] 0.0, 128
    %509 = vxpose.xlu0.b32.cont [12/16] 0.0, 128
    %510 = vxpose.xlu0.b32.cont [13/16] 0.0, 128
    %511 = vxpose.xlu0.b32.cont [14/16] 0.0, 128
    %512 = vxpose.xlu0.b32.cont [15/16] 0.0, 128
    %513 = vxpose.xlu0.b32.end [16/16] 0.0, 128
    %v514 = vpop.trf.xlu0
    %v515 = vpop.trf.xlu0
    %v516 = vpop.trf.xlu0
    %v517 = vpop.trf.xlu0
    %v518 = vpop.trf.xlu0
    %v519 = vpop.trf.xlu0
    %v520 = vpop.trf.xlu0
    %v521 = vpop.trf.xlu0
    %v522 = vpop.trf.xlu0
    %v523 = vpop.trf.xlu0
    %v524 = vpop.trf.xlu0
    %v525 = vpop.trf.xlu0
    %v526 = vpop.trf.xlu0
    %v527 = vpop.trf.xlu0
    %v528 = vpop.trf.xlu0
    %v529 = vpop.trf.xlu0
    %530 = vxpose.xlu0.b32.start [1/16] %v396, 128
    %531 = vxpose.xlu0.b32.cont [2/16] %v399, 128
    %532 = vxpose.xlu0.b32.cont [3/16] 0.0, 128
    %533 = vxpose.xlu0.b32.cont [4/16] 0.0, 128
    %534 = vxpose.xlu0.b32.cont [5/16] 0.0, 128
    %535 = vxpose.xlu0.b32.cont [6/16] 0.0, 128
    %536 = vxpose.xlu0.b32.cont [7/16] 0.0, 128
    %537 = vxpose.xlu0.b32.cont [8/16] 0.0, 128
    %538 = vxpose.xlu0.b32.cont [9/16] 0.0, 128
    %539 = vxpose.xlu0.b32.cont [10/16] 0.0, 128
    %540 = vxpose.xlu0.b32.cont [11/16] 0.0, 128
    %541 = vxpose.xlu0.b32.cont [12/16] 0.0, 128
    %542 = vxpose.xlu0.b32.cont [13/16] 0.0, 128
    %543 = vxpose.xlu0.b32.cont [14/16] 0.0, 128
    %544 = vxpose.xlu0.b32.cont [15/16] 0.0, 128
    %545 = vxpose.xlu0.b32.end [16/16] 0.0, 128
    %v546 = vpop.trf.xlu0
    %v547 = vpop.trf.xlu0
    %v548 = vpop.trf.xlu0
    %v549 = vpop.trf.xlu0
    %v550 = vpop.trf.xlu0
    %v551 = vpop.trf.xlu0
    %v552 = vpop.trf.xlu0
    %v553 = vpop.trf.xlu0
    %v554 = vpop.trf.xlu0
    %v555 = vpop.trf.xlu0
    %v556 = vpop.trf.xlu0
    %v557 = vpop.trf.xlu0
    %v558 = vpop.trf.xlu0
    %v559 = vpop.trf.xlu0
    %v560 = vpop.trf.xlu0
    %v561 = vpop.trf.xlu0
    %562 = vxpose.xlu0.b32.start [1/16] %v404, 128
    %563 = vxpose.xlu0.b32.cont [2/16] %v407, 128
    %564 = vxpose.xlu0.b32.cont [3/16] 0.0, 128
    %565 = vxpose.xlu0.b32.cont [4/16] 0.0, 128
    %566 = vxpose.xlu0.b32.cont [5/16] 0.0, 128
    %567 = vxpose.xlu0.b32.cont [6/16] 0.0, 128
    %568 = vxpose.xlu0.b32.cont [7/16] 0.0, 128
    %569 = vxpose.xlu0.b32.cont [8/16] 0.0, 128
    %570 = vxpose.xlu0.b32.cont [9/16] 0.0, 128
    %571 = vxpose.xlu0.b32.cont [10/16] 0.0, 128
    %572 = vxpose.xlu0.b32.cont [11/16] 0.0, 128
    %573 = vxpose.xlu0.b32.cont [12/16] 0.0, 128
    %574 = vxpose.xlu0.b32.cont [13/16] 0.0, 128
    %575 = vxpose.xlu0.b32.cont [14/16] 0.0, 128
    %576 = vxpose.xlu0.b32.cont [15/16] 0.0, 128
    %577 = vxpose.xlu0.b32.end [16/16] 0.0, 128
    %v578 = vpop.trf.xlu0
    %v579 = vpop.trf.xlu0
    %v580 = vpop.trf.xlu0
    %v581 = vpop.trf.xlu0
    %v582 = vpop.trf.xlu0
    %v583 = vpop.trf.xlu0
    %v584 = vpop.trf.xlu0
    %v585 = vpop.trf.xlu0
    %v586 = vpop.trf.xlu0
    %v587 = vpop.trf.xlu0
    %v588 = vpop.trf.xlu0
    %v589 = vpop.trf.xlu0
    %v590 = vpop.trf.xlu0
    %v591 = vpop.trf.xlu0
    %v592 = vpop.trf.xlu0
    %v593 = vpop.trf.xlu0
    %594 = vxpose.xlu0.b32.start [1/16] %v412, 128
    %595 = vxpose.xlu0.b32.cont [2/16] %v415, 128
    %596 = vxpose.xlu0.b32.cont [3/16] 0.0, 128
    %597 = vxpose.xlu0.b32.cont [4/16] 0.0, 128
    %598 = vxpose.xlu0.b32.cont [5/16] 0.0, 128
    %599 = vxpose.xlu0.b32.cont [6/16] 0.0, 128
    %600 = vxpose.xlu0.b32.cont [7/16] 0.0, 128
    %601 = vxpose.xlu0.b32.cont [8/16] 0.0, 128
    %602 = vxpose.xlu0.b32.cont [9/16] 0.0, 128
    %603 = vxpose.xlu0.b32.cont [10/16] 0.0, 128
    %604 = vxpose.xlu0.b32.cont [11/16] 0.0, 128
    %605 = vxpose.xlu0.b32.cont [12/16] 0.0, 128
    %606 = vxpose.xlu0.b32.cont [13/16] 0.0, 128
    %607 = vxpose.xlu0.b32.cont [14/16] 0.0, 128
    %608 = vxpose.xlu0.b32.cont [15/16] 0.0, 128
    %609 = vxpose.xlu0.b32.end [16/16] 0.0, 128
    %v610 = vpop.trf.xlu0
    %v611 = vpop.trf.xlu0
    %v612 = vpop.trf.xlu0
    %v613 = vpop.trf.xlu0
    %v614 = vpop.trf.xlu0
    %v615 = vpop.trf.xlu0
    %v616 = vpop.trf.xlu0
    %v617 = vpop.trf.xlu0
    %v618 = vpop.trf.xlu0
    %v619 = vpop.trf.xlu0
    %v620 = vpop.trf.xlu0
    %v621 = vpop.trf.xlu0
    %v622 = vpop.trf.xlu0
    %v623 = vpop.trf.xlu0
    %v624 = vpop.trf.xlu0
    %v625 = vpop.trf.xlu0
    %626 = vxpose.xlu0.b32.start [1/16] %v420, 128
    %627 = vxpose.xlu0.b32.cont [2/16] %v423, 128
    %628 = vxpose.xlu0.b32.cont [3/16] 0.0, 128
    %629 = vxpose.xlu0.b32.cont [4/16] 0.0, 128
    %630 = vxpose.xlu0.b32.cont [5/16] 0.0, 128
    %631 = vxpose.xlu0.b32.cont [6/16] 0.0, 128
    %632 = vxpose.xlu0.b32.cont [7/16] 0.0, 128
    %633 = vxpose.xlu0.b32.cont [8/16] 0.0, 128
    %634 = vxpose.xlu0.b32.cont [9/16] 0.0, 128
    %635 = vxpose.xlu0.b32.cont [10/16] 0.0, 128
    %636 = vxpose.xlu0.b32.cont [11/16] 0.0, 128
    %637 = vxpose.xlu0.b32.cont [12/16] 0.0, 128
    %638 = vxpose.xlu0.b32.cont [13/16] 0.0, 128
    %639 = vxpose.xlu0.b32.cont [14/16] 0.0, 128
    %640 = vxpose.xlu0.b32.cont [15/16] 0.0, 128
    %641 = vxpose.xlu0.b32.end [16/16] 0.0, 128
    %v642 = vpop.trf.xlu0
    %v643 = vpop.trf.xlu0
    %v644 = vpop.trf.xlu0
    %v645 = vpop.trf.xlu0
    %v646 = vpop.trf.xlu0
    %v647 = vpop.trf.xlu0
    %v648 = vpop.trf.xlu0
    %v649 = vpop.trf.xlu0
    %v650 = vpop.trf.xlu0
    %v651 = vpop.trf.xlu0
    %v652 = vpop.trf.xlu0
    %v653 = vpop.trf.xlu0
    %v654 = vpop.trf.xlu0
    %v655 = vpop.trf.xlu0
    %v656 = vpop.trf.xlu0
    %v657 = vpop.trf.xlu0
    %658 = vxpose.xlu0.b32.start [1/16] %v428, 128
    %659 = vxpose.xlu0.b32.cont [2/16] %v431, 128
    %660 = vxpose.xlu0.b32.cont [3/16] 0.0, 128
    %661 = vxpose.xlu0.b32.cont [4/16] 0.0, 128
    %662 = vxpose.xlu0.b32.cont [5/16] 0.0, 128
    %663 = vxpose.xlu0.b32.cont [6/16] 0.0, 128
    %664 = vxpose.xlu0.b32.cont [7/16] 0.0, 128
    %665 = vxpose.xlu0.b32.cont [8/16] 0.0, 128
    %666 = vxpose.xlu0.b32.cont [9/16] 0.0, 128
    %667 = vxpose.xlu0.b32.cont [10/16] 0.0, 128
    %668 = vxpose.xlu0.b32.cont [11/16] 0.0, 128
    %669 = vxpose.xlu0.b32.cont [12/16] 0.0, 128
    %670 = vxpose.xlu0.b32.cont [13/16] 0.0, 128
    %671 = vxpose.xlu0.b32.cont [14/16] 0.0, 128
    %672 = vxpose.xlu0.b32.cont [15/16] 0.0, 128
    %673 = vxpose.xlu0.b32.end [16/16] 0.0, 128
    %v674 = vpop.trf.xlu0
    %v675 = vpop.trf.xlu0
    %v676 = vpop.trf.xlu0
    %v677 = vpop.trf.xlu0
    %v678 = vpop.trf.xlu0
    %v679 = vpop.trf.xlu0
    %v680 = vpop.trf.xlu0
    %v681 = vpop.trf.xlu0
    %v682 = vpop.trf.xlu0
    %v683 = vpop.trf.xlu0
    %v684 = vpop.trf.xlu0
    %v685 = vpop.trf.xlu0
    %v686 = vpop.trf.xlu0
    %v687 = vpop.trf.xlu0
    %v688 = vpop.trf.xlu0
    %v689 = vpop.trf.xlu0
    %v690 = vld [vmem:[#allocation5] sm:$0xff]
    %v691 = vld [vmem:[#allocation5 + $0x8] sm:$0xff]
    %v692 = vld [vmem:[#allocation7] sm:$0x1]
    %v694 = vlaneseq
    %v695 = vshrl.u32 %v694, 7
    %v696 = vsub.s32 0, %v695
    %v697 = vrot.slane %v692, %v696
    %vm699 = vcmask 130048
    %v701 = vsel %vm699, %v450, 0
    %v704 = vsel %vm699, %v451, 0
    %v707 = vsel %vm699, %v482, 0
    %v710 = vsel %vm699, %v483, 0
    %v713 = vsel %vm699, %v514, 0
    %v716 = vsel %vm699, %v515, 0
    %v719 = vsel %vm699, %v546, 0
    %v722 = vsel %vm699, %v547, 0
    %v725 = vsel %vm699, %v578, 0
    %v728 = vsel %vm699, %v579, 0
    %v731 = vsel %vm699, %v610, 0
    %v734 = vsel %vm699, %v611, 0
    %v737 = vsel %vm699, %v642, 0
    %v740 = vsel %vm699, %v643, 0
    %v743 = vsel %vm699, %v674, 0
    %v746 = vsel %vm699, %v675, 0
    %748 = vmatprep.subr.mxu0 0.0
    %749 = vmatpush1.msra.mxu0 %v690
    %750 = vmatprep.subr.mxu0 0.0
    %751 = vmatpush1.msra.mxu0 %v691
    %752 = vmatprep.subr.mxu0 0.0
    %753 = vmatpush1.msra.mxu0 0.0
    %754 = vmatprep.subr.mxu0 0.0
    %755 = vmatpush1.msra.mxu0 0.0
    %756 = vmatprep.subr.mxu0 0.0
    %757 = vmatpush1.msra.mxu0 0.0
    %758 = vmatprep.subr.mxu0 0.0
    %759 = vmatpush1.msra.mxu0 0.0
    %760 = vmatprep.subr.mxu0 0.0
    %761 = vmatpush1.msra.mxu0 0.0
    %762 = vmatprep.subr.mxu0 0.0
    %763 = vmatpush1.msra.mxu0 0.0
    %764 = vmatprep.subr.mxu0 0.0
    %765 = vmatpush1.msra.mxu0 0.0
    %766 = vmatprep.subr.mxu0 0.0
    %767 = vmatpush1.msra.mxu0 0.0
    %768 = vmatprep.subr.mxu0 0.0
    %769 = vmatpush1.msra.mxu0 0.0
    %770 = vmatprep.subr.mxu0 0.0
    %771 = vmatpush1.msra.mxu0 0.0
    %772 = vmatprep.subr.mxu0 0.0
    %773 = vmatpush1.msra.mxu0 0.0
    %774 = vmatprep.subr.mxu0 0.0
    %775 = vmatpush1.msra.mxu0 0.0
    %776 = vmatprep.subr.mxu0 0.0
    %777 = vmatpush1.msra.mxu0 0.0
    %778 = vmatprep.subr.mxu0 0.0
    %779 = vmatpush1.msra.mxu0 0.0
    %780 = vmatprep.subr.mxu0 0.0
    %781 = vmatpush1.msra.mxu0 0.0
    %782 = vmatprep.subr.mxu0 0.0
    %783 = vmatpush1.msra.mxu0 0.0
    %784 = vmatprep.subr.mxu0 0.0
    %785 = vmatpush1.msra.mxu0 0.0
    %786 = vmatprep.subr.mxu0 0.0
    %787 = vmatpush1.msra.mxu0 0.0
    %788 = vmatprep.subr.mxu0 0.0
    %789 = vmatpush1.msra.mxu0 0.0
    %790 = vmatprep.subr.mxu0 0.0
    %791 = vmatpush1.msra.mxu0 0.0
    %792 = vmatprep.subr.mxu0 0.0
    %793 = vmatpush1.msra.mxu0 0.0
    %794 = vmatprep.subr.mxu0 0.0
    %795 = vmatpush1.msra.mxu0 0.0
    %796 = vmatprep.subr.mxu0 0.0
    %797 = vmatpush1.msra.mxu0 0.0
    %798 = vmatprep.subr.mxu0 0.0
    %799 = vmatpush1.msra.mxu0 0.0
    %800 = vmatprep.subr.mxu0 0.0
    %801 = vmatpush1.msra.mxu0 0.0
    %802 = vmatprep.subr.mxu0 0.0
    %803 = vmatpush1.msra.mxu0 0.0
    %804 = vmatprep.subr.mxu0 0.0
    %805 = vmatpush1.msra.mxu0 0.0
    %806 = vmatprep.subr.mxu0 0.0
    %807 = vmatpush1.msra.mxu0 0.0
    %808 = vmatprep.subr.mxu0 0.0
    %809 = vmatpush1.msra.mxu0 0.0
    %810 = vmatprep.subr.mxu0 0.0
    %811 = vmatpush1.msra.mxu0 0.0
    %812 = vmatprep.mubr.f32.mxu0 0.0
    %813 = vmatmul.mubr.f32.gmra.mrb[0].mxu0 %v701
    %v814 = vpop.f32.mrb[0].mxu0
    %v815 = vadd.f32 %v697, %v814
    %v816 = vpop.f32.mrb[0].mxu0
    %817 = vmatprep.mubr.f32.mxu0 0.0
    %818 = vmatmul.mubr.f32.gmra.mrb[0].mxu0 %v704
    %v819 = vpop.f32.mrb[0].mxu0
    %v820 = vadd.f32 %v697, %v819
    %v821 = vpop.f32.mrb[0].mxu0
    %822 = vmatprep.mubr.f32.mxu0 0.0
    %823 = vmatmul.mubr.f32.gmra.mrb[0].mxu0 %v707
    %v824 = vpop.f32.mrb[0].mxu0
    %v825 = vadd.f32 %v697, %v824
    %v826 = vpop.f32.mrb[0].mxu0
    %827 = vmatprep.mubr.f32.mxu0 0.0
    %828 = vmatmul.mubr.f32.gmra.mrb[0].mxu0 %v710
    %v829 = vpop.f32.mrb[0].mxu0
    %v830 = vadd.f32 %v697, %v829
    %v831 = vpop.f32.mrb[0].mxu0
    %832 = vmatprep.mubr.f32.mxu0 0.0
    %833 = vmatmul.mubr.f32.gmra.mrb[0].mxu0 %v713
    %v834 = vpop.f32.mrb[0].mxu0
    %v835 = vadd.f32 %v697, %v834
    %v836 = vpop.f32.mrb[0].mxu0
    %837 = vmatprep.mubr.f32.mxu0 0.0
    %838 = vmatmul.mubr.f32.gmra.mrb[0].mxu0 %v716
    %v839 = vpop.f32.mrb[0].mxu0
    %v840 = vadd.f32 %v697, %v839
    %v841 = vpop.f32.mrb[0].mxu0
    %842 = vmatprep.mubr.f32.mxu0 0.0
    %843 = vmatmul.mubr.f32.gmra.mrb[0].mxu0 %v719
    %v844 = vpop.f32.mrb[0].mxu0
    %v845 = vadd.f32 %v697, %v844
    %v846 = vpop.f32.mrb[0].mxu0
    %847 = vmatprep.mubr.f32.mxu0 0.0
    %848 = vmatmul.mubr.f32.gmra.mrb[0].mxu0 %v722
    %v849 = vpop.f32.mrb[0].mxu0
    %v850 = vadd.f32 %v697, %v849
    %v851 = vpop.f32.mrb[0].mxu0
    %852 = vmatprep.mubr.f32.mxu0 0.0
    %853 = vmatmul.mubr.f32.gmra.mrb[0].mxu0 %v725
    %v854 = vpop.f32.mrb[0].mxu0
    %v855 = vadd.f32 %v697, %v854
    %v856 = vpop.f32.mrb[0].mxu0
    %857 = vmatprep.mubr.f32.mxu0 0.0
    %858 = vmatmul.mubr.f32.gmra.mrb[0].mxu0 %v728
    %v859 = vpop.f32.mrb[0].mxu0
    %v860 = vadd.f32 %v697, %v859
    %v861 = vpop.f32.mrb[0].mxu0
    %862 = vmatprep.mubr.f32.mxu0 0.0
    %863 = vmatmul.mubr.f32.gmra.mrb[0].mxu0 %v731
    %v864 = vpop.f32.mrb[0].mxu0
    %v865 = vadd.f32 %v697, %v864
    %v866 = vpop.f32.mrb[0].mxu0
    %867 = vmatprep.mubr.f32.mxu0 0.0
    %868 = vmatmul.mubr.f32.gmra.mrb[0].mxu0 %v734
    %v869 = vpop.f32.mrb[0].mxu0
    %v870 = vadd.f32 %v697, %v869
    %v871 = vpop.f32.mrb[0].mxu0
    %872 = vmatprep.mubr.f32.mxu0 0.0
    %873 = vmatmul.mubr.f32.gmra.mrb[0].mxu0 %v737
    %v874 = vpop.f32.mrb[0].mxu0
    %v875 = vadd.f32 %v697, %v874
    %v876 = vpop.f32.mrb[0].mxu0
    %877 = vmatprep.mubr.f32.mxu0 0.0
    %878 = vmatmul.mubr.f32.gmra.mrb[0].mxu0 %v740
    %v879 = vpop.f32.mrb[0].mxu0
    %v880 = vadd.f32 %v697, %v879
    %v881 = vpop.f32.mrb[0].mxu0
    %882 = vmatprep.mubr.f32.mxu0 0.0
    %883 = vmatmul.mubr.f32.gmra.mrb[0].mxu0 %v743
    %v884 = vpop.f32.mrb[0].mxu0
    %v885 = vadd.f32 %v697, %v884
    %v886 = vpop.f32.mrb[0].mxu0
    %887 = vmatprep.mubr.f32.mxu0 0.0
    %888 = vmatmul.mubr.f32.gmra.mrb[0].mxu0 %v746
    %v889 = vpop.f32.mrb[0].mxu0
    %v890 = vadd.f32 %v697, %v889
    %v891 = vpop.f32.mrb[0].mxu0
    %892 = vdwg.mxu0
    %v893 = vmax.f32 %v815, 0.0
    %v894 = vmax.f32 %v820, 0.0
    %v895 = vmax.f32 %v825, 0.0
    %v896 = vmax.f32 %v830, 0.0
    %v897 = vmax.f32 %v835, 0.0
    %v898 = vmax.f32 %v840, 0.0
    %v899 = vmax.f32 %v845, 0.0
    %v900 = vmax.f32 %v850, 0.0
    %v901 = vmax.f32 %v855, 0.0
    %v902 = vmax.f32 %v860, 0.0
    %v903 = vmax.f32 %v865, 0.0
    %v904 = vmax.f32 %v870, 0.0
    %v905 = vmax.f32 %v875, 0.0
    %v906 = vmax.f32 %v880, 0.0
    %v907 = vmax.f32 %v885, 0.0
    %v908 = vmax.f32 %v890, 0.0
    %v925 = vcombine.low %v893, %v895
    %v926 = vcombine.high %v893, %v895
    %v927 = vcombine.low %v897, %v899
    %v928 = vcombine.high %v897, %v899
    %v929 = vcombine.low %v901, %v903
    %v930 = vcombine.high %v901, %v903
    %v931 = vcombine.low %v905, %v907
    %v932 = vcombine.high %v905, %v907
    %v934 = vunpack.c.l.s4 1966171168
    %v935 = vunpack.c.0.s8 %v934
    %v936 = vlaneseq
    %v937 = vshrl.u32 %v936, 7
    %v938 = vsub.s32 %v935, %v937
    %v939 = vrot.slane %v925, %v938
    %v941 = vunpack.c.l.s4 1966171168
    %v942 = vunpack.c.0.s8 %v941
    %v943 = vlaneseq
    %v944 = vshrl.u32 %v943, 7
    %v945 = vsub.s32 %v942, %v944
    %v946 = vrot.slane %v926, %v945
    %v948 = vunpack.c.l.s4 1966171168
    %v949 = vunpack.c.0.s8 %v948
    %v950 = vlaneseq
    %v951 = vshrl.u32 %v950, 7
    %v952 = vsub.s32 %v949, %v951
    %v953 = vrot.slane %v927, %v952
    %v955 = vunpack.c.l.s4 1966171168
    %v956 = vunpack.c.0.s8 %v955
    %v957 = vlaneseq
    %v958 = vshrl.u32 %v957, 7
    %v959 = vsub.s32 %v956, %v958
    %v960 = vrot.slane %v928, %v959
    %v962 = vunpack.c.l.s4 1966171168
    %v963 = vunpack.c.0.s8 %v962
    %v964 = vlaneseq
    %v965 = vshrl.u32 %v964, 7
    %v966 = vsub.s32 %v963, %v965
    %v967 = vrot.slane %v929, %v966
    %v969 = vunpack.c.l.s4 1966171168
    %v970 = vunpack.c.0.s8 %v969
    %v971 = vlaneseq
    %v972 = vshrl.u32 %v971, 7
    %v973 = vsub.s32 %v970, %v972
    %v974 = vrot.slane %v930, %v973
    %v976 = vunpack.c.l.s4 1966171168
    %v977 = vunpack.c.0.s8 %v976
    %v978 = vlaneseq
    %v979 = vshrl.u32 %v978, 7
    %v980 = vsub.s32 %v977, %v979
    %v981 = vrot.slane %v931, %v980
    %v983 = vunpack.c.l.s4 1966171168
    %v984 = vunpack.c.0.s8 %v983
    %v985 = vlaneseq
    %v986 = vshrl.u32 %v985, 7
    %v987 = vsub.s32 %v984, %v986
    %v988 = vrot.slane %v932, %v987
    %v989 = vcombine.low %v939, %v953
    %v990 = vcombine.high %v939, %v953
    %v991 = vcombine.low %v946, %v960
    %v992 = vcombine.high %v946, %v960
    %v993 = vcombine.low %v967, %v981
    %v994 = vcombine.high %v967, %v981
    %v995 = vcombine.low %v974, %v988
    %v996 = vcombine.high %v974, %v988
    %v998 = vunpack.c.l.s4 1966171168
    %v999 = vunpack.c.0.s8 %v998
    %v1000 = vlaneseq
    %v1001 = vshrl.u32 %v1000, 7
    %v1002 = vsub.s32 %v999, %v1001
    %v1003 = vrot.slane %v989, %v1002
    %v1005 = vunpack.c.l.s4 1966171168
    %v1006 = vunpack.c.0.s8 %v1005
    %v1007 = vlaneseq
    %v1008 = vshrl.u32 %v1007, 7
    %v1009 = vsub.s32 %v1006, %v1008
    %v1010 = vrot.slane %v991, %v1009
    %v1012 = vunpack.c.l.s4 1966171168
    %v1013 = vunpack.c.0.s8 %v1012
    %v1014 = vlaneseq
    %v1015 = vshrl.u32 %v1014, 7
    %v1016 = vsub.s32 %v1013, %v1015
    %v1017 = vrot.slane %v990, %v1016
    %v1019 = vunpack.c.l.s4 1966171168
    %v1020 = vunpack.c.0.s8 %v1019
    %v1021 = vlaneseq
    %v1022 = vshrl.u32 %v1021, 7
    %v1023 = vsub.s32 %v1020, %v1022
    %v1024 = vrot.slane %v992, %v1023
    %v1026 = vunpack.c.l.s4 1966171168
    %v1027 = vunpack.c.0.s8 %v1026
    %v1028 = vlaneseq
    %v1029 = vshrl.u32 %v1028, 7
    %v1030 = vsub.s32 %v1027, %v1029
    %v1031 = vrot.slane %v993, %v1030
    %v1033 = vunpack.c.l.s4 1966171168
    %v1034 = vunpack.c.0.s8 %v1033
    %v1035 = vlaneseq
    %v1036 = vshrl.u32 %v1035, 7
    %v1037 = vsub.s32 %v1034, %v1036
    %v1038 = vrot.slane %v995, %v1037
    %v1040 = vunpack.c.l.s4 1966171168
    %v1041 = vunpack.c.0.s8 %v1040
    %v1042 = vlaneseq
    %v1043 = vshrl.u32 %v1042, 7
    %v1044 = vsub.s32 %v1041, %v1043
    %v1045 = vrot.slane %v994, %v1044
    %v1047 = vunpack.c.l.s4 1966171168
    %v1048 = vunpack.c.0.s8 %v1047
    %v1049 = vlaneseq
    %v1050 = vshrl.u32 %v1049, 7
    %v1051 = vsub.s32 %v1048, %v1050
    %v1052 = vrot.slane %v996, %v1051
    %v1053 = vcombine.low %v1003, %v1031
    %v1054 = vcombine.high %v1003, %v1031
    %v1055 = vcombine.low %v1010, %v1038
    %v1056 = vcombine.high %v1010, %v1038
    %v1057 = vcombine.low %v1017, %v1045
    %v1058 = vcombine.high %v1017, %v1045
    %v1059 = vcombine.low %v1024, %v1052
    %v1060 = vcombine.high %v1024, %v1052
    %v1061 = vcombine.low %v894, %v896
    %v1062 = vcombine.high %v894, %v896
    %v1063 = vcombine.low %v898, %v900
    %v1064 = vcombine.high %v898, %v900
    %v1065 = vcombine.low %v902, %v904
    %v1066 = vcombine.high %v902, %v904
    %v1067 = vcombine.low %v906, %v908
    %v1068 = vcombine.high %v906, %v908
    %v1070 = vunpack.c.l.s4 1966171168
    %v1071 = vunpack.c.0.s8 %v1070
    %v1072 = vlaneseq
    %v1073 = vshrl.u32 %v1072, 7
    %v1074 = vsub.s32 %v1071, %v1073
    %v1075 = vrot.slane %v1061, %v1074
    %v1077 = vunpack.c.l.s4 1966171168
    %v1078 = vunpack.c.0.s8 %v1077
    %v1079 = vlaneseq
    %v1080 = vshrl.u32 %v1079, 7
    %v1081 = vsub.s32 %v1078, %v1080
    %v1082 = vrot.slane %v1062, %v1081
    %v1084 = vunpack.c.l.s4 1966171168
    %v1085 = vunpack.c.0.s8 %v1084
    %v1086 = vlaneseq
    %v1087 = vshrl.u32 %v1086, 7
    %v1088 = vsub.s32 %v1085, %v1087
    %v1089 = vrot.slane %v1063, %v1088
    %v1091 = vunpack.c.l.s4 1966171168
    %v1092 = vunpack.c.0.s8 %v1091
    %v1093 = vlaneseq
    %v1094 = vshrl.u32 %v1093, 7
    %v1095 = vsub.s32 %v1092, %v1094
    %v1096 = vrot.slane %v1064, %v1095
    %v1098 = vunpack.c.l.s4 1966171168
    %v1099 = vunpack.c.0.s8 %v1098
    %v1100 = vlaneseq
    %v1101 = vshrl.u32 %v1100, 7
    %v1102 = vsub.s32 %v1099, %v1101
    %v1103 = vrot.slane %v1065, %v1102
    %v1105 = vunpack.c.l.s4 1966171168
    %v1106 = vunpack.c.0.s8 %v1105
    %v1107 = vlaneseq
    %v1108 = vshrl.u32 %v1107, 7
    %v1109 = vsub.s32 %v1106, %v1108
    %v1110 = vrot.slane %v1066, %v1109
    %v1112 = vunpack.c.l.s4 1966171168
    %v1113 = vunpack.c.0.s8 %v1112
    %v1114 = vlaneseq
    %v1115 = vshrl.u32 %v1114, 7
    %v1116 = vsub.s32 %v1113, %v1115
    %v1117 = vrot.slane %v1067, %v1116
    %v1119 = vunpack.c.l.s4 1966171168
    %v1120 = vunpack.c.0.s8 %v1119
    %v1121 = vlaneseq
    %v1122 = vshrl.u32 %v1121, 7
    %v1123 = vsub.s32 %v1120, %v1122
    %v1124 = vrot.slane %v1068, %v1123
    %v1125 = vcombine.low %v1075, %v1089
    %v1126 = vcombine.high %v1075, %v1089
    %v1127 = vcombine.low %v1082, %v1096
    %v1128 = vcombine.high %v1082, %v1096
    %v1129 = vcombine.low %v1103, %v1117
    %v1130 = vcombine.high %v1103, %v1117
    %v1131 = vcombine.low %v1110, %v1124
    %v1132 = vcombine.high %v1110, %v1124
    %v1134 = vunpack.c.l.s4 1966171168
    %v1135 = vunpack.c.0.s8 %v1134
    %v1136 = vlaneseq
    %v1137 = vshrl.u32 %v1136, 7
    %v1138 = vsub.s32 %v1135, %v1137
    %v1139 = vrot.slane %v1125, %v1138
    %v1141 = vunpack.c.l.s4 1966171168
    %v1142 = vunpack.c.0.s8 %v1141
    %v1143 = vlaneseq
    %v1144 = vshrl.u32 %v1143, 7
    %v1145 = vsub.s32 %v1142, %v1144
    %v1146 = vrot.slane %v1127, %v1145
    %v1148 = vunpack.c.l.s4 1966171168
    %v1149 = vunpack.c.0.s8 %v1148
    %v1150 = vlaneseq
    %v1151 = vshrl.u32 %v1150, 7
    %v1152 = vsub.s32 %v1149, %v1151
    %v1153 = vrot.slane %v1126, %v1152
    %v1155 = vunpack.c.l.s4 1966171168
    %v1156 = vunpack.c.0.s8 %v1155
    %v1157 = vlaneseq
    %v1158 = vshrl.u32 %v1157, 7
    %v1159 = vsub.s32 %v1156, %v1158
    %v1160 = vrot.slane %v1128, %v1159
    %v1162 = vunpack.c.l.s4 1966171168
    %v1163 = vunpack.c.0.s8 %v1162
    %v1164 = vlaneseq
    %v1165 = vshrl.u32 %v1164, 7
    %v1166 = vsub.s32 %v1163, %v1165
    %v1167 = vrot.slane %v1129, %v1166
    %v1169 = vunpack.c.l.s4 1966171168
    %v1170 = vunpack.c.0.s8 %v1169
    %v1171 = vlaneseq
    %v1172 = vshrl.u32 %v1171, 7
    %v1173 = vsub.s32 %v1170, %v1172
    %v1174 = vrot.slane %v1131, %v1173
    %v1176 = vunpack.c.l.s4 1966171168
    %v1177 = vunpack.c.0.s8 %v1176
    %v1178 = vlaneseq
    %v1179 = vshrl.u32 %v1178, 7
    %v1180 = vsub.s32 %v1177, %v1179
    %v1181 = vrot.slane %v1130, %v1180
    %v1183 = vunpack.c.l.s4 1966171168
    %v1184 = vunpack.c.0.s8 %v1183
    %v1185 = vlaneseq
    %v1186 = vshrl.u32 %v1185, 7
    %v1187 = vsub.s32 %v1184, %v1186
    %v1188 = vrot.slane %v1132, %v1187
    %v1189 = vcombine.low %v1139, %v1167
    %v1190 = vcombine.high %v1139, %v1167
    %v1191 = vcombine.low %v1146, %v1174
    %v1192 = vcombine.high %v1146, %v1174
    %v1193 = vcombine.low %v1153, %v1181
    %v1194 = vcombine.high %v1153, %v1181
    %v1195 = vcombine.low %v1160, %v1188
    %v1196 = vcombine.high %v1160, %v1188
    %v1213 = vpack.c.bf16 %v1053, %v1053
    %v1214 = vpack.c.bf16 %v1057, %v1057
    %v1215 = vpack.c.bf16 %v1054, %v1054
    %v1216 = vpack.c.bf16 %v1058, %v1058
    %v1217 = vpack.c.bf16 %v1055, %v1055
    %v1218 = vpack.c.bf16 %v1059, %v1059
    %v1219 = vpack.c.bf16 %v1056, %v1056
    %v1220 = vpack.c.bf16 %v1060, %v1060
    %v1221 = vpack.c.bf16 %v1189, %v1189
    %v1222 = vpack.c.bf16 %v1193, %v1193
    %v1223 = vpack.c.bf16 %v1190, %v1190
    %v1224 = vpack.c.bf16 %v1194, %v1194
    %v1225 = vpack.c.bf16 %v1191, %v1191
    %v1226 = vpack.c.bf16 %v1195, %v1195
    %v1227 = vpack.c.bf16 %v1192, %v1192
    %v1228 = vpack.c.bf16 %v1196, %v1196
    %v1229 = vld [vmem:[#allocation8] sm:$0xff]
    %v1230 = vld [vmem:[#allocation8 + $0x8] sm:$0xff]
    %v1231 = vld [vmem:[#allocation8 + $0x10] sm:$0xff]
    %v1232 = vld [vmem:[#allocation8 + $0x18] sm:$0xff]
    %v1233 = vld [vmem:[#allocation8 + $0x20] sm:$0xff]
    %v1234 = vld [vmem:[#allocation8 + $0x28] sm:$0xff]
    %v1235 = vld [vmem:[#allocation8 + $0x30] sm:$0xff]
    %v1236 = vld [vmem:[#allocation8 + $0x38] sm:$0xff]
    %v1237 = vld [vmem:[#allocation8 + $0x40] sm:$0xff]
    %v1238 = vld [vmem:[#allocation8 + $0x48] sm:$0xff]
    %v1239 = vld [vmem:[#allocation8 + $0x50] sm:$0xff]
    %v1240 = vld [vmem:[#allocation8 + $0x58] sm:$0xff]
    %v1241 = vld [vmem:[#allocation8 + $0x60] sm:$0xff]
    %v1242 = vld [vmem:[#allocation8 + $0x68] sm:$0xff]
    %v1243 = vld [vmem:[#allocation8 + $0x70] sm:$0xff]
    %v1244 = vld [vmem:[#allocation8 + $0x78] sm:$0xff]
    %v1245 = vld [vmem:[#allocation8 + $0x80] sm:$0xff]
    %v1246 = vld [vmem:[#allocation8 + $0x88] sm:$0xff]
    %v1247 = vld [vmem:[#allocation8 + $0x90] sm:$0xff]
    %v1248 = vld [vmem:[#allocation8 + $0x98] sm:$0xff]
    %v1249 = vld [vmem:[#allocation8 + $0xa0] sm:$0xff]
    %v1250 = vld [vmem:[#allocation8 + $0xa8] sm:$0xff]
    %v1251 = vld [vmem:[#allocation8 + $0xb0] sm:$0xff]
    %v1252 = vld [vmem:[#allocation8 + $0xb8] sm:$0xff]
    %v1253 = vld [vmem:[#allocation8 + $0xc0] sm:$0xff]
    %v1254 = vld [vmem:[#allocation8 + $0xc8] sm:$0xff]
    %v1255 = vld [vmem:[#allocation8 + $0xd0] sm:$0xff]
    %v1256 = vld [vmem:[#allocation8 + $0xd8] sm:$0xff]
    %v1257 = vld [vmem:[#allocation8 + $0xe0] sm:$0xff]
    %v1258 = vld [vmem:[#allocation8 + $0xe8] sm:$0xff]
    %v1259 = vld [vmem:[#allocation8 + $0xf0] sm:$0xff]
    %v1260 = vld [vmem:[#allocation8 + $0xf8] sm:$0xff]
    %v1261 = vld [vmem:[#allocation8 + $0x100] sm:$0xff]
    %v1262 = vld [vmem:[#allocation8 + $0x108] sm:$0xff]
    %v1263 = vld [vmem:[#allocation8 + $0x110] sm:$0xff]
    %v1264 = vld [vmem:[#allocation8 + $0x118] sm:$0xff]
    %v1265 = vld [vmem:[#allocation8 + $0x120] sm:$0xff]
    %v1266 = vld [vmem:[#allocation8 + $0x128] sm:$0xff]
    %v1267 = vld [vmem:[#allocation8 + $0x130] sm:$0xff]
    %v1268 = vld [vmem:[#allocation8 + $0x138] sm:$0xff]
    %v1269 = vld [vmem:[#allocation8 + $0x140] sm:$0xff]
    %v1270 = vld [vmem:[#allocation8 + $0x148] sm:$0xff]
    %v1271 = vld [vmem:[#allocation8 + $0x150] sm:$0xff]
    %v1272 = vld [vmem:[#allocation8 + $0x158] sm:$0xff]
    %v1273 = vld [vmem:[#allocation8 + $0x160] sm:$0xff]
    %v1274 = vld [vmem:[#allocation8 + $0x168] sm:$0xff]
    %v1275 = vld [vmem:[#allocation8 + $0x170] sm:$0xff]
    %v1276 = vld [vmem:[#allocation8 + $0x178] sm:$0xff]
    %v1277 = vld [vmem:[#allocation8 + $0x180] sm:$0xff]
    %v1278 = vld [vmem:[#allocation8 + $0x188] sm:$0xff]
    %v1279 = vld [vmem:[#allocation8 + $0x190] sm:$0xff]
    %v1280 = vld [vmem:[#allocation8 + $0x198] sm:$0xff]
    %v1281 = vld [vmem:[#allocation8 + $0x1a0] sm:$0xff]
    %v1282 = vld [vmem:[#allocation8 + $0x1a8] sm:$0xff]
    %v1283 = vld [vmem:[#allocation8 + $0x1b0] sm:$0xff]
    %v1284 = vld [vmem:[#allocation8 + $0x1b8] sm:$0xff]
    %v1285 = vld [vmem:[#allocation8 + $0x1c0] sm:$0xff]
    %v1286 = vld [vmem:[#allocation8 + $0x1c8] sm:$0xff]
    %v1287 = vld [vmem:[#allocation8 + $0x1d0] sm:$0xff]
    %v1288 = vld [vmem:[#allocation8 + $0x1d8] sm:$0xff]
    %v1289 = vld [vmem:[#allocation8 + $0x1e0] sm:$0xff]
    %v1290 = vld [vmem:[#allocation8 + $0x1e8] sm:$0xff]
    %v1291 = vld [vmem:[#allocation8 + $0x1f0] sm:$0xff]
    %v1292 = vld [vmem:[#allocation8 + $0x1f8] sm:$0xff]
    %v1293 = vld [vmem:[#allocation8 + $0x200] sm:$0xff]
    %v1294 = vld [vmem:[#allocation8 + $0x208] sm:$0xff]
    %v1295 = vld [vmem:[#allocation8 + $0x210] sm:$0xff]
    %v1296 = vld [vmem:[#allocation8 + $0x218] sm:$0xff]
    %v1297 = vld [vmem:[#allocation8 + $0x220] sm:$0xff]
    %v1298 = vld [vmem:[#allocation8 + $0x228] sm:$0xff]
    %v1299 = vld [vmem:[#allocation8 + $0x230] sm:$0xff]
    %v1300 = vld [vmem:[#allocation8 + $0x238] sm:$0xff]
    %v1301 = vld [vmem:[#allocation8 + $0x240] sm:$0xff]
    %v1302 = vld [vmem:[#allocation8 + $0x248] sm:$0xff]
    %v1303 = vld [vmem:[#allocation8 + $0x250] sm:$0xff]
    %v1304 = vld [vmem:[#allocation8 + $0x258] sm:$0xff]
    %v1305 = vld [vmem:[#allocation8 + $0x260] sm:$0xff]
    %v1306 = vld [vmem:[#allocation8 + $0x268] sm:$0xff]
    %v1307 = vld [vmem:[#allocation8 + $0x270] sm:$0xff]
    %v1308 = vld [vmem:[#allocation8 + $0x278] sm:$0xff]
    %v1309 = vld [vmem:[#allocation8 + $0x280] sm:$0xff]
    %v1310 = vld [vmem:[#allocation8 + $0x288] sm:$0xff]
    %v1311 = vld [vmem:[#allocation8 + $0x290] sm:$0xff]
    %v1312 = vld [vmem:[#allocation8 + $0x298] sm:$0xff]
    %v1313 = vld [vmem:[#allocation8 + $0x2a0] sm:$0xff]
    %v1314 = vld [vmem:[#allocation8 + $0x2a8] sm:$0xff]
    %v1315 = vld [vmem:[#allocation8 + $0x2b0] sm:$0xff]
    %v1316 = vld [vmem:[#allocation8 + $0x2b8] sm:$0xff]
    %v1317 = vld [vmem:[#allocation8 + $0x2c0] sm:$0xff]
    %v1318 = vld [vmem:[#allocation8 + $0x2c8] sm:$0xff]
    %v1319 = vld [vmem:[#allocation8 + $0x2d0] sm:$0xff]
    %v1320 = vld [vmem:[#allocation8 + $0x2d8] sm:$0xff]
    %v1321 = vld [vmem:[#allocation8 + $0x2e0] sm:$0xff]
    %v1322 = vld [vmem:[#allocation8 + $0x2e8] sm:$0xff]
    %v1323 = vld [vmem:[#allocation8 + $0x2f0] sm:$0xff]
    %v1324 = vld [vmem:[#allocation8 + $0x2f8] sm:$0xff]
    %v1325 = vld [vmem:[#allocation8 + $0x300] sm:$0xff]
    %v1326 = vld [vmem:[#allocation8 + $0x308] sm:$0xff]
    %v1327 = vld [vmem:[#allocation8 + $0x310] sm:$0xff]
    %v1328 = vld [vmem:[#allocation8 + $0x318] sm:$0xff]
    %v1329 = vld [vmem:[#allocation8 + $0x320] sm:$0xff]
    %v1330 = vld [vmem:[#allocation8 + $0x328] sm:$0xff]
    %v1331 = vld [vmem:[#allocation8 + $0x330] sm:$0xff]
    %v1332 = vld [vmem:[#allocation8 + $0x338] sm:$0xff]
    %v1333 = vld [vmem:[#allocation8 + $0x340] sm:$0xff]
    %v1334 = vld [vmem:[#allocation8 + $0x348] sm:$0xff]
    %v1335 = vld [vmem:[#allocation8 + $0x350] sm:$0xff]
    %v1336 = vld [vmem:[#allocation8 + $0x358] sm:$0xff]
    %v1337 = vld [vmem:[#allocation8 + $0x360] sm:$0xff]
    %v1338 = vld [vmem:[#allocation8 + $0x368] sm:$0xff]
    %v1339 = vld [vmem:[#allocation8 + $0x370] sm:$0xff]
    %v1340 = vld [vmem:[#allocation8 + $0x378] sm:$0xff]
    %v1341 = vld [vmem:[#allocation8 + $0x380] sm:$0xff]
    %v1342 = vld [vmem:[#allocation8 + $0x388] sm:$0xff]
    %v1343 = vld [vmem:[#allocation8 + $0x390] sm:$0xff]
    %v1344 = vld [vmem:[#allocation8 + $0x398] sm:$0xff]
    %v1345 = vld [vmem:[#allocation8 + $0x3a0] sm:$0xff]
    %v1346 = vld [vmem:[#allocation8 + $0x3a8] sm:$0xff]
    %v1347 = vld [vmem:[#allocation8 + $0x3b0] sm:$0xff]
    %v1348 = vld [vmem:[#allocation8 + $0x3b8] sm:$0xff]
    %v1349 = vld [vmem:[#allocation8 + $0x3c0] sm:$0xff]
    %v1350 = vld [vmem:[#allocation8 + $0x3c8] sm:$0xff]
    %v1351 = vld [vmem:[#allocation8 + $0x3d0] sm:$0xff]
    %v1352 = vld [vmem:[#allocation8 + $0x3d8] sm:$0xff]
    %v1353 = vld [vmem:[#allocation8 + $0x3e0] sm:$0xff]
    %v1354 = vld [vmem:[#allocation8 + $0x3e8] sm:$0xff]
    %v1355 = vld [vmem:[#allocation8 + $0x3f0] sm:$0xff]
    %v1356 = vld [vmem:[#allocation8 + $0x3f8] sm:$0xff]
    %v1357 = vld [vmem:[#allocation8 + $0x400] sm:$0xff]
    %v1358 = vld [vmem:[#allocation8 + $0x408] sm:$0xff]
    %v1359 = vld [vmem:[#allocation8 + $0x410] sm:$0xff]
    %v1360 = vld [vmem:[#allocation8 + $0x418] sm:$0xff]
    %v1361 = vld [vmem:[#allocation8 + $0x420] sm:$0xff]
    %v1362 = vld [vmem:[#allocation8 + $0x428] sm:$0xff]
    %v1363 = vld [vmem:[#allocation8 + $0x430] sm:$0xff]
    %v1364 = vld [vmem:[#allocation8 + $0x438] sm:$0xff]
    %v1365 = vld [vmem:[#allocation8 + $0x440] sm:$0xff]
    %v1366 = vld [vmem:[#allocation8 + $0x448] sm:$0xff]
    %v1367 = vld [vmem:[#allocation8 + $0x450] sm:$0xff]
    %v1368 = vld [vmem:[#allocation8 + $0x458] sm:$0xff]
    %v1369 = vld [vmem:[#allocation8 + $0x460] sm:$0xff]
    %v1370 = vld [vmem:[#allocation8 + $0x468] sm:$0xff]
    %v1371 = vld [vmem:[#allocation8 + $0x470] sm:$0xff]
    %v1372 = vld [vmem:[#allocation8 + $0x478] sm:$0xff]
    %v1373 = vld [vmem:[#allocation8 + $0x480] sm:$0xff]
    %v1374 = vld [vmem:[#allocation8 + $0x488] sm:$0xff]
    %v1375 = vld [vmem:[#allocation8 + $0x490] sm:$0xff]
    %v1376 = vld [vmem:[#allocation8 + $0x498] sm:$0xff]
    %v1377 = vld [vmem:[#allocation8 + $0x4a0] sm:$0xff]
    %v1378 = vld [vmem:[#allocation8 + $0x4a8] sm:$0xff]
    %v1379 = vld [vmem:[#allocation8 + $0x4b0] sm:$0xff]
    %v1380 = vld [vmem:[#allocation8 + $0x4b8] sm:$0xff]
    %v1381 = vld [vmem:[#allocation8 + $0x4c0] sm:$0xff]
    %v1382 = vld [vmem:[#allocation8 + $0x4c8] sm:$0xff]
    %v1383 = vld [vmem:[#allocation8 + $0x4d0] sm:$0xff]
    %v1384 = vld [vmem:[#allocation8 + $0x4d8] sm:$0xff]
    %v1385 = vld [vmem:[#allocation8 + $0x4e0] sm:$0xff]
    %v1386 = vld [vmem:[#allocation8 + $0x4e8] sm:$0xff]
    %v1387 = vld [vmem:[#allocation8 + $0x4f0] sm:$0xff]
    %v1388 = vld [vmem:[#allocation8 + $0x4f8] sm:$0xff]
    %v1389 = vld [vmem:[#allocation8 + $0x500] sm:$0xff]
    %v1390 = vld [vmem:[#allocation8 + $0x508] sm:$0xff]
    %v1391 = vld [vmem:[#allocation8 + $0x510] sm:$0xff]
    %v1392 = vld [vmem:[#allocation8 + $0x518] sm:$0xff]
    %v1393 = vld [vmem:[#allocation8 + $0x520] sm:$0xff]
    %v1394 = vld [vmem:[#allocation8 + $0x528] sm:$0xff]
    %v1395 = vld [vmem:[#allocation8 + $0x530] sm:$0xff]
    %v1396 = vld [vmem:[#allocation8 + $0x538] sm:$0xff]
    %v1397 = vld [vmem:[#allocation8 + $0x540] sm:$0xff]
    %v1398 = vld [vmem:[#allocation8 + $0x548] sm:$0xff]
    %v1399 = vld [vmem:[#allocation8 + $0x550] sm:$0xff]
    %v1400 = vld [vmem:[#allocation8 + $0x558] sm:$0xff]
    %v1401 = vld [vmem:[#allocation8 + $0x560] sm:$0xff]
    %v1402 = vld [vmem:[#allocation8 + $0x568] sm:$0xff]
    %v1403 = vld [vmem:[#allocation8 + $0x570] sm:$0xff]
    %v1404 = vld [vmem:[#allocation8 + $0x578] sm:$0xff]
    %v1405 = vld [vmem:[#allocation8 + $0x580] sm:$0xff]
    %v1406 = vld [vmem:[#allocation8 + $0x588] sm:$0xff]
    %v1407 = vld [vmem:[#allocation8 + $0x590] sm:$0xff]
    %v1408 = vld [vmem:[#allocation8 + $0x598] sm:$0xff]
    %v1409 = vld [vmem:[#allocation8 + $0x5a0] sm:$0xff]
    %v1410 = vld [vmem:[#allocation8 + $0x5a8] sm:$0xff]
    %v1411 = vld [vmem:[#allocation8 + $0x5b0] sm:$0xff]
    %v1412 = vld [vmem:[#allocation8 + $0x5b8] sm:$0xff]
    %v1413 = vld [vmem:[#allocation8 + $0x5c0] sm:$0xff]
    %v1414 = vld [vmem:[#allocation8 + $0x5c8] sm:$0xff]
    %v1415 = vld [vmem:[#allocation8 + $0x5d0] sm:$0xff]
    %v1416 = vld [vmem:[#allocation8 + $0x5d8] sm:$0xff]
    %v1417 = vld [vmem:[#allocation8 + $0x5e0] sm:$0xff]
    %v1418 = vld [vmem:[#allocation8 + $0x5e8] sm:$0xff]
    %v1419 = vld [vmem:[#allocation8 + $0x5f0] sm:$0xff]
    %v1420 = vld [vmem:[#allocation8 + $0x5f8] sm:$0xff]
    %v1421 = vld [vmem:[#allocation8 + $0x600] sm:$0xff]
    %v1422 = vld [vmem:[#allocation8 + $0x608] sm:$0xff]
    %v1423 = vld [vmem:[#allocation8 + $0x610] sm:$0xff]
    %v1424 = vld [vmem:[#allocation8 + $0x618] sm:$0xff]
    %v1425 = vld [vmem:[#allocation8 + $0x620] sm:$0xff]
    %v1426 = vld [vmem:[#allocation8 + $0x628] sm:$0xff]
    %v1427 = vld [vmem:[#allocation8 + $0x630] sm:$0xff]
    %v1428 = vld [vmem:[#allocation8 + $0x638] sm:$0xff]
    %v1429 = vld [vmem:[#allocation8 + $0x640] sm:$0xff]
    %v1430 = vld [vmem:[#allocation8 + $0x648] sm:$0xff]
    %v1431 = vld [vmem:[#allocation8 + $0x650] sm:$0xff]
    %v1432 = vld [vmem:[#allocation8 + $0x658] sm:$0xff]
    %v1433 = vld [vmem:[#allocation8 + $0x660] sm:$0xff]
    %v1434 = vld [vmem:[#allocation8 + $0x668] sm:$0xff]
    %v1435 = vld [vmem:[#allocation8 + $0x670] sm:$0xff]
    %v1436 = vld [vmem:[#allocation8 + $0x678] sm:$0xff]
    %v1437 = vld [vmem:[#allocation8 + $0x680] sm:$0xff]
    %v1438 = vld [vmem:[#allocation8 + $0x688] sm:$0xff]
    %v1439 = vld [vmem:[#allocation8 + $0x690] sm:$0xff]
    %v1440 = vld [vmem:[#allocation8 + $0x698] sm:$0xff]
    %v1441 = vld [vmem:[#allocation8 + $0x6a0] sm:$0xff]
    %v1442 = vld [vmem:[#allocation8 + $0x6a8] sm:$0xff]
    %v1443 = vld [vmem:[#allocation8 + $0x6b0] sm:$0xff]
    %v1444 = vld [vmem:[#allocation8 + $0x6b8] sm:$0xff]
    %v1445 = vld [vmem:[#allocation8 + $0x6c0] sm:$0xff]
    %v1446 = vld [vmem:[#allocation8 + $0x6c8] sm:$0xff]
    %v1447 = vld [vmem:[#allocation8 + $0x6d0] sm:$0xff]
    %v1448 = vld [vmem:[#allocation8 + $0x6d8] sm:$0xff]
    %v1449 = vld [vmem:[#allocation8 + $0x6e0] sm:$0xff]
    %v1450 = vld [vmem:[#allocation8 + $0x6e8] sm:$0xff]
    %v1451 = vld [vmem:[#allocation8 + $0x6f0] sm:$0xff]
    %v1452 = vld [vmem:[#allocation8 + $0x6f8] sm:$0xff]
    %v1453 = vld [vmem:[#allocation8 + $0x700] sm:$0xff]
    %v1454 = vld [vmem:[#allocation8 + $0x708] sm:$0xff]
    %v1455 = vld [vmem:[#allocation8 + $0x710] sm:$0xff]
    %v1456 = vld [vmem:[#allocation8 + $0x718] sm:$0xff]
    %v1457 = vld [vmem:[#allocation8 + $0x720] sm:$0xff]
    %v1458 = vld [vmem:[#allocation8 + $0x728] sm:$0xff]
    %v1459 = vld [vmem:[#allocation8 + $0x730] sm:$0xff]
    %v1460 = vld [vmem:[#allocation8 + $0x738] sm:$0xff]
    %v1461 = vld [vmem:[#allocation8 + $0x740] sm:$0xff]
    %v1462 = vld [vmem:[#allocation8 + $0x748] sm:$0xff]
    %v1463 = vld [vmem:[#allocation8 + $0x750] sm:$0xff]
    %v1464 = vld [vmem:[#allocation8 + $0x758] sm:$0xff]
    %v1465 = vld [vmem:[#allocation8 + $0x760] sm:$0xff]
    %v1466 = vld [vmem:[#allocation8 + $0x768] sm:$0xff]
    %v1467 = vld [vmem:[#allocation8 + $0x770] sm:$0xff]
    %v1468 = vld [vmem:[#allocation8 + $0x778] sm:$0xff]
    %v1469 = vld [vmem:[#allocation8 + $0x780] sm:$0xff]
    %v1470 = vld [vmem:[#allocation8 + $0x788] sm:$0xff]
    %v1471 = vld [vmem:[#allocation8 + $0x790] sm:$0xff]
    %v1472 = vld [vmem:[#allocation8 + $0x798] sm:$0xff]
    %v1473 = vld [vmem:[#allocation8 + $0x7a0] sm:$0xff]
    %v1474 = vld [vmem:[#allocation8 + $0x7a8] sm:$0xff]
    %v1475 = vld [vmem:[#allocation8 + $0x7b0] sm:$0xff]
    %v1476 = vld [vmem:[#allocation8 + $0x7b8] sm:$0xff]
    %v1477 = vld [vmem:[#allocation8 + $0x7c0] sm:$0xff]
    %v1478 = vld [vmem:[#allocation8 + $0x7c8] sm:$0xff]
    %v1479 = vld [vmem:[#allocation8 + $0x7d0] sm:$0xff]
    %v1480 = vld [vmem:[#allocation8 + $0x7d8] sm:$0xff]
    %v1481 = vld [vmem:[#allocation8 + $0x7e0] sm:$0xff]
    %v1482 = vld [vmem:[#allocation8 + $0x7e8] sm:$0xff]
    %v1483 = vld [vmem:[#allocation8 + $0x7f0] sm:$0xff]
    %v1484 = vld [vmem:[#allocation8 + $0x7f8] sm:$0xff]
    %v1485 = vld [vmem:[#allocation8 + $0x800] sm:$0xff]
    %v1486 = vld [vmem:[#allocation8 + $0x808] sm:$0xff]
    %v1487 = vld [vmem:[#allocation8 + $0x810] sm:$0xff]
    %v1488 = vld [vmem:[#allocation8 + $0x818] sm:$0xff]
    %v1489 = vld [vmem:[#allocation8 + $0x820] sm:$0xff]
    %v1490 = vld [vmem:[#allocation8 + $0x828] sm:$0xff]
    %v1491 = vld [vmem:[#allocation8 + $0x830] sm:$0xff]
    %v1492 = vld [vmem:[#allocation8 + $0x838] sm:$0xff]
    %v1493 = vld [vmem:[#allocation8 + $0x840] sm:$0xff]
    %v1494 = vld [vmem:[#allocation8 + $0x848] sm:$0xff]
    %v1495 = vld [vmem:[#allocation8 + $0x850] sm:$0xff]
    %v1496 = vld [vmem:[#allocation8 + $0x858] sm:$0xff]
    %v1497 = vld [vmem:[#allocation8 + $0x860] sm:$0xff]
    %v1498 = vld [vmem:[#allocation8 + $0x868] sm:$0xff]
    %v1499 = vld [vmem:[#allocation8 + $0x870] sm:$0xff]
    %v1500 = vld [vmem:[#allocation8 + $0x878] sm:$0xff]
    %v1501 = vld [vmem:[#allocation8 + $0x880] sm:$0xff]
    %v1502 = vld [vmem:[#allocation8 + $0x888] sm:$0xff]
    %v1503 = vld [vmem:[#allocation8 + $0x890] sm:$0xff]
    %v1504 = vld [vmem:[#allocation8 + $0x898] sm:$0xff]
    %v1505 = vld [vmem:[#allocation8 + $0x8a0] sm:$0xff]
    %v1506 = vld [vmem:[#allocation8 + $0x8a8] sm:$0xff]
    %v1507 = vld [vmem:[#allocation8 + $0x8b0] sm:$0xff]
    %v1508 = vld [vmem:[#allocation8 + $0x8b8] sm:$0xff]
    %v1509 = vld [vmem:[#allocation8 + $0x8c0] sm:$0xff]
    %v1510 = vld [vmem:[#allocation8 + $0x8c8] sm:$0xff]
    %v1511 = vld [vmem:[#allocation8 + $0x8d0] sm:$0xff]
    %v1512 = vld [vmem:[#allocation8 + $0x8d8] sm:$0xff]
    %v1513 = vld [vmem:[#allocation8 + $0x8e0] sm:$0xff]
    %v1514 = vld [vmem:[#allocation8 + $0x8e8] sm:$0xff]
    %v1515 = vld [vmem:[#allocation8 + $0x8f0] sm:$0xff]
    %v1516 = vld [vmem:[#allocation8 + $0x8f8] sm:$0xff]
    %v1517 = vld [vmem:[#allocation8 + $0x900] sm:$0xff]
    %v1518 = vld [vmem:[#allocation8 + $0x908] sm:$0xff]
    %v1519 = vld [vmem:[#allocation8 + $0x910] sm:$0xff]
    %v1520 = vld [vmem:[#allocation8 + $0x918] sm:$0xff]
    %v1521 = vld [vmem:[#allocation8 + $0x920] sm:$0xff]
    %v1522 = vld [vmem:[#allocation8 + $0x928] sm:$0xff]
    %v1523 = vld [vmem:[#allocation8 + $0x930] sm:$0xff]
    %v1524 = vld [vmem:[#allocation8 + $0x938] sm:$0xff]
    %v1525 = vld [vmem:[#allocation8 + $0x940] sm:$0xff]
    %v1526 = vld [vmem:[#allocation8 + $0x948] sm:$0xff]
    %v1527 = vld [vmem:[#allocation8 + $0x950] sm:$0xff]
    %v1528 = vld [vmem:[#allocation8 + $0x958] sm:$0xff]
    %v1529 = vld [vmem:[#allocation8 + $0x960] sm:$0xff]
    %v1530 = vld [vmem:[#allocation8 + $0x968] sm:$0xff]
    %v1531 = vld [vmem:[#allocation8 + $0x970] sm:$0xff]
    %v1532 = vld [vmem:[#allocation8 + $0x978] sm:$0xff]
    %v1533 = vld [vmem:[#allocation8 + $0x980] sm:$0xff]
    %v1534 = vld [vmem:[#allocation8 + $0x988] sm:$0xff]
    %v1535 = vld [vmem:[#allocation8 + $0x990] sm:$0xff]
    %v1536 = vld [vmem:[#allocation8 + $0x998] sm:$0xff]
    %v1537 = vld [vmem:[#allocation8 + $0x9a0] sm:$0xff]
    %v1538 = vld [vmem:[#allocation8 + $0x9a8] sm:$0xff]
    %v1539 = vld [vmem:[#allocation8 + $0x9b0] sm:$0xff]
    %v1540 = vld [vmem:[#allocation8 + $0x9b8] sm:$0xff]
    %v1541 = vld [vmem:[#allocation8 + $0x9c0] sm:$0xff]
    %v1542 = vld [vmem:[#allocation8 + $0x9c8] sm:$0xff]
    %v1543 = vld [vmem:[#allocation8 + $0x9d0] sm:$0xff]
    %v1544 = vld [vmem:[#allocation8 + $0x9d8] sm:$0xff]
    %v1545 = vld [vmem:[#allocation8 + $0x9e0] sm:$0xff]
    %v1546 = vld [vmem:[#allocation8 + $0x9e8] sm:$0xff]
    %v1547 = vld [vmem:[#allocation8 + $0x9f0] sm:$0xff]
    %v1548 = vld [vmem:[#allocation8 + $0x9f8] sm:$0xff]
    %v1549 = vld [vmem:[#allocation8 + $0xa00] sm:$0xff]
    %v1550 = vld [vmem:[#allocation8 + $0xa08] sm:$0xff]
    %v1551 = vld [vmem:[#allocation8 + $0xa10] sm:$0xff]
    %v1552 = vld [vmem:[#allocation8 + $0xa18] sm:$0xff]
    %v1553 = vld [vmem:[#allocation8 + $0xa20] sm:$0xff]
    %v1554 = vld [vmem:[#allocation8 + $0xa28] sm:$0xff]
    %v1555 = vld [vmem:[#allocation8 + $0xa30] sm:$0xff]
    %v1556 = vld [vmem:[#allocation8 + $0xa38] sm:$0xff]
    %v1557 = vld [vmem:[#allocation8 + $0xa40] sm:$0xff]
    %v1558 = vld [vmem:[#allocation8 + $0xa48] sm:$0xff]
    %v1559 = vld [vmem:[#allocation8 + $0xa50] sm:$0xff]
    %v1560 = vld [vmem:[#allocation8 + $0xa58] sm:$0xff]
    %v1561 = vld [vmem:[#allocation8 + $0xa60] sm:$0xff]
    %v1562 = vld [vmem:[#allocation8 + $0xa68] sm:$0xff]
    %v1563 = vld [vmem:[#allocation8 + $0xa70] sm:$0xff]
    %v1564 = vld [vmem:[#allocation8 + $0xa78] sm:$0xff]
    %v1565 = vld [vmem:[#allocation8 + $0xa80] sm:$0xff]
    %v1566 = vld [vmem:[#allocation8 + $0xa88] sm:$0xff]
    %v1567 = vld [vmem:[#allocation8 + $0xa90] sm:$0xff]
    %v1568 = vld [vmem:[#allocation8 + $0xa98] sm:$0xff]
    %v1569 = vld [vmem:[#allocation8 + $0xaa0] sm:$0xff]
    %v1570 = vld [vmem:[#allocation8 + $0xaa8] sm:$0xff]
    %v1571 = vld [vmem:[#allocation8 + $0xab0] sm:$0xff]
    %v1572 = vld [vmem:[#allocation8 + $0xab8] sm:$0xff]
    %v1573 = vld [vmem:[#allocation8 + $0xac0] sm:$0xff]
    %v1574 = vld [vmem:[#allocation8 + $0xac8] sm:$0xff]
    %v1575 = vld [vmem:[#allocation8 + $0xad0] sm:$0xff]
    %v1576 = vld [vmem:[#allocation8 + $0xad8] sm:$0xff]
    %v1577 = vld [vmem:[#allocation8 + $0xae0] sm:$0xff]
    %v1578 = vld [vmem:[#allocation8 + $0xae8] sm:$0xff]
    %v1579 = vld [vmem:[#allocation8 + $0xaf0] sm:$0xff]
    %v1580 = vld [vmem:[#allocation8 + $0xaf8] sm:$0xff]
    %v1581 = vld [vmem:[#allocation8 + $0xb00] sm:$0xff]
    %v1582 = vld [vmem:[#allocation8 + $0xb08] sm:$0xff]
    %v1583 = vld [vmem:[#allocation8 + $0xb10] sm:$0xff]
    %v1584 = vld [vmem:[#allocation8 + $0xb18] sm:$0xff]
    %v1585 = vld [vmem:[#allocation8 + $0xb20] sm:$0xff]
    %v1586 = vld [vmem:[#allocation8 + $0xb28] sm:$0xff]
    %v1587 = vld [vmem:[#allocation8 + $0xb30] sm:$0xff]
    %v1588 = vld [vmem:[#allocation8 + $0xb38] sm:$0xff]
    %v1589 = vld [vmem:[#allocation8 + $0xb40] sm:$0xff]
    %v1590 = vld [vmem:[#allocation8 + $0xb48] sm:$0xff]
    %v1591 = vld [vmem:[#allocation8 + $0xb50] sm:$0xff]
    %v1592 = vld [vmem:[#allocation8 + $0xb58] sm:$0xff]
    %v1593 = vld [vmem:[#allocation8 + $0xb60] sm:$0xff]
    %v1594 = vld [vmem:[#allocation8 + $0xb68] sm:$0xff]
    %v1595 = vld [vmem:[#allocation8 + $0xb70] sm:$0xff]
    %v1596 = vld [vmem:[#allocation8 + $0xb78] sm:$0xff]
    %v1597 = vld [vmem:[#allocation8 + $0xb80] sm:$0xff]
    %v1598 = vld [vmem:[#allocation8 + $0xb88] sm:$0xff]
    %v1599 = vld [vmem:[#allocation8 + $0xb90] sm:$0xff]
    %v1600 = vld [vmem:[#allocation8 + $0xb98] sm:$0xff]
    %v1601 = vld [vmem:[#allocation8 + $0xba0] sm:$0xff]
    %v1602 = vld [vmem:[#allocation8 + $0xba8] sm:$0xff]
    %v1603 = vld [vmem:[#allocation8 + $0xbb0] sm:$0xff]
    %v1604 = vld [vmem:[#allocation8 + $0xbb8] sm:$0xff]
    %v1605 = vld [vmem:[#allocation8 + $0xbc0] sm:$0xff]
    %v1606 = vld [vmem:[#allocation8 + $0xbc8] sm:$0xff]
    %v1607 = vld [vmem:[#allocation8 + $0xbd0] sm:$0xff]
    %v1608 = vld [vmem:[#allocation8 + $0xbd8] sm:$0xff]
    %v1609 = vld [vmem:[#allocation8 + $0xbe0] sm:$0xff]
    %v1610 = vld [vmem:[#allocation8 + $0xbe8] sm:$0xff]
    %v1611 = vld [vmem:[#allocation8 + $0xbf0] sm:$0xff]
    %v1612 = vld [vmem:[#allocation8 + $0xbf8] sm:$0xff]
    %v1613 = vld [vmem:[#allocation8 + $0xc00] sm:$0xff]
    %v1614 = vld [vmem:[#allocation8 + $0xc08] sm:$0xff]
    %v1615 = vld [vmem:[#allocation8 + $0xc10] sm:$0xff]
    %v1616 = vld [vmem:[#allocation8 + $0xc18] sm:$0xff]
    %v1617 = vld [vmem:[#allocation8 + $0xc20] sm:$0xff]
    %v1618 = vld [vmem:[#allocation8 + $0xc28] sm:$0xff]
    %v1619 = vld [vmem:[#allocation8 + $0xc30] sm:$0xff]
    %v1620 = vld [vmem:[#allocation8 + $0xc38] sm:$0xff]
    %v1621 = vld [vmem:[#allocation8 + $0xc40] sm:$0xff]
    %v1622 = vld [vmem:[#allocation8 + $0xc48] sm:$0xff]
    %v1623 = vld [vmem:[#allocation8 + $0xc50] sm:$0xff]
    %v1624 = vld [vmem:[#allocation8 + $0xc58] sm:$0xff]
    %v1625 = vld [vmem:[#allocation8 + $0xc60] sm:$0xff]
    %v1626 = vld [vmem:[#allocation8 + $0xc68] sm:$0xff]
    %v1627 = vld [vmem:[#allocation8 + $0xc70] sm:$0xff]
    %v1628 = vld [vmem:[#allocation8 + $0xc78] sm:$0xff]
    %v1629 = vld [vmem:[#allocation8 + $0xc80] sm:$0xff]
    %v1630 = vld [vmem:[#allocation8 + $0xc88] sm:$0xff]
    %v1631 = vld [vmem:[#allocation8 + $0xc90] sm:$0xff]
    %v1632 = vld [vmem:[#allocation8 + $0xc98] sm:$0xff]
    %v1633 = vld [vmem:[#allocation8 + $0xca0] sm:$0xff]
    %v1634 = vld [vmem:[#allocation8 + $0xca8] sm:$0xff]
    %v1635 = vld [vmem:[#allocation8 + $0xcb0] sm:$0xff]
    %v1636 = vld [vmem:[#allocation8 + $0xcb8] sm:$0xff]
    %v1637 = vld [vmem:[#allocation8 + $0xcc0] sm:$0xff]
    %v1638 = vld [vmem:[#allocation8 + $0xcc8] sm:$0xff]
    %v1639 = vld [vmem:[#allocation8 + $0xcd0] sm:$0xff]
    %v1640 = vld [vmem:[#allocation8 + $0xcd8] sm:$0xff]
    %v1641 = vld [vmem:[#allocation8 + $0xce0] sm:$0xff]
    %v1642 = vld [vmem:[#allocation8 + $0xce8] sm:$0xff]
    %v1643 = vld [vmem:[#allocation8 + $0xcf0] sm:$0xff]
    %v1644 = vld [vmem:[#allocation8 + $0xcf8] sm:$0xff]
    %v1645 = vld [vmem:[#allocation8 + $0xd00] sm:$0xff]
    %v1646 = vld [vmem:[#allocation8 + $0xd08] sm:$0xff]
    %v1647 = vld [vmem:[#allocation8 + $0xd10] sm:$0xff]
    %v1648 = vld [vmem:[#allocation8 + $0xd18] sm:$0xff]
    %v1649 = vld [vmem:[#allocation8 + $0xd20] sm:$0xff]
    %v1650 = vld [vmem:[#allocation8 + $0xd28] sm:$0xff]
    %v1651 = vld [vmem:[#allocation8 + $0xd30] sm:$0xff]
    %v1652 = vld [vmem:[#allocation8 + $0xd38] sm:$0xff]
    %v1653 = vld [vmem:[#allocation8 + $0xd40] sm:$0xff]
    %v1654 = vld [vmem:[#allocation8 + $0xd48] sm:$0xff]
    %v1655 = vld [vmem:[#allocation8 + $0xd50] sm:$0xff]
    %v1656 = vld [vmem:[#allocation8 + $0xd58] sm:$0xff]
    %v1657 = vld [vmem:[#allocation8 + $0xd60] sm:$0xff]
    %v1658 = vld [vmem:[#allocation8 + $0xd68] sm:$0xff]
    %v1659 = vld [vmem:[#allocation8 + $0xd70] sm:$0xff]
    %v1660 = vld [vmem:[#allocation8 + $0xd78] sm:$0xff]
    %v1661 = vld [vmem:[#allocation8 + $0xd80] sm:$0xff]
    %v1662 = vld [vmem:[#allocation8 + $0xd88] sm:$0xff]
    %v1663 = vld [vmem:[#allocation8 + $0xd90] sm:$0xff]
    %v1664 = vld [vmem:[#allocation8 + $0xd98] sm:$0xff]
    %v1665 = vld [vmem:[#allocation8 + $0xda0] sm:$0xff]
    %v1666 = vld [vmem:[#allocation8 + $0xda8] sm:$0xff]
    %v1667 = vld [vmem:[#allocation8 + $0xdb0] sm:$0xff]
    %v1668 = vld [vmem:[#allocation8 + $0xdb8] sm:$0xff]
    %v1669 = vld [vmem:[#allocation8 + $0xdc0] sm:$0xff]
    %v1670 = vld [vmem:[#allocation8 + $0xdc8] sm:$0xff]
    %v1671 = vld [vmem:[#allocation8 + $0xdd0] sm:$0xff]
    %v1672 = vld [vmem:[#allocation8 + $0xdd8] sm:$0xff]
    %v1673 = vld [vmem:[#allocation8 + $0xde0] sm:$0xff]
    %v1674 = vld [vmem:[#allocation8 + $0xde8] sm:$0xff]
    %v1675 = vld [vmem:[#allocation8 + $0xdf0] sm:$0xff]
    %v1676 = vld [vmem:[#allocation8 + $0xdf8] sm:$0xff]
    %v1677 = vld [vmem:[#allocation8 + $0xe00] sm:$0xff]
    %v1678 = vld [vmem:[#allocation8 + $0xe08] sm:$0xff]
    %v1679 = vld [vmem:[#allocation8 + $0xe10] sm:$0xff]
    %v1680 = vld [vmem:[#allocation8 + $0xe18] sm:$0xff]
    %v1681 = vld [vmem:[#allocation8 + $0xe20] sm:$0xff]
    %v1682 = vld [vmem:[#allocation8 + $0xe28] sm:$0xff]
    %v1683 = vld [vmem:[#allocation8 + $0xe30] sm:$0xff]
    %v1684 = vld [vmem:[#allocation8 + $0xe38] sm:$0xff]
    %v1685 = vld [vmem:[#allocation8 + $0xe40] sm:$0xff]
    %v1686 = vld [vmem:[#allocation8 + $0xe48] sm:$0xff]
    %v1687 = vld [vmem:[#allocation8 + $0xe50] sm:$0xff]
    %v1688 = vld [vmem:[#allocation8 + $0xe58] sm:$0xff]
    %v1689 = vld [vmem:[#allocation8 + $0xe60] sm:$0xff]
    %v1690 = vld [vmem:[#allocation8 + $0xe68] sm:$0xff]
    %v1691 = vld [vmem:[#allocation8 + $0xe70] sm:$0xff]
    %v1692 = vld [vmem:[#allocation8 + $0xe78] sm:$0xff]
    %v1693 = vld [vmem:[#allocation8 + $0xe80] sm:$0xff]
    %v1694 = vld [vmem:[#allocation8 + $0xe88] sm:$0xff]
    %v1695 = vld [vmem:[#allocation8 + $0xe90] sm:$0xff]
    %v1696 = vld [vmem:[#allocation8 + $0xe98] sm:$0xff]
    %v1697 = vld [vmem:[#allocation8 + $0xea0] sm:$0xff]
    %v1698 = vld [vmem:[#allocation8 + $0xea8] sm:$0xff]
    %v1699 = vld [vmem:[#allocation8 + $0xeb0] sm:$0xff]
    %v1700 = vld [vmem:[#allocation8 + $0xeb8] sm:$0xff]
    %v1701 = vld [vmem:[#allocation8 + $0xec0] sm:$0xff]
    %v1702 = vld [vmem:[#allocation8 + $0xec8] sm:$0xff]
    %v1703 = vld [vmem:[#allocation8 + $0xed0] sm:$0xff]
    %v1704 = vld [vmem:[#allocation8 + $0xed8] sm:$0xff]
    %v1705 = vld [vmem:[#allocation8 + $0xee0] sm:$0xff]
    %v1706 = vld [vmem:[#allocation8 + $0xee8] sm:$0xff]
    %v1707 = vld [vmem:[#allocation8 + $0xef0] sm:$0xff]
    %v1708 = vld [vmem:[#allocation8 + $0xef8] sm:$0xff]
    %v1709 = vld [vmem:[#allocation8 + $0xf00] sm:$0xff]
    %v1710 = vld [vmem:[#allocation8 + $0xf08] sm:$0xff]
    %v1711 = vld [vmem:[#allocation8 + $0xf10] sm:$0xff]
    %v1712 = vld [vmem:[#allocation8 + $0xf18] sm:$0xff]
    %v1713 = vld [vmem:[#allocation8 + $0xf20] sm:$0xff]
    %v1714 = vld [vmem:[#allocation8 + $0xf28] sm:$0xff]
    %v1715 = vld [vmem:[#allocation8 + $0xf30] sm:$0xff]
    %v1716 = vld [vmem:[#allocation8 + $0xf38] sm:$0xff]
    %v1717 = vld [vmem:[#allocation8 + $0xf40] sm:$0xff]
    %v1718 = vld [vmem:[#allocation8 + $0xf48] sm:$0xff]
    %v1719 = vld [vmem:[#allocation8 + $0xf50] sm:$0xff]
    %v1720 = vld [vmem:[#allocation8 + $0xf58] sm:$0xff]
    %v1721 = vld [vmem:[#allocation8 + $0xf60] sm:$0xff]
    %v1722 = vld [vmem:[#allocation8 + $0xf68] sm:$0xff]
    %v1723 = vld [vmem:[#allocation8 + $0xf70] sm:$0xff]
    %v1724 = vld [vmem:[#allocation8 + $0xf78] sm:$0xff]
    %v1725 = vld [vmem:[#allocation8 + $0xf80] sm:$0xff]
    %v1726 = vld [vmem:[#allocation8 + $0xf88] sm:$0xff]
    %v1727 = vld [vmem:[#allocation8 + $0xf90] sm:$0xff]
    %v1728 = vld [vmem:[#allocation8 + $0xf98] sm:$0xff]
    %v1729 = vld [vmem:[#allocation8 + $0xfa0] sm:$0xff]
    %v1730 = vld [vmem:[#allocation8 + $0xfa8] sm:$0xff]
    %v1731 = vld [vmem:[#allocation8 + $0xfb0] sm:$0xff]
    %v1732 = vld [vmem:[#allocation8 + $0xfb8] sm:$0xff]
    %v1733 = vld [vmem:[#allocation8 + $0xfc0] sm:$0xff]
    %v1734 = vld [vmem:[#allocation8 + $0xfc8] sm:$0xff]
    %v1735 = vld [vmem:[#allocation8 + $0xfd0] sm:$0xff]
    %v1736 = vld [vmem:[#allocation8 + $0xfd8] sm:$0xff]
    %v1737 = vld [vmem:[#allocation8 + $0xfe0] sm:$0xff]
    %v1738 = vld [vmem:[#allocation8 + $0xfe8] sm:$0xff]
    %v1739 = vld [vmem:[#allocation8 + $0xff0] sm:$0xff]
    %v1740 = vld [vmem:[#allocation8 + $0xff8] sm:$0xff]
    %v1741 = vld [vmem:[#allocation8 + $0x1000] sm:$0xff]
    %v1742 = vld [vmem:[#allocation8 + $0x1008] sm:$0xff]
    %v1743 = vld [vmem:[#allocation8 + $0x1010] sm:$0xff]
    %v1744 = vld [vmem:[#allocation8 + $0x1018] sm:$0xff]
    %v1745 = vld [vmem:[#allocation8 + $0x1020] sm:$0xff]
    %v1746 = vld [vmem:[#allocation8 + $0x1028] sm:$0xff]
    %v1747 = vld [vmem:[#allocation8 + $0x1030] sm:$0xff]
    %v1748 = vld [vmem:[#allocation8 + $0x1038] sm:$0xff]
    %v1749 = vld [vmem:[#allocation8 + $0x1040] sm:$0xff]
    %v1750 = vld [vmem:[#allocation8 + $0x1048] sm:$0xff]
    %v1751 = vld [vmem:[#allocation8 + $0x1050] sm:$0xff]
    %v1752 = vld [vmem:[#allocation8 + $0x1058] sm:$0xff]
    %v1753 = vld [vmem:[#allocation8 + $0x1060] sm:$0xff]
    %v1754 = vld [vmem:[#allocation8 + $0x1068] sm:$0xff]
    %v1755 = vld [vmem:[#allocation8 + $0x1070] sm:$0xff]
    %v1756 = vld [vmem:[#allocation8 + $0x1078] sm:$0xff]
    %v1757 = vld [vmem:[#allocation8 + $0x1080] sm:$0xff]
    %v1758 = vld [vmem:[#allocation8 + $0x1088] sm:$0xff]
    %v1759 = vld [vmem:[#allocation8 + $0x1090] sm:$0xff]
    %v1760 = vld [vmem:[#allocation8 + $0x1098] sm:$0xff]
    %v1761 = vld [vmem:[#allocation8 + $0x10a0] sm:$0xff]
    %v1762 = vld [vmem:[#allocation8 + $0x10a8] sm:$0xff]
    %v1763 = vld [vmem:[#allocation8 + $0x10b0] sm:$0xff]
    %v1764 = vld [vmem:[#allocation8 + $0x10b8] sm:$0xff]
    %v1765 = vld [vmem:[#allocation8 + $0x10c0] sm:$0xff]
    %v1766 = vld [vmem:[#allocation8 + $0x10c8] sm:$0xff]
    %v1767 = vld [vmem:[#allocation8 + $0x10d0] sm:$0xff]
    %v1768 = vld [vmem:[#allocation8 + $0x10d8] sm:$0xff]
    %v1769 = vld [vmem:[#allocation8 + $0x10e0] sm:$0xff]
    %v1770 = vld [vmem:[#allocation8 + $0x10e8] sm:$0xff]
    %v1771 = vld [vmem:[#allocation8 + $0x10f0] sm:$0xff]
    %v1772 = vld [vmem:[#allocation8 + $0x10f8] sm:$0xff]
    %v1773 = vld [vmem:[#allocation8 + $0x1100] sm:$0xff]
    %v1774 = vld [vmem:[#allocation8 + $0x1108] sm:$0xff]
    %v1775 = vld [vmem:[#allocation8 + $0x1110] sm:$0xff]
    %v1776 = vld [vmem:[#allocation8 + $0x1118] sm:$0xff]
    %v1777 = vld [vmem:[#allocation8 + $0x1120] sm:$0xff]
    %v1778 = vld [vmem:[#allocation8 + $0x1128] sm:$0xff]
    %v1779 = vld [vmem:[#allocation8 + $0x1130] sm:$0xff]
    %v1780 = vld [vmem:[#allocation8 + $0x1138] sm:$0xff]
    %v1781 = vld [vmem:[#allocation8 + $0x1140] sm:$0xff]
    %v1782 = vld [vmem:[#allocation8 + $0x1148] sm:$0xff]
    %v1783 = vld [vmem:[#allocation8 + $0x1150] sm:$0xff]
    %v1784 = vld [vmem:[#allocation8 + $0x1158] sm:$0xff]
    %v1785 = vld [vmem:[#allocation8 + $0x1160] sm:$0xff]
    %v1786 = vld [vmem:[#allocation8 + $0x1168] sm:$0xff]
    %v1787 = vld [vmem:[#allocation8 + $0x1170] sm:$0xff]
    %v1788 = vld [vmem:[#allocation8 + $0x1178] sm:$0xff]
    %v1789 = vld [vmem:[#allocation8 + $0x1180] sm:$0xff]
    %v1790 = vld [vmem:[#allocation8 + $0x1188] sm:$0xff]
    %v1791 = vld [vmem:[#allocation8 + $0x1190] sm:$0xff]
    %v1792 = vld [vmem:[#allocation8 + $0x1198] sm:$0xff]
    %v1793 = vld [vmem:[#allocation8 + $0x11a0] sm:$0xff]
    %v1794 = vld [vmem:[#allocation8 + $0x11a8] sm:$0xff]
    %v1795 = vld [vmem:[#allocation8 + $0x11b0] sm:$0xff]
    %v1796 = vld [vmem:[#allocation8 + $0x11b8] sm:$0xff]
    %v1797 = vld [vmem:[#allocation8 + $0x11c0] sm:$0xff]
    %v1798 = vld [vmem:[#allocation8 + $0x11c8] sm:$0xff]
    %v1799 = vld [vmem:[#allocation8 + $0x11d0] sm:$0xff]
    %v1800 = vld [vmem:[#allocation8 + $0x11d8] sm:$0xff]
    %v1801 = vld [vmem:[#allocation8 + $0x11e0] sm:$0xff]
    %v1802 = vld [vmem:[#allocation8 + $0x11e8] sm:$0xff]
    %v1803 = vld [vmem:[#allocation8 + $0x11f0] sm:$0xff]
    %v1804 = vld [vmem:[#allocation8 + $0x11f8] sm:$0xff]
    %v1805 = vld [vmem:[#allocation8 + $0x1200] sm:$0xff]
    %v1806 = vld [vmem:[#allocation8 + $0x1208] sm:$0xff]
    %v1807 = vld [vmem:[#allocation8 + $0x1210] sm:$0xff]
    %v1808 = vld [vmem:[#allocation8 + $0x1218] sm:$0xff]
    %v1809 = vld [vmem:[#allocation8 + $0x1220] sm:$0xff]
    %v1810 = vld [vmem:[#allocation8 + $0x1228] sm:$0xff]
    %v1811 = vld [vmem:[#allocation8 + $0x1230] sm:$0xff]
    %v1812 = vld [vmem:[#allocation8 + $0x1238] sm:$0xff]
    %v1813 = vld [vmem:[#allocation8 + $0x1240] sm:$0xff]
    %v1814 = vld [vmem:[#allocation8 + $0x1248] sm:$0xff]
    %v1815 = vld [vmem:[#allocation8 + $0x1250] sm:$0xff]
    %v1816 = vld [vmem:[#allocation8 + $0x1258] sm:$0xff]
    %v1817 = vld [vmem:[#allocation8 + $0x1260] sm:$0xff]
    %v1818 = vld [vmem:[#allocation8 + $0x1268] sm:$0xff]
    %v1819 = vld [vmem:[#allocation8 + $0x1270] sm:$0xff]
    %v1820 = vld [vmem:[#allocation8 + $0x1278] sm:$0xff]
    %v1821 = vld [vmem:[#allocation8 + $0x1280] sm:$0xff]
    %v1822 = vld [vmem:[#allocation8 + $0x1288] sm:$0xff]
    %v1823 = vld [vmem:[#allocation8 + $0x1290] sm:$0xff]
    %v1824 = vld [vmem:[#allocation8 + $0x1298] sm:$0xff]
    %v1825 = vld [vmem:[#allocation8 + $0x12a0] sm:$0xff]
    %v1826 = vld [vmem:[#allocation8 + $0x12a8] sm:$0xff]
    %v1827 = vld [vmem:[#allocation8 + $0x12b0] sm:$0xff]
    %v1828 = vld [vmem:[#allocation8 + $0x12b8] sm:$0xff]
    %v1829 = vld [vmem:[#allocation8 + $0x12c0] sm:$0xff]
    %v1830 = vld [vmem:[#allocation8 + $0x12c8] sm:$0xff]
    %v1831 = vld [vmem:[#allocation8 + $0x12d0] sm:$0xff]
    %v1832 = vld [vmem:[#allocation8 + $0x12d8] sm:$0xff]
    %v1833 = vld [vmem:[#allocation8 + $0x12e0] sm:$0xff]
    %v1834 = vld [vmem:[#allocation8 + $0x12e8] sm:$0xff]
    %v1835 = vld [vmem:[#allocation8 + $0x12f0] sm:$0xff]
    %v1836 = vld [vmem:[#allocation8 + $0x12f8] sm:$0xff]
    %v1837 = vld [vmem:[#allocation8 + $0x1300] sm:$0xff]
    %v1838 = vld [vmem:[#allocation8 + $0x1308] sm:$0xff]
    %v1839 = vld [vmem:[#allocation8 + $0x1310] sm:$0xff]
    %v1840 = vld [vmem:[#allocation8 + $0x1318] sm:$0xff]
    %v1841 = vld [vmem:[#allocation8 + $0x1320] sm:$0xff]
    %v1842 = vld [vmem:[#allocation8 + $0x1328] sm:$0xff]
    %v1843 = vld [vmem:[#allocation8 + $0x1330] sm:$0xff]
    %v1844 = vld [vmem:[#allocation8 + $0x1338] sm:$0xff]
    %v1845 = vld [vmem:[#allocation8 + $0x1340] sm:$0xff]
    %v1846 = vld [vmem:[#allocation8 + $0x1348] sm:$0xff]
    %v1847 = vld [vmem:[#allocation8 + $0x1350] sm:$0xff]
    %v1848 = vld [vmem:[#allocation8 + $0x1358] sm:$0xff]
    %v1849 = vld [vmem:[#allocation8 + $0x1360] sm:$0xff]
    %v1850 = vld [vmem:[#allocation8 + $0x1368] sm:$0xff]
    %v1851 = vld [vmem:[#allocation8 + $0x1370] sm:$0xff]
    %v1852 = vld [vmem:[#allocation8 + $0x1378] sm:$0xff]
    %v1853 = vld [vmem:[#allocation8 + $0x1380] sm:$0xff]
    %v1854 = vld [vmem:[#allocation8 + $0x1388] sm:$0xff]
    %v1855 = vld [vmem:[#allocation8 + $0x1390] sm:$0xff]
    %v1856 = vld [vmem:[#allocation8 + $0x1398] sm:$0xff]
    %v1857 = vld [vmem:[#allocation8 + $0x13a0] sm:$0xff]
    %v1858 = vld [vmem:[#allocation8 + $0x13a8] sm:$0xff]
    %v1859 = vld [vmem:[#allocation8 + $0x13b0] sm:$0xff]
    %v1860 = vld [vmem:[#allocation8 + $0x13b8] sm:$0xff]
    %v1861 = vld [vmem:[#allocation8 + $0x13c0] sm:$0xff]
    %v1862 = vld [vmem:[#allocation8 + $0x13c8] sm:$0xff]
    %v1863 = vld [vmem:[#allocation8 + $0x13d0] sm:$0xff]
    %v1864 = vld [vmem:[#allocation8 + $0x13d8] sm:$0xff]
    %v1865 = vld [vmem:[#allocation8 + $0x13e0] sm:$0xff]
    %v1866 = vld [vmem:[#allocation8 + $0x13e8] sm:$0xff]
    %v1867 = vld [vmem:[#allocation8 + $0x13f0] sm:$0xff]
    %v1868 = vld [vmem:[#allocation8 + $0x13f8] sm:$0xff]
    %v1869 = vld [vmem:[#allocation8 + $0x1400] sm:$0xff]
    %v1870 = vld [vmem:[#allocation8 + $0x1408] sm:$0xff]
    %v1871 = vld [vmem:[#allocation8 + $0x1410] sm:$0xff]
    %v1872 = vld [vmem:[#allocation8 + $0x1418] sm:$0xff]
    %v1873 = vld [vmem:[#allocation8 + $0x1420] sm:$0xff]
    %v1874 = vld [vmem:[#allocation8 + $0x1428] sm:$0xff]
    %v1875 = vld [vmem:[#allocation8 + $0x1430] sm:$0xff]
    %v1876 = vld [vmem:[#allocation8 + $0x1438] sm:$0xff]
    %v1877 = vld [vmem:[#allocation8 + $0x1440] sm:$0xff]
    %v1878 = vld [vmem:[#allocation8 + $0x1448] sm:$0xff]
    %v1879 = vld [vmem:[#allocation8 + $0x1450] sm:$0xff]
    %v1880 = vld [vmem:[#allocation8 + $0x1458] sm:$0xff]
    %v1881 = vld [vmem:[#allocation8 + $0x1460] sm:$0xff]
    %v1882 = vld [vmem:[#allocation8 + $0x1468] sm:$0xff]
    %v1883 = vld [vmem:[#allocation8 + $0x1470] sm:$0xff]
    %v1884 = vld [vmem:[#allocation8 + $0x1478] sm:$0xff]
    %v1885 = vld [vmem:[#allocation8 + $0x1480] sm:$0xff]
    %v1886 = vld [vmem:[#allocation8 + $0x1488] sm:$0xff]
    %v1887 = vld [vmem:[#allocation8 + $0x1490] sm:$0xff]
    %v1888 = vld [vmem:[#allocation8 + $0x1498] sm:$0xff]
    %v1889 = vld [vmem:[#allocation8 + $0x14a0] sm:$0xff]
    %v1890 = vld [vmem:[#allocation8 + $0x14a8] sm:$0xff]
    %v1891 = vld [vmem:[#allocation8 + $0x14b0] sm:$0xff]
    %v1892 = vld [vmem:[#allocation8 + $0x14b8] sm:$0xff]
    %v1893 = vld [vmem:[#allocation8 + $0x14c0] sm:$0xff]
    %v1894 = vld [vmem:[#allocation8 + $0x14c8] sm:$0xff]
    %v1895 = vld [vmem:[#allocation8 + $0x14d0] sm:$0xff]
    %v1896 = vld [vmem:[#allocation8 + $0x14d8] sm:$0xff]
    %v1897 = vld [vmem:[#allocation8 + $0x14e0] sm:$0xff]
    %v1898 = vld [vmem:[#allocation8 + $0x14e8] sm:$0xff]
    %v1899 = vld [vmem:[#allocation8 + $0x14f0] sm:$0xff]
    %v1900 = vld [vmem:[#allocation8 + $0x14f8] sm:$0xff]
    %v1901 = vld [vmem:[#allocation8 + $0x1500] sm:$0xff]
    %v1902 = vld [vmem:[#allocation8 + $0x1508] sm:$0xff]
    %v1903 = vld [vmem:[#allocation8 + $0x1510] sm:$0xff]
    %v1904 = vld [vmem:[#allocation8 + $0x1518] sm:$0xff]
    %v1905 = vld [vmem:[#allocation8 + $0x1520] sm:$0xff]
    %v1906 = vld [vmem:[#allocation8 + $0x1528] sm:$0xff]
    %v1907 = vld [vmem:[#allocation8 + $0x1530] sm:$0xff]
    %v1908 = vld [vmem:[#allocation8 + $0x1538] sm:$0xff]
    %v1909 = vld [vmem:[#allocation8 + $0x1540] sm:$0xff]
    %v1910 = vld [vmem:[#allocation8 + $0x1548] sm:$0xff]
    %v1911 = vld [vmem:[#allocation8 + $0x1550] sm:$0xff]
    %v1912 = vld [vmem:[#allocation8 + $0x1558] sm:$0xff]
    %v1913 = vld [vmem:[#allocation8 + $0x1560] sm:$0xff]
    %v1914 = vld [vmem:[#allocation8 + $0x1568] sm:$0xff]
    %v1915 = vld [vmem:[#allocation8 + $0x1570] sm:$0xff]
    %v1916 = vld [vmem:[#allocation8 + $0x1578] sm:$0xff]
    %v1917 = vld [vmem:[#allocation8 + $0x1580] sm:$0xff]
    %v1918 = vld [vmem:[#allocation8 + $0x1588] sm:$0xff]
    %v1919 = vld [vmem:[#allocation8 + $0x1590] sm:$0xff]
    %v1920 = vld [vmem:[#allocation8 + $0x1598] sm:$0xff]
    %v1921 = vld [vmem:[#allocation8 + $0x15a0] sm:$0xff]
    %v1922 = vld [vmem:[#allocation8 + $0x15a8] sm:$0xff]
    %v1923 = vld [vmem:[#allocation8 + $0x15b0] sm:$0xff]
    %v1924 = vld [vmem:[#allocation8 + $0x15b8] sm:$0xff]
    %v1925 = vld [vmem:[#allocation8 + $0x15c0] sm:$0xff]
    %v1926 = vld [vmem:[#allocation8 + $0x15c8] sm:$0xff]
    %v1927 = vld [vmem:[#allocation8 + $0x15d0] sm:$0xff]
    %v1928 = vld [vmem:[#allocation8 + $0x15d8] sm:$0xff]
    %v1929 = vld [vmem:[#allocation8 + $0x15e0] sm:$0xff]
    %v1930 = vld [vmem:[#allocation8 + $0x15e8] sm:$0xff]
    %v1931 = vld [vmem:[#allocation8 + $0x15f0] sm:$0xff]
    %v1932 = vld [vmem:[#allocation8 + $0x15f8] sm:$0xff]
    %v1933 = vld [vmem:[#allocation8 + $0x1600] sm:$0xff]
    %v1934 = vld [vmem:[#allocation8 + $0x1608] sm:$0xff]
    %v1935 = vld [vmem:[#allocation8 + $0x1610] sm:$0xff]
    %v1936 = vld [vmem:[#allocation8 + $0x1618] sm:$0xff]
    %v1937 = vld [vmem:[#allocation8 + $0x1620] sm:$0xff]
    %v1938 = vld [vmem:[#allocation8 + $0x1628] sm:$0xff]
    %v1939 = vld [vmem:[#allocation8 + $0x1630] sm:$0xff]
    %v1940 = vld [vmem:[#allocation8 + $0x1638] sm:$0xff]
    %v1941 = vld [vmem:[#allocation8 + $0x1640] sm:$0xff]
    %v1942 = vld [vmem:[#allocation8 + $0x1648] sm:$0xff]
    %v1943 = vld [vmem:[#allocation8 + $0x1650] sm:$0xff]
    %v1944 = vld [vmem:[#allocation8 + $0x1658] sm:$0xff]
    %v1945 = vld [vmem:[#allocation8 + $0x1660] sm:$0xff]
    %v1946 = vld [vmem:[#allocation8 + $0x1668] sm:$0xff]
    %v1947 = vld [vmem:[#allocation8 + $0x1670] sm:$0xff]
    %v1948 = vld [vmem:[#allocation8 + $0x1678] sm:$0xff]
    %v1949 = vld [vmem:[#allocation8 + $0x1680] sm:$0xff]
    %v1950 = vld [vmem:[#allocation8 + $0x1688] sm:$0xff]
    %v1951 = vld [vmem:[#allocation8 + $0x1690] sm:$0xff]
    %v1952 = vld [vmem:[#allocation8 + $0x1698] sm:$0xff]
    %v1953 = vld [vmem:[#allocation8 + $0x16a0] sm:$0xff]
    %v1954 = vld [vmem:[#allocation8 + $0x16a8] sm:$0xff]
    %v1955 = vld [vmem:[#allocation8 + $0x16b0] sm:$0xff]
    %v1956 = vld [vmem:[#allocation8 + $0x16b8] sm:$0xff]
    %v1957 = vld [vmem:[#allocation8 + $0x16c0] sm:$0xff]
    %v1958 = vld [vmem:[#allocation8 + $0x16c8] sm:$0xff]
    %v1959 = vld [vmem:[#allocation8 + $0x16d0] sm:$0xff]
    %v1960 = vld [vmem:[#allocation8 + $0x16d8] sm:$0xff]
    %v1961 = vld [vmem:[#allocation8 + $0x16e0] sm:$0xff]
    %v1962 = vld [vmem:[#allocation8 + $0x16e8] sm:$0xff]
    %v1963 = vld [vmem:[#allocation8 + $0x16f0] sm:$0xff]
    %v1964 = vld [vmem:[#allocation8 + $0x16f8] sm:$0xff]
    %v1965 = vld [vmem:[#allocation8 + $0x1700] sm:$0xff]
    %v1966 = vld [vmem:[#allocation8 + $0x1708] sm:$0xff]
    %v1967 = vld [vmem:[#allocation8 + $0x1710] sm:$0xff]
    %v1968 = vld [vmem:[#allocation8 + $0x1718] sm:$0xff]
    %v1969 = vld [vmem:[#allocation8 + $0x1720] sm:$0xff]
    %v1970 = vld [vmem:[#allocation8 + $0x1728] sm:$0xff]
    %v1971 = vld [vmem:[#allocation8 + $0x1730] sm:$0xff]
    %v1972 = vld [vmem:[#allocation8 + $0x1738] sm:$0xff]
    %v1973 = vld [vmem:[#allocation8 + $0x1740] sm:$0xff]
    %v1974 = vld [vmem:[#allocation8 + $0x1748] sm:$0xff]
    %v1975 = vld [vmem:[#allocation8 + $0x1750] sm:$0xff]
    %v1976 = vld [vmem:[#allocation8 + $0x1758] sm:$0xff]
    %v1977 = vld [vmem:[#allocation8 + $0x1760] sm:$0xff]
    %v1978 = vld [vmem:[#allocation8 + $0x1768] sm:$0xff]
    %v1979 = vld [vmem:[#allocation8 + $0x1770] sm:$0xff]
    %v1980 = vld [vmem:[#allocation8 + $0x1778] sm:$0xff]
    %v1981 = vld [vmem:[#allocation8 + $0x1780] sm:$0xff]
    %v1982 = vld [vmem:[#allocation8 + $0x1788] sm:$0xff]
    %v1983 = vld [vmem:[#allocation8 + $0x1790] sm:$0xff]
    %v1984 = vld [vmem:[#allocation8 + $0x1798] sm:$0xff]
    %v1985 = vld [vmem:[#allocation8 + $0x17a0] sm:$0xff]
    %v1986 = vld [vmem:[#allocation8 + $0x17a8] sm:$0xff]
    %v1987 = vld [vmem:[#allocation8 + $0x17b0] sm:$0xff]
    %v1988 = vld [vmem:[#allocation8 + $0x17b8] sm:$0xff]
    %v1989 = vld [vmem:[#allocation8 + $0x17c0] sm:$0xff]
    %v1990 = vld [vmem:[#allocation8 + $0x17c8] sm:$0xff]
    %v1991 = vld [vmem:[#allocation8 + $0x17d0] sm:$0xff]
    %v1992 = vld [vmem:[#allocation8 + $0x17d8] sm:$0xff]
    %v1993 = vld [vmem:[#allocation8 + $0x17e0] sm:$0xff]
    %v1994 = vld [vmem:[#allocation8 + $0x17e8] sm:$0xff]
    %v1995 = vld [vmem:[#allocation8 + $0x17f0] sm:$0xff]
    %v1996 = vld [vmem:[#allocation8 + $0x17f8] sm:$0xff]
    %v1997 = vld [vmem:[#allocation8 + $0x1800] sm:$0xff]
    %v1998 = vld [vmem:[#allocation8 + $0x1808] sm:$0xff]
    %v1999 = vld [vmem:[#allocation8 + $0x1810] sm:$0xff]
    %v2000 = vld [vmem:[#allocation8 + $0x1818] sm:$0xff]
    %v2001 = vld [vmem:[#allocation8 + $0x1820] sm:$0xff]
    %v2002 = vld [vmem:[#allocation8 + $0x1828] sm:$0xff]
    %v2003 = vld [vmem:[#allocation8 + $0x1830] sm:$0xff]
    %v2004 = vld [vmem:[#allocation8 + $0x1838] sm:$0xff]
    %v2005 = vld [vmem:[#allocation8 + $0x1840] sm:$0xff]
    %v2006 = vld [vmem:[#allocation8 + $0x1848] sm:$0xff]
    %v2007 = vld [vmem:[#allocation8 + $0x1850] sm:$0xff]
    %v2008 = vld [vmem:[#allocation8 + $0x1858] sm:$0xff]
    %v2009 = vld [vmem:[#allocation8 + $0x1860] sm:$0xff]
    %v2010 = vld [vmem:[#allocation8 + $0x1868] sm:$0xff]
    %v2011 = vld [vmem:[#allocation8 + $0x1870] sm:$0xff]
    %v2012 = vld [vmem:[#allocation8 + $0x1878] sm:$0xff]
    %v2013 = vld [vmem:[#allocation8 + $0x1880] sm:$0xff]
    %v2014 = vld [vmem:[#allocation8 + $0x1888] sm:$0xff]
    %v2015 = vld [vmem:[#allocation8 + $0x1890] sm:$0xff]
    %v2016 = vld [vmem:[#allocation8 + $0x1898] sm:$0xff]
    %v2017 = vld [vmem:[#allocation8 + $0x18a0] sm:$0xff]
    %v2018 = vld [vmem:[#allocation8 + $0x18a8] sm:$0xff]
    %v2019 = vld [vmem:[#allocation8 + $0x18b0] sm:$0xff]
    %v2020 = vld [vmem:[#allocation8 + $0x18b8] sm:$0xff]
    %v2021 = vld [vmem:[#allocation8 + $0x18c0] sm:$0xff]
    %v2022 = vld [vmem:[#allocation8 + $0x18c8] sm:$0xff]
    %v2023 = vld [vmem:[#allocation8 + $0x18d0] sm:$0xff]
    %v2024 = vld [vmem:[#allocation8 + $0x18d8] sm:$0xff]
    %v2025 = vld [vmem:[#allocation8 + $0x18e0] sm:$0xff]
    %v2026 = vld [vmem:[#allocation8 + $0x18e8] sm:$0xff]
    %v2027 = vld [vmem:[#allocation8 + $0x18f0] sm:$0xff]
    %v2028 = vld [vmem:[#allocation8 + $0x18f8] sm:$0xff]
    %v2029 = vld [vmem:[#allocation8 + $0x1900] sm:$0xff]
    %v2030 = vld [vmem:[#allocation8 + $0x1908] sm:$0xff]
    %v2031 = vld [vmem:[#allocation8 + $0x1910] sm:$0xff]
    %v2032 = vld [vmem:[#allocation8 + $0x1918] sm:$0xff]
    %v2033 = vld [vmem:[#allocation8 + $0x1920] sm:$0xff]
    %v2034 = vld [vmem:[#allocation8 + $0x1928] sm:$0xff]
    %v2035 = vld [vmem:[#allocation8 + $0x1930] sm:$0xff]
    %v2036 = vld [vmem:[#allocation8 + $0x1938] sm:$0xff]
    %v2037 = vld [vmem:[#allocation8 + $0x1940] sm:$0xff]
    %v2038 = vld [vmem:[#allocation8 + $0x1948] sm:$0xff]
    %v2039 = vld [vmem:[#allocation8 + $0x1950] sm:$0xff]
    %v2040 = vld [vmem:[#allocation8 + $0x1958] sm:$0xff]
    %v2041 = vld [vmem:[#allocation8 + $0x1960] sm:$0xff]
    %v2042 = vld [vmem:[#allocation8 + $0x1968] sm:$0xff]
    %v2043 = vld [vmem:[#allocation8 + $0x1970] sm:$0xff]
    %v2044 = vld [vmem:[#allocation8 + $0x1978] sm:$0xff]
    %v2045 = vld [vmem:[#allocation8 + $0x1980] sm:$0xff]
    %v2046 = vld [vmem:[#allocation8 + $0x1988] sm:$0xff]
    %v2047 = vld [vmem:[#allocation8 + $0x1990] sm:$0xff]
    %v2048 = vld [vmem:[#allocation8 + $0x1998] sm:$0xff]
    %v2049 = vld [vmem:[#allocation8 + $0x19a0] sm:$0xff]
    %v2050 = vld [vmem:[#allocation8 + $0x19a8] sm:$0xff]
    %v2051 = vld [vmem:[#allocation8 + $0x19b0] sm:$0xff]
    %v2052 = vld [vmem:[#allocation8 + $0x19b8] sm:$0xff]
    %v2053 = vld [vmem:[#allocation8 + $0x19c0] sm:$0xff]
    %v2054 = vld [vmem:[#allocation8 + $0x19c8] sm:$0xff]
    %v2055 = vld [vmem:[#allocation8 + $0x19d0] sm:$0xff]
    %v2056 = vld [vmem:[#allocation8 + $0x19d8] sm:$0xff]
    %v2057 = vld [vmem:[#allocation8 + $0x19e0] sm:$0xff]
    %v2058 = vld [vmem:[#allocation8 + $0x19e8] sm:$0xff]
    %v2059 = vld [vmem:[#allocation8 + $0x19f0] sm:$0xff]
    %v2060 = vld [vmem:[#allocation8 + $0x19f8] sm:$0xff]
    %v2061 = vld [vmem:[#allocation8 + $0x1a00] sm:$0xff]
    %v2062 = vld [vmem:[#allocation8 + $0x1a08] sm:$0xff]
    %v2063 = vld [vmem:[#allocation8 + $0x1a10] sm:$0xff]
    %v2064 = vld [vmem:[#allocation8 + $0x1a18] sm:$0xff]
    %v2065 = vld [vmem:[#allocation8 + $0x1a20] sm:$0xff]
    %v2066 = vld [vmem:[#allocation8 + $0x1a28] sm:$0xff]
    %v2067 = vld [vmem:[#allocation8 + $0x1a30] sm:$0xff]
    %v2068 = vld [vmem:[#allocation8 + $0x1a38] sm:$0xff]
    %v2069 = vld [vmem:[#allocation8 + $0x1a40] sm:$0xff]
    %v2070 = vld [vmem:[#allocation8 + $0x1a48] sm:$0xff]
    %v2071 = vld [vmem:[#allocation8 + $0x1a50] sm:$0xff]
    %v2072 = vld [vmem:[#allocation8 + $0x1a58] sm:$0xff]
    %v2073 = vld [vmem:[#allocation8 + $0x1a60] sm:$0xff]
    %v2074 = vld [vmem:[#allocation8 + $0x1a68] sm:$0xff]
    %v2075 = vld [vmem:[#allocation8 + $0x1a70] sm:$0xff]
    %v2076 = vld [vmem:[#allocation8 + $0x1a78] sm:$0xff]
    %v2077 = vld [vmem:[#allocation8 + $0x1a80] sm:$0xff]
    %v2078 = vld [vmem:[#allocation8 + $0x1a88] sm:$0xff]
    %v2079 = vld [vmem:[#allocation8 + $0x1a90] sm:$0xff]
    %v2080 = vld [vmem:[#allocation8 + $0x1a98] sm:$0xff]
    %v2081 = vld [vmem:[#allocation8 + $0x1aa0] sm:$0xff]
    %v2082 = vld [vmem:[#allocation8 + $0x1aa8] sm:$0xff]
    %v2083 = vld [vmem:[#allocation8 + $0x1ab0] sm:$0xff]
    %v2084 = vld [vmem:[#allocation8 + $0x1ab8] sm:$0xff]
    %v2085 = vld [vmem:[#allocation8 + $0x1ac0] sm:$0xff]
    %v2086 = vld [vmem:[#allocation8 + $0x1ac8] sm:$0xff]
    %v2087 = vld [vmem:[#allocation8 + $0x1ad0] sm:$0xff]
    %v2088 = vld [vmem:[#allocation8 + $0x1ad8] sm:$0xff]
    %v2089 = vld [vmem:[#allocation8 + $0x1ae0] sm:$0xff]
    %v2090 = vld [vmem:[#allocation8 + $0x1ae8] sm:$0xff]
    %v2091 = vld [vmem:[#allocation8 + $0x1af0] sm:$0xff]
    %v2092 = vld [vmem:[#allocation8 + $0x1af8] sm:$0xff]
    %v2093 = vld [vmem:[#allocation8 + $0x1b00] sm:$0xff]
    %v2094 = vld [vmem:[#allocation8 + $0x1b08] sm:$0xff]
    %v2095 = vld [vmem:[#allocation8 + $0x1b10] sm:$0xff]
    %v2096 = vld [vmem:[#allocation8 + $0x1b18] sm:$0xff]
    %v2097 = vld [vmem:[#allocation8 + $0x1b20] sm:$0xff]
    %v2098 = vld [vmem:[#allocation8 + $0x1b28] sm:$0xff]
    %v2099 = vld [vmem:[#allocation8 + $0x1b30] sm:$0xff]
    %v2100 = vld [vmem:[#allocation8 + $0x1b38] sm:$0xff]
    %v2101 = vld [vmem:[#allocation8 + $0x1b40] sm:$0xff]
    %v2102 = vld [vmem:[#allocation8 + $0x1b48] sm:$0xff]
    %v2103 = vld [vmem:[#allocation8 + $0x1b50] sm:$0xff]
    %v2104 = vld [vmem:[#allocation8 + $0x1b58] sm:$0xff]
    %v2105 = vld [vmem:[#allocation8 + $0x1b60] sm:$0xff]
    %v2106 = vld [vmem:[#allocation8 + $0x1b68] sm:$0xff]
    %v2107 = vld [vmem:[#allocation8 + $0x1b70] sm:$0xff]
    %v2108 = vld [vmem:[#allocation8 + $0x1b78] sm:$0xff]
    %v2109 = vld [vmem:[#allocation8 + $0x1b80] sm:$0xff]
    %v2110 = vld [vmem:[#allocation8 + $0x1b88] sm:$0xff]
    %v2111 = vld [vmem:[#allocation8 + $0x1b90] sm:$0xff]
    %v2112 = vld [vmem:[#allocation8 + $0x1b98] sm:$0xff]
    %v2113 = vld [vmem:[#allocation8 + $0x1ba0] sm:$0xff]
    %v2114 = vld [vmem:[#allocation8 + $0x1ba8] sm:$0xff]
    %v2115 = vld [vmem:[#allocation8 + $0x1bb0] sm:$0xff]
    %v2116 = vld [vmem:[#allocation8 + $0x1bb8] sm:$0xff]
    %v2117 = vld [vmem:[#allocation8 + $0x1bc0] sm:$0xff]
    %v2118 = vld [vmem:[#allocation8 + $0x1bc8] sm:$0xff]
    %v2119 = vld [vmem:[#allocation8 + $0x1bd0] sm:$0xff]
    %v2120 = vld [vmem:[#allocation8 + $0x1bd8] sm:$0xff]
    %v2121 = vld [vmem:[#allocation8 + $0x1be0] sm:$0xff]
    %v2122 = vld [vmem:[#allocation8 + $0x1be8] sm:$0xff]
    %v2123 = vld [vmem:[#allocation8 + $0x1bf0] sm:$0xff]
    %v2124 = vld [vmem:[#allocation8 + $0x1bf8] sm:$0xff]
    %v2125 = vld [vmem:[#allocation8 + $0x1c00] sm:$0xff]
    %v2126 = vld [vmem:[#allocation8 + $0x1c08] sm:$0xff]
    %v2127 = vld [vmem:[#allocation8 + $0x1c10] sm:$0xff]
    %v2128 = vld [vmem:[#allocation8 + $0x1c18] sm:$0xff]
    %v2129 = vld [vmem:[#allocation8 + $0x1c20] sm:$0xff]
    %v2130 = vld [vmem:[#allocation8 + $0x1c28] sm:$0xff]
    %v2131 = vld [vmem:[#allocation8 + $0x1c30] sm:$0xff]
    %v2132 = vld [vmem:[#allocation8 + $0x1c38] sm:$0xff]
    %v2133 = vld [vmem:[#allocation8 + $0x1c40] sm:$0xff]
    %v2134 = vld [vmem:[#allocation8 + $0x1c48] sm:$0xff]
    %v2135 = vld [vmem:[#allocation8 + $0x1c50] sm:$0xff]
    %v2136 = vld [vmem:[#allocation8 + $0x1c58] sm:$0xff]
    %v2137 = vld [vmem:[#allocation8 + $0x1c60] sm:$0xff]
    %v2138 = vld [vmem:[#allocation8 + $0x1c68] sm:$0xff]
    %v2139 = vld [vmem:[#allocation8 + $0x1c70] sm:$0xff]
    %v2140 = vld [vmem:[#allocation8 + $0x1c78] sm:$0xff]
    %v2141 = vld [vmem:[#allocation8 + $0x1c80] sm:$0xff]
    %v2142 = vld [vmem:[#allocation8 + $0x1c88] sm:$0xff]
    %v2143 = vld [vmem:[#allocation8 + $0x1c90] sm:$0xff]
    %v2144 = vld [vmem:[#allocation8 + $0x1c98] sm:$0xff]
    %v2145 = vld [vmem:[#allocation8 + $0x1ca0] sm:$0xff]
    %v2146 = vld [vmem:[#allocation8 + $0x1ca8] sm:$0xff]
    %v2147 = vld [vmem:[#allocation8 + $0x1cb0] sm:$0xff]
    %v2148 = vld [vmem:[#allocation8 + $0x1cb8] sm:$0xff]
    %v2149 = vld [vmem:[#allocation8 + $0x1cc0] sm:$0xff]
    %v2150 = vld [vmem:[#allocation8 + $0x1cc8] sm:$0xff]
    %v2151 = vld [vmem:[#allocation8 + $0x1cd0] sm:$0xff]
    %v2152 = vld [vmem:[#allocation8 + $0x1cd8] sm:$0xff]
    %v2153 = vld [vmem:[#allocation8 + $0x1ce0] sm:$0xff]
    %v2154 = vld [vmem:[#allocation8 + $0x1ce8] sm:$0xff]
    %v2155 = vld [vmem:[#allocation8 + $0x1cf0] sm:$0xff]
    %v2156 = vld [vmem:[#allocation8 + $0x1cf8] sm:$0xff]
    %v2157 = vld [vmem:[#allocation8 + $0x1d00] sm:$0xff]
    %v2158 = vld [vmem:[#allocation8 + $0x1d08] sm:$0xff]
    %v2159 = vld [vmem:[#allocation8 + $0x1d10] sm:$0xff]
    %v2160 = vld [vmem:[#allocation8 + $0x1d18] sm:$0xff]
    %v2161 = vld [vmem:[#allocation8 + $0x1d20] sm:$0xff]
    %v2162 = vld [vmem:[#allocation8 + $0x1d28] sm:$0xff]
    %v2163 = vld [vmem:[#allocation8 + $0x1d30] sm:$0xff]
    %v2164 = vld [vmem:[#allocation8 + $0x1d38] sm:$0xff]
    %v2165 = vld [vmem:[#allocation8 + $0x1d40] sm:$0xff]
    %v2166 = vld [vmem:[#allocation8 + $0x1d48] sm:$0xff]
    %v2167 = vld [vmem:[#allocation8 + $0x1d50] sm:$0xff]
    %v2168 = vld [vmem:[#allocation8 + $0x1d58] sm:$0xff]
    %v2169 = vld [vmem:[#allocation8 + $0x1d60] sm:$0xff]
    %v2170 = vld [vmem:[#allocation8 + $0x1d68] sm:$0xff]
    %v2171 = vld [vmem:[#allocation8 + $0x1d70] sm:$0xff]
    %v2172 = vld [vmem:[#allocation8 + $0x1d78] sm:$0xff]
    %v2173 = vld [vmem:[#allocation8 + $0x1d80] sm:$0xff]
    %v2174 = vld [vmem:[#allocation8 + $0x1d88] sm:$0xff]
    %v2175 = vld [vmem:[#allocation8 + $0x1d90] sm:$0xff]
    %v2176 = vld [vmem:[#allocation8 + $0x1d98] sm:$0xff]
    %v2177 = vld [vmem:[#allocation8 + $0x1da0] sm:$0xff]
    %v2178 = vld [vmem:[#allocation8 + $0x1da8] sm:$0xff]
    %v2179 = vld [vmem:[#allocation8 + $0x1db0] sm:$0xff]
    %v2180 = vld [vmem:[#allocation8 + $0x1db8] sm:$0xff]
    %v2181 = vld [vmem:[#allocation8 + $0x1dc0] sm:$0xff]
    %v2182 = vld [vmem:[#allocation8 + $0x1dc8] sm:$0xff]
    %v2183 = vld [vmem:[#allocation8 + $0x1dd0] sm:$0xff]
    %v2184 = vld [vmem:[#allocation8 + $0x1dd8] sm:$0xff]
    %v2185 = vld [vmem:[#allocation8 + $0x1de0] sm:$0xff]
    %v2186 = vld [vmem:[#allocation8 + $0x1de8] sm:$0xff]
    %v2187 = vld [vmem:[#allocation8 + $0x1df0] sm:$0xff]
    %v2188 = vld [vmem:[#allocation8 + $0x1df8] sm:$0xff]
    %v2189 = vld [vmem:[#allocation8 + $0x1e00] sm:$0xff]
    %v2190 = vld [vmem:[#allocation8 + $0x1e08] sm:$0xff]
    %v2191 = vld [vmem:[#allocation8 + $0x1e10] sm:$0xff]
    %v2192 = vld [vmem:[#allocation8 + $0x1e18] sm:$0xff]
    %v2193 = vld [vmem:[#allocation8 + $0x1e20] sm:$0xff]
    %v2194 = vld [vmem:[#allocation8 + $0x1e28] sm:$0xff]
    %v2195 = vld [vmem:[#allocation8 + $0x1e30] sm:$0xff]
    %v2196 = vld [vmem:[#allocation8 + $0x1e38] sm:$0xff]
    %v2197 = vld [vmem:[#allocation8 + $0x1e40] sm:$0xff]
    %v2198 = vld [vmem:[#allocation8 + $0x1e48] sm:$0xff]
    %v2199 = vld [vmem:[#allocation8 + $0x1e50] sm:$0xff]
    %v2200 = vld [vmem:[#allocation8 + $0x1e58] sm:$0xff]
    %v2201 = vld [vmem:[#allocation8 + $0x1e60] sm:$0xff]
    %v2202 = vld [vmem:[#allocation8 + $0x1e68] sm:$0xff]
    %v2203 = vld [vmem:[#allocation8 + $0x1e70] sm:$0xff]
    %v2204 = vld [vmem:[#allocation8 + $0x1e78] sm:$0xff]
    %v2205 = vld [vmem:[#allocation8 + $0x1e80] sm:$0xff]
    %v2206 = vld [vmem:[#allocation8 + $0x1e88] sm:$0xff]
    %v2207 = vld [vmem:[#allocation8 + $0x1e90] sm:$0xff]
    %v2208 = vld [vmem:[#allocation8 + $0x1e98] sm:$0xff]
    %v2209 = vld [vmem:[#allocation8 + $0x1ea0] sm:$0xff]
    %v2210 = vld [vmem:[#allocation8 + $0x1ea8] sm:$0xff]
    %v2211 = vld [vmem:[#allocation8 + $0x1eb0] sm:$0xff]
    %v2212 = vld [vmem:[#allocation8 + $0x1eb8] sm:$0xff]
    %v2213 = vld [vmem:[#allocation8 + $0x1ec0] sm:$0xff]
    %v2214 = vld [vmem:[#allocation8 + $0x1ec8] sm:$0xff]
    %v2215 = vld [vmem:[#allocation8 + $0x1ed0] sm:$0xff]
    %v2216 = vld [vmem:[#allocation8 + $0x1ed8] sm:$0xff]
    %v2217 = vld [vmem:[#allocation8 + $0x1ee0] sm:$0xff]
    %v2218 = vld [vmem:[#allocation8 + $0x1ee8] sm:$0xff]
    %v2219 = vld [vmem:[#allocation8 + $0x1ef0] sm:$0xff]
    %v2220 = vld [vmem:[#allocation8 + $0x1ef8] sm:$0xff]
    %v2221 = vld [vmem:[#allocation8 + $0x1f00] sm:$0xff]
    %v2222 = vld [vmem:[#allocation8 + $0x1f08] sm:$0xff]
    %v2223 = vld [vmem:[#allocation8 + $0x1f10] sm:$0xff]
    %v2224 = vld [vmem:[#allocation8 + $0x1f18] sm:$0xff]
    %v2225 = vld [vmem:[#allocation8 + $0x1f20] sm:$0xff]
    %v2226 = vld [vmem:[#allocation8 + $0x1f28] sm:$0xff]
    %v2227 = vld [vmem:[#allocation8 + $0x1f30] sm:$0xff]
    %v2228 = vld [vmem:[#allocation8 + $0x1f38] sm:$0xff]
    %v2229 = vld [vmem:[#allocation8 + $0x1f40] sm:$0xff]
    %v2230 = vld [vmem:[#allocation8 + $0x1f48] sm:$0xff]
    %v2231 = vld [vmem:[#allocation8 + $0x1f50] sm:$0xff]
    %v2232 = vld [vmem:[#allocation8 + $0x1f58] sm:$0xff]
    %v2233 = vld [vmem:[#allocation8 + $0x1f60] sm:$0xff]
    %v2234 = vld [vmem:[#allocation8 + $0x1f68] sm:$0xff]
    %v2235 = vld [vmem:[#allocation8 + $0x1f70] sm:$0xff]
    %v2236 = vld [vmem:[#allocation8 + $0x1f78] sm:$0xff]
    %v2237 = vld [vmem:[#allocation8 + $0x1f80] sm:$0xff]
    %v2238 = vld [vmem:[#allocation8 + $0x1f88] sm:$0xff]
    %v2239 = vld [vmem:[#allocation8 + $0x1f90] sm:$0xff]
    %v2240 = vld [vmem:[#allocation8 + $0x1f98] sm:$0xff]
    %v2241 = vld [vmem:[#allocation8 + $0x1fa0] sm:$0xff]
    %v2242 = vld [vmem:[#allocation8 + $0x1fa8] sm:$0xff]
    %v2243 = vld [vmem:[#allocation8 + $0x1fb0] sm:$0xff]
    %v2244 = vld [vmem:[#allocation8 + $0x1fb8] sm:$0xff]
    %v2245 = vld [vmem:[#allocation8 + $0x1fc0] sm:$0xff]
    %v2246 = vld [vmem:[#allocation8 + $0x1fc8] sm:$0xff]
    %v2247 = vld [vmem:[#allocation8 + $0x1fd0] sm:$0xff]
    %v2248 = vld [vmem:[#allocation8 + $0x1fd8] sm:$0xff]
    %v2249 = vld [vmem:[#allocation8 + $0x1fe0] sm:$0xff]
    %v2250 = vld [vmem:[#allocation8 + $0x1fe8] sm:$0xff]
    %v2251 = vld [vmem:[#allocation8 + $0x1ff0] sm:$0xff]
    %v2252 = vld [vmem:[#allocation8 + $0x1ff8] sm:$0xff]
    %v2253 = vld [vmem:[#allocation10] sm:$0xff]
    %v2255 = vlaneseq
    %v2256 = vshrl.u32 %v2255, 7
    %v2257 = vsub.s32 0, %v2256
    %v2258 = vrot.slane %v2253, %v2257
    %v2259 = vlaneseq
    %v2260 = vshrl.u32 %v2259, 7
    %v2261 = vsub.s32 1, %v2260
    %v2262 = vrot.slane %v2253, %v2261
    %v2263 = vlaneseq
    %v2264 = vshrl.u32 %v2263, 7
    %v2265 = vsub.s32 2, %v2264
    %v2266 = vrot.slane %v2253, %v2265
    %v2267 = vlaneseq
    %v2268 = vshrl.u32 %v2267, 7
    %v2269 = vsub.s32 3, %v2268
    %v2270 = vrot.slane %v2253, %v2269
    %v2271 = vlaneseq
    %v2272 = vshrl.u32 %v2271, 7
    %v2273 = vsub.s32 4, %v2272
    %v2274 = vrot.slane %v2253, %v2273
    %v2275 = vlaneseq
    %v2276 = vshrl.u32 %v2275, 7
    %v2277 = vsub.s32 5, %v2276
    %v2278 = vrot.slane %v2253, %v2277
    %v2279 = vlaneseq
    %v2280 = vshrl.u32 %v2279, 7
    %v2281 = vsub.s32 6, %v2280
    %v2282 = vrot.slane %v2253, %v2281
    %v2283 = vlaneseq
    %v2284 = vshrl.u32 %v2283, 7
    %v2285 = vsub.s32 7, %v2284
    %v2286 = vrot.slane %v2253, %v2285
    %v3319 = vunpack.c.l.b16 %v1229
    %v3320 = vunpack.c.h.b16 %v1229
    %v3321 = vunpack.c.l.b16 %v1230
    %v3322 = vunpack.c.h.b16 %v1230
    %v3323 = vunpack.c.l.b16 %v1231
    %v3324 = vunpack.c.h.b16 %v1231
    %v3325 = vunpack.c.l.b16 %v1232
    %v3326 = vunpack.c.h.b16 %v1232
    %v3327 = vunpack.c.l.b16 %v1233
    %v3328 = vunpack.c.h.b16 %v1233
    %v3329 = vunpack.c.l.b16 %v1234
    %v3330 = vunpack.c.h.b16 %v1234
    %v3331 = vunpack.c.l.b16 %v1235
    %v3332 = vunpack.c.h.b16 %v1235
    %v3333 = vunpack.c.l.b16 %v1236
    %v3334 = vunpack.c.h.b16 %v1236
    %v3335 = vunpack.c.l.b16 %v1237
    %v3336 = vunpack.c.h.b16 %v1237
    %v3337 = vunpack.c.l.b16 %v1238
    %v3338 = vunpack.c.h.b16 %v1238
    %v3339 = vunpack.c.l.b16 %v1239
    %v3340 = vunpack.c.h.b16 %v1239
    %v3341 = vunpack.c.l.b16 %v1240
    %v3342 = vunpack.c.h.b16 %v1240
    %v3343 = vunpack.c.l.b16 %v1241
    %v3344 = vunpack.c.h.b16 %v1241
    %v3345 = vunpack.c.l.b16 %v1242
    %v3346 = vunpack.c.h.b16 %v1242
    %v3347 = vunpack.c.l.b16 %v1243
    %v3348 = vunpack.c.h.b16 %v1243
    %v3349 = vunpack.c.l.b16 %v1244
    %v3350 = vunpack.c.h.b16 %v1244
    %v3351 = vunpack.c.l.b16 %v1245
    %v3352 = vunpack.c.h.b16 %v1245
    %v3353 = vunpack.c.l.b16 %v1246
    %v3354 = vunpack.c.h.b16 %v1246
    %v3355 = vunpack.c.l.b16 %v1247
    %v3356 = vunpack.c.h.b16 %v1247
    %v3357 = vunpack.c.l.b16 %v1248
    %v3358 = vunpack.c.h.b16 %v1248
    %v3359 = vunpack.c.l.b16 %v1249
    %v3360 = vunpack.c.h.b16 %v1249
    %v3361 = vunpack.c.l.b16 %v1250
    %v3362 = vunpack.c.h.b16 %v1250
    %v3363 = vunpack.c.l.b16 %v1251
    %v3364 = vunpack.c.h.b16 %v1251
    %v3365 = vunpack.c.l.b16 %v1252
    %v3366 = vunpack.c.h.b16 %v1252
    %v3367 = vunpack.c.l.b16 %v1253
    %v3368 = vunpack.c.h.b16 %v1253
    %v3369 = vunpack.c.l.b16 %v1254
    %v3370 = vunpack.c.h.b16 %v1254
    %v3371 = vunpack.c.l.b16 %v1255
    %v3372 = vunpack.c.h.b16 %v1255
    %v3373 = vunpack.c.l.b16 %v1256
    %v3374 = vunpack.c.h.b16 %v1256
    %v3375 = vunpack.c.l.b16 %v1257
    %v3376 = vunpack.c.h.b16 %v1257
    %v3377 = vunpack.c.l.b16 %v1258
    %v3378 = vunpack.c.h.b16 %v1258
    %v3379 = vunpack.c.l.b16 %v1259
    %v3380 = vunpack.c.h.b16 %v1259
    %v3381 = vunpack.c.l.b16 %v1260
    %v3382 = vunpack.c.h.b16 %v1260
    %v3383 = vunpack.c.l.b16 %v1261
    %v3384 = vunpack.c.h.b16 %v1261
    %v3385 = vunpack.c.l.b16 %v1262
    %v3386 = vunpack.c.h.b16 %v1262
    %v3387 = vunpack.c.l.b16 %v1263
    %v3388 = vunpack.c.h.b16 %v1263
    %v3389 = vunpack.c.l.b16 %v1264
    %v3390 = vunpack.c.h.b16 %v1264
    %v3391 = vunpack.c.l.b16 %v1265
    %v3392 = vunpack.c.h.b16 %v1265
    %v3393 = vunpack.c.l.b16 %v1266
    %v3394 = vunpack.c.h.b16 %v1266
    %v3395 = vunpack.c.l.b16 %v1267
    %v3396 = vunpack.c.h.b16 %v1267
    %v3397 = vunpack.c.l.b16 %v1268
    %v3398 = vunpack.c.h.b16 %v1268
    %v3399 = vunpack.c.l.b16 %v1269
    %v3400 = vunpack.c.h.b16 %v1269
    %v3401 = vunpack.c.l.b16 %v1270
    %v3402 = vunpack.c.h.b16 %v1270
    %v3403 = vunpack.c.l.b16 %v1271
    %v3404 = vunpack.c.h.b16 %v1271
    %v3405 = vunpack.c.l.b16 %v1272
    %v3406 = vunpack.c.h.b16 %v1272
    %v3407 = vunpack.c.l.b16 %v1273
    %v3408 = vunpack.c.h.b16 %v1273
    %v3409 = vunpack.c.l.b16 %v1274
    %v3410 = vunpack.c.h.b16 %v1274
    %v3411 = vunpack.c.l.b16 %v1275
    %v3412 = vunpack.c.h.b16 %v1275
    %v3413 = vunpack.c.l.b16 %v1276
    %v3414 = vunpack.c.h.b16 %v1276
    %v3415 = vunpack.c.l.b16 %v1277
    %v3416 = vunpack.c.h.b16 %v1277
    %v3417 = vunpack.c.l.b16 %v1278
    %v3418 = vunpack.c.h.b16 %v1278
    %v3419 = vunpack.c.l.b16 %v1279
    %v3420 = vunpack.c.h.b16 %v1279
    %v3421 = vunpack.c.l.b16 %v1280
    %v3422 = vunpack.c.h.b16 %v1280
    %v3423 = vunpack.c.l.b16 %v1281
    %v3424 = vunpack.c.h.b16 %v1281
    %v3425 = vunpack.c.l.b16 %v1282
    %v3426 = vunpack.c.h.b16 %v1282
    %v3427 = vunpack.c.l.b16 %v1283
    %v3428 = vunpack.c.h.b16 %v1283
    %v3429 = vunpack.c.l.b16 %v1284
    %v3430 = vunpack.c.h.b16 %v1284
    %v3431 = vunpack.c.l.b16 %v1285
    %v3432 = vunpack.c.h.b16 %v1285
    %v3433 = vunpack.c.l.b16 %v1286
    %v3434 = vunpack.c.h.b16 %v1286
    %v3435 = vunpack.c.l.b16 %v1287
    %v3436 = vunpack.c.h.b16 %v1287
    %v3437 = vunpack.c.l.b16 %v1288
    %v3438 = vunpack.c.h.b16 %v1288
    %v3439 = vunpack.c.l.b16 %v1289
    %v3440 = vunpack.c.h.b16 %v1289
    %v3441 = vunpack.c.l.b16 %v1290
    %v3442 = vunpack.c.h.b16 %v1290
    %v3443 = vunpack.c.l.b16 %v1291
    %v3444 = vunpack.c.h.b16 %v1291
    %v3445 = vunpack.c.l.b16 %v1292
    %v3446 = vunpack.c.h.b16 %v1292
    %v3447 = vunpack.c.l.b16 %v1293
    %v3448 = vunpack.c.h.b16 %v1293
    %v3449 = vunpack.c.l.b16 %v1294
    %v3450 = vunpack.c.h.b16 %v1294
    %v3451 = vunpack.c.l.b16 %v1295
    %v3452 = vunpack.c.h.b16 %v1295
    %v3453 = vunpack.c.l.b16 %v1296
    %v3454 = vunpack.c.h.b16 %v1296
    %v3455 = vunpack.c.l.b16 %v1297
    %v3456 = vunpack.c.h.b16 %v1297
    %v3457 = vunpack.c.l.b16 %v1298
    %v3458 = vunpack.c.h.b16 %v1298
    %v3459 = vunpack.c.l.b16 %v1299
    %v3460 = vunpack.c.h.b16 %v1299
    %v3461 = vunpack.c.l.b16 %v1300
    %v3462 = vunpack.c.h.b16 %v1300
    %v3463 = vunpack.c.l.b16 %v1301
    %v3464 = vunpack.c.h.b16 %v1301
    %v3465 = vunpack.c.l.b16 %v1302
    %v3466 = vunpack.c.h.b16 %v1302
    %v3467 = vunpack.c.l.b16 %v1303
    %v3468 = vunpack.c.h.b16 %v1303
    %v3469 = vunpack.c.l.b16 %v1304
    %v3470 = vunpack.c.h.b16 %v1304
    %v3471 = vunpack.c.l.b16 %v1305
    %v3472 = vunpack.c.h.b16 %v1305
    %v3473 = vunpack.c.l.b16 %v1306
    %v3474 = vunpack.c.h.b16 %v1306
    %v3475 = vunpack.c.l.b16 %v1307
    %v3476 = vunpack.c.h.b16 %v1307
    %v3477 = vunpack.c.l.b16 %v1308
    %v3478 = vunpack.c.h.b16 %v1308
    %v3479 = vunpack.c.l.b16 %v1309
    %v3480 = vunpack.c.h.b16 %v1309
    %v3481 = vunpack.c.l.b16 %v1310
    %v3482 = vunpack.c.h.b16 %v1310
    %v3483 = vunpack.c.l.b16 %v1311
    %v3484 = vunpack.c.h.b16 %v1311
    %v3485 = vunpack.c.l.b16 %v1312
    %v3486 = vunpack.c.h.b16 %v1312
    %v3487 = vunpack.c.l.b16 %v1313
    %v3488 = vunpack.c.h.b16 %v1313
    %v3489 = vunpack.c.l.b16 %v1314
    %v3490 = vunpack.c.h.b16 %v1314
    %v3491 = vunpack.c.l.b16 %v1315
    %v3492 = vunpack.c.h.b16 %v1315
    %v3493 = vunpack.c.l.b16 %v1316
    %v3494 = vunpack.c.h.b16 %v1316
    %v3495 = vunpack.c.l.b16 %v1317
    %v3496 = vunpack.c.h.b16 %v1317
    %v3497 = vunpack.c.l.b16 %v1318
    %v3498 = vunpack.c.h.b16 %v1318
    %v3499 = vunpack.c.l.b16 %v1319
    %v3500 = vunpack.c.h.b16 %v1319
    %v3501 = vunpack.c.l.b16 %v1320
    %v3502 = vunpack.c.h.b16 %v1320
    %v3503 = vunpack.c.l.b16 %v1321
    %v3504 = vunpack.c.h.b16 %v1321
    %v3505 = vunpack.c.l.b16 %v1322
    %v3506 = vunpack.c.h.b16 %v1322
    %v3507 = vunpack.c.l.b16 %v1323
    %v3508 = vunpack.c.h.b16 %v1323
    %v3509 = vunpack.c.l.b16 %v1324
    %v3510 = vunpack.c.h.b16 %v1324
    %v3511 = vunpack.c.l.b16 %v1325
    %v3512 = vunpack.c.h.b16 %v1325
    %v3513 = vunpack.c.l.b16 %v1326
    %v3514 = vunpack.c.h.b16 %v1326
    %v3515 = vunpack.c.l.b16 %v1327
    %v3516 = vunpack.c.h.b16 %v1327
    %v3517 = vunpack.c.l.b16 %v1328
    %v3518 = vunpack.c.h.b16 %v1328
    %v3519 = vunpack.c.l.b16 %v1329
    %v3520 = vunpack.c.h.b16 %v1329
    %v3521 = vunpack.c.l.b16 %v1330
    %v3522 = vunpack.c.h.b16 %v1330
    %v3523 = vunpack.c.l.b16 %v1331
    %v3524 = vunpack.c.h.b16 %v1331
    %v3525 = vunpack.c.l.b16 %v1332
    %v3526 = vunpack.c.h.b16 %v1332
    %v3527 = vunpack.c.l.b16 %v1333
    %v3528 = vunpack.c.h.b16 %v1333
    %v3529 = vunpack.c.l.b16 %v1334
    %v3530 = vunpack.c.h.b16 %v1334
    %v3531 = vunpack.c.l.b16 %v1335
    %v3532 = vunpack.c.h.b16 %v1335
    %v3533 = vunpack.c.l.b16 %v1336
    %v3534 = vunpack.c.h.b16 %v1336
    %v3535 = vunpack.c.l.b16 %v1337
    %v3536 = vunpack.c.h.b16 %v1337
    %v3537 = vunpack.c.l.b16 %v1338
    %v3538 = vunpack.c.h.b16 %v1338
    %v3539 = vunpack.c.l.b16 %v1339
    %v3540 = vunpack.c.h.b16 %v1339
    %v3541 = vunpack.c.l.b16 %v1340
    %v3542 = vunpack.c.h.b16 %v1340
    %v3543 = vunpack.c.l.b16 %v1341
    %v3544 = vunpack.c.h.b16 %v1341
    %v3545 = vunpack.c.l.b16 %v1342
    %v3546 = vunpack.c.h.b16 %v1342
    %v3547 = vunpack.c.l.b16 %v1343
    %v3548 = vunpack.c.h.b16 %v1343
    %v3549 = vunpack.c.l.b16 %v1344
    %v3550 = vunpack.c.h.b16 %v1344
    %v3551 = vunpack.c.l.b16 %v1345
    %v3552 = vunpack.c.h.b16 %v1345
    %v3553 = vunpack.c.l.b16 %v1346
    %v3554 = vunpack.c.h.b16 %v1346
    %v3555 = vunpack.c.l.b16 %v1347
    %v3556 = vunpack.c.h.b16 %v1347
    %v3557 = vunpack.c.l.b16 %v1348
    %v3558 = vunpack.c.h.b16 %v1348
    %v3559 = vunpack.c.l.b16 %v1349
    %v3560 = vunpack.c.h.b16 %v1349
    %v3561 = vunpack.c.l.b16 %v1350
    %v3562 = vunpack.c.h.b16 %v1350
    %v3563 = vunpack.c.l.b16 %v1351
    %v3564 = vunpack.c.h.b16 %v1351
    %v3565 = vunpack.c.l.b16 %v1352
    %v3566 = vunpack.c.h.b16 %v1352
    %v3567 = vunpack.c.l.b16 %v1353
    %v3568 = vunpack.c.h.b16 %v1353
    %v3569 = vunpack.c.l.b16 %v1354
    %v3570 = vunpack.c.h.b16 %v1354
    %v3571 = vunpack.c.l.b16 %v1355
    %v3572 = vunpack.c.h.b16 %v1355
    %v3573 = vunpack.c.l.b16 %v1356
    %v3574 = vunpack.c.h.b16 %v1356
    %v3575 = vunpack.c.l.b16 %v1357
    %v3576 = vunpack.c.h.b16 %v1357
    %v3577 = vunpack.c.l.b16 %v1358
    %v3578 = vunpack.c.h.b16 %v1358
    %v3579 = vunpack.c.l.b16 %v1359
    %v3580 = vunpack.c.h.b16 %v1359
    %v3581 = vunpack.c.l.b16 %v1360
    %v3582 = vunpack.c.h.b16 %v1360
    %v3583 = vunpack.c.l.b16 %v1361
    %v3584 = vunpack.c.h.b16 %v1361
    %v3585 = vunpack.c.l.b16 %v1362
    %v3586 = vunpack.c.h.b16 %v1362
    %v3587 = vunpack.c.l.b16 %v1363
    %v3588 = vunpack.c.h.b16 %v1363
    %v3589 = vunpack.c.l.b16 %v1364
    %v3590 = vunpack.c.h.b16 %v1364
    %v3591 = vunpack.c.l.b16 %v1365
    %v3592 = vunpack.c.h.b16 %v1365
    %v3593 = vunpack.c.l.b16 %v1366
    %v3594 = vunpack.c.h.b16 %v1366
    %v3595 = vunpack.c.l.b16 %v1367
    %v3596 = vunpack.c.h.b16 %v1367
    %v3597 = vunpack.c.l.b16 %v1368
    %v3598 = vunpack.c.h.b16 %v1368
    %v3599 = vunpack.c.l.b16 %v1369
    %v3600 = vunpack.c.h.b16 %v1369
    %v3601 = vunpack.c.l.b16 %v1370
    %v3602 = vunpack.c.h.b16 %v1370
    %v3603 = vunpack.c.l.b16 %v1371
    %v3604 = vunpack.c.h.b16 %v1371
    %v3605 = vunpack.c.l.b16 %v1372
    %v3606 = vunpack.c.h.b16 %v1372
    %v3607 = vunpack.c.l.b16 %v1373
    %v3608 = vunpack.c.h.b16 %v1373
    %v3609 = vunpack.c.l.b16 %v1374
    %v3610 = vunpack.c.h.b16 %v1374
    %v3611 = vunpack.c.l.b16 %v1375
    %v3612 = vunpack.c.h.b16 %v1375
    %v3613 = vunpack.c.l.b16 %v1376
    %v3614 = vunpack.c.h.b16 %v1376
    %v3615 = vunpack.c.l.b16 %v1377
    %v3616 = vunpack.c.h.b16 %v1377
    %v3617 = vunpack.c.l.b16 %v1378
    %v3618 = vunpack.c.h.b16 %v1378
    %v3619 = vunpack.c.l.b16 %v1379
    %v3620 = vunpack.c.h.b16 %v1379
    %v3621 = vunpack.c.l.b16 %v1380
    %v3622 = vunpack.c.h.b16 %v1380
    %v3623 = vunpack.c.l.b16 %v1381
    %v3624 = vunpack.c.h.b16 %v1381
    %v3625 = vunpack.c.l.b16 %v1382
    %v3626 = vunpack.c.h.b16 %v1382
    %v3627 = vunpack.c.l.b16 %v1383
    %v3628 = vunpack.c.h.b16 %v1383
    %v3629 = vunpack.c.l.b16 %v1384
    %v3630 = vunpack.c.h.b16 %v1384
    %v3631 = vunpack.c.l.b16 %v1385
    %v3632 = vunpack.c.h.b16 %v1385
    %v3633 = vunpack.c.l.b16 %v1386
    %v3634 = vunpack.c.h.b16 %v1386
    %v3635 = vunpack.c.l.b16 %v1387
    %v3636 = vunpack.c.h.b16 %v1387
    %v3637 = vunpack.c.l.b16 %v1388
    %v3638 = vunpack.c.h.b16 %v1388
    %v3639 = vunpack.c.l.b16 %v1389
    %v3640 = vunpack.c.h.b16 %v1389
    %v3641 = vunpack.c.l.b16 %v1390
    %v3642 = vunpack.c.h.b16 %v1390
    %v3643 = vunpack.c.l.b16 %v1391
    %v3644 = vunpack.c.h.b16 %v1391
    %v3645 = vunpack.c.l.b16 %v1392
    %v3646 = vunpack.c.h.b16 %v1392
    %v3647 = vunpack.c.l.b16 %v1393
    %v3648 = vunpack.c.h.b16 %v1393
    %v3649 = vunpack.c.l.b16 %v1394
    %v3650 = vunpack.c.h.b16 %v1394
    %v3651 = vunpack.c.l.b16 %v1395
    %v3652 = vunpack.c.h.b16 %v1395
    %v3653 = vunpack.c.l.b16 %v1396
    %v3654 = vunpack.c.h.b16 %v1396
    %v3655 = vunpack.c.l.b16 %v1397
    %v3656 = vunpack.c.h.b16 %v1397
    %v3657 = vunpack.c.l.b16 %v1398
    %v3658 = vunpack.c.h.b16 %v1398
    %v3659 = vunpack.c.l.b16 %v1399
    %v3660 = vunpack.c.h.b16 %v1399
    %v3661 = vunpack.c.l.b16 %v1400
    %v3662 = vunpack.c.h.b16 %v1400
    %v3663 = vunpack.c.l.b16 %v1401
    %v3664 = vunpack.c.h.b16 %v1401
    %v3665 = vunpack.c.l.b16 %v1402
    %v3666 = vunpack.c.h.b16 %v1402
    %v3667 = vunpack.c.l.b16 %v1403
    %v3668 = vunpack.c.h.b16 %v1403
    %v3669 = vunpack.c.l.b16 %v1404
    %v3670 = vunpack.c.h.b16 %v1404
    %v3671 = vunpack.c.l.b16 %v1405
    %v3672 = vunpack.c.h.b16 %v1405
    %v3673 = vunpack.c.l.b16 %v1406
    %v3674 = vunpack.c.h.b16 %v1406
    %v3675 = vunpack.c.l.b16 %v1407
    %v3676 = vunpack.c.h.b16 %v1407
    %v3677 = vunpack.c.l.b16 %v1408
    %v3678 = vunpack.c.h.b16 %v1408
    %v3679 = vunpack.c.l.b16 %v1409
    %v3680 = vunpack.c.h.b16 %v1409
    %v3681 = vunpack.c.l.b16 %v1410
    %v3682 = vunpack.c.h.b16 %v1410
    %v3683 = vunpack.c.l.b16 %v1411
    %v3684 = vunpack.c.h.b16 %v1411
    %v3685 = vunpack.c.l.b16 %v1412
    %v3686 = vunpack.c.h.b16 %v1412
    %v3687 = vunpack.c.l.b16 %v1413
    %v3688 = vunpack.c.h.b16 %v1413
    %v3689 = vunpack.c.l.b16 %v1414
    %v3690 = vunpack.c.h.b16 %v1414
    %v3691 = vunpack.c.l.b16 %v1415
    %v3692 = vunpack.c.h.b16 %v1415
    %v3693 = vunpack.c.l.b16 %v1416
    %v3694 = vunpack.c.h.b16 %v1416
    %v3695 = vunpack.c.l.b16 %v1417
    %v3696 = vunpack.c.h.b16 %v1417
    %v3697 = vunpack.c.l.b16 %v1418
    %v3698 = vunpack.c.h.b16 %v1418
    %v3699 = vunpack.c.l.b16 %v1419
    %v3700 = vunpack.c.h.b16 %v1419
    %v3701 = vunpack.c.l.b16 %v1420
    %v3702 = vunpack.c.h.b16 %v1420
    %v3703 = vunpack.c.l.b16 %v1421
    %v3704 = vunpack.c.h.b16 %v1421
    %v3705 = vunpack.c.l.b16 %v1422
    %v3706 = vunpack.c.h.b16 %v1422
    %v3707 = vunpack.c.l.b16 %v1423
    %v3708 = vunpack.c.h.b16 %v1423
    %v3709 = vunpack.c.l.b16 %v1424
    %v3710 = vunpack.c.h.b16 %v1424
    %v3711 = vunpack.c.l.b16 %v1425
    %v3712 = vunpack.c.h.b16 %v1425
    %v3713 = vunpack.c.l.b16 %v1426
    %v3714 = vunpack.c.h.b16 %v1426
    %v3715 = vunpack.c.l.b16 %v1427
    %v3716 = vunpack.c.h.b16 %v1427
    %v3717 = vunpack.c.l.b16 %v1428
    %v3718 = vunpack.c.h.b16 %v1428
    %v3719 = vunpack.c.l.b16 %v1429
    %v3720 = vunpack.c.h.b16 %v1429
    %v3721 = vunpack.c.l.b16 %v1430
    %v3722 = vunpack.c.h.b16 %v1430
    %v3723 = vunpack.c.l.b16 %v1431
    %v3724 = vunpack.c.h.b16 %v1431
    %v3725 = vunpack.c.l.b16 %v1432
    %v3726 = vunpack.c.h.b16 %v1432
    %v3727 = vunpack.c.l.b16 %v1433
    %v3728 = vunpack.c.h.b16 %v1433
    %v3729 = vunpack.c.l.b16 %v1434
    %v3730 = vunpack.c.h.b16 %v1434
    %v3731 = vunpack.c.l.b16 %v1435
    %v3732 = vunpack.c.h.b16 %v1435
    %v3733 = vunpack.c.l.b16 %v1436
    %v3734 = vunpack.c.h.b16 %v1436
    %v3735 = vunpack.c.l.b16 %v1437
    %v3736 = vunpack.c.h.b16 %v1437
    %v3737 = vunpack.c.l.b16 %v1438
    %v3738 = vunpack.c.h.b16 %v1438
    %v3739 = vunpack.c.l.b16 %v1439
    %v3740 = vunpack.c.h.b16 %v1439
    %v3741 = vunpack.c.l.b16 %v1440
    %v3742 = vunpack.c.h.b16 %v1440
    %v3743 = vunpack.c.l.b16 %v1441
    %v3744 = vunpack.c.h.b16 %v1441
    %v3745 = vunpack.c.l.b16 %v1442
    %v3746 = vunpack.c.h.b16 %v1442
    %v3747 = vunpack.c.l.b16 %v1443
    %v3748 = vunpack.c.h.b16 %v1443
    %v3749 = vunpack.c.l.b16 %v1444
    %v3750 = vunpack.c.h.b16 %v1444
    %v3751 = vunpack.c.l.b16 %v1445
    %v3752 = vunpack.c.h.b16 %v1445
    %v3753 = vunpack.c.l.b16 %v1446
    %v3754 = vunpack.c.h.b16 %v1446
    %v3755 = vunpack.c.l.b16 %v1447
    %v3756 = vunpack.c.h.b16 %v1447
    %v3757 = vunpack.c.l.b16 %v1448
    %v3758 = vunpack.c.h.b16 %v1448
    %v3759 = vunpack.c.l.b16 %v1449
    %v3760 = vunpack.c.h.b16 %v1449
    %v3761 = vunpack.c.l.b16 %v1450
    %v3762 = vunpack.c.h.b16 %v1450
    %v3763 = vunpack.c.l.b16 %v1451
    %v3764 = vunpack.c.h.b16 %v1451
    %v3765 = vunpack.c.l.b16 %v1452
    %v3766 = vunpack.c.h.b16 %v1452
    %v3767 = vunpack.c.l.b16 %v1453
    %v3768 = vunpack.c.h.b16 %v1453
    %v3769 = vunpack.c.l.b16 %v1454
    %v3770 = vunpack.c.h.b16 %v1454
    %v3771 = vunpack.c.l.b16 %v1455
    %v3772 = vunpack.c.h.b16 %v1455
    %v3773 = vunpack.c.l.b16 %v1456
    %v3774 = vunpack.c.h.b16 %v1456
    %v3775 = vunpack.c.l.b16 %v1457
    %v3776 = vunpack.c.h.b16 %v1457
    %v3777 = vunpack.c.l.b16 %v1458
    %v3778 = vunpack.c.h.b16 %v1458
    %v3779 = vunpack.c.l.b16 %v1459
    %v3780 = vunpack.c.h.b16 %v1459
    %v3781 = vunpack.c.l.b16 %v1460
    %v3782 = vunpack.c.h.b16 %v1460
    %v3783 = vunpack.c.l.b16 %v1461
    %v3784 = vunpack.c.h.b16 %v1461
    %v3785 = vunpack.c.l.b16 %v1462
    %v3786 = vunpack.c.h.b16 %v1462
    %v3787 = vunpack.c.l.b16 %v1463
    %v3788 = vunpack.c.h.b16 %v1463
    %v3789 = vunpack.c.l.b16 %v1464
    %v3790 = vunpack.c.h.b16 %v1464
    %v3791 = vunpack.c.l.b16 %v1465
    %v3792 = vunpack.c.h.b16 %v1465
    %v3793 = vunpack.c.l.b16 %v1466
    %v3794 = vunpack.c.h.b16 %v1466
    %v3795 = vunpack.c.l.b16 %v1467
    %v3796 = vunpack.c.h.b16 %v1467
    %v3797 = vunpack.c.l.b16 %v1468
    %v3798 = vunpack.c.h.b16 %v1468
    %v3799 = vunpack.c.l.b16 %v1469
    %v3800 = vunpack.c.h.b16 %v1469
    %v3801 = vunpack.c.l.b16 %v1470
    %v3802 = vunpack.c.h.b16 %v1470
    %v3803 = vunpack.c.l.b16 %v1471
    %v3804 = vunpack.c.h.b16 %v1471
    %v3805 = vunpack.c.l.b16 %v1472
    %v3806 = vunpack.c.h.b16 %v1472
    %v3807 = vunpack.c.l.b16 %v1473
    %v3808 = vunpack.c.h.b16 %v1473
    %v3809 = vunpack.c.l.b16 %v1474
    %v3810 = vunpack.c.h.b16 %v1474
    %v3811 = vunpack.c.l.b16 %v1475
    %v3812 = vunpack.c.h.b16 %v1475
    %v3813 = vunpack.c.l.b16 %v1476
    %v3814 = vunpack.c.h.b16 %v1476
    %v3815 = vunpack.c.l.b16 %v1477
    %v3816 = vunpack.c.h.b16 %v1477
    %v3817 = vunpack.c.l.b16 %v1478
    %v3818 = vunpack.c.h.b16 %v1478
    %v3819 = vunpack.c.l.b16 %v1479
    %v3820 = vunpack.c.h.b16 %v1479
    %v3821 = vunpack.c.l.b16 %v1480
    %v3822 = vunpack.c.h.b16 %v1480
    %v3823 = vunpack.c.l.b16 %v1481
    %v3824 = vunpack.c.h.b16 %v1481
    %v3825 = vunpack.c.l.b16 %v1482
    %v3826 = vunpack.c.h.b16 %v1482
    %v3827 = vunpack.c.l.b16 %v1483
    %v3828 = vunpack.c.h.b16 %v1483
    %v3829 = vunpack.c.l.b16 %v1484
    %v3830 = vunpack.c.h.b16 %v1484
    %v3831 = vunpack.c.l.b16 %v1485
    %v3832 = vunpack.c.h.b16 %v1485
    %v3833 = vunpack.c.l.b16 %v1486
    %v3834 = vunpack.c.h.b16 %v1486
    %v3835 = vunpack.c.l.b16 %v1487
    %v3836 = vunpack.c.h.b16 %v1487
    %v3837 = vunpack.c.l.b16 %v1488
    %v3838 = vunpack.c.h.b16 %v1488
    %v3839 = vunpack.c.l.b16 %v1489
    %v3840 = vunpack.c.h.b16 %v1489
    %v3841 = vunpack.c.l.b16 %v1490
    %v3842 = vunpack.c.h.b16 %v1490
    %v3843 = vunpack.c.l.b16 %v1491
    %v3844 = vunpack.c.h.b16 %v1491
    %v3845 = vunpack.c.l.b16 %v1492
    %v3846 = vunpack.c.h.b16 %v1492
    %v3847 = vunpack.c.l.b16 %v1493
    %v3848 = vunpack.c.h.b16 %v1493
    %v3849 = vunpack.c.l.b16 %v1494
    %v3850 = vunpack.c.h.b16 %v1494
    %v3851 = vunpack.c.l.b16 %v1495
    %v3852 = vunpack.c.h.b16 %v1495
    %v3853 = vunpack.c.l.b16 %v1496
    %v3854 = vunpack.c.h.b16 %v1496
    %v3855 = vunpack.c.l.b16 %v1497
    %v3856 = vunpack.c.h.b16 %v1497
    %v3857 = vunpack.c.l.b16 %v1498
    %v3858 = vunpack.c.h.b16 %v1498
    %v3859 = vunpack.c.l.b16 %v1499
    %v3860 = vunpack.c.h.b16 %v1499
    %v3861 = vunpack.c.l.b16 %v1500
    %v3862 = vunpack.c.h.b16 %v1500
    %v3863 = vunpack.c.l.b16 %v1501
    %v3864 = vunpack.c.h.b16 %v1501
    %v3865 = vunpack.c.l.b16 %v1502
    %v3866 = vunpack.c.h.b16 %v1502
    %v3867 = vunpack.c.l.b16 %v1503
    %v3868 = vunpack.c.h.b16 %v1503
    %v3869 = vunpack.c.l.b16 %v1504
    %v3870 = vunpack.c.h.b16 %v1504
    %v3871 = vunpack.c.l.b16 %v1505
    %v3872 = vunpack.c.h.b16 %v1505
    %v3873 = vunpack.c.l.b16 %v1506
    %v3874 = vunpack.c.h.b16 %v1506
    %v3875 = vunpack.c.l.b16 %v1507
    %v3876 = vunpack.c.h.b16 %v1507
    %v3877 = vunpack.c.l.b16 %v1508
    %v3878 = vunpack.c.h.b16 %v1508
    %v3879 = vunpack.c.l.b16 %v1509
    %v3880 = vunpack.c.h.b16 %v1509
    %v3881 = vunpack.c.l.b16 %v1510
    %v3882 = vunpack.c.h.b16 %v1510
    %v3883 = vunpack.c.l.b16 %v1511
    %v3884 = vunpack.c.h.b16 %v1511
    %v3885 = vunpack.c.l.b16 %v1512
    %v3886 = vunpack.c.h.b16 %v1512
    %v3887 = vunpack.c.l.b16 %v1513
    %v3888 = vunpack.c.h.b16 %v1513
    %v3889 = vunpack.c.l.b16 %v1514
    %v3890 = vunpack.c.h.b16 %v1514
    %v3891 = vunpack.c.l.b16 %v1515
    %v3892 = vunpack.c.h.b16 %v1515
    %v3893 = vunpack.c.l.b16 %v1516
    %v3894 = vunpack.c.h.b16 %v1516
    %v3895 = vunpack.c.l.b16 %v1517
    %v3896 = vunpack.c.h.b16 %v1517
    %v3897 = vunpack.c.l.b16 %v1518
    %v3898 = vunpack.c.h.b16 %v1518
    %v3899 = vunpack.c.l.b16 %v1519
    %v3900 = vunpack.c.h.b16 %v1519
    %v3901 = vunpack.c.l.b16 %v1520
    %v3902 = vunpack.c.h.b16 %v1520
    %v3903 = vunpack.c.l.b16 %v1521
    %v3904 = vunpack.c.h.b16 %v1521
    %v3905 = vunpack.c.l.b16 %v1522
    %v3906 = vunpack.c.h.b16 %v1522
    %v3907 = vunpack.c.l.b16 %v1523
    %v3908 = vunpack.c.h.b16 %v1523
    %v3909 = vunpack.c.l.b16 %v1524
    %v3910 = vunpack.c.h.b16 %v1524
    %v3911 = vunpack.c.l.b16 %v1525
    %v3912 = vunpack.c.h.b16 %v1525
    %v3913 = vunpack.c.l.b16 %v1526
    %v3914 = vunpack.c.h.b16 %v1526
    %v3915 = vunpack.c.l.b16 %v1527
    %v3916 = vunpack.c.h.b16 %v1527
    %v3917 = vunpack.c.l.b16 %v1528
    %v3918 = vunpack.c.h.b16 %v1528
    %v3919 = vunpack.c.l.b16 %v1529
    %v3920 = vunpack.c.h.b16 %v1529
    %v3921 = vunpack.c.l.b16 %v1530
    %v3922 = vunpack.c.h.b16 %v1530
    %v3923 = vunpack.c.l.b16 %v1531
    %v3924 = vunpack.c.h.b16 %v1531
    %v3925 = vunpack.c.l.b16 %v1532
    %v3926 = vunpack.c.h.b16 %v1532
    %v3927 = vunpack.c.l.b16 %v1533
    %v3928 = vunpack.c.h.b16 %v1533
    %v3929 = vunpack.c.l.b16 %v1534
    %v3930 = vunpack.c.h.b16 %v1534
    %v3931 = vunpack.c.l.b16 %v1535
    %v3932 = vunpack.c.h.b16 %v1535
    %v3933 = vunpack.c.l.b16 %v1536
    %v3934 = vunpack.c.h.b16 %v1536
    %v3935 = vunpack.c.l.b16 %v1537
    %v3936 = vunpack.c.h.b16 %v1537
    %v3937 = vunpack.c.l.b16 %v1538
    %v3938 = vunpack.c.h.b16 %v1538
    %v3939 = vunpack.c.l.b16 %v1539
    %v3940 = vunpack.c.h.b16 %v1539
    %v3941 = vunpack.c.l.b16 %v1540
    %v3942 = vunpack.c.h.b16 %v1540
    %v3943 = vunpack.c.l.b16 %v1541
    %v3944 = vunpack.c.h.b16 %v1541
    %v3945 = vunpack.c.l.b16 %v1542
    %v3946 = vunpack.c.h.b16 %v1542
    %v3947 = vunpack.c.l.b16 %v1543
    %v3948 = vunpack.c.h.b16 %v1543
    %v3949 = vunpack.c.l.b16 %v1544
    %v3950 = vunpack.c.h.b16 %v1544
    %v3951 = vunpack.c.l.b16 %v1545
    %v3952 = vunpack.c.h.b16 %v1545
    %v3953 = vunpack.c.l.b16 %v1546
    %v3954 = vunpack.c.h.b16 %v1546
    %v3955 = vunpack.c.l.b16 %v1547
    %v3956 = vunpack.c.h.b16 %v1547
    %v3957 = vunpack.c.l.b16 %v1548
    %v3958 = vunpack.c.h.b16 %v1548
    %v3959 = vunpack.c.l.b16 %v1549
    %v3960 = vunpack.c.h.b16 %v1549
    %v3961 = vunpack.c.l.b16 %v1550
    %v3962 = vunpack.c.h.b16 %v1550
    %v3963 = vunpack.c.l.b16 %v1551
    %v3964 = vunpack.c.h.b16 %v1551
    %v3965 = vunpack.c.l.b16 %v1552
    %v3966 = vunpack.c.h.b16 %v1552
    %v3967 = vunpack.c.l.b16 %v1553
    %v3968 = vunpack.c.h.b16 %v1553
    %v3969 = vunpack.c.l.b16 %v1554
    %v3970 = vunpack.c.h.b16 %v1554
    %v3971 = vunpack.c.l.b16 %v1555
    %v3972 = vunpack.c.h.b16 %v1555
    %v3973 = vunpack.c.l.b16 %v1556
    %v3974 = vunpack.c.h.b16 %v1556
    %v3975 = vunpack.c.l.b16 %v1557
    %v3976 = vunpack.c.h.b16 %v1557
    %v3977 = vunpack.c.l.b16 %v1558
    %v3978 = vunpack.c.h.b16 %v1558
    %v3979 = vunpack.c.l.b16 %v1559
    %v3980 = vunpack.c.h.b16 %v1559
    %v3981 = vunpack.c.l.b16 %v1560
    %v3982 = vunpack.c.h.b16 %v1560
    %v3983 = vunpack.c.l.b16 %v1561
    %v3984 = vunpack.c.h.b16 %v1561
    %v3985 = vunpack.c.l.b16 %v1562
    %v3986 = vunpack.c.h.b16 %v1562
    %v3987 = vunpack.c.l.b16 %v1563
    %v3988 = vunpack.c.h.b16 %v1563
    %v3989 = vunpack.c.l.b16 %v1564
    %v3990 = vunpack.c.h.b16 %v1564
    %v3991 = vunpack.c.l.b16 %v1565
    %v3992 = vunpack.c.h.b16 %v1565
    %v3993 = vunpack.c.l.b16 %v1566
    %v3994 = vunpack.c.h.b16 %v1566
    %v3995 = vunpack.c.l.b16 %v1567
    %v3996 = vunpack.c.h.b16 %v1567
    %v3997 = vunpack.c.l.b16 %v1568
    %v3998 = vunpack.c.h.b16 %v1568
    %v3999 = vunpack.c.l.b16 %v1569
    %v4000 = vunpack.c.h.b16 %v1569
    %v4001 = vunpack.c.l.b16 %v1570
    %v4002 = vunpack.c.h.b16 %v1570
    %v4003 = vunpack.c.l.b16 %v1571
    %v4004 = vunpack.c.h.b16 %v1571
    %v4005 = vunpack.c.l.b16 %v1572
    %v4006 = vunpack.c.h.b16 %v1572
    %v4007 = vunpack.c.l.b16 %v1573
    %v4008 = vunpack.c.h.b16 %v1573
    %v4009 = vunpack.c.l.b16 %v1574
    %v4010 = vunpack.c.h.b16 %v1574
    %v4011 = vunpack.c.l.b16 %v1575
    %v4012 = vunpack.c.h.b16 %v1575
    %v4013 = vunpack.c.l.b16 %v1576
    %v4014 = vunpack.c.h.b16 %v1576
    %v4015 = vunpack.c.l.b16 %v1577
    %v4016 = vunpack.c.h.b16 %v1577
    %v4017 = vunpack.c.l.b16 %v1578
    %v4018 = vunpack.c.h.b16 %v1578
    %v4019 = vunpack.c.l.b16 %v1579
    %v4020 = vunpack.c.h.b16 %v1579
    %v4021 = vunpack.c.l.b16 %v1580
    %v4022 = vunpack.c.h.b16 %v1580
    %v4023 = vunpack.c.l.b16 %v1581
    %v4024 = vunpack.c.h.b16 %v1581
    %v4025 = vunpack.c.l.b16 %v1582
    %v4026 = vunpack.c.h.b16 %v1582
    %v4027 = vunpack.c.l.b16 %v1583
    %v4028 = vunpack.c.h.b16 %v1583
    %v4029 = vunpack.c.l.b16 %v1584
    %v4030 = vunpack.c.h.b16 %v1584
    %v4031 = vunpack.c.l.b16 %v1585
    %v4032 = vunpack.c.h.b16 %v1585
    %v4033 = vunpack.c.l.b16 %v1586
    %v4034 = vunpack.c.h.b16 %v1586
    %v4035 = vunpack.c.l.b16 %v1587
    %v4036 = vunpack.c.h.b16 %v1587
    %v4037 = vunpack.c.l.b16 %v1588
    %v4038 = vunpack.c.h.b16 %v1588
    %v4039 = vunpack.c.l.b16 %v1589
    %v4040 = vunpack.c.h.b16 %v1589
    %v4041 = vunpack.c.l.b16 %v1590
    %v4042 = vunpack.c.h.b16 %v1590
    %v4043 = vunpack.c.l.b16 %v1591
    %v4044 = vunpack.c.h.b16 %v1591
    %v4045 = vunpack.c.l.b16 %v1592
    %v4046 = vunpack.c.h.b16 %v1592
    %v4047 = vunpack.c.l.b16 %v1593
    %v4048 = vunpack.c.h.b16 %v1593
    %v4049 = vunpack.c.l.b16 %v1594
    %v4050 = vunpack.c.h.b16 %v1594
    %v4051 = vunpack.c.l.b16 %v1595
    %v4052 = vunpack.c.h.b16 %v1595
    %v4053 = vunpack.c.l.b16 %v1596
    %v4054 = vunpack.c.h.b16 %v1596
    %v4055 = vunpack.c.l.b16 %v1597
    %v4056 = vunpack.c.h.b16 %v1597
    %v4057 = vunpack.c.l.b16 %v1598
    %v4058 = vunpack.c.h.b16 %v1598
    %v4059 = vunpack.c.l.b16 %v1599
    %v4060 = vunpack.c.h.b16 %v1599
    %v4061 = vunpack.c.l.b16 %v1600
    %v4062 = vunpack.c.h.b16 %v1600
    %v4063 = vunpack.c.l.b16 %v1601
    %v4064 = vunpack.c.h.b16 %v1601
    %v4065 = vunpack.c.l.b16 %v1602
    %v4066 = vunpack.c.h.b16 %v1602
    %v4067 = vunpack.c.l.b16 %v1603
    %v4068 = vunpack.c.h.b16 %v1603
    %v4069 = vunpack.c.l.b16 %v1604
    %v4070 = vunpack.c.h.b16 %v1604
    %v4071 = vunpack.c.l.b16 %v1605
    %v4072 = vunpack.c.h.b16 %v1605
    %v4073 = vunpack.c.l.b16 %v1606
    %v4074 = vunpack.c.h.b16 %v1606
    %v4075 = vunpack.c.l.b16 %v1607
    %v4076 = vunpack.c.h.b16 %v1607
    %v4077 = vunpack.c.l.b16 %v1608
    %v4078 = vunpack.c.h.b16 %v1608
    %v4079 = vunpack.c.l.b16 %v1609
    %v4080 = vunpack.c.h.b16 %v1609
    %v4081 = vunpack.c.l.b16 %v1610
    %v4082 = vunpack.c.h.b16 %v1610
    %v4083 = vunpack.c.l.b16 %v1611
    %v4084 = vunpack.c.h.b16 %v1611
    %v4085 = vunpack.c.l.b16 %v1612
    %v4086 = vunpack.c.h.b16 %v1612
    %v4087 = vunpack.c.l.b16 %v1613
    %v4088 = vunpack.c.h.b16 %v1613
    %v4089 = vunpack.c.l.b16 %v1614
    %v4090 = vunpack.c.h.b16 %v1614
    %v4091 = vunpack.c.l.b16 %v1615
    %v4092 = vunpack.c.h.b16 %v1615
    %v4093 = vunpack.c.l.b16 %v1616
    %v4094 = vunpack.c.h.b16 %v1616
    %v4095 = vunpack.c.l.b16 %v1617
    %v4096 = vunpack.c.h.b16 %v1617
    %v4097 = vunpack.c.l.b16 %v1618
    %v4098 = vunpack.c.h.b16 %v1618
    %v4099 = vunpack.c.l.b16 %v1619
    %v4100 = vunpack.c.h.b16 %v1619
    %v4101 = vunpack.c.l.b16 %v1620
    %v4102 = vunpack.c.h.b16 %v1620
    %v4103 = vunpack.c.l.b16 %v1621
    %v4104 = vunpack.c.h.b16 %v1621
    %v4105 = vunpack.c.l.b16 %v1622
    %v4106 = vunpack.c.h.b16 %v1622
    %v4107 = vunpack.c.l.b16 %v1623
    %v4108 = vunpack.c.h.b16 %v1623
    %v4109 = vunpack.c.l.b16 %v1624
    %v4110 = vunpack.c.h.b16 %v1624
    %v4111 = vunpack.c.l.b16 %v1625
    %v4112 = vunpack.c.h.b16 %v1625
    %v4113 = vunpack.c.l.b16 %v1626
    %v4114 = vunpack.c.h.b16 %v1626
    %v4115 = vunpack.c.l.b16 %v1627
    %v4116 = vunpack.c.h.b16 %v1627
    %v4117 = vunpack.c.l.b16 %v1628
    %v4118 = vunpack.c.h.b16 %v1628
    %v4119 = vunpack.c.l.b16 %v1629
    %v4120 = vunpack.c.h.b16 %v1629
    %v4121 = vunpack.c.l.b16 %v1630
    %v4122 = vunpack.c.h.b16 %v1630
    %v4123 = vunpack.c.l.b16 %v1631
    %v4124 = vunpack.c.h.b16 %v1631
    %v4125 = vunpack.c.l.b16 %v1632
    %v4126 = vunpack.c.h.b16 %v1632
    %v4127 = vunpack.c.l.b16 %v1633
    %v4128 = vunpack.c.h.b16 %v1633
    %v4129 = vunpack.c.l.b16 %v1634
    %v4130 = vunpack.c.h.b16 %v1634
    %v4131 = vunpack.c.l.b16 %v1635
    %v4132 = vunpack.c.h.b16 %v1635
    %v4133 = vunpack.c.l.b16 %v1636
    %v4134 = vunpack.c.h.b16 %v1636
    %v4135 = vunpack.c.l.b16 %v1637
    %v4136 = vunpack.c.h.b16 %v1637
    %v4137 = vunpack.c.l.b16 %v1638
    %v4138 = vunpack.c.h.b16 %v1638
    %v4139 = vunpack.c.l.b16 %v1639
    %v4140 = vunpack.c.h.b16 %v1639
    %v4141 = vunpack.c.l.b16 %v1640
    %v4142 = vunpack.c.h.b16 %v1640
    %v4143 = vunpack.c.l.b16 %v1641
    %v4144 = vunpack.c.h.b16 %v1641
    %v4145 = vunpack.c.l.b16 %v1642
    %v4146 = vunpack.c.h.b16 %v1642
    %v4147 = vunpack.c.l.b16 %v1643
    %v4148 = vunpack.c.h.b16 %v1643
    %v4149 = vunpack.c.l.b16 %v1644
    %v4150 = vunpack.c.h.b16 %v1644
    %v4151 = vunpack.c.l.b16 %v1645
    %v4152 = vunpack.c.h.b16 %v1645
    %v4153 = vunpack.c.l.b16 %v1646
    %v4154 = vunpack.c.h.b16 %v1646
    %v4155 = vunpack.c.l.b16 %v1647
    %v4156 = vunpack.c.h.b16 %v1647
    %v4157 = vunpack.c.l.b16 %v1648
    %v4158 = vunpack.c.h.b16 %v1648
    %v4159 = vunpack.c.l.b16 %v1649
    %v4160 = vunpack.c.h.b16 %v1649
    %v4161 = vunpack.c.l.b16 %v1650
    %v4162 = vunpack.c.h.b16 %v1650
    %v4163 = vunpack.c.l.b16 %v1651
    %v4164 = vunpack.c.h.b16 %v1651
    %v4165 = vunpack.c.l.b16 %v1652
    %v4166 = vunpack.c.h.b16 %v1652
    %v4167 = vunpack.c.l.b16 %v1653
    %v4168 = vunpack.c.h.b16 %v1653
    %v4169 = vunpack.c.l.b16 %v1654
    %v4170 = vunpack.c.h.b16 %v1654
    %v4171 = vunpack.c.l.b16 %v1655
    %v4172 = vunpack.c.h.b16 %v1655
    %v4173 = vunpack.c.l.b16 %v1656
    %v4174 = vunpack.c.h.b16 %v1656
    %v4175 = vunpack.c.l.b16 %v1657
    %v4176 = vunpack.c.h.b16 %v1657
    %v4177 = vunpack.c.l.b16 %v1658
    %v4178 = vunpack.c.h.b16 %v1658
    %v4179 = vunpack.c.l.b16 %v1659
    %v4180 = vunpack.c.h.b16 %v1659
    %v4181 = vunpack.c.l.b16 %v1660
    %v4182 = vunpack.c.h.b16 %v1660
    %v4183 = vunpack.c.l.b16 %v1661
    %v4184 = vunpack.c.h.b16 %v1661
    %v4185 = vunpack.c.l.b16 %v1662
    %v4186 = vunpack.c.h.b16 %v1662
    %v4187 = vunpack.c.l.b16 %v1663
    %v4188 = vunpack.c.h.b16 %v1663
    %v4189 = vunpack.c.l.b16 %v1664
    %v4190 = vunpack.c.h.b16 %v1664
    %v4191 = vunpack.c.l.b16 %v1665
    %v4192 = vunpack.c.h.b16 %v1665
    %v4193 = vunpack.c.l.b16 %v1666
    %v4194 = vunpack.c.h.b16 %v1666
    %v4195 = vunpack.c.l.b16 %v1667
    %v4196 = vunpack.c.h.b16 %v1667
    %v4197 = vunpack.c.l.b16 %v1668
    %v4198 = vunpack.c.h.b16 %v1668
    %v4199 = vunpack.c.l.b16 %v1669
    %v4200 = vunpack.c.h.b16 %v1669
    %v4201 = vunpack.c.l.b16 %v1670
    %v4202 = vunpack.c.h.b16 %v1670
    %v4203 = vunpack.c.l.b16 %v1671
    %v4204 = vunpack.c.h.b16 %v1671
    %v4205 = vunpack.c.l.b16 %v1672
    %v4206 = vunpack.c.h.b16 %v1672
    %v4207 = vunpack.c.l.b16 %v1673
    %v4208 = vunpack.c.h.b16 %v1673
    %v4209 = vunpack.c.l.b16 %v1674
    %v4210 = vunpack.c.h.b16 %v1674
    %v4211 = vunpack.c.l.b16 %v1675
    %v4212 = vunpack.c.h.b16 %v1675
    %v4213 = vunpack.c.l.b16 %v1676
    %v4214 = vunpack.c.h.b16 %v1676
    %v4215 = vunpack.c.l.b16 %v1677
    %v4216 = vunpack.c.h.b16 %v1677
    %v4217 = vunpack.c.l.b16 %v1678
    %v4218 = vunpack.c.h.b16 %v1678
    %v4219 = vunpack.c.l.b16 %v1679
    %v4220 = vunpack.c.h.b16 %v1679
    %v4221 = vunpack.c.l.b16 %v1680
    %v4222 = vunpack.c.h.b16 %v1680
    %v4223 = vunpack.c.l.b16 %v1681
    %v4224 = vunpack.c.h.b16 %v1681
    %v4225 = vunpack.c.l.b16 %v1682
    %v4226 = vunpack.c.h.b16 %v1682
    %v4227 = vunpack.c.l.b16 %v1683
    %v4228 = vunpack.c.h.b16 %v1683
    %v4229 = vunpack.c.l.b16 %v1684
    %v4230 = vunpack.c.h.b16 %v1684
    %v4231 = vunpack.c.l.b16 %v1685
    %v4232 = vunpack.c.h.b16 %v1685
    %v4233 = vunpack.c.l.b16 %v1686
    %v4234 = vunpack.c.h.b16 %v1686
    %v4235 = vunpack.c.l.b16 %v1687
    %v4236 = vunpack.c.h.b16 %v1687
    %v4237 = vunpack.c.l.b16 %v1688
    %v4238 = vunpack.c.h.b16 %v1688
    %v4239 = vunpack.c.l.b16 %v1689
    %v4240 = vunpack.c.h.b16 %v1689
    %v4241 = vunpack.c.l.b16 %v1690
    %v4242 = vunpack.c.h.b16 %v1690
    %v4243 = vunpack.c.l.b16 %v1691
    %v4244 = vunpack.c.h.b16 %v1691
    %v4245 = vunpack.c.l.b16 %v1692
    %v4246 = vunpack.c.h.b16 %v1692
    %v4247 = vunpack.c.l.b16 %v1693
    %v4248 = vunpack.c.h.b16 %v1693
    %v4249 = vunpack.c.l.b16 %v1694
    %v4250 = vunpack.c.h.b16 %v1694
    %v4251 = vunpack.c.l.b16 %v1695
    %v4252 = vunpack.c.h.b16 %v1695
    %v4253 = vunpack.c.l.b16 %v1696
    %v4254 = vunpack.c.h.b16 %v1696
    %v4255 = vunpack.c.l.b16 %v1697
    %v4256 = vunpack.c.h.b16 %v1697
    %v4257 = vunpack.c.l.b16 %v1698
    %v4258 = vunpack.c.h.b16 %v1698
    %v4259 = vunpack.c.l.b16 %v1699
    %v4260 = vunpack.c.h.b16 %v1699
    %v4261 = vunpack.c.l.b16 %v1700
    %v4262 = vunpack.c.h.b16 %v1700
    %v4263 = vunpack.c.l.b16 %v1701
    %v4264 = vunpack.c.h.b16 %v1701
    %v4265 = vunpack.c.l.b16 %v1702
    %v4266 = vunpack.c.h.b16 %v1702
    %v4267 = vunpack.c.l.b16 %v1703
    %v4268 = vunpack.c.h.b16 %v1703
    %v4269 = vunpack.c.l.b16 %v1704
    %v4270 = vunpack.c.h.b16 %v1704
    %v4271 = vunpack.c.l.b16 %v1705
    %v4272 = vunpack.c.h.b16 %v1705
    %v4273 = vunpack.c.l.b16 %v1706
    %v4274 = vunpack.c.h.b16 %v1706
    %v4275 = vunpack.c.l.b16 %v1707
    %v4276 = vunpack.c.h.b16 %v1707
    %v4277 = vunpack.c.l.b16 %v1708
    %v4278 = vunpack.c.h.b16 %v1708
    %v4279 = vunpack.c.l.b16 %v1709
    %v4280 = vunpack.c.h.b16 %v1709
    %v4281 = vunpack.c.l.b16 %v1710
    %v4282 = vunpack.c.h.b16 %v1710
    %v4283 = vunpack.c.l.b16 %v1711
    %v4284 = vunpack.c.h.b16 %v1711
    %v4285 = vunpack.c.l.b16 %v1712
    %v4286 = vunpack.c.h.b16 %v1712
    %v4287 = vunpack.c.l.b16 %v1713
    %v4288 = vunpack.c.h.b16 %v1713
    %v4289 = vunpack.c.l.b16 %v1714
    %v4290 = vunpack.c.h.b16 %v1714
    %v4291 = vunpack.c.l.b16 %v1715
    %v4292 = vunpack.c.h.b16 %v1715
    %v4293 = vunpack.c.l.b16 %v1716
    %v4294 = vunpack.c.h.b16 %v1716
    %v4295 = vunpack.c.l.b16 %v1717
    %v4296 = vunpack.c.h.b16 %v1717
    %v4297 = vunpack.c.l.b16 %v1718
    %v4298 = vunpack.c.h.b16 %v1718
    %v4299 = vunpack.c.l.b16 %v1719
    %v4300 = vunpack.c.h.b16 %v1719
    %v4301 = vunpack.c.l.b16 %v1720
    %v4302 = vunpack.c.h.b16 %v1720
    %v4303 = vunpack.c.l.b16 %v1721
    %v4304 = vunpack.c.h.b16 %v1721
    %v4305 = vunpack.c.l.b16 %v1722
    %v4306 = vunpack.c.h.b16 %v1722
    %v4307 = vunpack.c.l.b16 %v1723
    %v4308 = vunpack.c.h.b16 %v1723
    %v4309 = vunpack.c.l.b16 %v1724
    %v4310 = vunpack.c.h.b16 %v1724
    %v4311 = vunpack.c.l.b16 %v1725
    %v4312 = vunpack.c.h.b16 %v1725
    %v4313 = vunpack.c.l.b16 %v1726
    %v4314 = vunpack.c.h.b16 %v1726
    %v4315 = vunpack.c.l.b16 %v1727
    %v4316 = vunpack.c.h.b16 %v1727
    %v4317 = vunpack.c.l.b16 %v1728
    %v4318 = vunpack.c.h.b16 %v1728
    %v4319 = vunpack.c.l.b16 %v1729
    %v4320 = vunpack.c.h.b16 %v1729
    %v4321 = vunpack.c.l.b16 %v1730
    %v4322 = vunpack.c.h.b16 %v1730
    %v4323 = vunpack.c.l.b16 %v1731
    %v4324 = vunpack.c.h.b16 %v1731
    %v4325 = vunpack.c.l.b16 %v1732
    %v4326 = vunpack.c.h.b16 %v1732
    %v4327 = vunpack.c.l.b16 %v1733
    %v4328 = vunpack.c.h.b16 %v1733
    %v4329 = vunpack.c.l.b16 %v1734
    %v4330 = vunpack.c.h.b16 %v1734
    %v4331 = vunpack.c.l.b16 %v1735
    %v4332 = vunpack.c.h.b16 %v1735
    %v4333 = vunpack.c.l.b16 %v1736
    %v4334 = vunpack.c.h.b16 %v1736
    %v4335 = vunpack.c.l.b16 %v1737
    %v4336 = vunpack.c.h.b16 %v1737
    %v4337 = vunpack.c.l.b16 %v1738
    %v4338 = vunpack.c.h.b16 %v1738
    %v4339 = vunpack.c.l.b16 %v1739
    %v4340 = vunpack.c.h.b16 %v1739
    %v4341 = vunpack.c.l.b16 %v1740
    %v4342 = vunpack.c.h.b16 %v1740
    %v4343 = vunpack.c.l.b16 %v1741
    %v4344 = vunpack.c.h.b16 %v1741
    %v4345 = vunpack.c.l.b16 %v1742
    %v4346 = vunpack.c.h.b16 %v1742
    %v4347 = vunpack.c.l.b16 %v1743
    %v4348 = vunpack.c.h.b16 %v1743
    %v4349 = vunpack.c.l.b16 %v1744
    %v4350 = vunpack.c.h.b16 %v1744
    %v4351 = vunpack.c.l.b16 %v1745
    %v4352 = vunpack.c.h.b16 %v1745
    %v4353 = vunpack.c.l.b16 %v1746
    %v4354 = vunpack.c.h.b16 %v1746
    %v4355 = vunpack.c.l.b16 %v1747
    %v4356 = vunpack.c.h.b16 %v1747
    %v4357 = vunpack.c.l.b16 %v1748
    %v4358 = vunpack.c.h.b16 %v1748
    %v4359 = vunpack.c.l.b16 %v1749
    %v4360 = vunpack.c.h.b16 %v1749
    %v4361 = vunpack.c.l.b16 %v1750
    %v4362 = vunpack.c.h.b16 %v1750
    %v4363 = vunpack.c.l.b16 %v1751
    %v4364 = vunpack.c.h.b16 %v1751
    %v4365 = vunpack.c.l.b16 %v1752
    %v4366 = vunpack.c.h.b16 %v1752
    %v4367 = vunpack.c.l.b16 %v1753
    %v4368 = vunpack.c.h.b16 %v1753
    %v4369 = vunpack.c.l.b16 %v1754
    %v4370 = vunpack.c.h.b16 %v1754
    %v4371 = vunpack.c.l.b16 %v1755
    %v4372 = vunpack.c.h.b16 %v1755
    %v4373 = vunpack.c.l.b16 %v1756
    %v4374 = vunpack.c.h.b16 %v1756
    %v4375 = vunpack.c.l.b16 %v1757
    %v4376 = vunpack.c.h.b16 %v1757
    %v4377 = vunpack.c.l.b16 %v1758
    %v4378 = vunpack.c.h.b16 %v1758
    %v4379 = vunpack.c.l.b16 %v1759
    %v4380 = vunpack.c.h.b16 %v1759
    %v4381 = vunpack.c.l.b16 %v1760
    %v4382 = vunpack.c.h.b16 %v1760
    %v4383 = vunpack.c.l.b16 %v1761
    %v4384 = vunpack.c.h.b16 %v1761
    %v4385 = vunpack.c.l.b16 %v1762
    %v4386 = vunpack.c.h.b16 %v1762
    %v4387 = vunpack.c.l.b16 %v1763
    %v4388 = vunpack.c.h.b16 %v1763
    %v4389 = vunpack.c.l.b16 %v1764
    %v4390 = vunpack.c.h.b16 %v1764
    %v4391 = vunpack.c.l.b16 %v1765
    %v4392 = vunpack.c.h.b16 %v1765
    %v4393 = vunpack.c.l.b16 %v1766
    %v4394 = vunpack.c.h.b16 %v1766
    %v4395 = vunpack.c.l.b16 %v1767
    %v4396 = vunpack.c.h.b16 %v1767
    %v4397 = vunpack.c.l.b16 %v1768
    %v4398 = vunpack.c.h.b16 %v1768
    %v4399 = vunpack.c.l.b16 %v1769
    %v4400 = vunpack.c.h.b16 %v1769
    %v4401 = vunpack.c.l.b16 %v1770
    %v4402 = vunpack.c.h.b16 %v1770
    %v4403 = vunpack.c.l.b16 %v1771
    %v4404 = vunpack.c.h.b16 %v1771
    %v4405 = vunpack.c.l.b16 %v1772
    %v4406 = vunpack.c.h.b16 %v1772
    %v4407 = vunpack.c.l.b16 %v1773
    %v4408 = vunpack.c.h.b16 %v1773
    %v4409 = vunpack.c.l.b16 %v1774
    %v4410 = vunpack.c.h.b16 %v1774
    %v4411 = vunpack.c.l.b16 %v1775
    %v4412 = vunpack.c.h.b16 %v1775
    %v4413 = vunpack.c.l.b16 %v1776
    %v4414 = vunpack.c.h.b16 %v1776
    %v4415 = vunpack.c.l.b16 %v1777
    %v4416 = vunpack.c.h.b16 %v1777
    %v4417 = vunpack.c.l.b16 %v1778
    %v4418 = vunpack.c.h.b16 %v1778
    %v4419 = vunpack.c.l.b16 %v1779
    %v4420 = vunpack.c.h.b16 %v1779
    %v4421 = vunpack.c.l.b16 %v1780
    %v4422 = vunpack.c.h.b16 %v1780
    %v4423 = vunpack.c.l.b16 %v1781
    %v4424 = vunpack.c.h.b16 %v1781
    %v4425 = vunpack.c.l.b16 %v1782
    %v4426 = vunpack.c.h.b16 %v1782
    %v4427 = vunpack.c.l.b16 %v1783
    %v4428 = vunpack.c.h.b16 %v1783
    %v4429 = vunpack.c.l.b16 %v1784
    %v4430 = vunpack.c.h.b16 %v1784
    %v4431 = vunpack.c.l.b16 %v1785
    %v4432 = vunpack.c.h.b16 %v1785
    %v4433 = vunpack.c.l.b16 %v1786
    %v4434 = vunpack.c.h.b16 %v1786
    %v4435 = vunpack.c.l.b16 %v1787
    %v4436 = vunpack.c.h.b16 %v1787
    %v4437 = vunpack.c.l.b16 %v1788
    %v4438 = vunpack.c.h.b16 %v1788
    %v4439 = vunpack.c.l.b16 %v1789
    %v4440 = vunpack.c.h.b16 %v1789
    %v4441 = vunpack.c.l.b16 %v1790
    %v4442 = vunpack.c.h.b16 %v1790
    %v4443 = vunpack.c.l.b16 %v1791
    %v4444 = vunpack.c.h.b16 %v1791
    %v4445 = vunpack.c.l.b16 %v1792
    %v4446 = vunpack.c.h.b16 %v1792
    %v4447 = vunpack.c.l.b16 %v1793
    %v4448 = vunpack.c.h.b16 %v1793
    %v4449 = vunpack.c.l.b16 %v1794
    %v4450 = vunpack.c.h.b16 %v1794
    %v4451 = vunpack.c.l.b16 %v1795
    %v4452 = vunpack.c.h.b16 %v1795
    %v4453 = vunpack.c.l.b16 %v1796
    %v4454 = vunpack.c.h.b16 %v1796
    %v4455 = vunpack.c.l.b16 %v1797
    %v4456 = vunpack.c.h.b16 %v1797
    %v4457 = vunpack.c.l.b16 %v1798
    %v4458 = vunpack.c.h.b16 %v1798
    %v4459 = vunpack.c.l.b16 %v1799
    %v4460 = vunpack.c.h.b16 %v1799
    %v4461 = vunpack.c.l.b16 %v1800
    %v4462 = vunpack.c.h.b16 %v1800
    %v4463 = vunpack.c.l.b16 %v1801
    %v4464 = vunpack.c.h.b16 %v1801
    %v4465 = vunpack.c.l.b16 %v1802
    %v4466 = vunpack.c.h.b16 %v1802
    %v4467 = vunpack.c.l.b16 %v1803
    %v4468 = vunpack.c.h.b16 %v1803
    %v4469 = vunpack.c.l.b16 %v1804
    %v4470 = vunpack.c.h.b16 %v1804
    %v4471 = vunpack.c.l.b16 %v1805
    %v4472 = vunpack.c.h.b16 %v1805
    %v4473 = vunpack.c.l.b16 %v1806
    %v4474 = vunpack.c.h.b16 %v1806
    %v4475 = vunpack.c.l.b16 %v1807
    %v4476 = vunpack.c.h.b16 %v1807
    %v4477 = vunpack.c.l.b16 %v1808
    %v4478 = vunpack.c.h.b16 %v1808
    %v4479 = vunpack.c.l.b16 %v1809
    %v4480 = vunpack.c.h.b16 %v1809
    %v4481 = vunpack.c.l.b16 %v1810
    %v4482 = vunpack.c.h.b16 %v1810
    %v4483 = vunpack.c.l.b16 %v1811
    %v4484 = vunpack.c.h.b16 %v1811
    %v4485 = vunpack.c.l.b16 %v1812
    %v4486 = vunpack.c.h.b16 %v1812
    %v4487 = vunpack.c.l.b16 %v1813
    %v4488 = vunpack.c.h.b16 %v1813
    %v4489 = vunpack.c.l.b16 %v1814
    %v4490 = vunpack.c.h.b16 %v1814
    %v4491 = vunpack.c.l.b16 %v1815
    %v4492 = vunpack.c.h.b16 %v1815
    %v4493 = vunpack.c.l.b16 %v1816
    %v4494 = vunpack.c.h.b16 %v1816
    %v4495 = vunpack.c.l.b16 %v1817
    %v4496 = vunpack.c.h.b16 %v1817
    %v4497 = vunpack.c.l.b16 %v1818
    %v4498 = vunpack.c.h.b16 %v1818
    %v4499 = vunpack.c.l.b16 %v1819
    %v4500 = vunpack.c.h.b16 %v1819
    %v4501 = vunpack.c.l.b16 %v1820
    %v4502 = vunpack.c.h.b16 %v1820
    %v4503 = vunpack.c.l.b16 %v1821
    %v4504 = vunpack.c.h.b16 %v1821
    %v4505 = vunpack.c.l.b16 %v1822
    %v4506 = vunpack.c.h.b16 %v1822
    %v4507 = vunpack.c.l.b16 %v1823
    %v4508 = vunpack.c.h.b16 %v1823
    %v4509 = vunpack.c.l.b16 %v1824
    %v4510 = vunpack.c.h.b16 %v1824
    %v4511 = vunpack.c.l.b16 %v1825
    %v4512 = vunpack.c.h.b16 %v1825
    %v4513 = vunpack.c.l.b16 %v1826
    %v4514 = vunpack.c.h.b16 %v1826
    %v4515 = vunpack.c.l.b16 %v1827
    %v4516 = vunpack.c.h.b16 %v1827
    %v4517 = vunpack.c.l.b16 %v1828
    %v4518 = vunpack.c.h.b16 %v1828
    %v4519 = vunpack.c.l.b16 %v1829
    %v4520 = vunpack.c.h.b16 %v1829
    %v4521 = vunpack.c.l.b16 %v1830
    %v4522 = vunpack.c.h.b16 %v1830
    %v4523 = vunpack.c.l.b16 %v1831
    %v4524 = vunpack.c.h.b16 %v1831
    %v4525 = vunpack.c.l.b16 %v1832
    %v4526 = vunpack.c.h.b16 %v1832
    %v4527 = vunpack.c.l.b16 %v1833
    %v4528 = vunpack.c.h.b16 %v1833
    %v4529 = vunpack.c.l.b16 %v1834
    %v4530 = vunpack.c.h.b16 %v1834
    %v4531 = vunpack.c.l.b16 %v1835
    %v4532 = vunpack.c.h.b16 %v1835
    %v4533 = vunpack.c.l.b16 %v1836
    %v4534 = vunpack.c.h.b16 %v1836
    %v4535 = vunpack.c.l.b16 %v1837
    %v4536 = vunpack.c.h.b16 %v1837
    %v4537 = vunpack.c.l.b16 %v1838
    %v4538 = vunpack.c.h.b16 %v1838
    %v4539 = vunpack.c.l.b16 %v1839
    %v4540 = vunpack.c.h.b16 %v1839
    %v4541 = vunpack.c.l.b16 %v1840
    %v4542 = vunpack.c.h.b16 %v1840
    %v4543 = vunpack.c.l.b16 %v1841
    %v4544 = vunpack.c.h.b16 %v1841
    %v4545 = vunpack.c.l.b16 %v1842
    %v4546 = vunpack.c.h.b16 %v1842
    %v4547 = vunpack.c.l.b16 %v1843
    %v4548 = vunpack.c.h.b16 %v1843
    %v4549 = vunpack.c.l.b16 %v1844
    %v4550 = vunpack.c.h.b16 %v1844
    %v4551 = vunpack.c.l.b16 %v1845
    %v4552 = vunpack.c.h.b16 %v1845
    %v4553 = vunpack.c.l.b16 %v1846
    %v4554 = vunpack.c.h.b16 %v1846
    %v4555 = vunpack.c.l.b16 %v1847
    %v4556 = vunpack.c.h.b16 %v1847
    %v4557 = vunpack.c.l.b16 %v1848
    %v4558 = vunpack.c.h.b16 %v1848
    %v4559 = vunpack.c.l.b16 %v1849
    %v4560 = vunpack.c.h.b16 %v1849
    %v4561 = vunpack.c.l.b16 %v1850
    %v4562 = vunpack.c.h.b16 %v1850
    %v4563 = vunpack.c.l.b16 %v1851
    %v4564 = vunpack.c.h.b16 %v1851
    %v4565 = vunpack.c.l.b16 %v1852
    %v4566 = vunpack.c.h.b16 %v1852
    %v4567 = vunpack.c.l.b16 %v1853
    %v4568 = vunpack.c.h.b16 %v1853
    %v4569 = vunpack.c.l.b16 %v1854
    %v4570 = vunpack.c.h.b16 %v1854
    %v4571 = vunpack.c.l.b16 %v1855
    %v4572 = vunpack.c.h.b16 %v1855
    %v4573 = vunpack.c.l.b16 %v1856
    %v4574 = vunpack.c.h.b16 %v1856
    %v4575 = vunpack.c.l.b16 %v1857
    %v4576 = vunpack.c.h.b16 %v1857
    %v4577 = vunpack.c.l.b16 %v1858
    %v4578 = vunpack.c.h.b16 %v1858
    %v4579 = vunpack.c.l.b16 %v1859
    %v4580 = vunpack.c.h.b16 %v1859
    %v4581 = vunpack.c.l.b16 %v1860
    %v4582 = vunpack.c.h.b16 %v1860
    %v4583 = vunpack.c.l.b16 %v1861
    %v4584 = vunpack.c.h.b16 %v1861
    %v4585 = vunpack.c.l.b16 %v1862
    %v4586 = vunpack.c.h.b16 %v1862
    %v4587 = vunpack.c.l.b16 %v1863
    %v4588 = vunpack.c.h.b16 %v1863
    %v4589 = vunpack.c.l.b16 %v1864
    %v4590 = vunpack.c.h.b16 %v1864
    %v4591 = vunpack.c.l.b16 %v1865
    %v4592 = vunpack.c.h.b16 %v1865
    %v4593 = vunpack.c.l.b16 %v1866
    %v4594 = vunpack.c.h.b16 %v1866
    %v4595 = vunpack.c.l.b16 %v1867
    %v4596 = vunpack.c.h.b16 %v1867
    %v4597 = vunpack.c.l.b16 %v1868
    %v4598 = vunpack.c.h.b16 %v1868
    %v4599 = vunpack.c.l.b16 %v1869
    %v4600 = vunpack.c.h.b16 %v1869
    %v4601 = vunpack.c.l.b16 %v1870
    %v4602 = vunpack.c.h.b16 %v1870
    %v4603 = vunpack.c.l.b16 %v1871
    %v4604 = vunpack.c.h.b16 %v1871
    %v4605 = vunpack.c.l.b16 %v1872
    %v4606 = vunpack.c.h.b16 %v1872
    %v4607 = vunpack.c.l.b16 %v1873
    %v4608 = vunpack.c.h.b16 %v1873
    %v4609 = vunpack.c.l.b16 %v1874
    %v4610 = vunpack.c.h.b16 %v1874
    %v4611 = vunpack.c.l.b16 %v1875
    %v4612 = vunpack.c.h.b16 %v1875
    %v4613 = vunpack.c.l.b16 %v1876
    %v4614 = vunpack.c.h.b16 %v1876
    %v4615 = vunpack.c.l.b16 %v1877
    %v4616 = vunpack.c.h.b16 %v1877
    %v4617 = vunpack.c.l.b16 %v1878
    %v4618 = vunpack.c.h.b16 %v1878
    %v4619 = vunpack.c.l.b16 %v1879
    %v4620 = vunpack.c.h.b16 %v1879
    %v4621 = vunpack.c.l.b16 %v1880
    %v4622 = vunpack.c.h.b16 %v1880
    %v4623 = vunpack.c.l.b16 %v1881
    %v4624 = vunpack.c.h.b16 %v1881
    %v4625 = vunpack.c.l.b16 %v1882
    %v4626 = vunpack.c.h.b16 %v1882
    %v4627 = vunpack.c.l.b16 %v1883
    %v4628 = vunpack.c.h.b16 %v1883
    %v4629 = vunpack.c.l.b16 %v1884
    %v4630 = vunpack.c.h.b16 %v1884
    %v4631 = vunpack.c.l.b16 %v1885
    %v4632 = vunpack.c.h.b16 %v1885
    %v4633 = vunpack.c.l.b16 %v1886
    %v4634 = vunpack.c.h.b16 %v1886
    %v4635 = vunpack.c.l.b16 %v1887
    %v4636 = vunpack.c.h.b16 %v1887
    %v4637 = vunpack.c.l.b16 %v1888
    %v4638 = vunpack.c.h.b16 %v1888
    %v4639 = vunpack.c.l.b16 %v1889
    %v4640 = vunpack.c.h.b16 %v1889
    %v4641 = vunpack.c.l.b16 %v1890
    %v4642 = vunpack.c.h.b16 %v1890
    %v4643 = vunpack.c.l.b16 %v1891
    %v4644 = vunpack.c.h.b16 %v1891
    %v4645 = vunpack.c.l.b16 %v1892
    %v4646 = vunpack.c.h.b16 %v1892
    %v4647 = vunpack.c.l.b16 %v1893
    %v4648 = vunpack.c.h.b16 %v1893
    %v4649 = vunpack.c.l.b16 %v1894
    %v4650 = vunpack.c.h.b16 %v1894
    %v4651 = vunpack.c.l.b16 %v1895
    %v4652 = vunpack.c.h.b16 %v1895
    %v4653 = vunpack.c.l.b16 %v1896
    %v4654 = vunpack.c.h.b16 %v1896
    %v4655 = vunpack.c.l.b16 %v1897
    %v4656 = vunpack.c.h.b16 %v1897
    %v4657 = vunpack.c.l.b16 %v1898
    %v4658 = vunpack.c.h.b16 %v1898
    %v4659 = vunpack.c.l.b16 %v1899
    %v4660 = vunpack.c.h.b16 %v1899
    %v4661 = vunpack.c.l.b16 %v1900
    %v4662 = vunpack.c.h.b16 %v1900
    %v4663 = vunpack.c.l.b16 %v1901
    %v4664 = vunpack.c.h.b16 %v1901
    %v4665 = vunpack.c.l.b16 %v1902
    %v4666 = vunpack.c.h.b16 %v1902
    %v4667 = vunpack.c.l.b16 %v1903
    %v4668 = vunpack.c.h.b16 %v1903
    %v4669 = vunpack.c.l.b16 %v1904
    %v4670 = vunpack.c.h.b16 %v1904
    %v4671 = vunpack.c.l.b16 %v1905
    %v4672 = vunpack.c.h.b16 %v1905
    %v4673 = vunpack.c.l.b16 %v1906
    %v4674 = vunpack.c.h.b16 %v1906
    %v4675 = vunpack.c.l.b16 %v1907
    %v4676 = vunpack.c.h.b16 %v1907
    %v4677 = vunpack.c.l.b16 %v1908
    %v4678 = vunpack.c.h.b16 %v1908
    %v4679 = vunpack.c.l.b16 %v1909
    %v4680 = vunpack.c.h.b16 %v1909
    %v4681 = vunpack.c.l.b16 %v1910
    %v4682 = vunpack.c.h.b16 %v1910
    %v4683 = vunpack.c.l.b16 %v1911
    %v4684 = vunpack.c.h.b16 %v1911
    %v4685 = vunpack.c.l.b16 %v1912
    %v4686 = vunpack.c.h.b16 %v1912
    %v4687 = vunpack.c.l.b16 %v1913
    %v4688 = vunpack.c.h.b16 %v1913
    %v4689 = vunpack.c.l.b16 %v1914
    %v4690 = vunpack.c.h.b16 %v1914
    %v4691 = vunpack.c.l.b16 %v1915
    %v4692 = vunpack.c.h.b16 %v1915
    %v4693 = vunpack.c.l.b16 %v1916
    %v4694 = vunpack.c.h.b16 %v1916
    %v4695 = vunpack.c.l.b16 %v1917
    %v4696 = vunpack.c.h.b16 %v1917
    %v4697 = vunpack.c.l.b16 %v1918
    %v4698 = vunpack.c.h.b16 %v1918
    %v4699 = vunpack.c.l.b16 %v1919
    %v4700 = vunpack.c.h.b16 %v1919
    %v4701 = vunpack.c.l.b16 %v1920
    %v4702 = vunpack.c.h.b16 %v1920
    %v4703 = vunpack.c.l.b16 %v1921
    %v4704 = vunpack.c.h.b16 %v1921
    %v4705 = vunpack.c.l.b16 %v1922
    %v4706 = vunpack.c.h.b16 %v1922
    %v4707 = vunpack.c.l.b16 %v1923
    %v4708 = vunpack.c.h.b16 %v1923
    %v4709 = vunpack.c.l.b16 %v1924
    %v4710 = vunpack.c.h.b16 %v1924
    %v4711 = vunpack.c.l.b16 %v1925
    %v4712 = vunpack.c.h.b16 %v1925
    %v4713 = vunpack.c.l.b16 %v1926
    %v4714 = vunpack.c.h.b16 %v1926
    %v4715 = vunpack.c.l.b16 %v1927
    %v4716 = vunpack.c.h.b16 %v1927
    %v4717 = vunpack.c.l.b16 %v1928
    %v4718 = vunpack.c.h.b16 %v1928
    %v4719 = vunpack.c.l.b16 %v1929
    %v4720 = vunpack.c.h.b16 %v1929
    %v4721 = vunpack.c.l.b16 %v1930
    %v4722 = vunpack.c.h.b16 %v1930
    %v4723 = vunpack.c.l.b16 %v1931
    %v4724 = vunpack.c.h.b16 %v1931
    %v4725 = vunpack.c.l.b16 %v1932
    %v4726 = vunpack.c.h.b16 %v1932
    %v4727 = vunpack.c.l.b16 %v1933
    %v4728 = vunpack.c.h.b16 %v1933
    %v4729 = vunpack.c.l.b16 %v1934
    %v4730 = vunpack.c.h.b16 %v1934
    %v4731 = vunpack.c.l.b16 %v1935
    %v4732 = vunpack.c.h.b16 %v1935
    %v4733 = vunpack.c.l.b16 %v1936
    %v4734 = vunpack.c.h.b16 %v1936
    %v4735 = vunpack.c.l.b16 %v1937
    %v4736 = vunpack.c.h.b16 %v1937
    %v4737 = vunpack.c.l.b16 %v1938
    %v4738 = vunpack.c.h.b16 %v1938
    %v4739 = vunpack.c.l.b16 %v1939
    %v4740 = vunpack.c.h.b16 %v1939
    %v4741 = vunpack.c.l.b16 %v1940
    %v4742 = vunpack.c.h.b16 %v1940
    %v4743 = vunpack.c.l.b16 %v1941
    %v4744 = vunpack.c.h.b16 %v1941
    %v4745 = vunpack.c.l.b16 %v1942
    %v4746 = vunpack.c.h.b16 %v1942
    %v4747 = vunpack.c.l.b16 %v1943
    %v4748 = vunpack.c.h.b16 %v1943
    %v4749 = vunpack.c.l.b16 %v1944
    %v4750 = vunpack.c.h.b16 %v1944
    %v4751 = vunpack.c.l.b16 %v1945
    %v4752 = vunpack.c.h.b16 %v1945
    %v4753 = vunpack.c.l.b16 %v1946
    %v4754 = vunpack.c.h.b16 %v1946
    %v4755 = vunpack.c.l.b16 %v1947
    %v4756 = vunpack.c.h.b16 %v1947
    %v4757 = vunpack.c.l.b16 %v1948
    %v4758 = vunpack.c.h.b16 %v1948
    %v4759 = vunpack.c.l.b16 %v1949
    %v4760 = vunpack.c.h.b16 %v1949
    %v4761 = vunpack.c.l.b16 %v1950
    %v4762 = vunpack.c.h.b16 %v1950
    %v4763 = vunpack.c.l.b16 %v1951
    %v4764 = vunpack.c.h.b16 %v1951
    %v4765 = vunpack.c.l.b16 %v1952
    %v4766 = vunpack.c.h.b16 %v1952
    %v4767 = vunpack.c.l.b16 %v1953
    %v4768 = vunpack.c.h.b16 %v1953
    %v4769 = vunpack.c.l.b16 %v1954
    %v4770 = vunpack.c.h.b16 %v1954
    %v4771 = vunpack.c.l.b16 %v1955
    %v4772 = vunpack.c.h.b16 %v1955
    %v4773 = vunpack.c.l.b16 %v1956
    %v4774 = vunpack.c.h.b16 %v1956
    %v4775 = vunpack.c.l.b16 %v1957
    %v4776 = vunpack.c.h.b16 %v1957
    %v4777 = vunpack.c.l.b16 %v1958
    %v4778 = vunpack.c.h.b16 %v1958
    %v4779 = vunpack.c.l.b16 %v1959
    %v4780 = vunpack.c.h.b16 %v1959
    %v4781 = vunpack.c.l.b16 %v1960
    %v4782 = vunpack.c.h.b16 %v1960
    %v4783 = vunpack.c.l.b16 %v1961
    %v4784 = vunpack.c.h.b16 %v1961
    %v4785 = vunpack.c.l.b16 %v1962
    %v4786 = vunpack.c.h.b16 %v1962
    %v4787 = vunpack.c.l.b16 %v1963
    %v4788 = vunpack.c.h.b16 %v1963
    %v4789 = vunpack.c.l.b16 %v1964
    %v4790 = vunpack.c.h.b16 %v1964
    %v4791 = vunpack.c.l.b16 %v1965
    %v4792 = vunpack.c.h.b16 %v1965
    %v4793 = vunpack.c.l.b16 %v1966
    %v4794 = vunpack.c.h.b16 %v1966
    %v4795 = vunpack.c.l.b16 %v1967
    %v4796 = vunpack.c.h.b16 %v1967
    %v4797 = vunpack.c.l.b16 %v1968
    %v4798 = vunpack.c.h.b16 %v1968
    %v4799 = vunpack.c.l.b16 %v1969
    %v4800 = vunpack.c.h.b16 %v1969
    %v4801 = vunpack.c.l.b16 %v1970
    %v4802 = vunpack.c.h.b16 %v1970
    %v4803 = vunpack.c.l.b16 %v1971
    %v4804 = vunpack.c.h.b16 %v1971
    %v4805 = vunpack.c.l.b16 %v1972
    %v4806 = vunpack.c.h.b16 %v1972
    %v4807 = vunpack.c.l.b16 %v1973
    %v4808 = vunpack.c.h.b16 %v1973
    %v4809 = vunpack.c.l.b16 %v1974
    %v4810 = vunpack.c.h.b16 %v1974
    %v4811 = vunpack.c.l.b16 %v1975
    %v4812 = vunpack.c.h.b16 %v1975
    %v4813 = vunpack.c.l.b16 %v1976
    %v4814 = vunpack.c.h.b16 %v1976
    %v4815 = vunpack.c.l.b16 %v1977
    %v4816 = vunpack.c.h.b16 %v1977
    %v4817 = vunpack.c.l.b16 %v1978
    %v4818 = vunpack.c.h.b16 %v1978
    %v4819 = vunpack.c.l.b16 %v1979
    %v4820 = vunpack.c.h.b16 %v1979
    %v4821 = vunpack.c.l.b16 %v1980
    %v4822 = vunpack.c.h.b16 %v1980
    %v4823 = vunpack.c.l.b16 %v1981
    %v4824 = vunpack.c.h.b16 %v1981
    %v4825 = vunpack.c.l.b16 %v1982
    %v4826 = vunpack.c.h.b16 %v1982
    %v4827 = vunpack.c.l.b16 %v1983
    %v4828 = vunpack.c.h.b16 %v1983
    %v4829 = vunpack.c.l.b16 %v1984
    %v4830 = vunpack.c.h.b16 %v1984
    %v4831 = vunpack.c.l.b16 %v1985
    %v4832 = vunpack.c.h.b16 %v1985
    %v4833 = vunpack.c.l.b16 %v1986
    %v4834 = vunpack.c.h.b16 %v1986
    %v4835 = vunpack.c.l.b16 %v1987
    %v4836 = vunpack.c.h.b16 %v1987
    %v4837 = vunpack.c.l.b16 %v1988
    %v4838 = vunpack.c.h.b16 %v1988
    %v4839 = vunpack.c.l.b16 %v1989
    %v4840 = vunpack.c.h.b16 %v1989
    %v4841 = vunpack.c.l.b16 %v1990
    %v4842 = vunpack.c.h.b16 %v1990
    %v4843 = vunpack.c.l.b16 %v1991
    %v4844 = vunpack.c.h.b16 %v1991
    %v4845 = vunpack.c.l.b16 %v1992
    %v4846 = vunpack.c.h.b16 %v1992
    %v4847 = vunpack.c.l.b16 %v1993
    %v4848 = vunpack.c.h.b16 %v1993
    %v4849 = vunpack.c.l.b16 %v1994
    %v4850 = vunpack.c.h.b16 %v1994
    %v4851 = vunpack.c.l.b16 %v1995
    %v4852 = vunpack.c.h.b16 %v1995
    %v4853 = vunpack.c.l.b16 %v1996
    %v4854 = vunpack.c.h.b16 %v1996
    %v4855 = vunpack.c.l.b16 %v1997
    %v4856 = vunpack.c.h.b16 %v1997
    %v4857 = vunpack.c.l.b16 %v1998
    %v4858 = vunpack.c.h.b16 %v1998
    %v4859 = vunpack.c.l.b16 %v1999
    %v4860 = vunpack.c.h.b16 %v1999
    %v4861 = vunpack.c.l.b16 %v2000
    %v4862 = vunpack.c.h.b16 %v2000
    %v4863 = vunpack.c.l.b16 %v2001
    %v4864 = vunpack.c.h.b16 %v2001
    %v4865 = vunpack.c.l.b16 %v2002
    %v4866 = vunpack.c.h.b16 %v2002
    %v4867 = vunpack.c.l.b16 %v2003
    %v4868 = vunpack.c.h.b16 %v2003
    %v4869 = vunpack.c.l.b16 %v2004
    %v4870 = vunpack.c.h.b16 %v2004
    %v4871 = vunpack.c.l.b16 %v2005
    %v4872 = vunpack.c.h.b16 %v2005
    %v4873 = vunpack.c.l.b16 %v2006
    %v4874 = vunpack.c.h.b16 %v2006
    %v4875 = vunpack.c.l.b16 %v2007
    %v4876 = vunpack.c.h.b16 %v2007
    %v4877 = vunpack.c.l.b16 %v2008
    %v4878 = vunpack.c.h.b16 %v2008
    %v4879 = vunpack.c.l.b16 %v2009
    %v4880 = vunpack.c.h.b16 %v2009
    %v4881 = vunpack.c.l.b16 %v2010
    %v4882 = vunpack.c.h.b16 %v2010
    %v4883 = vunpack.c.l.b16 %v2011
    %v4884 = vunpack.c.h.b16 %v2011
    %v4885 = vunpack.c.l.b16 %v2012
    %v4886 = vunpack.c.h.b16 %v2012
    %v4887 = vunpack.c.l.b16 %v2013
    %v4888 = vunpack.c.h.b16 %v2013
    %v4889 = vunpack.c.l.b16 %v2014
    %v4890 = vunpack.c.h.b16 %v2014
    %v4891 = vunpack.c.l.b16 %v2015
    %v4892 = vunpack.c.h.b16 %v2015
    %v4893 = vunpack.c.l.b16 %v2016
    %v4894 = vunpack.c.h.b16 %v2016
    %v4895 = vunpack.c.l.b16 %v2017
    %v4896 = vunpack.c.h.b16 %v2017
    %v4897 = vunpack.c.l.b16 %v2018
    %v4898 = vunpack.c.h.b16 %v2018
    %v4899 = vunpack.c.l.b16 %v2019
    %v4900 = vunpack.c.h.b16 %v2019
    %v4901 = vunpack.c.l.b16 %v2020
    %v4902 = vunpack.c.h.b16 %v2020
    %v4903 = vunpack.c.l.b16 %v2021
    %v4904 = vunpack.c.h.b16 %v2021
    %v4905 = vunpack.c.l.b16 %v2022
    %v4906 = vunpack.c.h.b16 %v2022
    %v4907 = vunpack.c.l.b16 %v2023
    %v4908 = vunpack.c.h.b16 %v2023
    %v4909 = vunpack.c.l.b16 %v2024
    %v4910 = vunpack.c.h.b16 %v2024
    %v4911 = vunpack.c.l.b16 %v2025
    %v4912 = vunpack.c.h.b16 %v2025
    %v4913 = vunpack.c.l.b16 %v2026
    %v4914 = vunpack.c.h.b16 %v2026
    %v4915 = vunpack.c.l.b16 %v2027
    %v4916 = vunpack.c.h.b16 %v2027
    %v4917 = vunpack.c.l.b16 %v2028
    %v4918 = vunpack.c.h.b16 %v2028
    %v4919 = vunpack.c.l.b16 %v2029
    %v4920 = vunpack.c.h.b16 %v2029
    %v4921 = vunpack.c.l.b16 %v2030
    %v4922 = vunpack.c.h.b16 %v2030
    %v4923 = vunpack.c.l.b16 %v2031
    %v4924 = vunpack.c.h.b16 %v2031
    %v4925 = vunpack.c.l.b16 %v2032
    %v4926 = vunpack.c.h.b16 %v2032
    %v4927 = vunpack.c.l.b16 %v2033
    %v4928 = vunpack.c.h.b16 %v2033
    %v4929 = vunpack.c.l.b16 %v2034
    %v4930 = vunpack.c.h.b16 %v2034
    %v4931 = vunpack.c.l.b16 %v2035
    %v4932 = vunpack.c.h.b16 %v2035
    %v4933 = vunpack.c.l.b16 %v2036
    %v4934 = vunpack.c.h.b16 %v2036
    %v4935 = vunpack.c.l.b16 %v2037
    %v4936 = vunpack.c.h.b16 %v2037
    %v4937 = vunpack.c.l.b16 %v2038
    %v4938 = vunpack.c.h.b16 %v2038
    %v4939 = vunpack.c.l.b16 %v2039
    %v4940 = vunpack.c.h.b16 %v2039
    %v4941 = vunpack.c.l.b16 %v2040
    %v4942 = vunpack.c.h.b16 %v2040
    %v4943 = vunpack.c.l.b16 %v2041
    %v4944 = vunpack.c.h.b16 %v2041
    %v4945 = vunpack.c.l.b16 %v2042
    %v4946 = vunpack.c.h.b16 %v2042
    %v4947 = vunpack.c.l.b16 %v2043
    %v4948 = vunpack.c.h.b16 %v2043
    %v4949 = vunpack.c.l.b16 %v2044
    %v4950 = vunpack.c.h.b16 %v2044
    %v4951 = vunpack.c.l.b16 %v2045
    %v4952 = vunpack.c.h.b16 %v2045
    %v4953 = vunpack.c.l.b16 %v2046
    %v4954 = vunpack.c.h.b16 %v2046
    %v4955 = vunpack.c.l.b16 %v2047
    %v4956 = vunpack.c.h.b16 %v2047
    %v4957 = vunpack.c.l.b16 %v2048
    %v4958 = vunpack.c.h.b16 %v2048
    %v4959 = vunpack.c.l.b16 %v2049
    %v4960 = vunpack.c.h.b16 %v2049
    %v4961 = vunpack.c.l.b16 %v2050
    %v4962 = vunpack.c.h.b16 %v2050
    %v4963 = vunpack.c.l.b16 %v2051
    %v4964 = vunpack.c.h.b16 %v2051
    %v4965 = vunpack.c.l.b16 %v2052
    %v4966 = vunpack.c.h.b16 %v2052
    %v4967 = vunpack.c.l.b16 %v2053
    %v4968 = vunpack.c.h.b16 %v2053
    %v4969 = vunpack.c.l.b16 %v2054
    %v4970 = vunpack.c.h.b16 %v2054
    %v4971 = vunpack.c.l.b16 %v2055
    %v4972 = vunpack.c.h.b16 %v2055
    %v4973 = vunpack.c.l.b16 %v2056
    %v4974 = vunpack.c.h.b16 %v2056
    %v4975 = vunpack.c.l.b16 %v2057
    %v4976 = vunpack.c.h.b16 %v2057
    %v4977 = vunpack.c.l.b16 %v2058
    %v4978 = vunpack.c.h.b16 %v2058
    %v4979 = vunpack.c.l.b16 %v2059
    %v4980 = vunpack.c.h.b16 %v2059
    %v4981 = vunpack.c.l.b16 %v2060
    %v4982 = vunpack.c.h.b16 %v2060
    %v4983 = vunpack.c.l.b16 %v2061
    %v4984 = vunpack.c.h.b16 %v2061
    %v4985 = vunpack.c.l.b16 %v2062
    %v4986 = vunpack.c.h.b16 %v2062
    %v4987 = vunpack.c.l.b16 %v2063
    %v4988 = vunpack.c.h.b16 %v2063
    %v4989 = vunpack.c.l.b16 %v2064
    %v4990 = vunpack.c.h.b16 %v2064
    %v4991 = vunpack.c.l.b16 %v2065
    %v4992 = vunpack.c.h.b16 %v2065
    %v4993 = vunpack.c.l.b16 %v2066
    %v4994 = vunpack.c.h.b16 %v2066
    %v4995 = vunpack.c.l.b16 %v2067
    %v4996 = vunpack.c.h.b16 %v2067
    %v4997 = vunpack.c.l.b16 %v2068
    %v4998 = vunpack.c.h.b16 %v2068
    %v4999 = vunpack.c.l.b16 %v2069
    %v5000 = vunpack.c.h.b16 %v2069
    %v5001 = vunpack.c.l.b16 %v2070
    %v5002 = vunpack.c.h.b16 %v2070
    %v5003 = vunpack.c.l.b16 %v2071
    %v5004 = vunpack.c.h.b16 %v2071
    %v5005 = vunpack.c.l.b16 %v2072
    %v5006 = vunpack.c.h.b16 %v2072
    %v5007 = vunpack.c.l.b16 %v2073
    %v5008 = vunpack.c.h.b16 %v2073
    %v5009 = vunpack.c.l.b16 %v2074
    %v5010 = vunpack.c.h.b16 %v2074
    %v5011 = vunpack.c.l.b16 %v2075
    %v5012 = vunpack.c.h.b16 %v2075
    %v5013 = vunpack.c.l.b16 %v2076
    %v5014 = vunpack.c.h.b16 %v2076
    %v5015 = vunpack.c.l.b16 %v2077
    %v5016 = vunpack.c.h.b16 %v2077
    %v5017 = vunpack.c.l.b16 %v2078
    %v5018 = vunpack.c.h.b16 %v2078
    %v5019 = vunpack.c.l.b16 %v2079
    %v5020 = vunpack.c.h.b16 %v2079
    %v5021 = vunpack.c.l.b16 %v2080
    %v5022 = vunpack.c.h.b16 %v2080
    %v5023 = vunpack.c.l.b16 %v2081
    %v5024 = vunpack.c.h.b16 %v2081
    %v5025 = vunpack.c.l.b16 %v2082
    %v5026 = vunpack.c.h.b16 %v2082
    %v5027 = vunpack.c.l.b16 %v2083
    %v5028 = vunpack.c.h.b16 %v2083
    %v5029 = vunpack.c.l.b16 %v2084
    %v5030 = vunpack.c.h.b16 %v2084
    %v5031 = vunpack.c.l.b16 %v2085
    %v5032 = vunpack.c.h.b16 %v2085
    %v5033 = vunpack.c.l.b16 %v2086
    %v5034 = vunpack.c.h.b16 %v2086
    %v5035 = vunpack.c.l.b16 %v2087
    %v5036 = vunpack.c.h.b16 %v2087
    %v5037 = vunpack.c.l.b16 %v2088
    %v5038 = vunpack.c.h.b16 %v2088
    %v5039 = vunpack.c.l.b16 %v2089
    %v5040 = vunpack.c.h.b16 %v2089
    %v5041 = vunpack.c.l.b16 %v2090
    %v5042 = vunpack.c.h.b16 %v2090
    %v5043 = vunpack.c.l.b16 %v2091
    %v5044 = vunpack.c.h.b16 %v2091
    %v5045 = vunpack.c.l.b16 %v2092
    %v5046 = vunpack.c.h.b16 %v2092
    %v5047 = vunpack.c.l.b16 %v2093
    %v5048 = vunpack.c.h.b16 %v2093
    %v5049 = vunpack.c.l.b16 %v2094
    %v5050 = vunpack.c.h.b16 %v2094
    %v5051 = vunpack.c.l.b16 %v2095
    %v5052 = vunpack.c.h.b16 %v2095
    %v5053 = vunpack.c.l.b16 %v2096
    %v5054 = vunpack.c.h.b16 %v2096
    %v5055 = vunpack.c.l.b16 %v2097
    %v5056 = vunpack.c.h.b16 %v2097
    %v5057 = vunpack.c.l.b16 %v2098
    %v5058 = vunpack.c.h.b16 %v2098
    %v5059 = vunpack.c.l.b16 %v2099
    %v5060 = vunpack.c.h.b16 %v2099
    %v5061 = vunpack.c.l.b16 %v2100
    %v5062 = vunpack.c.h.b16 %v2100
    %v5063 = vunpack.c.l.b16 %v2101
    %v5064 = vunpack.c.h.b16 %v2101
    %v5065 = vunpack.c.l.b16 %v2102
    %v5066 = vunpack.c.h.b16 %v2102
    %v5067 = vunpack.c.l.b16 %v2103
    %v5068 = vunpack.c.h.b16 %v2103
    %v5069 = vunpack.c.l.b16 %v2104
    %v5070 = vunpack.c.h.b16 %v2104
    %v5071 = vunpack.c.l.b16 %v2105
    %v5072 = vunpack.c.h.b16 %v2105
    %v5073 = vunpack.c.l.b16 %v2106
    %v5074 = vunpack.c.h.b16 %v2106
    %v5075 = vunpack.c.l.b16 %v2107
    %v5076 = vunpack.c.h.b16 %v2107
    %v5077 = vunpack.c.l.b16 %v2108
    %v5078 = vunpack.c.h.b16 %v2108
    %v5079 = vunpack.c.l.b16 %v2109
    %v5080 = vunpack.c.h.b16 %v2109
    %v5081 = vunpack.c.l.b16 %v2110
    %v5082 = vunpack.c.h.b16 %v2110
    %v5083 = vunpack.c.l.b16 %v2111
    %v5084 = vunpack.c.h.b16 %v2111
    %v5085 = vunpack.c.l.b16 %v2112
    %v5086 = vunpack.c.h.b16 %v2112
    %v5087 = vunpack.c.l.b16 %v2113
    %v5088 = vunpack.c.h.b16 %v2113
    %v5089 = vunpack.c.l.b16 %v2114
    %v5090 = vunpack.c.h.b16 %v2114
    %v5091 = vunpack.c.l.b16 %v2115
    %v5092 = vunpack.c.h.b16 %v2115
    %v5093 = vunpack.c.l.b16 %v2116
    %v5094 = vunpack.c.h.b16 %v2116
    %v5095 = vunpack.c.l.b16 %v2117
    %v5096 = vunpack.c.h.b16 %v2117
    %v5097 = vunpack.c.l.b16 %v2118
    %v5098 = vunpack.c.h.b16 %v2118
    %v5099 = vunpack.c.l.b16 %v2119
    %v5100 = vunpack.c.h.b16 %v2119
    %v5101 = vunpack.c.l.b16 %v2120
    %v5102 = vunpack.c.h.b16 %v2120
    %v5103 = vunpack.c.l.b16 %v2121
    %v5104 = vunpack.c.h.b16 %v2121
    %v5105 = vunpack.c.l.b16 %v2122
    %v5106 = vunpack.c.h.b16 %v2122
    %v5107 = vunpack.c.l.b16 %v2123
    %v5108 = vunpack.c.h.b16 %v2123
    %v5109 = vunpack.c.l.b16 %v2124
    %v5110 = vunpack.c.h.b16 %v2124
    %v5111 = vunpack.c.l.b16 %v2125
    %v5112 = vunpack.c.h.b16 %v2125
    %v5113 = vunpack.c.l.b16 %v2126
    %v5114 = vunpack.c.h.b16 %v2126
    %v5115 = vunpack.c.l.b16 %v2127
    %v5116 = vunpack.c.h.b16 %v2127
    %v5117 = vunpack.c.l.b16 %v2128
    %v5118 = vunpack.c.h.b16 %v2128
    %v5119 = vunpack.c.l.b16 %v2129
    %v5120 = vunpack.c.h.b16 %v2129
    %v5121 = vunpack.c.l.b16 %v2130
    %v5122 = vunpack.c.h.b16 %v2130
    %v5123 = vunpack.c.l.b16 %v2131
    %v5124 = vunpack.c.h.b16 %v2131
    %v5125 = vunpack.c.l.b16 %v2132
    %v5126 = vunpack.c.h.b16 %v2132
    %v5127 = vunpack.c.l.b16 %v2133
    %v5128 = vunpack.c.h.b16 %v2133
    %v5129 = vunpack.c.l.b16 %v2134
    %v5130 = vunpack.c.h.b16 %v2134
    %v5131 = vunpack.c.l.b16 %v2135
    %v5132 = vunpack.c.h.b16 %v2135
    %v5133 = vunpack.c.l.b16 %v2136
    %v5134 = vunpack.c.h.b16 %v2136
    %v5135 = vunpack.c.l.b16 %v2137
    %v5136 = vunpack.c.h.b16 %v2137
    %v5137 = vunpack.c.l.b16 %v2138
    %v5138 = vunpack.c.h.b16 %v2138
    %v5139 = vunpack.c.l.b16 %v2139
    %v5140 = vunpack.c.h.b16 %v2139
    %v5141 = vunpack.c.l.b16 %v2140
    %v5142 = vunpack.c.h.b16 %v2140
    %v5143 = vunpack.c.l.b16 %v2141
    %v5144 = vunpack.c.h.b16 %v2141
    %v5145 = vunpack.c.l.b16 %v2142
    %v5146 = vunpack.c.h.b16 %v2142
    %v5147 = vunpack.c.l.b16 %v2143
    %v5148 = vunpack.c.h.b16 %v2143
    %v5149 = vunpack.c.l.b16 %v2144
    %v5150 = vunpack.c.h.b16 %v2144
    %v5151 = vunpack.c.l.b16 %v2145
    %v5152 = vunpack.c.h.b16 %v2145
    %v5153 = vunpack.c.l.b16 %v2146
    %v5154 = vunpack.c.h.b16 %v2146
    %v5155 = vunpack.c.l.b16 %v2147
    %v5156 = vunpack.c.h.b16 %v2147
    %v5157 = vunpack.c.l.b16 %v2148
    %v5158 = vunpack.c.h.b16 %v2148
    %v5159 = vunpack.c.l.b16 %v2149
    %v5160 = vunpack.c.h.b16 %v2149
    %v5161 = vunpack.c.l.b16 %v2150
    %v5162 = vunpack.c.h.b16 %v2150
    %v5163 = vunpack.c.l.b16 %v2151
    %v5164 = vunpack.c.h.b16 %v2151
    %v5165 = vunpack.c.l.b16 %v2152
    %v5166 = vunpack.c.h.b16 %v2152
    %v5167 = vunpack.c.l.b16 %v2153
    %v5168 = vunpack.c.h.b16 %v2153
    %v5169 = vunpack.c.l.b16 %v2154
    %v5170 = vunpack.c.h.b16 %v2154
    %v5171 = vunpack.c.l.b16 %v2155
    %v5172 = vunpack.c.h.b16 %v2155
    %v5173 = vunpack.c.l.b16 %v2156
    %v5174 = vunpack.c.h.b16 %v2156
    %v5175 = vunpack.c.l.b16 %v2157
    %v5176 = vunpack.c.h.b16 %v2157
    %v5177 = vunpack.c.l.b16 %v2158
    %v5178 = vunpack.c.h.b16 %v2158
    %v5179 = vunpack.c.l.b16 %v2159
    %v5180 = vunpack.c.h.b16 %v2159
    %v5181 = vunpack.c.l.b16 %v2160
    %v5182 = vunpack.c.h.b16 %v2160
    %v5183 = vunpack.c.l.b16 %v2161
    %v5184 = vunpack.c.h.b16 %v2161
    %v5185 = vunpack.c.l.b16 %v2162
    %v5186 = vunpack.c.h.b16 %v2162
    %v5187 = vunpack.c.l.b16 %v2163
    %v5188 = vunpack.c.h.b16 %v2163
    %v5189 = vunpack.c.l.b16 %v2164
    %v5190 = vunpack.c.h.b16 %v2164
    %v5191 = vunpack.c.l.b16 %v2165
    %v5192 = vunpack.c.h.b16 %v2165
    %v5193 = vunpack.c.l.b16 %v2166
    %v5194 = vunpack.c.h.b16 %v2166
    %v5195 = vunpack.c.l.b16 %v2167
    %v5196 = vunpack.c.h.b16 %v2167
    %v5197 = vunpack.c.l.b16 %v2168
    %v5198 = vunpack.c.h.b16 %v2168
    %v5199 = vunpack.c.l.b16 %v2169
    %v5200 = vunpack.c.h.b16 %v2169
    %v5201 = vunpack.c.l.b16 %v2170
    %v5202 = vunpack.c.h.b16 %v2170
    %v5203 = vunpack.c.l.b16 %v2171
    %v5204 = vunpack.c.h.b16 %v2171
    %v5205 = vunpack.c.l.b16 %v2172
    %v5206 = vunpack.c.h.b16 %v2172
    %v5207 = vunpack.c.l.b16 %v2173
    %v5208 = vunpack.c.h.b16 %v2173
    %v5209 = vunpack.c.l.b16 %v2174
    %v5210 = vunpack.c.h.b16 %v2174
    %v5211 = vunpack.c.l.b16 %v2175
    %v5212 = vunpack.c.h.b16 %v2175
    %v5213 = vunpack.c.l.b16 %v2176
    %v5214 = vunpack.c.h.b16 %v2176
    %v5215 = vunpack.c.l.b16 %v2177
    %v5216 = vunpack.c.h.b16 %v2177
    %v5217 = vunpack.c.l.b16 %v2178
    %v5218 = vunpack.c.h.b16 %v2178
    %v5219 = vunpack.c.l.b16 %v2179
    %v5220 = vunpack.c.h.b16 %v2179
    %v5221 = vunpack.c.l.b16 %v2180
    %v5222 = vunpack.c.h.b16 %v2180
    %v5223 = vunpack.c.l.b16 %v2181
    %v5224 = vunpack.c.h.b16 %v2181
    %v5225 = vunpack.c.l.b16 %v2182
    %v5226 = vunpack.c.h.b16 %v2182
    %v5227 = vunpack.c.l.b16 %v2183
    %v5228 = vunpack.c.h.b16 %v2183
    %v5229 = vunpack.c.l.b16 %v2184
    %v5230 = vunpack.c.h.b16 %v2184
    %v5231 = vunpack.c.l.b16 %v2185
    %v5232 = vunpack.c.h.b16 %v2185
    %v5233 = vunpack.c.l.b16 %v2186
    %v5234 = vunpack.c.h.b16 %v2186
    %v5235 = vunpack.c.l.b16 %v2187
    %v5236 = vunpack.c.h.b16 %v2187
    %v5237 = vunpack.c.l.b16 %v2188
    %v5238 = vunpack.c.h.b16 %v2188
    %v5239 = vunpack.c.l.b16 %v2189
    %v5240 = vunpack.c.h.b16 %v2189
    %v5241 = vunpack.c.l.b16 %v2190
    %v5242 = vunpack.c.h.b16 %v2190
    %v5243 = vunpack.c.l.b16 %v2191
    %v5244 = vunpack.c.h.b16 %v2191
    %v5245 = vunpack.c.l.b16 %v2192
    %v5246 = vunpack.c.h.b16 %v2192
    %v5247 = vunpack.c.l.b16 %v2193
    %v5248 = vunpack.c.h.b16 %v2193
    %v5249 = vunpack.c.l.b16 %v2194
    %v5250 = vunpack.c.h.b16 %v2194
    %v5251 = vunpack.c.l.b16 %v2195
    %v5252 = vunpack.c.h.b16 %v2195
    %v5253 = vunpack.c.l.b16 %v2196
    %v5254 = vunpack.c.h.b16 %v2196
    %v5255 = vunpack.c.l.b16 %v2197
    %v5256 = vunpack.c.h.b16 %v2197
    %v5257 = vunpack.c.l.b16 %v2198
    %v5258 = vunpack.c.h.b16 %v2198
    %v5259 = vunpack.c.l.b16 %v2199
    %v5260 = vunpack.c.h.b16 %v2199
    %v5261 = vunpack.c.l.b16 %v2200
    %v5262 = vunpack.c.h.b16 %v2200
    %v5263 = vunpack.c.l.b16 %v2201
    %v5264 = vunpack.c.h.b16 %v2201
    %v5265 = vunpack.c.l.b16 %v2202
    %v5266 = vunpack.c.h.b16 %v2202
    %v5267 = vunpack.c.l.b16 %v2203
    %v5268 = vunpack.c.h.b16 %v2203
    %v5269 = vunpack.c.l.b16 %v2204
    %v5270 = vunpack.c.h.b16 %v2204
    %v5271 = vunpack.c.l.b16 %v2205
    %v5272 = vunpack.c.h.b16 %v2205
    %v5273 = vunpack.c.l.b16 %v2206
    %v5274 = vunpack.c.h.b16 %v2206
    %v5275 = vunpack.c.l.b16 %v2207
    %v5276 = vunpack.c.h.b16 %v2207
    %v5277 = vunpack.c.l.b16 %v2208
    %v5278 = vunpack.c.h.b16 %v2208
    %v5279 = vunpack.c.l.b16 %v2209
    %v5280 = vunpack.c.h.b16 %v2209
    %v5281 = vunpack.c.l.b16 %v2210
    %v5282 = vunpack.c.h.b16 %v2210
    %v5283 = vunpack.c.l.b16 %v2211
    %v5284 = vunpack.c.h.b16 %v2211
    %v5285 = vunpack.c.l.b16 %v2212
    %v5286 = vunpack.c.h.b16 %v2212
    %v5287 = vunpack.c.l.b16 %v2213
    %v5288 = vunpack.c.h.b16 %v2213
    %v5289 = vunpack.c.l.b16 %v2214
    %v5290 = vunpack.c.h.b16 %v2214
    %v5291 = vunpack.c.l.b16 %v2215
    %v5292 = vunpack.c.h.b16 %v2215
    %v5293 = vunpack.c.l.b16 %v2216
    %v5294 = vunpack.c.h.b16 %v2216
    %v5295 = vunpack.c.l.b16 %v2217
    %v5296 = vunpack.c.h.b16 %v2217
    %v5297 = vunpack.c.l.b16 %v2218
    %v5298 = vunpack.c.h.b16 %v2218
    %v5299 = vunpack.c.l.b16 %v2219
    %v5300 = vunpack.c.h.b16 %v2219
    %v5301 = vunpack.c.l.b16 %v2220
    %v5302 = vunpack.c.h.b16 %v2220
    %v5303 = vunpack.c.l.b16 %v2221
    %v5304 = vunpack.c.h.b16 %v2221
    %v5305 = vunpack.c.l.b16 %v2222
    %v5306 = vunpack.c.h.b16 %v2222
    %v5307 = vunpack.c.l.b16 %v2223
    %v5308 = vunpack.c.h.b16 %v2223
    %v5309 = vunpack.c.l.b16 %v2224
    %v5310 = vunpack.c.h.b16 %v2224
    %v5311 = vunpack.c.l.b16 %v2225
    %v5312 = vunpack.c.h.b16 %v2225
    %v5313 = vunpack.c.l.b16 %v2226
    %v5314 = vunpack.c.h.b16 %v2226
    %v5315 = vunpack.c.l.b16 %v2227
    %v5316 = vunpack.c.h.b16 %v2227
    %v5317 = vunpack.c.l.b16 %v2228
    %v5318 = vunpack.c.h.b16 %v2228
    %v5319 = vunpack.c.l.b16 %v2229
    %v5320 = vunpack.c.h.b16 %v2229
    %v5321 = vunpack.c.l.b16 %v2230
    %v5322 = vunpack.c.h.b16 %v2230
    %v5323 = vunpack.c.l.b16 %v2231
    %v5324 = vunpack.c.h.b16 %v2231
    %v5325 = vunpack.c.l.b16 %v2232
    %v5326 = vunpack.c.h.b16 %v2232
    %v5327 = vunpack.c.l.b16 %v2233
    %v5328 = vunpack.c.h.b16 %v2233
    %v5329 = vunpack.c.l.b16 %v2234
    %v5330 = vunpack.c.h.b16 %v2234
    %v5331 = vunpack.c.l.b16 %v2235
    %v5332 = vunpack.c.h.b16 %v2235
    %v5333 = vunpack.c.l.b16 %v2236
    %v5334 = vunpack.c.h.b16 %v2236
    %v5335 = vunpack.c.l.b16 %v2237
    %v5336 = vunpack.c.h.b16 %v2237
    %v5337 = vunpack.c.l.b16 %v2238
    %v5338 = vunpack.c.h.b16 %v2238
    %v5339 = vunpack.c.l.b16 %v2239
    %v5340 = vunpack.c.h.b16 %v2239
    %v5341 = vunpack.c.l.b16 %v2240
    %v5342 = vunpack.c.h.b16 %v2240
    %v5343 = vunpack.c.l.b16 %v2241
    %v5344 = vunpack.c.h.b16 %v2241
    %v5345 = vunpack.c.l.b16 %v2242
    %v5346 = vunpack.c.h.b16 %v2242
    %v5347 = vunpack.c.l.b16 %v2243
    %v5348 = vunpack.c.h.b16 %v2243
    %v5349 = vunpack.c.l.b16 %v2244
    %v5350 = vunpack.c.h.b16 %v2244
    %v5351 = vunpack.c.l.b16 %v2245
    %v5352 = vunpack.c.h.b16 %v2245
    %v5353 = vunpack.c.l.b16 %v2246
    %v5354 = vunpack.c.h.b16 %v2246
    %v5355 = vunpack.c.l.b16 %v2247
    %v5356 = vunpack.c.h.b16 %v2247
    %v5357 = vunpack.c.l.b16 %v2248
    %v5358 = vunpack.c.h.b16 %v2248
    %v5359 = vunpack.c.l.b16 %v2249
    %v5360 = vunpack.c.h.b16 %v2249
    %v5361 = vunpack.c.l.b16 %v2250
    %v5362 = vunpack.c.h.b16 %v2250
    %v5363 = vunpack.c.l.b16 %v2251
    %v5364 = vunpack.c.h.b16 %v2251
    %v5365 = vunpack.c.l.b16 %v2252
    %v5366 = vunpack.c.h.b16 %v2252
    %v5367 = vpack.c.b16 %v3327, %v3319
    %v5368 = vpack.c.b16 %v3328, %v3320
    %v5369 = vpack.c.b16 %v3329, %v3321
    %v5370 = vpack.c.b16 %v3330, %v3322
    %v5371 = vpack.c.b16 %v3331, %v3323
    %v5372 = vpack.c.b16 %v3332, %v3324
    %v5373 = vpack.c.b16 %v3333, %v3325
    %v5374 = vpack.c.b16 %v3334, %v3326
    %v5375 = vpack.c.b16 %v3343, %v3335
    %v5376 = vpack.c.b16 %v3344, %v3336
    %v5377 = vpack.c.b16 %v3345, %v3337
    %v5378 = vpack.c.b16 %v3346, %v3338
    %v5379 = vpack.c.b16 %v3347, %v3339
    %v5380 = vpack.c.b16 %v3348, %v3340
    %v5381 = vpack.c.b16 %v3349, %v3341
    %v5382 = vpack.c.b16 %v3350, %v3342
    %v5383 = vpack.c.b16 %v3359, %v3351
    %v5384 = vpack.c.b16 %v3360, %v3352
    %v5385 = vpack.c.b16 %v3361, %v3353
    %v5386 = vpack.c.b16 %v3362, %v3354
    %v5387 = vpack.c.b16 %v3363, %v3355
    %v5388 = vpack.c.b16 %v3364, %v3356
    %v5389 = vpack.c.b16 %v3365, %v3357
    %v5390 = vpack.c.b16 %v3366, %v3358
    %v5391 = vpack.c.b16 %v3375, %v3367
    %v5392 = vpack.c.b16 %v3376, %v3368
    %v5393 = vpack.c.b16 %v3377, %v3369
    %v5394 = vpack.c.b16 %v3378, %v3370
    %v5395 = vpack.c.b16 %v3379, %v3371
    %v5396 = vpack.c.b16 %v3380, %v3372
    %v5397 = vpack.c.b16 %v3381, %v3373
    %v5398 = vpack.c.b16 %v3382, %v3374
    %v5399 = vpack.c.b16 %v3391, %v3383
    %v5400 = vpack.c.b16 %v3392, %v3384
    %v5401 = vpack.c.b16 %v3393, %v3385
    %v5402 = vpack.c.b16 %v3394, %v3386
    %v5403 = vpack.c.b16 %v3395, %v3387
    %v5404 = vpack.c.b16 %v3396, %v3388
    %v5405 = vpack.c.b16 %v3397, %v3389
    %v5406 = vpack.c.b16 %v3398, %v3390
    %v5407 = vpack.c.b16 %v3407, %v3399
    %v5408 = vpack.c.b16 %v3408, %v3400
    %v5409 = vpack.c.b16 %v3409, %v3401
    %v5410 = vpack.c.b16 %v3410, %v3402
    %v5411 = vpack.c.b16 %v3411, %v3403
    %v5412 = vpack.c.b16 %v3412, %v3404
    %v5413 = vpack.c.b16 %v3413, %v3405
    %v5414 = vpack.c.b16 %v3414, %v3406
    %v5415 = vpack.c.b16 %v3423, %v3415
    %v5416 = vpack.c.b16 %v3424, %v3416
    %v5417 = vpack.c.b16 %v3425, %v3417
    %v5418 = vpack.c.b16 %v3426, %v3418
    %v5419 = vpack.c.b16 %v3427, %v3419
    %v5420 = vpack.c.b16 %v3428, %v3420
    %v5421 = vpack.c.b16 %v3429, %v3421
    %v5422 = vpack.c.b16 %v3430, %v3422
    %v5423 = vpack.c.b16 %v3439, %v3431
    %v5424 = vpack.c.b16 %v3440, %v3432
    %v5425 = vpack.c.b16 %v3441, %v3433
    %v5426 = vpack.c.b16 %v3442, %v3434
    %v5427 = vpack.c.b16 %v3443, %v3435
    %v5428 = vpack.c.b16 %v3444, %v3436
    %v5429 = vpack.c.b16 %v3445, %v3437
    %v5430 = vpack.c.b16 %v3446, %v3438
    %v5431 = vpack.c.b16 %v3455, %v3447
    %v5432 = vpack.c.b16 %v3456, %v3448
    %v5433 = vpack.c.b16 %v3457, %v3449
    %v5434 = vpack.c.b16 %v3458, %v3450
    %v5435 = vpack.c.b16 %v3459, %v3451
    %v5436 = vpack.c.b16 %v3460, %v3452
    %v5437 = vpack.c.b16 %v3461, %v3453
    %v5438 = vpack.c.b16 %v3462, %v3454
    %v5439 = vpack.c.b16 %v3471, %v3463
    %v5440 = vpack.c.b16 %v3472, %v3464
    %v5441 = vpack.c.b16 %v3473, %v3465
    %v5442 = vpack.c.b16 %v3474, %v3466
    %v5443 = vpack.c.b16 %v3475, %v3467
    %v5444 = vpack.c.b16 %v3476, %v3468
    %v5445 = vpack.c.b16 %v3477, %v3469
    %v5446 = vpack.c.b16 %v3478, %v3470
    %v5447 = vpack.c.b16 %v3487, %v3479
    %v5448 = vpack.c.b16 %v3488, %v3480
    %v5449 = vpack.c.b16 %v3489, %v3481
    %v5450 = vpack.c.b16 %v3490, %v3482
    %v5451 = vpack.c.b16 %v3491, %v3483
    %v5452 = vpack.c.b16 %v3492, %v3484
    %v5453 = vpack.c.b16 %v3493, %v3485
    %v5454 = vpack.c.b16 %v3494, %v3486
    %v5455 = vpack.c.b16 %v3503, %v3495
    %v5456 = vpack.c.b16 %v3504, %v3496
    %v5457 = vpack.c.b16 %v3505, %v3497
    %v5458 = vpack.c.b16 %v3506, %v3498
    %v5459 = vpack.c.b16 %v3507, %v3499
    %v5460 = vpack.c.b16 %v3508, %v3500
    %v5461 = vpack.c.b16 %v3509, %v3501
    %v5462 = vpack.c.b16 %v3510, %v3502
    %v5463 = vpack.c.b16 %v3519, %v3511
    %v5464 = vpack.c.b16 %v3520, %v3512
    %v5465 = vpack.c.b16 %v3521, %v3513
    %v5466 = vpack.c.b16 %v3522, %v3514
    %v5467 = vpack.c.b16 %v3523, %v3515
    %v5468 = vpack.c.b16 %v3524, %v3516
    %v5469 = vpack.c.b16 %v3525, %v3517
    %v5470 = vpack.c.b16 %v3526, %v3518
    %v5471 = vpack.c.b16 %v3535, %v3527
    %v5472 = vpack.c.b16 %v3536, %v3528
    %v5473 = vpack.c.b16 %v3537, %v3529
    %v5474 = vpack.c.b16 %v3538, %v3530
    %v5475 = vpack.c.b16 %v3539, %v3531
    %v5476 = vpack.c.b16 %v3540, %v3532
    %v5477 = vpack.c.b16 %v3541, %v3533
    %v5478 = vpack.c.b16 %v3542, %v3534
    %v5479 = vpack.c.b16 %v3551, %v3543
    %v5480 = vpack.c.b16 %v3552, %v3544
    %v5481 = vpack.c.b16 %v3553, %v3545
    %v5482 = vpack.c.b16 %v3554, %v3546
    %v5483 = vpack.c.b16 %v3555, %v3547
    %v5484 = vpack.c.b16 %v3556, %v3548
    %v5485 = vpack.c.b16 %v3557, %v3549
    %v5486 = vpack.c.b16 %v3558, %v3550
    %v5487 = vpack.c.b16 %v3567, %v3559
    %v5488 = vpack.c.b16 %v3568, %v3560
    %v5489 = vpack.c.b16 %v3569, %v3561
    %v5490 = vpack.c.b16 %v3570, %v3562
    %v5491 = vpack.c.b16 %v3571, %v3563
    %v5492 = vpack.c.b16 %v3572, %v3564
    %v5493 = vpack.c.b16 %v3573, %v3565
    %v5494 = vpack.c.b16 %v3574, %v3566
    %v5495 = vpack.c.b16 %v3583, %v3575
    %v5496 = vpack.c.b16 %v3584, %v3576
    %v5497 = vpack.c.b16 %v3585, %v3577
    %v5498 = vpack.c.b16 %v3586, %v3578
    %v5499 = vpack.c.b16 %v3587, %v3579
    %v5500 = vpack.c.b16 %v3588, %v3580
    %v5501 = vpack.c.b16 %v3589, %v3581
    %v5502 = vpack.c.b16 %v3590, %v3582
    %v5503 = vpack.c.b16 %v3599, %v3591
    %v5504 = vpack.c.b16 %v3600, %v3592
    %v5505 = vpack.c.b16 %v3601, %v3593
    %v5506 = vpack.c.b16 %v3602, %v3594
    %v5507 = vpack.c.b16 %v3603, %v3595
    %v5508 = vpack.c.b16 %v3604, %v3596
    %v5509 = vpack.c.b16 %v3605, %v3597
    %v5510 = vpack.c.b16 %v3606, %v3598
    %v5511 = vpack.c.b16 %v3615, %v3607
    %v5512 = vpack.c.b16 %v3616, %v3608
    %v5513 = vpack.c.b16 %v3617, %v3609
    %v5514 = vpack.c.b16 %v3618, %v3610
    %v5515 = vpack.c.b16 %v3619, %v3611
    %v5516 = vpack.c.b16 %v3620, %v3612
    %v5517 = vpack.c.b16 %v3621, %v3613
    %v5518 = vpack.c.b16 %v3622, %v3614
    %v5519 = vpack.c.b16 %v3631, %v3623
    %v5520 = vpack.c.b16 %v3632, %v3624
    %v5521 = vpack.c.b16 %v3633, %v3625
    %v5522 = vpack.c.b16 %v3634, %v3626
    %v5523 = vpack.c.b16 %v3635, %v3627
    %v5524 = vpack.c.b16 %v3636, %v3628
    %v5525 = vpack.c.b16 %v3637, %v3629
    %v5526 = vpack.c.b16 %v3638, %v3630
    %v5527 = vpack.c.b16 %v3647, %v3639
    %v5528 = vpack.c.b16 %v3648, %v3640
    %v5529 = vpack.c.b16 %v3649, %v3641
    %v5530 = vpack.c.b16 %v3650, %v3642
    %v5531 = vpack.c.b16 %v3651, %v3643
    %v5532 = vpack.c.b16 %v3652, %v3644
    %v5533 = vpack.c.b16 %v3653, %v3645
    %v5534 = vpack.c.b16 %v3654, %v3646
    %v5535 = vpack.c.b16 %v3663, %v3655
    %v5536 = vpack.c.b16 %v3664, %v3656
    %v5537 = vpack.c.b16 %v3665, %v3657
    %v5538 = vpack.c.b16 %v3666, %v3658
    %v5539 = vpack.c.b16 %v3667, %v3659
    %v5540 = vpack.c.b16 %v3668, %v3660
    %v5541 = vpack.c.b16 %v3669, %v3661
    %v5542 = vpack.c.b16 %v3670, %v3662
    %v5543 = vpack.c.b16 %v3679, %v3671
    %v5544 = vpack.c.b16 %v3680, %v3672
    %v5545 = vpack.c.b16 %v3681, %v3673
    %v5546 = vpack.c.b16 %v3682, %v3674
    %v5547 = vpack.c.b16 %v3683, %v3675
    %v5548 = vpack.c.b16 %v3684, %v3676
    %v5549 = vpack.c.b16 %v3685, %v3677
    %v5550 = vpack.c.b16 %v3686, %v3678
    %v5551 = vpack.c.b16 %v3695, %v3687
    %v5552 = vpack.c.b16 %v3696, %v3688
    %v5553 = vpack.c.b16 %v3697, %v3689
    %v5554 = vpack.c.b16 %v3698, %v3690
    %v5555 = vpack.c.b16 %v3699, %v3691
    %v5556 = vpack.c.b16 %v3700, %v3692
    %v5557 = vpack.c.b16 %v3701, %v3693
    %v5558 = vpack.c.b16 %v3702, %v3694
    %v5559 = vpack.c.b16 %v3711, %v3703
    %v5560 = vpack.c.b16 %v3712, %v3704
    %v5561 = vpack.c.b16 %v3713, %v3705
    %v5562 = vpack.c.b16 %v3714, %v3706
    %v5563 = vpack.c.b16 %v3715, %v3707
    %v5564 = vpack.c.b16 %v3716, %v3708
    %v5565 = vpack.c.b16 %v3717, %v3709
    %v5566 = vpack.c.b16 %v3718, %v3710
    %v5567 = vpack.c.b16 %v3727, %v3719
    %v5568 = vpack.c.b16 %v3728, %v3720
    %v5569 = vpack.c.b16 %v3729, %v3721
    %v5570 = vpack.c.b16 %v3730, %v3722
    %v5571 = vpack.c.b16 %v3731, %v3723
    %v5572 = vpack.c.b16 %v3732, %v3724
    %v5573 = vpack.c.b16 %v3733, %v3725
    %v5574 = vpack.c.b16 %v3734, %v3726
    %v5575 = vpack.c.b16 %v3743, %v3735
    %v5576 = vpack.c.b16 %v3744, %v3736
    %v5577 = vpack.c.b16 %v3745, %v3737
    %v5578 = vpack.c.b16 %v3746, %v3738
    %v5579 = vpack.c.b16 %v3747, %v3739
    %v5580 = vpack.c.b16 %v3748, %v3740
    %v5581 = vpack.c.b16 %v3749, %v3741
    %v5582 = vpack.c.b16 %v3750, %v3742
    %v5583 = vpack.c.b16 %v3759, %v3751
    %v5584 = vpack.c.b16 %v3760, %v3752
    %v5585 = vpack.c.b16 %v3761, %v3753
    %v5586 = vpack.c.b16 %v3762, %v3754
    %v5587 = vpack.c.b16 %v3763, %v3755
    %v5588 = vpack.c.b16 %v3764, %v3756
    %v5589 = vpack.c.b16 %v3765, %v3757
    %v5590 = vpack.c.b16 %v3766, %v3758
    %v5591 = vpack.c.b16 %v3775, %v3767
    %v5592 = vpack.c.b16 %v3776, %v3768
    %v5593 = vpack.c.b16 %v3777, %v3769
    %v5594 = vpack.c.b16 %v3778, %v3770
    %v5595 = vpack.c.b16 %v3779, %v3771
    %v5596 = vpack.c.b16 %v3780, %v3772
    %v5597 = vpack.c.b16 %v3781, %v3773
    %v5598 = vpack.c.b16 %v3782, %v3774
    %v5599 = vpack.c.b16 %v3791, %v3783
    %v5600 = vpack.c.b16 %v3792, %v3784
    %v5601 = vpack.c.b16 %v3793, %v3785
    %v5602 = vpack.c.b16 %v3794, %v3786
    %v5603 = vpack.c.b16 %v3795, %v3787
    %v5604 = vpack.c.b16 %v3796, %v3788
    %v5605 = vpack.c.b16 %v3797, %v3789
    %v5606 = vpack.c.b16 %v3798, %v3790
    %v5607 = vpack.c.b16 %v3807, %v3799
    %v5608 = vpack.c.b16 %v3808, %v3800
    %v5609 = vpack.c.b16 %v3809, %v3801
    %v5610 = vpack.c.b16 %v3810, %v3802
    %v5611 = vpack.c.b16 %v3811, %v3803
    %v5612 = vpack.c.b16 %v3812, %v3804
    %v5613 = vpack.c.b16 %v3813, %v3805
    %v5614 = vpack.c.b16 %v3814, %v3806
    %v5615 = vpack.c.b16 %v3823, %v3815
    %v5616 = vpack.c.b16 %v3824, %v3816
    %v5617 = vpack.c.b16 %v3825, %v3817
    %v5618 = vpack.c.b16 %v3826, %v3818
    %v5619 = vpack.c.b16 %v3827, %v3819
    %v5620 = vpack.c.b16 %v3828, %v3820
    %v5621 = vpack.c.b16 %v3829, %v3821
    %v5622 = vpack.c.b16 %v3830, %v3822
    %v5623 = vpack.c.b16 %v3839, %v3831
    %v5624 = vpack.c.b16 %v3840, %v3832
    %v5625 = vpack.c.b16 %v3841, %v3833
    %v5626 = vpack.c.b16 %v3842, %v3834
    %v5627 = vpack.c.b16 %v3843, %v3835
    %v5628 = vpack.c.b16 %v3844, %v3836
    %v5629 = vpack.c.b16 %v3845, %v3837
    %v5630 = vpack.c.b16 %v3846, %v3838
    %v5631 = vpack.c.b16 %v3855, %v3847
    %v5632 = vpack.c.b16 %v3856, %v3848
    %v5633 = vpack.c.b16 %v3857, %v3849
    %v5634 = vpack.c.b16 %v3858, %v3850
    %v5635 = vpack.c.b16 %v3859, %v3851
    %v5636 = vpack.c.b16 %v3860, %v3852
    %v5637 = vpack.c.b16 %v3861, %v3853
    %v5638 = vpack.c.b16 %v3862, %v3854
    %v5639 = vpack.c.b16 %v3871, %v3863
    %v5640 = vpack.c.b16 %v3872, %v3864
    %v5641 = vpack.c.b16 %v3873, %v3865
    %v5642 = vpack.c.b16 %v3874, %v3866
    %v5643 = vpack.c.b16 %v3875, %v3867
    %v5644 = vpack.c.b16 %v3876, %v3868
    %v5645 = vpack.c.b16 %v3877, %v3869
    %v5646 = vpack.c.b16 %v3878, %v3870
    %v5647 = vpack.c.b16 %v3887, %v3879
    %v5648 = vpack.c.b16 %v3888, %v3880
    %v5649 = vpack.c.b16 %v3889, %v3881
    %v5650 = vpack.c.b16 %v3890, %v3882
    %v5651 = vpack.c.b16 %v3891, %v3883
    %v5652 = vpack.c.b16 %v3892, %v3884
    %v5653 = vpack.c.b16 %v3893, %v3885
    %v5654 = vpack.c.b16 %v3894, %v3886
    %v5655 = vpack.c.b16 %v3903, %v3895
    %v5656 = vpack.c.b16 %v3904, %v3896
    %v5657 = vpack.c.b16 %v3905, %v3897
    %v5658 = vpack.c.b16 %v3906, %v3898
    %v5659 = vpack.c.b16 %v3907, %v3899
    %v5660 = vpack.c.b16 %v3908, %v3900
    %v5661 = vpack.c.b16 %v3909, %v3901
    %v5662 = vpack.c.b16 %v3910, %v3902
    %v5663 = vpack.c.b16 %v3919, %v3911
    %v5664 = vpack.c.b16 %v3920, %v3912
    %v5665 = vpack.c.b16 %v3921, %v3913
    %v5666 = vpack.c.b16 %v3922, %v3914
    %v5667 = vpack.c.b16 %v3923, %v3915
    %v5668 = vpack.c.b16 %v3924, %v3916
    %v5669 = vpack.c.b16 %v3925, %v3917
    %v5670 = vpack.c.b16 %v3926, %v3918
    %v5671 = vpack.c.b16 %v3935, %v3927
    %v5672 = vpack.c.b16 %v3936, %v3928
    %v5673 = vpack.c.b16 %v3937, %v3929
    %v5674 = vpack.c.b16 %v3938, %v3930
    %v5675 = vpack.c.b16 %v3939, %v3931
    %v5676 = vpack.c.b16 %v3940, %v3932
    %v5677 = vpack.c.b16 %v3941, %v3933
    %v5678 = vpack.c.b16 %v3942, %v3934
    %v5679 = vpack.c.b16 %v3951, %v3943
    %v5680 = vpack.c.b16 %v3952, %v3944
    %v5681 = vpack.c.b16 %v3953, %v3945
    %v5682 = vpack.c.b16 %v3954, %v3946
    %v5683 = vpack.c.b16 %v3955, %v3947
    %v5684 = vpack.c.b16 %v3956, %v3948
    %v5685 = vpack.c.b16 %v3957, %v3949
    %v5686 = vpack.c.b16 %v3958, %v3950
    %v5687 = vpack.c.b16 %v3967, %v3959
    %v5688 = vpack.c.b16 %v3968, %v3960
    %v5689 = vpack.c.b16 %v3969, %v3961
    %v5690 = vpack.c.b16 %v3970, %v3962
    %v5691 = vpack.c.b16 %v3971, %v3963
    %v5692 = vpack.c.b16 %v3972, %v3964
    %v5693 = vpack.c.b16 %v3973, %v3965
    %v5694 = vpack.c.b16 %v3974, %v3966
    %v5695 = vpack.c.b16 %v3983, %v3975
    %v5696 = vpack.c.b16 %v3984, %v3976
    %v5697 = vpack.c.b16 %v3985, %v3977
    %v5698 = vpack.c.b16 %v3986, %v3978
    %v5699 = vpack.c.b16 %v3987, %v3979
    %v5700 = vpack.c.b16 %v3988, %v3980
    %v5701 = vpack.c.b16 %v3989, %v3981
    %v5702 = vpack.c.b16 %v3990, %v3982
    %v5703 = vpack.c.b16 %v3999, %v3991
    %v5704 = vpack.c.b16 %v4000, %v3992
    %v5705 = vpack.c.b16 %v4001, %v3993
    %v5706 = vpack.c.b16 %v4002, %v3994
    %v5707 = vpack.c.b16 %v4003, %v3995
    %v5708 = vpack.c.b16 %v4004, %v3996
    %v5709 = vpack.c.b16 %v4005, %v3997
    %v5710 = vpack.c.b16 %v4006, %v3998
    %v5711 = vpack.c.b16 %v4015, %v4007
    %v5712 = vpack.c.b16 %v4016, %v4008
    %v5713 = vpack.c.b16 %v4017, %v4009
    %v5714 = vpack.c.b16 %v4018, %v4010
    %v5715 = vpack.c.b16 %v4019, %v4011
    %v5716 = vpack.c.b16 %v4020, %v4012
    %v5717 = vpack.c.b16 %v4021, %v4013
    %v5718 = vpack.c.b16 %v4022, %v4014
    %v5719 = vpack.c.b16 %v4031, %v4023
    %v5720 = vpack.c.b16 %v4032, %v4024
    %v5721 = vpack.c.b16 %v4033, %v4025
    %v5722 = vpack.c.b16 %v4034, %v4026
    %v5723 = vpack.c.b16 %v4035, %v4027
    %v5724 = vpack.c.b16 %v4036, %v4028
    %v5725 = vpack.c.b16 %v4037, %v4029
    %v5726 = vpack.c.b16 %v4038, %v4030
    %v5727 = vpack.c.b16 %v4047, %v4039
    %v5728 = vpack.c.b16 %v4048, %v4040
    %v5729 = vpack.c.b16 %v4049, %v4041
    %v5730 = vpack.c.b16 %v4050, %v4042
    %v5731 = vpack.c.b16 %v4051, %v4043
    %v5732 = vpack.c.b16 %v4052, %v4044
    %v5733 = vpack.c.b16 %v4053, %v4045
    %v5734 = vpack.c.b16 %v4054, %v4046
    %v5735 = vpack.c.b16 %v4063, %v4055
    %v5736 = vpack.c.b16 %v4064, %v4056
    %v5737 = vpack.c.b16 %v4065, %v4057
    %v5738 = vpack.c.b16 %v4066, %v4058
    %v5739 = vpack.c.b16 %v4067, %v4059
    %v5740 = vpack.c.b16 %v4068, %v4060
    %v5741 = vpack.c.b16 %v4069, %v4061
    %v5742 = vpack.c.b16 %v4070, %v4062
    %v5743 = vpack.c.b16 %v4079, %v4071
    %v5744 = vpack.c.b16 %v4080, %v4072
    %v5745 = vpack.c.b16 %v4081, %v4073
    %v5746 = vpack.c.b16 %v4082, %v4074
    %v5747 = vpack.c.b16 %v4083, %v4075
    %v5748 = vpack.c.b16 %v4084, %v4076
    %v5749 = vpack.c.b16 %v4085, %v4077
    %v5750 = vpack.c.b16 %v4086, %v4078
    %v5751 = vpack.c.b16 %v4095, %v4087
    %v5752 = vpack.c.b16 %v4096, %v4088
    %v5753 = vpack.c.b16 %v4097, %v4089
    %v5754 = vpack.c.b16 %v4098, %v4090
    %v5755 = vpack.c.b16 %v4099, %v4091
    %v5756 = vpack.c.b16 %v4100, %v4092
    %v5757 = vpack.c.b16 %v4101, %v4093
    %v5758 = vpack.c.b16 %v4102, %v4094
    %v5759 = vpack.c.b16 %v4111, %v4103
    %v5760 = vpack.c.b16 %v4112, %v4104
    %v5761 = vpack.c.b16 %v4113, %v4105
    %v5762 = vpack.c.b16 %v4114, %v4106
    %v5763 = vpack.c.b16 %v4115, %v4107
    %v5764 = vpack.c.b16 %v4116, %v4108
    %v5765 = vpack.c.b16 %v4117, %v4109
    %v5766 = vpack.c.b16 %v4118, %v4110
    %v5767 = vpack.c.b16 %v4127, %v4119
    %v5768 = vpack.c.b16 %v4128, %v4120
    %v5769 = vpack.c.b16 %v4129, %v4121
    %v5770 = vpack.c.b16 %v4130, %v4122
    %v5771 = vpack.c.b16 %v4131, %v4123
    %v5772 = vpack.c.b16 %v4132, %v4124
    %v5773 = vpack.c.b16 %v4133, %v4125
    %v5774 = vpack.c.b16 %v4134, %v4126
    %v5775 = vpack.c.b16 %v4143, %v4135
    %v5776 = vpack.c.b16 %v4144, %v4136
    %v5777 = vpack.c.b16 %v4145, %v4137
    %v5778 = vpack.c.b16 %v4146, %v4138
    %v5779 = vpack.c.b16 %v4147, %v4139
    %v5780 = vpack.c.b16 %v4148, %v4140
    %v5781 = vpack.c.b16 %v4149, %v4141
    %v5782 = vpack.c.b16 %v4150, %v4142
    %v5783 = vpack.c.b16 %v4159, %v4151
    %v5784 = vpack.c.b16 %v4160, %v4152
    %v5785 = vpack.c.b16 %v4161, %v4153
    %v5786 = vpack.c.b16 %v4162, %v4154
    %v5787 = vpack.c.b16 %v4163, %v4155
    %v5788 = vpack.c.b16 %v4164, %v4156
    %v5789 = vpack.c.b16 %v4165, %v4157
    %v5790 = vpack.c.b16 %v4166, %v4158
    %v5791 = vpack.c.b16 %v4175, %v4167
    %v5792 = vpack.c.b16 %v4176, %v4168
    %v5793 = vpack.c.b16 %v4177, %v4169
    %v5794 = vpack.c.b16 %v4178, %v4170
    %v5795 = vpack.c.b16 %v4179, %v4171
    %v5796 = vpack.c.b16 %v4180, %v4172
    %v5797 = vpack.c.b16 %v4181, %v4173
    %v5798 = vpack.c.b16 %v4182, %v4174
    %v5799 = vpack.c.b16 %v4191, %v4183
    %v5800 = vpack.c.b16 %v4192, %v4184
    %v5801 = vpack.c.b16 %v4193, %v4185
    %v5802 = vpack.c.b16 %v4194, %v4186
    %v5803 = vpack.c.b16 %v4195, %v4187
    %v5804 = vpack.c.b16 %v4196, %v4188
    %v5805 = vpack.c.b16 %v4197, %v4189
    %v5806 = vpack.c.b16 %v4198, %v4190
    %v5807 = vpack.c.b16 %v4207, %v4199
    %v5808 = vpack.c.b16 %v4208, %v4200
    %v5809 = vpack.c.b16 %v4209, %v4201
    %v5810 = vpack.c.b16 %v4210, %v4202
    %v5811 = vpack.c.b16 %v4211, %v4203
    %v5812 = vpack.c.b16 %v4212, %v4204
    %v5813 = vpack.c.b16 %v4213, %v4205
    %v5814 = vpack.c.b16 %v4214, %v4206
    %v5815 = vpack.c.b16 %v4223, %v4215
    %v5816 = vpack.c.b16 %v4224, %v4216
    %v5817 = vpack.c.b16 %v4225, %v4217
    %v5818 = vpack.c.b16 %v4226, %v4218
    %v5819 = vpack.c.b16 %v4227, %v4219
    %v5820 = vpack.c.b16 %v4228, %v4220
    %v5821 = vpack.c.b16 %v4229, %v4221
    %v5822 = vpack.c.b16 %v4230, %v4222
    %v5823 = vpack.c.b16 %v4239, %v4231
    %v5824 = vpack.c.b16 %v4240, %v4232
    %v5825 = vpack.c.b16 %v4241, %v4233
    %v5826 = vpack.c.b16 %v4242, %v4234
    %v5827 = vpack.c.b16 %v4243, %v4235
    %v5828 = vpack.c.b16 %v4244, %v4236
    %v5829 = vpack.c.b16 %v4245, %v4237
    %v5830 = vpack.c.b16 %v4246, %v4238
    %v5831 = vpack.c.b16 %v4255, %v4247
    %v5832 = vpack.c.b16 %v4256, %v4248
    %v5833 = vpack.c.b16 %v4257, %v4249
    %v5834 = vpack.c.b16 %v4258, %v4250
    %v5835 = vpack.c.b16 %v4259, %v4251
    %v5836 = vpack.c.b16 %v4260, %v4252
    %v5837 = vpack.c.b16 %v4261, %v4253
    %v5838 = vpack.c.b16 %v4262, %v4254
    %v5839 = vpack.c.b16 %v4271, %v4263
    %v5840 = vpack.c.b16 %v4272, %v4264
    %v5841 = vpack.c.b16 %v4273, %v4265
    %v5842 = vpack.c.b16 %v4274, %v4266
    %v5843 = vpack.c.b16 %v4275, %v4267
    %v5844 = vpack.c.b16 %v4276, %v4268
    %v5845 = vpack.c.b16 %v4277, %v4269
    %v5846 = vpack.c.b16 %v4278, %v4270
    %v5847 = vpack.c.b16 %v4287, %v4279
    %v5848 = vpack.c.b16 %v4288, %v4280
    %v5849 = vpack.c.b16 %v4289, %v4281
    %v5850 = vpack.c.b16 %v4290, %v4282
    %v5851 = vpack.c.b16 %v4291, %v4283
    %v5852 = vpack.c.b16 %v4292, %v4284
    %v5853 = vpack.c.b16 %v4293, %v4285
    %v5854 = vpack.c.b16 %v4294, %v4286
    %v5855 = vpack.c.b16 %v4303, %v4295
    %v5856 = vpack.c.b16 %v4304, %v4296
    %v5857 = vpack.c.b16 %v4305, %v4297
    %v5858 = vpack.c.b16 %v4306, %v4298
    %v5859 = vpack.c.b16 %v4307, %v4299
    %v5860 = vpack.c.b16 %v4308, %v4300
    %v5861 = vpack.c.b16 %v4309, %v4301
    %v5862 = vpack.c.b16 %v4310, %v4302
    %v5863 = vpack.c.b16 %v4319, %v4311
    %v5864 = vpack.c.b16 %v4320, %v4312
    %v5865 = vpack.c.b16 %v4321, %v4313
    %v5866 = vpack.c.b16 %v4322, %v4314
    %v5867 = vpack.c.b16 %v4323, %v4315
    %v5868 = vpack.c.b16 %v4324, %v4316
    %v5869 = vpack.c.b16 %v4325, %v4317
    %v5870 = vpack.c.b16 %v4326, %v4318
    %v5871 = vpack.c.b16 %v4335, %v4327
    %v5872 = vpack.c.b16 %v4336, %v4328
    %v5873 = vpack.c.b16 %v4337, %v4329
    %v5874 = vpack.c.b16 %v4338, %v4330
    %v5875 = vpack.c.b16 %v4339, %v4331
    %v5876 = vpack.c.b16 %v4340, %v4332
    %v5877 = vpack.c.b16 %v4341, %v4333
    %v5878 = vpack.c.b16 %v4342, %v4334
    %v5879 = vpack.c.b16 %v4351, %v4343
    %v5880 = vpack.c.b16 %v4352, %v4344
    %v5881 = vpack.c.b16 %v4353, %v4345
    %v5882 = vpack.c.b16 %v4354, %v4346
    %v5883 = vpack.c.b16 %v4355, %v4347
    %v5884 = vpack.c.b16 %v4356, %v4348
    %v5885 = vpack.c.b16 %v4357, %v4349
    %v5886 = vpack.c.b16 %v4358, %v4350
    %v5887 = vpack.c.b16 %v4367, %v4359
    %v5888 = vpack.c.b16 %v4368, %v4360
    %v5889 = vpack.c.b16 %v4369, %v4361
    %v5890 = vpack.c.b16 %v4370, %v4362
    %v5891 = vpack.c.b16 %v4371, %v4363
    %v5892 = vpack.c.b16 %v4372, %v4364
    %v5893 = vpack.c.b16 %v4373, %v4365
    %v5894 = vpack.c.b16 %v4374, %v4366
    %v5895 = vpack.c.b16 %v4383, %v4375
    %v5896 = vpack.c.b16 %v4384, %v4376
    %v5897 = vpack.c.b16 %v4385, %v4377
    %v5898 = vpack.c.b16 %v4386, %v4378
    %v5899 = vpack.c.b16 %v4387, %v4379
    %v5900 = vpack.c.b16 %v4388, %v4380
    %v5901 = vpack.c.b16 %v4389, %v4381
    %v5902 = vpack.c.b16 %v4390, %v4382
    %v5903 = vpack.c.b16 %v4399, %v4391
    %v5904 = vpack.c.b16 %v4400, %v4392
    %v5905 = vpack.c.b16 %v4401, %v4393
    %v5906 = vpack.c.b16 %v4402, %v4394
    %v5907 = vpack.c.b16 %v4403, %v4395
    %v5908 = vpack.c.b16 %v4404, %v4396
    %v5909 = vpack.c.b16 %v4405, %v4397
    %v5910 = vpack.c.b16 %v4406, %v4398
    %v5911 = vpack.c.b16 %v4415, %v4407
    %v5912 = vpack.c.b16 %v4416, %v4408
    %v5913 = vpack.c.b16 %v4417, %v4409
    %v5914 = vpack.c.b16 %v4418, %v4410
    %v5915 = vpack.c.b16 %v4419, %v4411
    %v5916 = vpack.c.b16 %v4420, %v4412
    %v5917 = vpack.c.b16 %v4421, %v4413
    %v5918 = vpack.c.b16 %v4422, %v4414
    %v5919 = vpack.c.b16 %v4431, %v4423
    %v5920 = vpack.c.b16 %v4432, %v4424
    %v5921 = vpack.c.b16 %v4433, %v4425
    %v5922 = vpack.c.b16 %v4434, %v4426
    %v5923 = vpack.c.b16 %v4435, %v4427
    %v5924 = vpack.c.b16 %v4436, %v4428
    %v5925 = vpack.c.b16 %v4437, %v4429
    %v5926 = vpack.c.b16 %v4438, %v4430
    %v5927 = vpack.c.b16 %v4447, %v4439
    %v5928 = vpack.c.b16 %v4448, %v4440
    %v5929 = vpack.c.b16 %v4449, %v4441
    %v5930 = vpack.c.b16 %v4450, %v4442
    %v5931 = vpack.c.b16 %v4451, %v4443
    %v5932 = vpack.c.b16 %v4452, %v4444
    %v5933 = vpack.c.b16 %v4453, %v4445
    %v5934 = vpack.c.b16 %v4454, %v4446
    %v5935 = vpack.c.b16 %v4463, %v4455
    %v5936 = vpack.c.b16 %v4464, %v4456
    %v5937 = vpack.c.b16 %v4465, %v4457
    %v5938 = vpack.c.b16 %v4466, %v4458
    %v5939 = vpack.c.b16 %v4467, %v4459
    %v5940 = vpack.c.b16 %v4468, %v4460
    %v5941 = vpack.c.b16 %v4469, %v4461
    %v5942 = vpack.c.b16 %v4470, %v4462
    %v5943 = vpack.c.b16 %v4479, %v4471
    %v5944 = vpack.c.b16 %v4480, %v4472
    %v5945 = vpack.c.b16 %v4481, %v4473
    %v5946 = vpack.c.b16 %v4482, %v4474
    %v5947 = vpack.c.b16 %v4483, %v4475
    %v5948 = vpack.c.b16 %v4484, %v4476
    %v5949 = vpack.c.b16 %v4485, %v4477
    %v5950 = vpack.c.b16 %v4486, %v4478
    %v5951 = vpack.c.b16 %v4495, %v4487
    %v5952 = vpack.c.b16 %v4496, %v4488
    %v5953 = vpack.c.b16 %v4497, %v4489
    %v5954 = vpack.c.b16 %v4498, %v4490
    %v5955 = vpack.c.b16 %v4499, %v4491
    %v5956 = vpack.c.b16 %v4500, %v4492
    %v5957 = vpack.c.b16 %v4501, %v4493
    %v5958 = vpack.c.b16 %v4502, %v4494
    %v5959 = vpack.c.b16 %v4511, %v4503
    %v5960 = vpack.c.b16 %v4512, %v4504
    %v5961 = vpack.c.b16 %v4513, %v4505
    %v5962 = vpack.c.b16 %v4514, %v4506
    %v5963 = vpack.c.b16 %v4515, %v4507
    %v5964 = vpack.c.b16 %v4516, %v4508
    %v5965 = vpack.c.b16 %v4517, %v4509
    %v5966 = vpack.c.b16 %v4518, %v4510
    %v5967 = vpack.c.b16 %v4527, %v4519
    %v5968 = vpack.c.b16 %v4528, %v4520
    %v5969 = vpack.c.b16 %v4529, %v4521
    %v5970 = vpack.c.b16 %v4530, %v4522
    %v5971 = vpack.c.b16 %v4531, %v4523
    %v5972 = vpack.c.b16 %v4532, %v4524
    %v5973 = vpack.c.b16 %v4533, %v4525
    %v5974 = vpack.c.b16 %v4534, %v4526
    %v5975 = vpack.c.b16 %v4543, %v4535
    %v5976 = vpack.c.b16 %v4544, %v4536
    %v5977 = vpack.c.b16 %v4545, %v4537
    %v5978 = vpack.c.b16 %v4546, %v4538
    %v5979 = vpack.c.b16 %v4547, %v4539
    %v5980 = vpack.c.b16 %v4548, %v4540
    %v5981 = vpack.c.b16 %v4549, %v4541
    %v5982 = vpack.c.b16 %v4550, %v4542
    %v5983 = vpack.c.b16 %v4559, %v4551
    %v5984 = vpack.c.b16 %v4560, %v4552
    %v5985 = vpack.c.b16 %v4561, %v4553
    %v5986 = vpack.c.b16 %v4562, %v4554
    %v5987 = vpack.c.b16 %v4563, %v4555
    %v5988 = vpack.c.b16 %v4564, %v4556
    %v5989 = vpack.c.b16 %v4565, %v4557
    %v5990 = vpack.c.b16 %v4566, %v4558
    %v5991 = vpack.c.b16 %v4575, %v4567
    %v5992 = vpack.c.b16 %v4576, %v4568
    %v5993 = vpack.c.b16 %v4577, %v4569
    %v5994 = vpack.c.b16 %v4578, %v4570
    %v5995 = vpack.c.b16 %v4579, %v4571
    %v5996 = vpack.c.b16 %v4580, %v4572
    %v5997 = vpack.c.b16 %v4581, %v4573
    %v5998 = vpack.c.b16 %v4582, %v4574
    %v5999 = vpack.c.b16 %v4591, %v4583
    %v6000 = vpack.c.b16 %v4592, %v4584
    %v6001 = vpack.c.b16 %v4593, %v4585
    %v6002 = vpack.c.b16 %v4594, %v4586
    %v6003 = vpack.c.b16 %v4595, %v4587
    %v6004 = vpack.c.b16 %v4596, %v4588
    %v6005 = vpack.c.b16 %v4597, %v4589
    %v6006 = vpack.c.b16 %v4598, %v4590
    %v6007 = vpack.c.b16 %v4607, %v4599
    %v6008 = vpack.c.b16 %v4608, %v4600
    %v6009 = vpack.c.b16 %v4609, %v4601
    %v6010 = vpack.c.b16 %v4610, %v4602
    %v6011 = vpack.c.b16 %v4611, %v4603
    %v6012 = vpack.c.b16 %v4612, %v4604
    %v6013 = vpack.c.b16 %v4613, %v4605
    %v6014 = vpack.c.b16 %v4614, %v4606
    %v6015 = vpack.c.b16 %v4623, %v4615
    %v6016 = vpack.c.b16 %v4624, %v4616
    %v6017 = vpack.c.b16 %v4625, %v4617
    %v6018 = vpack.c.b16 %v4626, %v4618
    %v6019 = vpack.c.b16 %v4627, %v4619
    %v6020 = vpack.c.b16 %v4628, %v4620
    %v6021 = vpack.c.b16 %v4629, %v4621
    %v6022 = vpack.c.b16 %v4630, %v4622
    %v6023 = vpack.c.b16 %v4639, %v4631
    %v6024 = vpack.c.b16 %v4640, %v4632
    %v6025 = vpack.c.b16 %v4641, %v4633
    %v6026 = vpack.c.b16 %v4642, %v4634
    %v6027 = vpack.c.b16 %v4643, %v4635
    %v6028 = vpack.c.b16 %v4644, %v4636
    %v6029 = vpack.c.b16 %v4645, %v4637
    %v6030 = vpack.c.b16 %v4646, %v4638
    %v6031 = vpack.c.b16 %v4655, %v4647
    %v6032 = vpack.c.b16 %v4656, %v4648
    %v6033 = vpack.c.b16 %v4657, %v4649
    %v6034 = vpack.c.b16 %v4658, %v4650
    %v6035 = vpack.c.b16 %v4659, %v4651
    %v6036 = vpack.c.b16 %v4660, %v4652
    %v6037 = vpack.c.b16 %v4661, %v4653
    %v6038 = vpack.c.b16 %v4662, %v4654
    %v6039 = vpack.c.b16 %v4671, %v4663
    %v6040 = vpack.c.b16 %v4672, %v4664
    %v6041 = vpack.c.b16 %v4673, %v4665
    %v6042 = vpack.c.b16 %v4674, %v4666
    %v6043 = vpack.c.b16 %v4675, %v4667
    %v6044 = vpack.c.b16 %v4676, %v4668
    %v6045 = vpack.c.b16 %v4677, %v4669
    %v6046 = vpack.c.b16 %v4678, %v4670
    %v6047 = vpack.c.b16 %v4687, %v4679
    %v6048 = vpack.c.b16 %v4688, %v4680
    %v6049 = vpack.c.b16 %v4689, %v4681
    %v6050 = vpack.c.b16 %v4690, %v4682
    %v6051 = vpack.c.b16 %v4691, %v4683
    %v6052 = vpack.c.b16 %v4692, %v4684
    %v6053 = vpack.c.b16 %v4693, %v4685
    %v6054 = vpack.c.b16 %v4694, %v4686
    %v6055 = vpack.c.b16 %v4703, %v4695
    %v6056 = vpack.c.b16 %v4704, %v4696
    %v6057 = vpack.c.b16 %v4705, %v4697
    %v6058 = vpack.c.b16 %v4706, %v4698
    %v6059 = vpack.c.b16 %v4707, %v4699
    %v6060 = vpack.c.b16 %v4708, %v4700
    %v6061 = vpack.c.b16 %v4709, %v4701
    %v6062 = vpack.c.b16 %v4710, %v4702
    %v6063 = vpack.c.b16 %v4719, %v4711
    %v6064 = vpack.c.b16 %v4720, %v4712
    %v6065 = vpack.c.b16 %v4721, %v4713
    %v6066 = vpack.c.b16 %v4722, %v4714
    %v6067 = vpack.c.b16 %v4723, %v4715
    %v6068 = vpack.c.b16 %v4724, %v4716
    %v6069 = vpack.c.b16 %v4725, %v4717
    %v6070 = vpack.c.b16 %v4726, %v4718
    %v6071 = vpack.c.b16 %v4735, %v4727
    %v6072 = vpack.c.b16 %v4736, %v4728
    %v6073 = vpack.c.b16 %v4737, %v4729
    %v6074 = vpack.c.b16 %v4738, %v4730
    %v6075 = vpack.c.b16 %v4739, %v4731
    %v6076 = vpack.c.b16 %v4740, %v4732
    %v6077 = vpack.c.b16 %v4741, %v4733
    %v6078 = vpack.c.b16 %v4742, %v4734
    %v6079 = vpack.c.b16 %v4751, %v4743
    %v6080 = vpack.c.b16 %v4752, %v4744
    %v6081 = vpack.c.b16 %v4753, %v4745
    %v6082 = vpack.c.b16 %v4754, %v4746
    %v6083 = vpack.c.b16 %v4755, %v4747
    %v6084 = vpack.c.b16 %v4756, %v4748
    %v6085 = vpack.c.b16 %v4757, %v4749
    %v6086 = vpack.c.b16 %v4758, %v4750
    %v6087 = vpack.c.b16 %v4767, %v4759
    %v6088 = vpack.c.b16 %v4768, %v4760
    %v6089 = vpack.c.b16 %v4769, %v4761
    %v6090 = vpack.c.b16 %v4770, %v4762
    %v6091 = vpack.c.b16 %v4771, %v4763
    %v6092 = vpack.c.b16 %v4772, %v4764
    %v6093 = vpack.c.b16 %v4773, %v4765
    %v6094 = vpack.c.b16 %v4774, %v4766
    %v6095 = vpack.c.b16 %v4783, %v4775
    %v6096 = vpack.c.b16 %v4784, %v4776
    %v6097 = vpack.c.b16 %v4785, %v4777
    %v6098 = vpack.c.b16 %v4786, %v4778
    %v6099 = vpack.c.b16 %v4787, %v4779
    %v6100 = vpack.c.b16 %v4788, %v4780
    %v6101 = vpack.c.b16 %v4789, %v4781
    %v6102 = vpack.c.b16 %v4790, %v4782
    %v6103 = vpack.c.b16 %v4799, %v4791
    %v6104 = vpack.c.b16 %v4800, %v4792
    %v6105 = vpack.c.b16 %v4801, %v4793
    %v6106 = vpack.c.b16 %v4802, %v4794
    %v6107 = vpack.c.b16 %v4803, %v4795
    %v6108 = vpack.c.b16 %v4804, %v4796
    %v6109 = vpack.c.b16 %v4805, %v4797
    %v6110 = vpack.c.b16 %v4806, %v4798
    %v6111 = vpack.c.b16 %v4815, %v4807
    %v6112 = vpack.c.b16 %v4816, %v4808
    %v6113 = vpack.c.b16 %v4817, %v4809
    %v6114 = vpack.c.b16 %v4818, %v4810
    %v6115 = vpack.c.b16 %v4819, %v4811
    %v6116 = vpack.c.b16 %v4820, %v4812
    %v6117 = vpack.c.b16 %v4821, %v4813
    %v6118 = vpack.c.b16 %v4822, %v4814
    %v6119 = vpack.c.b16 %v4831, %v4823
    %v6120 = vpack.c.b16 %v4832, %v4824
    %v6121 = vpack.c.b16 %v4833, %v4825
    %v6122 = vpack.c.b16 %v4834, %v4826
    %v6123 = vpack.c.b16 %v4835, %v4827
    %v6124 = vpack.c.b16 %v4836, %v4828
    %v6125 = vpack.c.b16 %v4837, %v4829
    %v6126 = vpack.c.b16 %v4838, %v4830
    %v6127 = vpack.c.b16 %v4847, %v4839
    %v6128 = vpack.c.b16 %v4848, %v4840
    %v6129 = vpack.c.b16 %v4849, %v4841
    %v6130 = vpack.c.b16 %v4850, %v4842
    %v6131 = vpack.c.b16 %v4851, %v4843
    %v6132 = vpack.c.b16 %v4852, %v4844
    %v6133 = vpack.c.b16 %v4853, %v4845
    %v6134 = vpack.c.b16 %v4854, %v4846
    %v6135 = vpack.c.b16 %v4863, %v4855
    %v6136 = vpack.c.b16 %v4864, %v4856
    %v6137 = vpack.c.b16 %v4865, %v4857
    %v6138 = vpack.c.b16 %v4866, %v4858
    %v6139 = vpack.c.b16 %v4867, %v4859
    %v6140 = vpack.c.b16 %v4868, %v4860
    %v6141 = vpack.c.b16 %v4869, %v4861
    %v6142 = vpack.c.b16 %v4870, %v4862
    %v6143 = vpack.c.b16 %v4879, %v4871
    %v6144 = vpack.c.b16 %v4880, %v4872
    %v6145 = vpack.c.b16 %v4881, %v4873
    %v6146 = vpack.c.b16 %v4882, %v4874
    %v6147 = vpack.c.b16 %v4883, %v4875
    %v6148 = vpack.c.b16 %v4884, %v4876
    %v6149 = vpack.c.b16 %v4885, %v4877
    %v6150 = vpack.c.b16 %v4886, %v4878
    %v6151 = vpack.c.b16 %v4895, %v4887
    %v6152 = vpack.c.b16 %v4896, %v4888
    %v6153 = vpack.c.b16 %v4897, %v4889
    %v6154 = vpack.c.b16 %v4898, %v4890
    %v6155 = vpack.c.b16 %v4899, %v4891
    %v6156 = vpack.c.b16 %v4900, %v4892
    %v6157 = vpack.c.b16 %v4901, %v4893
    %v6158 = vpack.c.b16 %v4902, %v4894
    %v6159 = vpack.c.b16 %v4911, %v4903
    %v6160 = vpack.c.b16 %v4912, %v4904
    %v6161 = vpack.c.b16 %v4913, %v4905
    %v6162 = vpack.c.b16 %v4914, %v4906
    %v6163 = vpack.c.b16 %v4915, %v4907
    %v6164 = vpack.c.b16 %v4916, %v4908
    %v6165 = vpack.c.b16 %v4917, %v4909
    %v6166 = vpack.c.b16 %v4918, %v4910
    %v6167 = vpack.c.b16 %v4927, %v4919
    %v6168 = vpack.c.b16 %v4928, %v4920
    %v6169 = vpack.c.b16 %v4929, %v4921
    %v6170 = vpack.c.b16 %v4930, %v4922
    %v6171 = vpack.c.b16 %v4931, %v4923
    %v6172 = vpack.c.b16 %v4932, %v4924
    %v6173 = vpack.c.b16 %v4933, %v4925
    %v6174 = vpack.c.b16 %v4934, %v4926
    %v6175 = vpack.c.b16 %v4943, %v4935
    %v6176 = vpack.c.b16 %v4944, %v4936
    %v6177 = vpack.c.b16 %v4945, %v4937
    %v6178 = vpack.c.b16 %v4946, %v4938
    %v6179 = vpack.c.b16 %v4947, %v4939
    %v6180 = vpack.c.b16 %v4948, %v4940
    %v6181 = vpack.c.b16 %v4949, %v4941
    %v6182 = vpack.c.b16 %v4950, %v4942
    %v6183 = vpack.c.b16 %v4959, %v4951
    %v6184 = vpack.c.b16 %v4960, %v4952
    %v6185 = vpack.c.b16 %v4961, %v4953
    %v6186 = vpack.c.b16 %v4962, %v4954
    %v6187 = vpack.c.b16 %v4963, %v4955
    %v6188 = vpack.c.b16 %v4964, %v4956
    %v6189 = vpack.c.b16 %v4965, %v4957
    %v6190 = vpack.c.b16 %v4966, %v4958
    %v6191 = vpack.c.b16 %v4975, %v4967
    %v6192 = vpack.c.b16 %v4976, %v4968
    %v6193 = vpack.c.b16 %v4977, %v4969
    %v6194 = vpack.c.b16 %v4978, %v4970
    %v6195 = vpack.c.b16 %v4979, %v4971
    %v6196 = vpack.c.b16 %v4980, %v4972
    %v6197 = vpack.c.b16 %v4981, %v4973
    %v6198 = vpack.c.b16 %v4982, %v4974
    %v6199 = vpack.c.b16 %v4991, %v4983
    %v6200 = vpack.c.b16 %v4992, %v4984
    %v6201 = vpack.c.b16 %v4993, %v4985
    %v6202 = vpack.c.b16 %v4994, %v4986
    %v6203 = vpack.c.b16 %v4995, %v4987
    %v6204 = vpack.c.b16 %v4996, %v4988
    %v6205 = vpack.c.b16 %v4997, %v4989
    %v6206 = vpack.c.b16 %v4998, %v4990
    %v6207 = vpack.c.b16 %v5007, %v4999
    %v6208 = vpack.c.b16 %v5008, %v5000
    %v6209 = vpack.c.b16 %v5009, %v5001
    %v6210 = vpack.c.b16 %v5010, %v5002
    %v6211 = vpack.c.b16 %v5011, %v5003
    %v6212 = vpack.c.b16 %v5012, %v5004
    %v6213 = vpack.c.b16 %v5013, %v5005
    %v6214 = vpack.c.b16 %v5014, %v5006
    %v6215 = vpack.c.b16 %v5023, %v5015
    %v6216 = vpack.c.b16 %v5024, %v5016
    %v6217 = vpack.c.b16 %v5025, %v5017
    %v6218 = vpack.c.b16 %v5026, %v5018
    %v6219 = vpack.c.b16 %v5027, %v5019
    %v6220 = vpack.c.b16 %v5028, %v5020
    %v6221 = vpack.c.b16 %v5029, %v5021
    %v6222 = vpack.c.b16 %v5030, %v5022
    %v6223 = vpack.c.b16 %v5039, %v5031
    %v6224 = vpack.c.b16 %v5040, %v5032
    %v6225 = vpack.c.b16 %v5041, %v5033
    %v6226 = vpack.c.b16 %v5042, %v5034
    %v6227 = vpack.c.b16 %v5043, %v5035
    %v6228 = vpack.c.b16 %v5044, %v5036
    %v6229 = vpack.c.b16 %v5045, %v5037
    %v6230 = vpack.c.b16 %v5046, %v5038
    %v6231 = vpack.c.b16 %v5055, %v5047
    %v6232 = vpack.c.b16 %v5056, %v5048
    %v6233 = vpack.c.b16 %v5057, %v5049
    %v6234 = vpack.c.b16 %v5058, %v5050
    %v6235 = vpack.c.b16 %v5059, %v5051
    %v6236 = vpack.c.b16 %v5060, %v5052
    %v6237 = vpack.c.b16 %v5061, %v5053
    %v6238 = vpack.c.b16 %v5062, %v5054
    %v6239 = vpack.c.b16 %v5071, %v5063
    %v6240 = vpack.c.b16 %v5072, %v5064
    %v6241 = vpack.c.b16 %v5073, %v5065
    %v6242 = vpack.c.b16 %v5074, %v5066
    %v6243 = vpack.c.b16 %v5075, %v5067
    %v6244 = vpack.c.b16 %v5076, %v5068
    %v6245 = vpack.c.b16 %v5077, %v5069
    %v6246 = vpack.c.b16 %v5078, %v5070
    %v6247 = vpack.c.b16 %v5087, %v5079
    %v6248 = vpack.c.b16 %v5088, %v5080
    %v6249 = vpack.c.b16 %v5089, %v5081
    %v6250 = vpack.c.b16 %v5090, %v5082
    %v6251 = vpack.c.b16 %v5091, %v5083
    %v6252 = vpack.c.b16 %v5092, %v5084
    %v6253 = vpack.c.b16 %v5093, %v5085
    %v6254 = vpack.c.b16 %v5094, %v5086
    %v6255 = vpack.c.b16 %v5103, %v5095
    %v6256 = vpack.c.b16 %v5104, %v5096
    %v6257 = vpack.c.b16 %v5105, %v5097
    %v6258 = vpack.c.b16 %v5106, %v5098
    %v6259 = vpack.c.b16 %v5107, %v5099
    %v6260 = vpack.c.b16 %v5108, %v5100
    %v6261 = vpack.c.b16 %v5109, %v5101
    %v6262 = vpack.c.b16 %v5110, %v5102
    %v6263 = vpack.c.b16 %v5119, %v5111
    %v6264 = vpack.c.b16 %v5120, %v5112
    %v6265 = vpack.c.b16 %v5121, %v5113
    %v6266 = vpack.c.b16 %v5122, %v5114
    %v6267 = vpack.c.b16 %v5123, %v5115
    %v6268 = vpack.c.b16 %v5124, %v5116
    %v6269 = vpack.c.b16 %v5125, %v5117
    %v6270 = vpack.c.b16 %v5126, %v5118
    %v6271 = vpack.c.b16 %v5135, %v5127
    %v6272 = vpack.c.b16 %v5136, %v5128
    %v6273 = vpack.c.b16 %v5137, %v5129
    %v6274 = vpack.c.b16 %v5138, %v5130
    %v6275 = vpack.c.b16 %v5139, %v5131
    %v6276 = vpack.c.b16 %v5140, %v5132
    %v6277 = vpack.c.b16 %v5141, %v5133
    %v6278 = vpack.c.b16 %v5142, %v5134
    %v6279 = vpack.c.b16 %v5151, %v5143
    %v6280 = vpack.c.b16 %v5152, %v5144
    %v6281 = vpack.c.b16 %v5153, %v5145
    %v6282 = vpack.c.b16 %v5154, %v5146
    %v6283 = vpack.c.b16 %v5155, %v5147
    %v6284 = vpack.c.b16 %v5156, %v5148
    %v6285 = vpack.c.b16 %v5157, %v5149
    %v6286 = vpack.c.b16 %v5158, %v5150
    %v6287 = vpack.c.b16 %v5167, %v5159
    %v6288 = vpack.c.b16 %v5168, %v5160
    %v6289 = vpack.c.b16 %v5169, %v5161
    %v6290 = vpack.c.b16 %v5170, %v5162
    %v6291 = vpack.c.b16 %v5171, %v5163
    %v6292 = vpack.c.b16 %v5172, %v5164
    %v6293 = vpack.c.b16 %v5173, %v5165
    %v6294 = vpack.c.b16 %v5174, %v5166
    %v6295 = vpack.c.b16 %v5183, %v5175
    %v6296 = vpack.c.b16 %v5184, %v5176
    %v6297 = vpack.c.b16 %v5185, %v5177
    %v6298 = vpack.c.b16 %v5186, %v5178
    %v6299 = vpack.c.b16 %v5187, %v5179
    %v6300 = vpack.c.b16 %v5188, %v5180
    %v6301 = vpack.c.b16 %v5189, %v5181
    %v6302 = vpack.c.b16 %v5190, %v5182
    %v6303 = vpack.c.b16 %v5199, %v5191
    %v6304 = vpack.c.b16 %v5200, %v5192
    %v6305 = vpack.c.b16 %v5201, %v5193
    %v6306 = vpack.c.b16 %v5202, %v5194
    %v6307 = vpack.c.b16 %v5203, %v5195
    %v6308 = vpack.c.b16 %v5204, %v5196
    %v6309 = vpack.c.b16 %v5205, %v5197
    %v6310 = vpack.c.b16 %v5206, %v5198
    %v6311 = vpack.c.b16 %v5215, %v5207
    %v6312 = vpack.c.b16 %v5216, %v5208
    %v6313 = vpack.c.b16 %v5217, %v5209
    %v6314 = vpack.c.b16 %v5218, %v5210
    %v6315 = vpack.c.b16 %v5219, %v5211
    %v6316 = vpack.c.b16 %v5220, %v5212
    %v6317 = vpack.c.b16 %v5221, %v5213
    %v6318 = vpack.c.b16 %v5222, %v5214
    %v6319 = vpack.c.b16 %v5231, %v5223
    %v6320 = vpack.c.b16 %v5232, %v5224
    %v6321 = vpack.c.b16 %v5233, %v5225
    %v6322 = vpack.c.b16 %v5234, %v5226
    %v6323 = vpack.c.b16 %v5235, %v5227
    %v6324 = vpack.c.b16 %v5236, %v5228
    %v6325 = vpack.c.b16 %v5237, %v5229
    %v6326 = vpack.c.b16 %v5238, %v5230
    %v6327 = vpack.c.b16 %v5247, %v5239
    %v6328 = vpack.c.b16 %v5248, %v5240
    %v6329 = vpack.c.b16 %v5249, %v5241
    %v6330 = vpack.c.b16 %v5250, %v5242
    %v6331 = vpack.c.b16 %v5251, %v5243
    %v6332 = vpack.c.b16 %v5252, %v5244
    %v6333 = vpack.c.b16 %v5253, %v5245
    %v6334 = vpack.c.b16 %v5254, %v5246
    %v6335 = vpack.c.b16 %v5263, %v5255
    %v6336 = vpack.c.b16 %v5264, %v5256
    %v6337 = vpack.c.b16 %v5265, %v5257
    %v6338 = vpack.c.b16 %v5266, %v5258
    %v6339 = vpack.c.b16 %v5267, %v5259
    %v6340 = vpack.c.b16 %v5268, %v5260
    %v6341 = vpack.c.b16 %v5269, %v5261
    %v6342 = vpack.c.b16 %v5270, %v5262
    %v6343 = vpack.c.b16 %v5279, %v5271
    %v6344 = vpack.c.b16 %v5280, %v5272
    %v6345 = vpack.c.b16 %v5281, %v5273
    %v6346 = vpack.c.b16 %v5282, %v5274
    %v6347 = vpack.c.b16 %v5283, %v5275
    %v6348 = vpack.c.b16 %v5284, %v5276
    %v6349 = vpack.c.b16 %v5285, %v5277
    %v6350 = vpack.c.b16 %v5286, %v5278
    %v6351 = vpack.c.b16 %v5295, %v5287
    %v6352 = vpack.c.b16 %v5296, %v5288
    %v6353 = vpack.c.b16 %v5297, %v5289
    %v6354 = vpack.c.b16 %v5298, %v5290
    %v6355 = vpack.c.b16 %v5299, %v5291
    %v6356 = vpack.c.b16 %v5300, %v5292
    %v6357 = vpack.c.b16 %v5301, %v5293
    %v6358 = vpack.c.b16 %v5302, %v5294
    %v6359 = vpack.c.b16 %v5311, %v5303
    %v6360 = vpack.c.b16 %v5312, %v5304
    %v6361 = vpack.c.b16 %v5313, %v5305
    %v6362 = vpack.c.b16 %v5314, %v5306
    %v6363 = vpack.c.b16 %v5315, %v5307
    %v6364 = vpack.c.b16 %v5316, %v5308
    %v6365 = vpack.c.b16 %v5317, %v5309
    %v6366 = vpack.c.b16 %v5318, %v5310
    %v6367 = vpack.c.b16 %v5327, %v5319
    %v6368 = vpack.c.b16 %v5328, %v5320
    %v6369 = vpack.c.b16 %v5329, %v5321
    %v6370 = vpack.c.b16 %v5330, %v5322
    %v6371 = vpack.c.b16 %v5331, %v5323
    %v6372 = vpack.c.b16 %v5332, %v5324
    %v6373 = vpack.c.b16 %v5333, %v5325
    %v6374 = vpack.c.b16 %v5334, %v5326
    %v6375 = vpack.c.b16 %v5343, %v5335
    %v6376 = vpack.c.b16 %v5344, %v5336
    %v6377 = vpack.c.b16 %v5345, %v5337
    %v6378 = vpack.c.b16 %v5346, %v5338
    %v6379 = vpack.c.b16 %v5347, %v5339
    %v6380 = vpack.c.b16 %v5348, %v5340
    %v6381 = vpack.c.b16 %v5349, %v5341
    %v6382 = vpack.c.b16 %v5350, %v5342
    %v6383 = vpack.c.b16 %v5359, %v5351
    %v6384 = vpack.c.b16 %v5360, %v5352
    %v6385 = vpack.c.b16 %v5361, %v5353
    %v6386 = vpack.c.b16 %v5362, %v5354
    %v6387 = vpack.c.b16 %v5363, %v5355
    %v6388 = vpack.c.b16 %v5364, %v5356
    %v6389 = vpack.c.b16 %v5365, %v5357
    %v6390 = vpack.c.b16 %v5366, %v5358
    %7415 = vmatprep.subr.bf16.mxu0 %v5368
    %7416 = vmatpush1.bf16.msra.mxu0 %v5367
    %7417 = vmatprep.subr.bf16.mxu0 %v5376
    %7418 = vmatpush1.bf16.msra.mxu0 %v5375
    %7419 = vmatprep.subr.bf16.mxu0 %v5384
    %7420 = vmatpush1.bf16.msra.mxu0 %v5383
    %7421 = vmatprep.subr.bf16.mxu0 %v5392
    %7422 = vmatpush1.bf16.msra.mxu0 %v5391
    %7423 = vmatprep.subr.bf16.mxu0 %v5400
    %7424 = vmatpush1.bf16.msra.mxu0 %v5399
    %7425 = vmatprep.subr.bf16.mxu0 %v5408
    %7426 = vmatpush1.bf16.msra.mxu0 %v5407
    %7427 = vmatprep.subr.bf16.mxu0 %v5416
    %7428 = vmatpush1.bf16.msra.mxu0 %v5415
    %7429 = vmatprep.subr.bf16.mxu0 %v5424
    %7430 = vmatpush1.bf16.msra.mxu0 %v5423
    %7431 = vmatprep.subr.bf16.mxu0 %v5432
    %7432 = vmatpush1.bf16.msra.mxu0 %v5431
    %7433 = vmatprep.subr.bf16.mxu0 %v5440
    %7434 = vmatpush1.bf16.msra.mxu0 %v5439
    %7435 = vmatprep.subr.bf16.mxu0 %v5448
    %7436 = vmatpush1.bf16.msra.mxu0 %v5447
    %7437 = vmatprep.subr.bf16.mxu0 %v5456
    %7438 = vmatpush1.bf16.msra.mxu0 %v5455
    %7439 = vmatprep.subr.bf16.mxu0 %v5464
    %7440 = vmatpush1.bf16.msra.mxu0 %v5463
    %7441 = vmatprep.subr.bf16.mxu0 %v5472
    %7442 = vmatpush1.bf16.msra.mxu0 %v5471
    %7443 = vmatprep.subr.bf16.mxu0 %v5480
    %7444 = vmatpush1.bf16.msra.mxu0 %v5479
    %7445 = vmatprep.subr.bf16.mxu0 %v5488
    %7446 = vmatpush1.bf16.msra.mxu0 %v5487
    %7447 = vmatprep.mubr.bf16.mxu0 %v1214
    %7448 = vmatmul.mubr.bf16.gmra.mrb[0].mxu0 %v1213
    %v7449 = vpop.f32.mrb[0].mxu0
    %v7450 = vadd.f32 %v2258, %v7449
    %v7451 = vpop.f32.mrb[0].mxu0
    %v7452 = vadd.f32 %v2262, %v7451
    %v7453 = vpop.f32.mrb[0].mxu0
    %v7454 = vpop.f32.mrb[0].mxu0
    %7455 = vdwg.mxu0
    %7456 = vmatprep.subr.bf16.mxu0 %v5496
    %7457 = vmatpush1.bf16.msra.mxu0 %v5495
    %7458 = vmatprep.subr.bf16.mxu0 %v5504
    %7459 = vmatpush1.bf16.msra.mxu0 %v5503
    %7460 = vmatprep.subr.bf16.mxu0 %v5512
    %7461 = vmatpush1.bf16.msra.mxu0 %v5511
    %7462 = vmatprep.subr.bf16.mxu0 %v5520
    %7463 = vmatpush1.bf16.msra.mxu0 %v5519
    %7464 = vmatprep.subr.bf16.mxu0 %v5528
    %7465 = vmatpush1.bf16.msra.mxu0 %v5527
    %7466 = vmatprep.subr.bf16.mxu0 %v5536
    %7467 = vmatpush1.bf16.msra.mxu0 %v5535
    %7468 = vmatprep.subr.bf16.mxu0 %v5544
    %7469 = vmatpush1.bf16.msra.mxu0 %v5543
    %7470 = vmatprep.subr.bf16.mxu0 %v5552
    %7471 = vmatpush1.bf16.msra.mxu0 %v5551
    %7472 = vmatprep.subr.bf16.mxu0 %v5560
    %7473 = vmatpush1.bf16.msra.mxu0 %v5559
    %7474 = vmatprep.subr.bf16.mxu0 %v5568
    %7475 = vmatpush1.bf16.msra.mxu0 %v5567
    %7476 = vmatprep.subr.bf16.mxu0 %v5576
    %7477 = vmatpush1.bf16.msra.mxu0 %v5575
    %7478 = vmatprep.subr.bf16.mxu0 %v5584
    %7479 = vmatpush1.bf16.msra.mxu0 %v5583
    %7480 = vmatprep.subr.bf16.mxu0 %v5592
    %7481 = vmatpush1.bf16.msra.mxu0 %v5591
    %7482 = vmatprep.subr.bf16.mxu0 %v5600
    %7483 = vmatpush1.bf16.msra.mxu0 %v5599
    %7484 = vmatprep.subr.bf16.mxu0 %v5608
    %7485 = vmatpush1.bf16.msra.mxu0 %v5607
    %7486 = vmatprep.subr.bf16.mxu0 %v5616
    %7487 = vmatpush1.bf16.msra.mxu0 %v5615
    %7488 = vmatprep.mubr.bf16.mxu0 %v1216
    %7489 = vmatmul.mubr.bf16.gmra.mrb[0].mxu0 %v1215
    %v7490 = vpop.f32.mrb[0].mxu0
    %v7491 = vadd.f32 %v7450, %v7490
    %v7492 = vpop.f32.mrb[0].mxu0
    %v7493 = vadd.f32 %v7452, %v7492
    %v7494 = vpop.f32.mrb[0].mxu0
    %v7495 = vpop.f32.mrb[0].mxu0
    %7496 = vdwg.mxu0
    %7497 = vmatprep.subr.bf16.mxu0 %v5624
    %7498 = vmatpush1.bf16.msra.mxu0 %v5623
    %7499 = vmatprep.subr.bf16.mxu0 %v5632
    %7500 = vmatpush1.bf16.msra.mxu0 %v5631
    %7501 = vmatprep.subr.bf16.mxu0 %v5640
    %7502 = vmatpush1.bf16.msra.mxu0 %v5639
    %7503 = vmatprep.subr.bf16.mxu0 %v5648
    %7504 = vmatpush1.bf16.msra.mxu0 %v5647
    %7505 = vmatprep.subr.bf16.mxu0 %v5656
    %7506 = vmatpush1.bf16.msra.mxu0 %v5655
    %7507 = vmatprep.subr.bf16.mxu0 %v5664
    %7508 = vmatpush1.bf16.msra.mxu0 %v5663
    %7509 = vmatprep.subr.bf16.mxu0 %v5672
    %7510 = vmatpush1.bf16.msra.mxu0 %v5671
    %7511 = vmatprep.subr.bf16.mxu0 %v5680
    %7512 = vmatpush1.bf16.msra.mxu0 %v5679
    %7513 = vmatprep.subr.bf16.mxu0 %v5688
    %7514 = vmatpush1.bf16.msra.mxu0 %v5687
    %7515 = vmatprep.subr.bf16.mxu0 %v5696
    %7516 = vmatpush1.bf16.msra.mxu0 %v5695
    %7517 = vmatprep.subr.bf16.mxu0 %v5704
    %7518 = vmatpush1.bf16.msra.mxu0 %v5703
    %7519 = vmatprep.subr.bf16.mxu0 %v5712
    %7520 = vmatpush1.bf16.msra.mxu0 %v5711
    %7521 = vmatprep.subr.bf16.mxu0 %v5720
    %7522 = vmatpush1.bf16.msra.mxu0 %v5719
    %7523 = vmatprep.subr.bf16.mxu0 %v5728
    %7524 = vmatpush1.bf16.msra.mxu0 %v5727
    %7525 = vmatprep.subr.bf16.mxu0 %v5736
    %7526 = vmatpush1.bf16.msra.mxu0 %v5735
    %7527 = vmatprep.subr.bf16.mxu0 %v5744
    %7528 = vmatpush1.bf16.msra.mxu0 %v5743
    %7529 = vmatprep.mubr.bf16.mxu0 %v1218
    %7530 = vmatmul.mubr.bf16.gmra.mrb[0].mxu0 %v1217
    %v7531 = vpop.f32.mrb[0].mxu0
    %v7532 = vadd.f32 %v7491, %v7531
    %v7533 = vpop.f32.mrb[0].mxu0
    %v7534 = vadd.f32 %v7493, %v7533
    %v7535 = vpop.f32.mrb[0].mxu0
    %v7536 = vpop.f32.mrb[0].mxu0
    %7537 = vdwg.mxu0
    %7538 = vmatprep.subr.bf16.mxu0 %v5752
    %7539 = vmatpush1.bf16.msra.mxu0 %v5751
    %7540 = vmatprep.subr.bf16.mxu0 %v5760
    %7541 = vmatpush1.bf16.msra.mxu0 %v5759
    %7542 = vmatprep.subr.bf16.mxu0 %v5768
    %7543 = vmatpush1.bf16.msra.mxu0 %v5767
    %7544 = vmatprep.subr.bf16.mxu0 %v5776
    %7545 = vmatpush1.bf16.msra.mxu0 %v5775
    %7546 = vmatprep.subr.bf16.mxu0 %v5784
    %7547 = vmatpush1.bf16.msra.mxu0 %v5783
    %7548 = vmatprep.subr.bf16.mxu0 %v5792
    %7549 = vmatpush1.bf16.msra.mxu0 %v5791
    %7550 = vmatprep.subr.bf16.mxu0 %v5800
    %7551 = vmatpush1.bf16.msra.mxu0 %v5799
    %7552 = vmatprep.subr.bf16.mxu0 %v5808
    %7553 = vmatpush1.bf16.msra.mxu0 %v5807
    %7554 = vmatprep.subr.bf16.mxu0 %v5816
    %7555 = vmatpush1.bf16.msra.mxu0 %v5815
    %7556 = vmatprep.subr.bf16.mxu0 %v5824
    %7557 = vmatpush1.bf16.msra.mxu0 %v5823
    %7558 = vmatprep.subr.bf16.mxu0 %v5832
    %7559 = vmatpush1.bf16.msra.mxu0 %v5831
    %7560 = vmatprep.subr.bf16.mxu0 %v5840
    %7561 = vmatpush1.bf16.msra.mxu0 %v5839
    %7562 = vmatprep.subr.bf16.mxu0 %v5848
    %7563 = vmatpush1.bf16.msra.mxu0 %v5847
    %7564 = vmatprep.subr.bf16.mxu0 %v5856
    %7565 = vmatpush1.bf16.msra.mxu0 %v5855
    %7566 = vmatprep.subr.bf16.mxu0 %v5864
    %7567 = vmatpush1.bf16.msra.mxu0 %v5863
    %7568 = vmatprep.subr.bf16.mxu0 %v5872
    %7569 = vmatpush1.bf16.msra.mxu0 %v5871
    %7570 = vmatprep.mubr.bf16.mxu0 %v1220
    %7571 = vmatmul.mubr.bf16.gmra.mrb[0].mxu0 %v1219
    %v7572 = vpop.f32.mrb[0].mxu0
    %v7573 = vadd.f32 %v7532, %v7572
    %v7574 = vpop.f32.mrb[0].mxu0
    %v7575 = vadd.f32 %v7534, %v7574
    %v7576 = vpop.f32.mrb[0].mxu0
    %v7577 = vpop.f32.mrb[0].mxu0
    %7578 = vdwg.mxu0
    %7579 = vmatprep.subr.bf16.mxu0 %v5880
    %7580 = vmatpush1.bf16.msra.mxu0 %v5879
    %7581 = vmatprep.subr.bf16.mxu0 %v5888
    %7582 = vmatpush1.bf16.msra.mxu0 %v5887
    %7583 = vmatprep.subr.bf16.mxu0 %v5896
    %7584 = vmatpush1.bf16.msra.mxu0 %v5895
    %7585 = vmatprep.subr.bf16.mxu0 %v5904
    %7586 = vmatpush1.bf16.msra.mxu0 %v5903
    %7587 = vmatprep.subr.bf16.mxu0 %v5912
    %7588 = vmatpush1.bf16.msra.mxu0 %v5911
    %7589 = vmatprep.subr.bf16.mxu0 %v5920
    %7590 = vmatpush1.bf16.msra.mxu0 %v5919
    %7591 = vmatprep.subr.bf16.mxu0 %v5928
    %7592 = vmatpush1.bf16.msra.mxu0 %v5927
    %7593 = vmatprep.subr.bf16.mxu0 %v5936
    %7594 = vmatpush1.bf16.msra.mxu0 %v5935
    %7595 = vmatprep.subr.bf16.mxu0 %v5944
    %7596 = vmatpush1.bf16.msra.mxu0 %v5943
    %7597 = vmatprep.subr.bf16.mxu0 %v5952
    %7598 = vmatpush1.bf16.msra.mxu0 %v5951
    %7599 = vmatprep.subr.bf16.mxu0 %v5960
    %7600 = vmatpush1.bf16.msra.mxu0 %v5959
    %7601 = vmatprep.subr.bf16.mxu0 %v5968
    %7602 = vmatpush1.bf16.msra.mxu0 %v5967
    %7603 = vmatprep.subr.bf16.mxu0 %v5976
    %7604 = vmatpush1.bf16.msra.mxu0 %v5975
    %7605 = vmatprep.subr.bf16.mxu0 %v5984
    %7606 = vmatpush1.bf16.msra.mxu0 %v5983
    %7607 = vmatprep.subr.bf16.mxu0 %v5992
    %7608 = vmatpush1.bf16.msra.mxu0 %v5991
    %7609 = vmatprep.subr.bf16.mxu0 %v6000
    %7610 = vmatpush1.bf16.msra.mxu0 %v5999
    %7611 = vmatprep.mubr.bf16.mxu0 %v1222
    %7612 = vmatmul.mubr.bf16.gmra.mrb[0].mxu0 %v1221
    %v7613 = vpop.f32.mrb[0].mxu0
    %v7614 = vadd.f32 %v7573, %v7613
    %v7615 = vpop.f32.mrb[0].mxu0
    %v7616 = vadd.f32 %v7575, %v7615
    %v7617 = vpop.f32.mrb[0].mxu0
    %v7618 = vpop.f32.mrb[0].mxu0
    %7619 = vdwg.mxu0
    %7620 = vmatprep.subr.bf16.mxu0 %v6008
    %7621 = vmatpush1.bf16.msra.mxu0 %v6007
    %7622 = vmatprep.subr.bf16.mxu0 %v6016
    %7623 = vmatpush1.bf16.msra.mxu0 %v6015
    %7624 = vmatprep.subr.bf16.mxu0 %v6024
    %7625 = vmatpush1.bf16.msra.mxu0 %v6023
    %7626 = vmatprep.subr.bf16.mxu0 %v6032
    %7627 = vmatpush1.bf16.msra.mxu0 %v6031
    %7628 = vmatprep.subr.bf16.mxu0 %v6040
    %7629 = vmatpush1.bf16.msra.mxu0 %v6039
    %7630 = vmatprep.subr.bf16.mxu0 %v6048
    %7631 = vmatpush1.bf16.msra.mxu0 %v6047
    %7632 = vmatprep.subr.bf16.mxu0 %v6056
    %7633 = vmatpush1.bf16.msra.mxu0 %v6055
    %7634 = vmatprep.subr.bf16.mxu0 %v6064
    %7635 = vmatpush1.bf16.msra.mxu0 %v6063
    %7636 = vmatprep.subr.bf16.mxu0 %v6072
    %7637 = vmatpush1.bf16.msra.mxu0 %v6071
    %7638 = vmatprep.subr.bf16.mxu0 %v6080
    %7639 = vmatpush1.bf16.msra.mxu0 %v6079
    %7640 = vmatprep.subr.bf16.mxu0 %v6088
    %7641 = vmatpush1.bf16.msra.mxu0 %v6087
    %7642 = vmatprep.subr.bf16.mxu0 %v6096
    %7643 = vmatpush1.bf16.msra.mxu0 %v6095
    %7644 = vmatprep.subr.bf16.mxu0 %v6104
    %7645 = vmatpush1.bf16.msra.mxu0 %v6103
    %7646 = vmatprep.subr.bf16.mxu0 %v6112
    %7647 = vmatpush1.bf16.msra.mxu0 %v6111
    %7648 = vmatprep.subr.bf16.mxu0 %v6120
    %7649 = vmatpush1.bf16.msra.mxu0 %v6119
    %7650 = vmatprep.subr.bf16.mxu0 %v6128
    %7651 = vmatpush1.bf16.msra.mxu0 %v6127
    %7652 = vmatprep.mubr.bf16.mxu0 %v1224
    %7653 = vmatmul.mubr.bf16.gmra.mrb[0].mxu0 %v1223
    %v7654 = vpop.f32.mrb[0].mxu0
    %v7655 = vadd.f32 %v7614, %v7654
    %v7656 = vpop.f32.mrb[0].mxu0
    %v7657 = vadd.f32 %v7616, %v7656
    %v7658 = vpop.f32.mrb[0].mxu0
    %v7659 = vpop.f32.mrb[0].mxu0
    %7660 = vdwg.mxu0
    %7661 = vmatprep.subr.bf16.mxu0 %v6136
    %7662 = vmatpush1.bf16.msra.mxu0 %v6135
    %7663 = vmatprep.subr.bf16.mxu0 %v6144
    %7664 = vmatpush1.bf16.msra.mxu0 %v6143
    %7665 = vmatprep.subr.bf16.mxu0 %v6152
    %7666 = vmatpush1.bf16.msra.mxu0 %v6151
    %7667 = vmatprep.subr.bf16.mxu0 %v6160
    %7668 = vmatpush1.bf16.msra.mxu0 %v6159
    %7669 = vmatprep.subr.bf16.mxu0 %v6168
    %7670 = vmatpush1.bf16.msra.mxu0 %v6167
    %7671 = vmatprep.subr.bf16.mxu0 %v6176
    %7672 = vmatpush1.bf16.msra.mxu0 %v6175
    %7673 = vmatprep.subr.bf16.mxu0 %v6184
    %7674 = vmatpush1.bf16.msra.mxu0 %v6183
    %7675 = vmatprep.subr.bf16.mxu0 %v6192
    %7676 = vmatpush1.bf16.msra.mxu0 %v6191
    %7677 = vmatprep.subr.bf16.mxu0 %v6200
    %7678 = vmatpush1.bf16.msra.mxu0 %v6199
    %7679 = vmatprep.subr.bf16.mxu0 %v6208
    %7680 = vmatpush1.bf16.msra.mxu0 %v6207
    %7681 = vmatprep.subr.bf16.mxu0 %v6216
    %7682 = vmatpush1.bf16.msra.mxu0 %v6215
    %7683 = vmatprep.subr.bf16.mxu0 %v6224
    %7684 = vmatpush1.bf16.msra.mxu0 %v6223
    %7685 = vmatprep.subr.bf16.mxu0 %v6232
    %7686 = vmatpush1.bf16.msra.mxu0 %v6231
    %7687 = vmatprep.subr.bf16.mxu0 %v6240
    %7688 = vmatpush1.bf16.msra.mxu0 %v6239
    %7689 = vmatprep.subr.bf16.mxu0 %v6248
    %7690 = vmatpush1.bf16.msra.mxu0 %v6247
    %7691 = vmatprep.subr.bf16.mxu0 %v6256
    %7692 = vmatpush1.bf16.msra.mxu0 %v6255
    %7693 = vmatprep.mubr.bf16.mxu0 %v1226
    %7694 = vmatmul.mubr.bf16.gmra.mrb[0].mxu0 %v1225
    %v7695 = vpop.f32.mrb[0].mxu0
    %v7696 = vadd.f32 %v7655, %v7695
    %v7697 = vpop.f32.mrb[0].mxu0
    %v7698 = vadd.f32 %v7657, %v7697
    %v7699 = vpop.f32.mrb[0].mxu0
    %v7700 = vpop.f32.mrb[0].mxu0
    %7701 = vdwg.mxu0
    %7702 = vmatprep.subr.bf16.mxu0 %v6264
    %7703 = vmatpush1.bf16.msra.mxu0 %v6263
    %7704 = vmatprep.subr.bf16.mxu0 %v6272
    %7705 = vmatpush1.bf16.msra.mxu0 %v6271
    %7706 = vmatprep.subr.bf16.mxu0 %v6280
    %7707 = vmatpush1.bf16.msra.mxu0 %v6279
    %7708 = vmatprep.subr.bf16.mxu0 %v6288
    %7709 = vmatpush1.bf16.msra.mxu0 %v6287
    %7710 = vmatprep.subr.bf16.mxu0 %v6296
    %7711 = vmatpush1.bf16.msra.mxu0 %v6295
    %7712 = vmatprep.subr.bf16.mxu0 %v6304
    %7713 = vmatpush1.bf16.msra.mxu0 %v6303
    %7714 = vmatprep.subr.bf16.mxu0 %v6312
    %7715 = vmatpush1.bf16.msra.mxu0 %v6311
    %7716 = vmatprep.subr.bf16.mxu0 %v6320
    %7717 = vmatpush1.bf16.msra.mxu0 %v6319
    %7718 = vmatprep.subr.bf16.mxu0 %v6328
    %7719 = vmatpush1.bf16.msra.mxu0 %v6327
    %7720 = vmatprep.subr.bf16.mxu0 %v6336
    %7721 = vmatpush1.bf16.msra.mxu0 %v6335
    %7722 = vmatprep.subr.bf16.mxu0 %v6344
    %7723 = vmatpush1.bf16.msra.mxu0 %v6343
    %7724 = vmatprep.subr.bf16.mxu0 %v6352
    %7725 = vmatpush1.bf16.msra.mxu0 %v6351
    %7726 = vmatprep.subr.bf16.mxu0 %v6360
    %7727 = vmatpush1.bf16.msra.mxu0 %v6359
    %7728 = vmatprep.subr.bf16.mxu0 %v6368
    %7729 = vmatpush1.bf16.msra.mxu0 %v6367
    %7730 = vmatprep.subr.bf16.mxu0 %v6376
    %7731 = vmatpush1.bf16.msra.mxu0 %v6375
    %7732 = vmatprep.subr.bf16.mxu0 %v6384
    %7733 = vmatpush1.bf16.msra.mxu0 %v6383
    %7734 = vmatprep.mubr.bf16.mxu0 %v1228
    %7735 = vmatmul.mubr.bf16.gmra.mrb[0].mxu0 %v1227
    %v7736 = vpop.f32.mrb[0].mxu0
    %v7737 = vadd.f32 %v7696, %v7736
    %v7738 = vpop.f32.mrb[0].mxu0
    %v7739 = vadd.f32 %v7698, %v7738
    %v7740 = vpop.f32.mrb[0].mxu0
    %v7741 = vpop.f32.mrb[0].mxu0
    %7742 = vdwg.mxu0
    %7743 = vmatprep.subr.bf16.mxu0 %v5370
    %7744 = vmatpush1.bf16.msra.mxu0 %v5369
    %7745 = vmatprep.subr.bf16.mxu0 %v5378
    %7746 = vmatpush1.bf16.msra.mxu0 %v5377
    %7747 = vmatprep.subr.bf16.mxu0 %v5386
    %7748 = vmatpush1.bf16.msra.mxu0 %v5385
    %7749 = vmatprep.subr.bf16.mxu0 %v5394
    %7750 = vmatpush1.bf16.msra.mxu0 %v5393
    %7751 = vmatprep.subr.bf16.mxu0 %v5402
    %7752 = vmatpush1.bf16.msra.mxu0 %v5401
    %7753 = vmatprep.subr.bf16.mxu0 %v5410
    %7754 = vmatpush1.bf16.msra.mxu0 %v5409
    %7755 = vmatprep.subr.bf16.mxu0 %v5418
    %7756 = vmatpush1.bf16.msra.mxu0 %v5417
    %7757 = vmatprep.subr.bf16.mxu0 %v5426
    %7758 = vmatpush1.bf16.msra.mxu0 %v5425
    %7759 = vmatprep.subr.bf16.mxu0 %v5434
    %7760 = vmatpush1.bf16.msra.mxu0 %v5433
    %7761 = vmatprep.subr.bf16.mxu0 %v5442
    %7762 = vmatpush1.bf16.msra.mxu0 %v5441
    %7763 = vmatprep.subr.bf16.mxu0 %v5450
    %7764 = vmatpush1.bf16.msra.mxu0 %v5449
    %7765 = vmatprep.subr.bf16.mxu0 %v5458
    %7766 = vmatpush1.bf16.msra.mxu0 %v5457
    %7767 = vmatprep.subr.bf16.mxu0 %v5466
    %7768 = vmatpush1.bf16.msra.mxu0 %v5465
    %7769 = vmatprep.subr.bf16.mxu0 %v5474
    %7770 = vmatpush1.bf16.msra.mxu0 %v5473
    %7771 = vmatprep.subr.bf16.mxu0 %v5482
    %7772 = vmatpush1.bf16.msra.mxu0 %v5481
    %7773 = vmatprep.subr.bf16.mxu0 %v5490
    %7774 = vmatpush1.bf16.msra.mxu0 %v5489
    %7775 = vmatprep.mubr.bf16.mxu0 %v1214
    %7776 = vmatmul.mubr.bf16.gmra.mrb[0].mxu0 %v1213
    %v7777 = vpop.f32.mrb[0].mxu0
    %v7778 = vadd.f32 %v2266, %v7777
    %v7779 = vpop.f32.mrb[0].mxu0
    %v7780 = vadd.f32 %v2270, %v7779
    %v7781 = vpop.f32.mrb[0].mxu0
    %v7782 = vpop.f32.mrb[0].mxu0
    %7783 = vdwg.mxu0
    %7784 = vmatprep.subr.bf16.mxu0 %v5498
    %7785 = vmatpush1.bf16.msra.mxu0 %v5497
    %7786 = vmatprep.subr.bf16.mxu0 %v5506
    %7787 = vmatpush1.bf16.msra.mxu0 %v5505
    %7788 = vmatprep.subr.bf16.mxu0 %v5514
    %7789 = vmatpush1.bf16.msra.mxu0 %v5513
    %7790 = vmatprep.subr.bf16.mxu0 %v5522
    %7791 = vmatpush1.bf16.msra.mxu0 %v5521
    %7792 = vmatprep.subr.bf16.mxu0 %v5530
    %7793 = vmatpush1.bf16.msra.mxu0 %v5529
    %7794 = vmatprep.subr.bf16.mxu0 %v5538
    %7795 = vmatpush1.bf16.msra.mxu0 %v5537
    %7796 = vmatprep.subr.bf16.mxu0 %v5546
    %7797 = vmatpush1.bf16.msra.mxu0 %v5545
    %7798 = vmatprep.subr.bf16.mxu0 %v5554
    %7799 = vmatpush1.bf16.msra.mxu0 %v5553
    %7800 = vmatprep.subr.bf16.mxu0 %v5562
    %7801 = vmatpush1.bf16.msra.mxu0 %v5561
    %7802 = vmatprep.subr.bf16.mxu0 %v5570
    %7803 = vmatpush1.bf16.msra.mxu0 %v5569
    %7804 = vmatprep.subr.bf16.mxu0 %v5578
    %7805 = vmatpush1.bf16.msra.mxu0 %v5577
    %7806 = vmatprep.subr.bf16.mxu0 %v5586
    %7807 = vmatpush1.bf16.msra.mxu0 %v5585
    %7808 = vmatprep.subr.bf16.mxu0 %v5594
    %7809 = vmatpush1.bf16.msra.mxu0 %v5593
    %7810 = vmatprep.subr.bf16.mxu0 %v5602
    %7811 = vmatpush1.bf16.msra.mxu0 %v5601
    %7812 = vmatprep.subr.bf16.mxu0 %v5610
    %7813 = vmatpush1.bf16.msra.mxu0 %v5609
    %7814 = vmatprep.subr.bf16.mxu0 %v5618
    %7815 = vmatpush1.bf16.msra.mxu0 %v5617
    %7816 = vmatprep.mubr.bf16.mxu0 %v1216
    %7817 = vmatmul.mubr.bf16.gmra.mrb[0].mxu0 %v1215
    %v7818 = vpop.f32.mrb[0].mxu0
    %v7819 = vadd.f32 %v7778, %v7818
    %v7820 = vpop.f32.mrb[0].mxu0
    %v7821 = vadd.f32 %v7780, %v7820
    %v7822 = vpop.f32.mrb[0].mxu0
    %v7823 = vpop.f32.mrb[0].mxu0
    %7824 = vdwg.mxu0
    %7825 = vmatprep.subr.bf16.mxu0 %v5626
    %7826 = vmatpush1.bf16.msra.mxu0 %v5625
    %7827 = vmatprep.subr.bf16.mxu0 %v5634
    %7828 = vmatpush1.bf16.msra.mxu0 %v5633
    %7829 = vmatprep.subr.bf16.mxu0 %v5642
    %7830 = vmatpush1.bf16.msra.mxu0 %v5641
    %7831 = vmatprep.subr.bf16.mxu0 %v5650
    %7832 = vmatpush1.bf16.msra.mxu0 %v5649
    %7833 = vmatprep.subr.bf16.mxu0 %v5658
    %7834 = vmatpush1.bf16.msra.mxu0 %v5657
    %7835 = vmatprep.subr.bf16.mxu0 %v5666
    %7836 = vmatpush1.bf16.msra.mxu0 %v5665
    %7837 = vmatprep.subr.bf16.mxu0 %v5674
    %7838 = vmatpush1.bf16.msra.mxu0 %v5673
    %7839 = vmatprep.subr.bf16.mxu0 %v5682
    %7840 = vmatpush1.bf16.msra.mxu0 %v5681
    %7841 = vmatprep.subr.bf16.mxu0 %v5690
    %7842 = vmatpush1.bf16.msra.mxu0 %v5689
    %7843 = vmatprep.subr.bf16.mxu0 %v5698
    %7844 = vmatpush1.bf16.msra.mxu0 %v5697
    %7845 = vmatprep.subr.bf16.mxu0 %v5706
    %7846 = vmatpush1.bf16.msra.mxu0 %v5705
    %7847 = vmatprep.subr.bf16.mxu0 %v5714
    %7848 = vmatpush1.bf16.msra.mxu0 %v5713
    %7849 = vmatprep.subr.bf16.mxu0 %v5722
    %7850 = vmatpush1.bf16.msra.mxu0 %v5721
    %7851 = vmatprep.subr.bf16.mxu0 %v5730
    %7852 = vmatpush1.bf16.msra.mxu0 %v5729
    %7853 = vmatprep.subr.bf16.mxu0 %v5738
    %7854 = vmatpush1.bf16.msra.mxu0 %v5737
    %7855 = vmatprep.subr.bf16.mxu0 %v5746
    %7856 = vmatpush1.bf16.msra.mxu0 %v5745
    %7857 = vmatprep.mubr.bf16.mxu0 %v1218
    %7858 = vmatmul.mubr.bf16.gmra.mrb[0].mxu0 %v1217
    %v7859 = vpop.f32.mrb[0].mxu0
    %v7860 = vadd.f32 %v7819, %v7859
    %v7861 = vpop.f32.mrb[0].mxu0
    %v7862 = vadd.f32 %v7821, %v7861
    %v7863 = vpop.f32.mrb[0].mxu0
    %v7864 = vpop.f32.mrb[0].mxu0
    %7865 = vdwg.mxu0
    %7866 = vmatprep.subr.bf16.mxu0 %v5754
    %7867 = vmatpush1.bf16.msra.mxu0 %v5753
    %7868 = vmatprep.subr.bf16.mxu0 %v5762
    %7869 = vmatpush1.bf16.msra.mxu0 %v5761
    %7870 = vmatprep.subr.bf16.mxu0 %v5770
    %7871 = vmatpush1.bf16.msra.mxu0 %v5769
    %7872 = vmatprep.subr.bf16.mxu0 %v5778
    %7873 = vmatpush1.bf16.msra.mxu0 %v5777
    %7874 = vmatprep.subr.bf16.mxu0 %v5786
    %7875 = vmatpush1.bf16.msra.mxu0 %v5785
    %7876 = vmatprep.subr.bf16.mxu0 %v5794
    %7877 = vmatpush1.bf16.msra.mxu0 %v5793
    %7878 = vmatprep.subr.bf16.mxu0 %v5802
    %7879 = vmatpush1.bf16.msra.mxu0 %v5801
    %7880 = vmatprep.subr.bf16.mxu0 %v5810
    %7881 = vmatpush1.bf16.msra.mxu0 %v5809
    %7882 = vmatprep.subr.bf16.mxu0 %v5818
    %7883 = vmatpush1.bf16.msra.mxu0 %v5817
    %7884 = vmatprep.subr.bf16.mxu0 %v5826
    %7885 = vmatpush1.bf16.msra.mxu0 %v5825
    %7886 = vmatprep.subr.bf16.mxu0 %v5834
    %7887 = vmatpush1.bf16.msra.mxu0 %v5833
    %7888 = vmatprep.subr.bf16.mxu0 %v5842
    %7889 = vmatpush1.bf16.msra.mxu0 %v5841
    %7890 = vmatprep.subr.bf16.mxu0 %v5850
    %7891 = vmatpush1.bf16.msra.mxu0 %v5849
    %7892 = vmatprep.subr.bf16.mxu0 %v5858
    %7893 = vmatpush1.bf16.msra.mxu0 %v5857
    %7894 = vmatprep.subr.bf16.mxu0 %v5866
    %7895 = vmatpush1.bf16.msra.mxu0 %v5865
    %7896 = vmatprep.subr.bf16.mxu0 %v5874
    %7897 = vmatpush1.bf16.msra.mxu0 %v5873
    %7898 = vmatprep.mubr.bf16.mxu0 %v1220
    %7899 = vmatmul.mubr.bf16.gmra.mrb[0].mxu0 %v1219
    %v7900 = vpop.f32.mrb[0].mxu0
    %v7901 = vadd.f32 %v7860, %v7900
    %v7902 = vpop.f32.mrb[0].mxu0
    %v7903 = vadd.f32 %v7862, %v7902
    %v7904 = vpop.f32.mrb[0].mxu0
    %v7905 = vpop.f32.mrb[0].mxu0
    %7906 = vdwg.mxu0
    %7907 = vmatprep.subr.bf16.mxu0 %v5882
    %7908 = vmatpush1.bf16.msra.mxu0 %v5881
    %7909 = vmatprep.subr.bf16.mxu0 %v5890
    %7910 = vmatpush1.bf16.msra.mxu0 %v5889
    %7911 = vmatprep.subr.bf16.mxu0 %v5898
    %7912 = vmatpush1.bf16.msra.mxu0 %v5897
    %7913 = vmatprep.subr.bf16.mxu0 %v5906
    %7914 = vmatpush1.bf16.msra.mxu0 %v5905
    %7915 = vmatprep.subr.bf16.mxu0 %v5914
    %7916 = vmatpush1.bf16.msra.mxu0 %v5913
    %7917 = vmatprep.subr.bf16.mxu0 %v5922
    %7918 = vmatpush1.bf16.msra.mxu0 %v5921
    %7919 = vmatprep.subr.bf16.mxu0 %v5930
    %7920 = vmatpush1.bf16.msra.mxu0 %v5929
    %7921 = vmatprep.subr.bf16.mxu0 %v5938
    %7922 = vmatpush1.bf16.msra.mxu0 %v5937
    %7923 = vmatprep.subr.bf16.mxu0 %v5946
    %7924 = vmatpush1.bf16.msra.mxu0 %v5945
    %7925 = vmatprep.subr.bf16.mxu0 %v5954
    %7926 = vmatpush1.bf16.msra.mxu0 %v5953
    %7927 = vmatprep.subr.bf16.mxu0 %v5962
    %7928 = vmatpush1.bf16.msra.mxu0 %v5961
    %7929 = vmatprep.subr.bf16.mxu0 %v5970
    %7930 = vmatpush1.bf16.msra.mxu0 %v5969
    %7931 = vmatprep.subr.bf16.mxu0 %v5978
    %7932 = vmatpush1.bf16.msra.mxu0 %v5977
    %7933 = vmatprep.subr.bf16.mxu0 %v5986
    %7934 = vmatpush1.bf16.msra.mxu0 %v5985
    %7935 = vmatprep.subr.bf16.mxu0 %v5994
    %7936 = vmatpush1.bf16.msra.mxu0 %v5993
    %7937 = vmatprep.subr.bf16.mxu0 %v6002
    %7938 = vmatpush1.bf16.msra.mxu0 %v6001
    %7939 = vmatprep.mubr.bf16.mxu0 %v1222
    %7940 = vmatmul.mubr.bf16.gmra.mrb[0].mxu0 %v1221
    %v7941 = vpop.f32.mrb[0].mxu0
    %v7942 = vadd.f32 %v7901, %v7941
    %v7943 = vpop.f32.mrb[0].mxu0
    %v7944 = vadd.f32 %v7903, %v7943
    %v7945 = vpop.f32.mrb[0].mxu0
    %v7946 = vpop.f32.mrb[0].mxu0
    %7947 = vdwg.mxu0
    %7948 = vmatprep.subr.bf16.mxu0 %v6010
    %7949 = vmatpush1.bf16.msra.mxu0 %v6009
    %7950 = vmatprep.subr.bf16.mxu0 %v6018
    %7951 = vmatpush1.bf16.msra.mxu0 %v6017
    %7952 = vmatprep.subr.bf16.mxu0 %v6026
    %7953 = vmatpush1.bf16.msra.mxu0 %v6025
    %7954 = vmatprep.subr.bf16.mxu0 %v6034
    %7955 = vmatpush1.bf16.msra.mxu0 %v6033
    %7956 = vmatprep.subr.bf16.mxu0 %v6042
    %7957 = vmatpush1.bf16.msra.mxu0 %v6041
    %7958 = vmatprep.subr.bf16.mxu0 %v6050
    %7959 = vmatpush1.bf16.msra.mxu0 %v6049
    %7960 = vmatprep.subr.bf16.mxu0 %v6058
    %7961 = vmatpush1.bf16.msra.mxu0 %v6057
    %7962 = vmatprep.subr.bf16.mxu0 %v6066
    %7963 = vmatpush1.bf16.msra.mxu0 %v6065
    %7964 = vmatprep.subr.bf16.mxu0 %v6074
    %7965 = vmatpush1.bf16.msra.mxu0 %v6073
    %7966 = vmatprep.subr.bf16.mxu0 %v6082
    %7967 = vmatpush1.bf16.msra.mxu0 %v6081
    %7968 = vmatprep.subr.bf16.mxu0 %v6090
    %7969 = vmatpush1.bf16.msra.mxu0 %v6089
    %7970 = vmatprep.subr.bf16.mxu0 %v6098
    %7971 = vmatpush1.bf16.msra.mxu0 %v6097
    %7972 = vmatprep.subr.bf16.mxu0 %v6106
    %7973 = vmatpush1.bf16.msra.mxu0 %v6105
    %7974 = vmatprep.subr.bf16.mxu0 %v6114
    %7975 = vmatpush1.bf16.msra.mxu0 %v6113
    %7976 = vmatprep.subr.bf16.mxu0 %v6122
    %7977 = vmatpush1.bf16.msra.mxu0 %v6121
    %7978 = vmatprep.subr.bf16.mxu0 %v6130
    %7979 = vmatpush1.bf16.msra.mxu0 %v6129
    %7980 = vmatprep.mubr.bf16.mxu0 %v1224
    %7981 = vmatmul.mubr.bf16.gmra.mrb[0].mxu0 %v1223
    %v7982 = vpop.f32.mrb[0].mxu0
    %v7983 = vadd.f32 %v7942, %v7982
    %v7984 = vpop.f32.mrb[0].mxu0
    %v7985 = vadd.f32 %v7944, %v7984
    %v7986 = vpop.f32.mrb[0].mxu0
    %v7987 = vpop.f32.mrb[0].mxu0
    %7988 = vdwg.mxu0
    %7989 = vmatprep.subr.bf16.mxu0 %v6138
    %7990 = vmatpush1.bf16.msra.mxu0 %v6137
    %7991 = vmatprep.subr.bf16.mxu0 %v6146
    %7992 = vmatpush1.bf16.msra.mxu0 %v6145
    %7993 = vmatprep.subr.bf16.mxu0 %v6154
    %7994 = vmatpush1.bf16.msra.mxu0 %v6153
    %7995 = vmatprep.subr.bf16.mxu0 %v6162
    %7996 = vmatpush1.bf16.msra.mxu0 %v6161
    %7997 = vmatprep.subr.bf16.mxu0 %v6170
    %7998 = vmatpush1.bf16.msra.mxu0 %v6169
    %7999 = vmatprep.subr.bf16.mxu0 %v6178
    %8000 = vmatpush1.bf16.msra.mxu0 %v6177
    %8001 = vmatprep.subr.bf16.mxu0 %v6186
    %8002 = vmatpush1.bf16.msra.mxu0 %v6185
    %8003 = vmatprep.subr.bf16.mxu0 %v6194
    %8004 = vmatpush1.bf16.msra.mxu0 %v6193
    %8005 = vmatprep.subr.bf16.mxu0 %v6202
    %8006 = vmatpush1.bf16.msra.mxu0 %v6201
    %8007 = vmatprep.subr.bf16.mxu0 %v6210
    %8008 = vmatpush1.bf16.msra.mxu0 %v6209
    %8009 = vmatprep.subr.bf16.mxu0 %v6218
    %8010 = vmatpush1.bf16.msra.mxu0 %v6217
    %8011 = vmatprep.subr.bf16.mxu0 %v6226
    %8012 = vmatpush1.bf16.msra.mxu0 %v6225
    %8013 = vmatprep.subr.bf16.mxu0 %v6234
    %8014 = vmatpush1.bf16.msra.mxu0 %v6233
    %8015 = vmatprep.subr.bf16.mxu0 %v6242
    %8016 = vmatpush1.bf16.msra.mxu0 %v6241
    %8017 = vmatprep.subr.bf16.mxu0 %v6250
    %8018 = vmatpush1.bf16.msra.mxu0 %v6249
    %8019 = vmatprep.subr.bf16.mxu0 %v6258
    %8020 = vmatpush1.bf16.msra.mxu0 %v6257
    %8021 = vmatprep.mubr.bf16.mxu0 %v1226
    %8022 = vmatmul.mubr.bf16.gmra.mrb[0].mxu0 %v1225
    %v8023 = vpop.f32.mrb[0].mxu0
    %v8024 = vadd.f32 %v7983, %v8023
    %v8025 = vpop.f32.mrb[0].mxu0
    %v8026 = vadd.f32 %v7985, %v8025
    %v8027 = vpop.f32.mrb[0].mxu0
    %v8028 = vpop.f32.mrb[0].mxu0
    %8029 = vdwg.mxu0
    %8030 = vmatprep.subr.bf16.mxu0 %v6266
    %8031 = vmatpush1.bf16.msra.mxu0 %v6265
    %8032 = vmatprep.subr.bf16.mxu0 %v6274
    %8033 = vmatpush1.bf16.msra.mxu0 %v6273
    %8034 = vmatprep.subr.bf16.mxu0 %v6282
    %8035 = vmatpush1.bf16.msra.mxu0 %v6281
    %8036 = vmatprep.subr.bf16.mxu0 %v6290
    %8037 = vmatpush1.bf16.msra.mxu0 %v6289
    %8038 = vmatprep.subr.bf16.mxu0 %v6298
    %8039 = vmatpush1.bf16.msra.mxu0 %v6297
    %8040 = vmatprep.subr.bf16.mxu0 %v6306
    %8041 = vmatpush1.bf16.msra.mxu0 %v6305
    %8042 = vmatprep.subr.bf16.mxu0 %v6314
    %8043 = vmatpush1.bf16.msra.mxu0 %v6313
    %8044 = vmatprep.subr.bf16.mxu0 %v6322
    %8045 = vmatpush1.bf16.msra.mxu0 %v6321
    %8046 = vmatprep.subr.bf16.mxu0 %v6330
    %8047 = vmatpush1.bf16.msra.mxu0 %v6329
    %8048 = vmatprep.subr.bf16.mxu0 %v6338
    %8049 = vmatpush1.bf16.msra.mxu0 %v6337
    %8050 = vmatprep.subr.bf16.mxu0 %v6346
    %8051 = vmatpush1.bf16.msra.mxu0 %v6345
    %8052 = vmatprep.subr.bf16.mxu0 %v6354
    %8053 = vmatpush1.bf16.msra.mxu0 %v6353
    %8054 = vmatprep.subr.bf16.mxu0 %v6362
    %8055 = vmatpush1.bf16.msra.mxu0 %v6361
    %8056 = vmatprep.subr.bf16.mxu0 %v6370
    %8057 = vmatpush1.bf16.msra.mxu0 %v6369
    %8058 = vmatprep.subr.bf16.mxu0 %v6378
    %8059 = vmatpush1.bf16.msra.mxu0 %v6377
    %8060 = vmatprep.subr.bf16.mxu0 %v6386
    %8061 = vmatpush1.bf16.msra.mxu0 %v6385
    %8062 = vmatprep.mubr.bf16.mxu0 %v1228
    %8063 = vmatmul.mubr.bf16.gmra.mrb[0].mxu0 %v1227
    %v8064 = vpop.f32.mrb[0].mxu0
    %v8065 = vadd.f32 %v8024, %v8064
    %v8066 = vpop.f32.mrb[0].mxu0
    %v8067 = vadd.f32 %v8026, %v8066
    %v8068 = vpop.f32.mrb[0].mxu0
    %v8069 = vpop.f32.mrb[0].mxu0
    %8070 = vdwg.mxu0
    %8071 = vmatprep.subr.bf16.mxu0 %v5372
    %8072 = vmatpush1.bf16.msra.mxu0 %v5371
    %8073 = vmatprep.subr.bf16.mxu0 %v5380
    %8074 = vmatpush1.bf16.msra.mxu0 %v5379
    %8075 = vmatprep.subr.bf16.mxu0 %v5388
    %8076 = vmatpush1.bf16.msra.mxu0 %v5387
    %8077 = vmatprep.subr.bf16.mxu0 %v5396
    %8078 = vmatpush1.bf16.msra.mxu0 %v5395
    %8079 = vmatprep.subr.bf16.mxu0 %v5404
    %8080 = vmatpush1.bf16.msra.mxu0 %v5403
    %8081 = vmatprep.subr.bf16.mxu0 %v5412
    %8082 = vmatpush1.bf16.msra.mxu0 %v5411
    %8083 = vmatprep.subr.bf16.mxu0 %v5420
    %8084 = vmatpush1.bf16.msra.mxu0 %v5419
    %8085 = vmatprep.subr.bf16.mxu0 %v5428
    %8086 = vmatpush1.bf16.msra.mxu0 %v5427
    %8087 = vmatprep.subr.bf16.mxu0 %v5436
    %8088 = vmatpush1.bf16.msra.mxu0 %v5435
    %8089 = vmatprep.subr.bf16.mxu0 %v5444
    %8090 = vmatpush1.bf16.msra.mxu0 %v5443
    %8091 = vmatprep.subr.bf16.mxu0 %v5452
    %8092 = vmatpush1.bf16.msra.mxu0 %v5451
    %8093 = vmatprep.subr.bf16.mxu0 %v5460
    %8094 = vmatpush1.bf16.msra.mxu0 %v5459
    %8095 = vmatprep.subr.bf16.mxu0 %v5468
    %8096 = vmatpush1.bf16.msra.mxu0 %v5467
    %8097 = vmatprep.subr.bf16.mxu0 %v5476
    %8098 = vmatpush1.bf16.msra.mxu0 %v5475
    %8099 = vmatprep.subr.bf16.mxu0 %v5484
    %8100 = vmatpush1.bf16.msra.mxu0 %v5483
    %8101 = vmatprep.subr.bf16.mxu0 %v5492
    %8102 = vmatpush1.bf16.msra.mxu0 %v5491
    %8103 = vmatprep.mubr.bf16.mxu0 %v1214
    %8104 = vmatmul.mubr.bf16.gmra.mrb[0].mxu0 %v1213
    %v8105 = vpop.f32.mrb[0].mxu0
    %v8106 = vadd.f32 %v2274, %v8105
    %v8107 = vpop.f32.mrb[0].mxu0
    %v8108 = vadd.f32 %v2278, %v8107
    %v8109 = vpop.f32.mrb[0].mxu0
    %v8110 = vpop.f32.mrb[0].mxu0
    %8111 = vdwg.mxu0
    %8112 = vmatprep.subr.bf16.mxu0 %v5500
    %8113 = vmatpush1.bf16.msra.mxu0 %v5499
    %8114 = vmatprep.subr.bf16.mxu0 %v5508
    %8115 = vmatpush1.bf16.msra.mxu0 %v5507
    %8116 = vmatprep.subr.bf16.mxu0 %v5516
    %8117 = vmatpush1.bf16.msra.mxu0 %v5515
    %8118 = vmatprep.subr.bf16.mxu0 %v5524
    %8119 = vmatpush1.bf16.msra.mxu0 %v5523
    %8120 = vmatprep.subr.bf16.mxu0 %v5532
    %8121 = vmatpush1.bf16.msra.mxu0 %v5531
    %8122 = vmatprep.subr.bf16.mxu0 %v5540
    %8123 = vmatpush1.bf16.msra.mxu0 %v5539
    %8124 = vmatprep.subr.bf16.mxu0 %v5548
    %8125 = vmatpush1.bf16.msra.mxu0 %v5547
    %8126 = vmatprep.subr.bf16.mxu0 %v5556
    %8127 = vmatpush1.bf16.msra.mxu0 %v5555
    %8128 = vmatprep.subr.bf16.mxu0 %v5564
    %8129 = vmatpush1.bf16.msra.mxu0 %v5563
    %8130 = vmatprep.subr.bf16.mxu0 %v5572
    %8131 = vmatpush1.bf16.msra.mxu0 %v5571
    %8132 = vmatprep.subr.bf16.mxu0 %v5580
    %8133 = vmatpush1.bf16.msra.mxu0 %v5579
    %8134 = vmatprep.subr.bf16.mxu0 %v5588
    %8135 = vmatpush1.bf16.msra.mxu0 %v5587
    %8136 = vmatprep.subr.bf16.mxu0 %v5596
    %8137 = vmatpush1.bf16.msra.mxu0 %v5595
    %8138 = vmatprep.subr.bf16.mxu0 %v5604
    %8139 = vmatpush1.bf16.msra.mxu0 %v5603
    %8140 = vmatprep.subr.bf16.mxu0 %v5612
    %8141 = vmatpush1.bf16.msra.mxu0 %v5611
    %8142 = vmatprep.subr.bf16.mxu0 %v5620
    %8143 = vmatpush1.bf16.msra.mxu0 %v5619
    %8144 = vmatprep.mubr.bf16.mxu0 %v1216
    %8145 = vmatmul.mubr.bf16.gmra.mrb[0].mxu0 %v1215
    %v8146 = vpop.f32.mrb[0].mxu0
    %v8147 = vadd.f32 %v8106, %v8146
    %v8148 = vpop.f32.mrb[0].mxu0
    %v8149 = vadd.f32 %v8108, %v8148
    %v8150 = vpop.f32.mrb[0].mxu0
    %v8151 = vpop.f32.mrb[0].mxu0
    %8152 = vdwg.mxu0
    %8153 = vmatprep.subr.bf16.mxu0 %v5628
    %8154 = vmatpush1.bf16.msra.mxu0 %v5627
    %8155 = vmatprep.subr.bf16.mxu0 %v5636
    %8156 = vmatpush1.bf16.msra.mxu0 %v5635
    %8157 = vmatprep.subr.bf16.mxu0 %v5644
    %8158 = vmatpush1.bf16.msra.mxu0 %v5643
    %8159 = vmatprep.subr.bf16.mxu0 %v5652
    %8160 = vmatpush1.bf16.msra.mxu0 %v5651
    %8161 = vmatprep.subr.bf16.mxu0 %v5660
    %8162 = vmatpush1.bf16.msra.mxu0 %v5659
    %8163 = vmatprep.subr.bf16.mxu0 %v5668
    %8164 = vmatpush1.bf16.msra.mxu0 %v5667
    %8165 = vmatprep.subr.bf16.mxu0 %v5676
    %8166 = vmatpush1.bf16.msra.mxu0 %v5675
    %8167 = vmatprep.subr.bf16.mxu0 %v5684
    %8168 = vmatpush1.bf16.msra.mxu0 %v5683
    %8169 = vmatprep.subr.bf16.mxu0 %v5692
    %8170 = vmatpush1.bf16.msra.mxu0 %v5691
    %8171 = vmatprep.subr.bf16.mxu0 %v5700
    %8172 = vmatpush1.bf16.msra.mxu0 %v5699
    %8173 = vmatprep.subr.bf16.mxu0 %v5708
    %8174 = vmatpush1.bf16.msra.mxu0 %v5707
    %8175 = vmatprep.subr.bf16.mxu0 %v5716
    %8176 = vmatpush1.bf16.msra.mxu0 %v5715
    %8177 = vmatprep.subr.bf16.mxu0 %v5724
    %8178 = vmatpush1.bf16.msra.mxu0 %v5723
    %8179 = vmatprep.subr.bf16.mxu0 %v5732
    %8180 = vmatpush1.bf16.msra.mxu0 %v5731
    %8181 = vmatprep.subr.bf16.mxu0 %v5740
    %8182 = vmatpush1.bf16.msra.mxu0 %v5739
    %8183 = vmatprep.subr.bf16.mxu0 %v5748
    %8184 = vmatpush1.bf16.msra.mxu0 %v5747
    %8185 = vmatprep.mubr.bf16.mxu0 %v1218
    %8186 = vmatmul.mubr.bf16.gmra.mrb[0].mxu0 %v1217
    %v8187 = vpop.f32.mrb[0].mxu0
    %v8188 = vadd.f32 %v8147, %v8187
    %v8189 = vpop.f32.mrb[0].mxu0
    %v8190 = vadd.f32 %v8149, %v8189
    %v8191 = vpop.f32.mrb[0].mxu0
    %v8192 = vpop.f32.mrb[0].mxu0
    %8193 = vdwg.mxu0
    %8194 = vmatprep.subr.bf16.mxu0 %v5756
    %8195 = vmatpush1.bf16.msra.mxu0 %v5755
    %8196 = vmatprep.subr.bf16.mxu0 %v5764
    %8197 = vmatpush1.bf16.msra.mxu0 %v5763
    %8198 = vmatprep.subr.bf16.mxu0 %v5772
    %8199 = vmatpush1.bf16.msra.mxu0 %v5771
    %8200 = vmatprep.subr.bf16.mxu0 %v5780
    %8201 = vmatpush1.bf16.msra.mxu0 %v5779
    %8202 = vmatprep.subr.bf16.mxu0 %v5788
    %8203 = vmatpush1.bf16.msra.mxu0 %v5787
    %8204 = vmatprep.subr.bf16.mxu0 %v5796
    %8205 = vmatpush1.bf16.msra.mxu0 %v5795
    %8206 = vmatprep.subr.bf16.mxu0 %v5804
    %8207 = vmatpush1.bf16.msra.mxu0 %v5803
    %8208 = vmatprep.subr.bf16.mxu0 %v5812
    %8209 = vmatpush1.bf16.msra.mxu0 %v5811
    %8210 = vmatprep.subr.bf16.mxu0 %v5820
    %8211 = vmatpush1.bf16.msra.mxu0 %v5819
    %8212 = vmatprep.subr.bf16.mxu0 %v5828
    %8213 = vmatpush1.bf16.msra.mxu0 %v5827
    %8214 = vmatprep.subr.bf16.mxu0 %v5836
    %8215 = vmatpush1.bf16.msra.mxu0 %v5835
    %8216 = vmatprep.subr.bf16.mxu0 %v5844
    %8217 = vmatpush1.bf16.msra.mxu0 %v5843
    %8218 = vmatprep.subr.bf16.mxu0 %v5852
    %8219 = vmatpush1.bf16.msra.mxu0 %v5851
    %8220 = vmatprep.subr.bf16.mxu0 %v5860
    %8221 = vmatpush1.bf16.msra.mxu0 %v5859
    %8222 = vmatprep.subr.bf16.mxu0 %v5868
    %8223 = vmatpush1.bf16.msra.mxu0 %v5867
    %8224 = vmatprep.subr.bf16.mxu0 %v5876
    %8225 = vmatpush1.bf16.msra.mxu0 %v5875
    %8226 = vmatprep.mubr.bf16.mxu0 %v1220
    %8227 = vmatmul.mubr.bf16.gmra.mrb[0].mxu0 %v1219
    %v8228 = vpop.f32.mrb[0].mxu0
    %v8229 = vadd.f32 %v8188, %v8228
    %v8230 = vpop.f32.mrb[0].mxu0
    %v8231 = vadd.f32 %v8190, %v8230
    %v8232 = vpop.f32.mrb[0].mxu0
    %v8233 = vpop.f32.mrb[0].mxu0
    %8234 = vdwg.mxu0
    %8235 = vmatprep.subr.bf16.mxu0 %v5884
    %8236 = vmatpush1.bf16.msra.mxu0 %v5883
    %8237 = vmatprep.subr.bf16.mxu0 %v5892
    %8238 = vmatpush1.bf16.msra.mxu0 %v5891
    %8239 = vmatprep.subr.bf16.mxu0 %v5900
    %8240 = vmatpush1.bf16.msra.mxu0 %v5899
    %8241 = vmatprep.subr.bf16.mxu0 %v5908
    %8242 = vmatpush1.bf16.msra.mxu0 %v5907
    %8243 = vmatprep.subr.bf16.mxu0 %v5916
    %8244 = vmatpush1.bf16.msra.mxu0 %v5915
    %8245 = vmatprep.subr.bf16.mxu0 %v5924
    %8246 = vmatpush1.bf16.msra.mxu0 %v5923
    %8247 = vmatprep.subr.bf16.mxu0 %v5932
    %8248 = vmatpush1.bf16.msra.mxu0 %v5931
    %8249 = vmatprep.subr.bf16.mxu0 %v5940
    %8250 = vmatpush1.bf16.msra.mxu0 %v5939
    %8251 = vmatprep.subr.bf16.mxu0 %v5948
    %8252 = vmatpush1.bf16.msra.mxu0 %v5947
    %8253 = vmatprep.subr.bf16.mxu0 %v5956
    %8254 = vmatpush1.bf16.msra.mxu0 %v5955
    %8255 = vmatprep.subr.bf16.mxu0 %v5964
    %8256 = vmatpush1.bf16.msra.mxu0 %v5963
    %8257 = vmatprep.subr.bf16.mxu0 %v5972
    %8258 = vmatpush1.bf16.msra.mxu0 %v5971
    %8259 = vmatprep.subr.bf16.mxu0 %v5980
    %8260 = vmatpush1.bf16.msra.mxu0 %v5979
    %8261 = vmatprep.subr.bf16.mxu0 %v5988
    %8262 = vmatpush1.bf16.msra.mxu0 %v5987
    %8263 = vmatprep.subr.bf16.mxu0 %v5996
    %8264 = vmatpush1.bf16.msra.mxu0 %v5995
    %8265 = vmatprep.subr.bf16.mxu0 %v6004
    %8266 = vmatpush1.bf16.msra.mxu0 %v6003
    %8267 = vmatprep.mubr.bf16.mxu0 %v1222
    %8268 = vmatmul.mubr.bf16.gmra.mrb[0].mxu0 %v1221
    %v8269 = vpop.f32.mrb[0].mxu0
    %v8270 = vadd.f32 %v8229, %v8269
    %v8271 = vpop.f32.mrb[0].mxu0
    %v8272 = vadd.f32 %v8231, %v8271
    %v8273 = vpop.f32.mrb[0].mxu0
    %v8274 = vpop.f32.mrb[0].mxu0
    %8275 = vdwg.mxu0
    %8276 = vmatprep.subr.bf16.mxu0 %v6012
    %8277 = vmatpush1.bf16.msra.mxu0 %v6011
    %8278 = vmatprep.subr.bf16.mxu0 %v6020
    %8279 = vmatpush1.bf16.msra.mxu0 %v6019
    %8280 = vmatprep.subr.bf16.mxu0 %v6028
    %8281 = vmatpush1.bf16.msra.mxu0 %v6027
    %8282 = vmatprep.subr.bf16.mxu0 %v6036
    %8283 = vmatpush1.bf16.msra.mxu0 %v6035
    %8284 = vmatprep.subr.bf16.mxu0 %v6044
    %8285 = vmatpush1.bf16.msra.mxu0 %v6043
    %8286 = vmatprep.subr.bf16.mxu0 %v6052
    %8287 = vmatpush1.bf16.msra.mxu0 %v6051
    %8288 = vmatprep.subr.bf16.mxu0 %v6060
    %8289 = vmatpush1.bf16.msra.mxu0 %v6059
    %8290 = vmatprep.subr.bf16.mxu0 %v6068
    %8291 = vmatpush1.bf16.msra.mxu0 %v6067
    %8292 = vmatprep.subr.bf16.mxu0 %v6076
    %8293 = vmatpush1.bf16.msra.mxu0 %v6075
    %8294 = vmatprep.subr.bf16.mxu0 %v6084
    %8295 = vmatpush1.bf16.msra.mxu0 %v6083
    %8296 = vmatprep.subr.bf16.mxu0 %v6092
    %8297 = vmatpush1.bf16.msra.mxu0 %v6091
    %8298 = vmatprep.subr.bf16.mxu0 %v6100
    %8299 = vmatpush1.bf16.msra.mxu0 %v6099
    %8300 = vmatprep.subr.bf16.mxu0 %v6108
    %8301 = vmatpush1.bf16.msra.mxu0 %v6107
    %8302 = vmatprep.subr.bf16.mxu0 %v6116
    %8303 = vmatpush1.bf16.msra.mxu0 %v6115
    %8304 = vmatprep.subr.bf16.mxu0 %v6124
    %8305 = vmatpush1.bf16.msra.mxu0 %v6123
    %8306 = vmatprep.subr.bf16.mxu0 %v6132
    %8307 = vmatpush1.bf16.msra.mxu0 %v6131
    %8308 = vmatprep.mubr.bf16.mxu0 %v1224
    %8309 = vmatmul.mubr.bf16.gmra.mrb[0].mxu0 %v1223
    %v8310 = vpop.f32.mrb[0].mxu0
    %v8311 = vadd.f32 %v8270, %v8310
    %v8312 = vpop.f32.mrb[0].mxu0
    %v8313 = vadd.f32 %v8272, %v8312
    %v8314 = vpop.f32.mrb[0].mxu0
    %v8315 = vpop.f32.mrb[0].mxu0
    %8316 = vdwg.mxu0
    %8317 = vmatprep.subr.bf16.mxu0 %v6140
    %8318 = vmatpush1.bf16.msra.mxu0 %v6139
    %8319 = vmatprep.subr.bf16.mxu0 %v6148
    %8320 = vmatpush1.bf16.msra.mxu0 %v6147
    %8321 = vmatprep.subr.bf16.mxu0 %v6156
    %8322 = vmatpush1.bf16.msra.mxu0 %v6155
    %8323 = vmatprep.subr.bf16.mxu0 %v6164
    %8324 = vmatpush1.bf16.msra.mxu0 %v6163
    %8325 = vmatprep.subr.bf16.mxu0 %v6172
    %8326 = vmatpush1.bf16.msra.mxu0 %v6171
    %8327 = vmatprep.subr.bf16.mxu0 %v6180
    %8328 = vmatpush1.bf16.msra.mxu0 %v6179
    %8329 = vmatprep.subr.bf16.mxu0 %v6188
    %8330 = vmatpush1.bf16.msra.mxu0 %v6187
    %8331 = vmatprep.subr.bf16.mxu0 %v6196
    %8332 = vmatpush1.bf16.msra.mxu0 %v6195
    %8333 = vmatprep.subr.bf16.mxu0 %v6204
    %8334 = vmatpush1.bf16.msra.mxu0 %v6203
    %8335 = vmatprep.subr.bf16.mxu0 %v6212
    %8336 = vmatpush1.bf16.msra.mxu0 %v6211
    %8337 = vmatprep.subr.bf16.mxu0 %v6220
    %8338 = vmatpush1.bf16.msra.mxu0 %v6219
    %8339 = vmatprep.subr.bf16.mxu0 %v6228
    %8340 = vmatpush1.bf16.msra.mxu0 %v6227
    %8341 = vmatprep.subr.bf16.mxu0 %v6236
    %8342 = vmatpush1.bf16.msra.mxu0 %v6235
    %8343 = vmatprep.subr.bf16.mxu0 %v6244
    %8344 = vmatpush1.bf16.msra.mxu0 %v6243
    %8345 = vmatprep.subr.bf16.mxu0 %v6252
    %8346 = vmatpush1.bf16.msra.mxu0 %v6251
    %8347 = vmatprep.subr.bf16.mxu0 %v6260
    %8348 = vmatpush1.bf16.msra.mxu0 %v6259
    %8349 = vmatprep.mubr.bf16.mxu0 %v1226
    %8350 = vmatmul.mubr.bf16.gmra.mrb[0].mxu0 %v1225
    %v8351 = vpop.f32.mrb[0].mxu0
    %v8352 = vadd.f32 %v8311, %v8351
    %v8353 = vpop.f32.mrb[0].mxu0
    %v8354 = vadd.f32 %v8313, %v8353
    %v8355 = vpop.f32.mrb[0].mxu0
    %v8356 = vpop.f32.mrb[0].mxu0
    %8357 = vdwg.mxu0
    %8358 = vmatprep.subr.bf16.mxu0 %v6268
    %8359 = vmatpush1.bf16.msra.mxu0 %v6267
    %8360 = vmatprep.subr.bf16.mxu0 %v6276
    %8361 = vmatpush1.bf16.msra.mxu0 %v6275
    %8362 = vmatprep.subr.bf16.mxu0 %v6284
    %8363 = vmatpush1.bf16.msra.mxu0 %v6283
    %8364 = vmatprep.subr.bf16.mxu0 %v6292
    %8365 = vmatpush1.bf16.msra.mxu0 %v6291
    %8366 = vmatprep.subr.bf16.mxu0 %v6300
    %8367 = vmatpush1.bf16.msra.mxu0 %v6299
    %8368 = vmatprep.subr.bf16.mxu0 %v6308
    %8369 = vmatpush1.bf16.msra.mxu0 %v6307
    %8370 = vmatprep.subr.bf16.mxu0 %v6316
    %8371 = vmatpush1.bf16.msra.mxu0 %v6315
    %8372 = vmatprep.subr.bf16.mxu0 %v6324
    %8373 = vmatpush1.bf16.msra.mxu0 %v6323
    %8374 = vmatprep.subr.bf16.mxu0 %v6332
    %8375 = vmatpush1.bf16.msra.mxu0 %v6331
    %8376 = vmatprep.subr.bf16.mxu0 %v6340
    %8377 = vmatpush1.bf16.msra.mxu0 %v6339
    %8378 = vmatprep.subr.bf16.mxu0 %v6348
    %8379 = vmatpush1.bf16.msra.mxu0 %v6347
    %8380 = vmatprep.subr.bf16.mxu0 %v6356
    %8381 = vmatpush1.bf16.msra.mxu0 %v6355
    %8382 = vmatprep.subr.bf16.mxu0 %v6364
    %8383 = vmatpush1.bf16.msra.mxu0 %v6363
    %8384 = vmatprep.subr.bf16.mxu0 %v6372
    %8385 = vmatpush1.bf16.msra.mxu0 %v6371
    %8386 = vmatprep.subr.bf16.mxu0 %v6380
    %8387 = vmatpush1.bf16.msra.mxu0 %v6379
    %8388 = vmatprep.subr.bf16.mxu0 %v6388
    %8389 = vmatpush1.bf16.msra.mxu0 %v6387
    %8390 = vmatprep.mubr.bf16.mxu0 %v1228
    %8391 = vmatmul.mubr.bf16.gmra.mrb[0].mxu0 %v1227
    %v8392 = vpop.f32.mrb[0].mxu0
    %v8393 = vadd.f32 %v8352, %v8392
    %v8394 = vpop.f32.mrb[0].mxu0
    %v8395 = vadd.f32 %v8354, %v8394
    %v8396 = vpop.f32.mrb[0].mxu0
    %v8397 = vpop.f32.mrb[0].mxu0
    %8398 = vdwg.mxu0
    %8399 = vmatprep.subr.bf16.mxu0 %v5374
    %8400 = vmatpush1.bf16.msra.mxu0 %v5373
    %8401 = vmatprep.subr.bf16.mxu0 %v5382
    %8402 = vmatpush1.bf16.msra.mxu0 %v5381
    %8403 = vmatprep.subr.bf16.mxu0 %v5390
    %8404 = vmatpush1.bf16.msra.mxu0 %v5389
    %8405 = vmatprep.subr.bf16.mxu0 %v5398
    %8406 = vmatpush1.bf16.msra.mxu0 %v5397
    %8407 = vmatprep.subr.bf16.mxu0 %v5406
    %8408 = vmatpush1.bf16.msra.mxu0 %v5405
    %8409 = vmatprep.subr.bf16.mxu0 %v5414
    %8410 = vmatpush1.bf16.msra.mxu0 %v5413
    %8411 = vmatprep.subr.bf16.mxu0 %v5422
    %8412 = vmatpush1.bf16.msra.mxu0 %v5421
    %8413 = vmatprep.subr.bf16.mxu0 %v5430
    %8414 = vmatpush1.bf16.msra.mxu0 %v5429
    %8415 = vmatprep.subr.bf16.mxu0 %v5438
    %8416 = vmatpush1.bf16.msra.mxu0 %v5437
    %8417 = vmatprep.subr.bf16.mxu0 %v5446
    %8418 = vmatpush1.bf16.msra.mxu0 %v5445
    %8419 = vmatprep.subr.bf16.mxu0 %v5454
    %8420 = vmatpush1.bf16.msra.mxu0 %v5453
    %8421 = vmatprep.subr.bf16.mxu0 %v5462
    %8422 = vmatpush1.bf16.msra.mxu0 %v5461
    %8423 = vmatprep.subr.bf16.mxu0 %v5470
    %8424 = vmatpush1.bf16.msra.mxu0 %v5469
    %8425 = vmatprep.subr.bf16.mxu0 %v5478
    %8426 = vmatpush1.bf16.msra.mxu0 %v5477
    %8427 = vmatprep.subr.bf16.mxu0 %v5486
    %8428 = vmatpush1.bf16.msra.mxu0 %v5485
    %8429 = vmatprep.subr.bf16.mxu0 %v5494
    %8430 = vmatpush1.bf16.msra.mxu0 %v5493
    %8431 = vmatprep.mubr.bf16.mxu0 %v1214
    %8432 = vmatmul.mubr.bf16.gmra.mrb[0].mxu0 %v1213
    %v8433 = vpop.f32.mrb[0].mxu0
    %v8434 = vadd.f32 %v2282, %v8433
    %v8435 = vpop.f32.mrb[0].mxu0
    %v8436 = vadd.f32 %v2286, %v8435
    %v8437 = vpop.f32.mrb[0].mxu0
    %v8438 = vpop.f32.mrb[0].mxu0
    %8439 = vdwg.mxu0
    %8440 = vmatprep.subr.bf16.mxu0 %v5502
    %8441 = vmatpush1.bf16.msra.mxu0 %v5501
    %8442 = vmatprep.subr.bf16.mxu0 %v5510
    %8443 = vmatpush1.bf16.msra.mxu0 %v5509
    %8444 = vmatprep.subr.bf16.mxu0 %v5518
    %8445 = vmatpush1.bf16.msra.mxu0 %v5517
    %8446 = vmatprep.subr.bf16.mxu0 %v5526
    %8447 = vmatpush1.bf16.msra.mxu0 %v5525
    %8448 = vmatprep.subr.bf16.mxu0 %v5534
    %8449 = vmatpush1.bf16.msra.mxu0 %v5533
    %8450 = vmatprep.subr.bf16.mxu0 %v5542
    %8451 = vmatpush1.bf16.msra.mxu0 %v5541
    %8452 = vmatprep.subr.bf16.mxu0 %v5550
    %8453 = vmatpush1.bf16.msra.mxu0 %v5549
    %8454 = vmatprep.subr.bf16.mxu0 %v5558
    %8455 = vmatpush1.bf16.msra.mxu0 %v5557
    %8456 = vmatprep.subr.bf16.mxu0 %v5566
    %8457 = vmatpush1.bf16.msra.mxu0 %v5565
    %8458 = vmatprep.subr.bf16.mxu0 %v5574
    %8459 = vmatpush1.bf16.msra.mxu0 %v5573
    %8460 = vmatprep.subr.bf16.mxu0 %v5582
    %8461 = vmatpush1.bf16.msra.mxu0 %v5581
    %8462 = vmatprep.subr.bf16.mxu0 %v5590
    %8463 = vmatpush1.bf16.msra.mxu0 %v5589
    %8464 = vmatprep.subr.bf16.mxu0 %v5598
    %8465 = vmatpush1.bf16.msra.mxu0 %v5597
    %8466 = vmatprep.subr.bf16.mxu0 %v5606
    %8467 = vmatpush1.bf16.msra.mxu0 %v5605
    %8468 = vmatprep.subr.bf16.mxu0 %v5614
    %8469 = vmatpush1.bf16.msra.mxu0 %v5613
    %8470 = vmatprep.subr.bf16.mxu0 %v5622
    %8471 = vmatpush1.bf16.msra.mxu0 %v5621
    %8472 = vmatprep.mubr.bf16.mxu0 %v1216
    %8473 = vmatmul.mubr.bf16.gmra.mrb[0].mxu0 %v1215
    %v8474 = vpop.f32.mrb[0].mxu0
    %v8475 = vadd.f32 %v8434, %v8474
    %v8476 = vpop.f32.mrb[0].mxu0
    %v8477 = vadd.f32 %v8436, %v8476
    %v8478 = vpop.f32.mrb[0].mxu0
    %v8479 = vpop.f32.mrb[0].mxu0
    %8480 = vdwg.mxu0
    %8481 = vmatprep.subr.bf16.mxu0 %v5630
    %8482 = vmatpush1.bf16.msra.mxu0 %v5629
    %8483 = vmatprep.subr.bf16.mxu0 %v5638
    %8484 = vmatpush1.bf16.msra.mxu0 %v5637
    %8485 = vmatprep.subr.bf16.mxu0 %v5646
    %8486 = vmatpush1.bf16.msra.mxu0 %v5645
    %8487 = vmatprep.subr.bf16.mxu0 %v5654
    %8488 = vmatpush1.bf16.msra.mxu0 %v5653
    %8489 = vmatprep.subr.bf16.mxu0 %v5662
    %8490 = vmatpush1.bf16.msra.mxu0 %v5661
    %8491 = vmatprep.subr.bf16.mxu0 %v5670
    %8492 = vmatpush1.bf16.msra.mxu0 %v5669
    %8493 = vmatprep.subr.bf16.mxu0 %v5678
    %8494 = vmatpush1.bf16.msra.mxu0 %v5677
    %8495 = vmatprep.subr.bf16.mxu0 %v5686
    %8496 = vmatpush1.bf16.msra.mxu0 %v5685
    %8497 = vmatprep.subr.bf16.mxu0 %v5694
    %8498 = vmatpush1.bf16.msra.mxu0 %v5693
    %8499 = vmatprep.subr.bf16.mxu0 %v5702
    %8500 = vmatpush1.bf16.msra.mxu0 %v5701
    %8501 = vmatprep.subr.bf16.mxu0 %v5710
    %8502 = vmatpush1.bf16.msra.mxu0 %v5709
    %8503 = vmatprep.subr.bf16.mxu0 %v5718
    %8504 = vmatpush1.bf16.msra.mxu0 %v5717
    %8505 = vmatprep.subr.bf16.mxu0 %v5726
    %8506 = vmatpush1.bf16.msra.mxu0 %v5725
    %8507 = vmatprep.subr.bf16.mxu0 %v5734
    %8508 = vmatpush1.bf16.msra.mxu0 %v5733
    %8509 = vmatprep.subr.bf16.mxu0 %v5742
    %8510 = vmatpush1.bf16.msra.mxu0 %v5741
    %8511 = vmatprep.subr.bf16.mxu0 %v5750
    %8512 = vmatpush1.bf16.msra.mxu0 %v5749
    %8513 = vmatprep.mubr.bf16.mxu0 %v1218
    %8514 = vmatmul.mubr.bf16.gmra.mrb[0].mxu0 %v1217
    %v8515 = vpop.f32.mrb[0].mxu0
    %v8516 = vadd.f32 %v8475, %v8515
    %v8517 = vpop.f32.mrb[0].mxu0
    %v8518 = vadd.f32 %v8477, %v8517
    %v8519 = vpop.f32.mrb[0].mxu0
    %v8520 = vpop.f32.mrb[0].mxu0
    %8521 = vdwg.mxu0
    %8522 = vmatprep.subr.bf16.mxu0 %v5758
    %8523 = vmatpush1.bf16.msra.mxu0 %v5757
    %8524 = vmatprep.subr.bf16.mxu0 %v5766
    %8525 = vmatpush1.bf16.msra.mxu0 %v5765
    %8526 = vmatprep.subr.bf16.mxu0 %v5774
    %8527 = vmatpush1.bf16.msra.mxu0 %v5773
    %8528 = vmatprep.subr.bf16.mxu0 %v5782
    %8529 = vmatpush1.bf16.msra.mxu0 %v5781
    %8530 = vmatprep.subr.bf16.mxu0 %v5790
    %8531 = vmatpush1.bf16.msra.mxu0 %v5789
    %8532 = vmatprep.subr.bf16.mxu0 %v5798
    %8533 = vmatpush1.bf16.msra.mxu0 %v5797
    %8534 = vmatprep.subr.bf16.mxu0 %v5806
    %8535 = vmatpush1.bf16.msra.mxu0 %v5805
    %8536 = vmatprep.subr.bf16.mxu0 %v5814
    %8537 = vmatpush1.bf16.msra.mxu0 %v5813
    %8538 = vmatprep.subr.bf16.mxu0 %v5822
    %8539 = vmatpush1.bf16.msra.mxu0 %v5821
    %8540 = vmatprep.subr.bf16.mxu0 %v5830
    %8541 = vmatpush1.bf16.msra.mxu0 %v5829
    %8542 = vmatprep.subr.bf16.mxu0 %v5838
    %8543 = vmatpush1.bf16.msra.mxu0 %v5837
    %8544 = vmatprep.subr.bf16.mxu0 %v5846
    %8545 = vmatpush1.bf16.msra.mxu0 %v5845
    %8546 = vmatprep.subr.bf16.mxu0 %v5854
    %8547 = vmatpush1.bf16.msra.mxu0 %v5853
    %8548 = vmatprep.subr.bf16.mxu0 %v5862
    %8549 = vmatpush1.bf16.msra.mxu0 %v5861
    %8550 = vmatprep.subr.bf16.mxu0 %v5870
    %8551 = vmatpush1.bf16.msra.mxu0 %v5869
    %8552 = vmatprep.subr.bf16.mxu0 %v5878
    %8553 = vmatpush1.bf16.msra.mxu0 %v5877
    %8554 = vmatprep.mubr.bf16.mxu0 %v1220
    %8555 = vmatmul.mubr.bf16.gmra.mrb[0].mxu0 %v1219
    %v8556 = vpop.f32.mrb[0].mxu0
    %v8557 = vadd.f32 %v8516, %v8556
    %v8558 = vpop.f32.mrb[0].mxu0
    %v8559 = vadd.f32 %v8518, %v8558
    %v8560 = vpop.f32.mrb[0].mxu0
    %v8561 = vpop.f32.mrb[0].mxu0
    %8562 = vdwg.mxu0
    %8563 = vmatprep.subr.bf16.mxu0 %v5886
    %8564 = vmatpush1.bf16.msra.mxu0 %v5885
    %8565 = vmatprep.subr.bf16.mxu0 %v5894
    %8566 = vmatpush1.bf16.msra.mxu0 %v5893
    %8567 = vmatprep.subr.bf16.mxu0 %v5902
    %8568 = vmatpush1.bf16.msra.mxu0 %v5901
    %8569 = vmatprep.subr.bf16.mxu0 %v5910
    %8570 = vmatpush1.bf16.msra.mxu0 %v5909
    %8571 = vmatprep.subr.bf16.mxu0 %v5918
    %8572 = vmatpush1.bf16.msra.mxu0 %v5917
    %8573 = vmatprep.subr.bf16.mxu0 %v5926
    %8574 = vmatpush1.bf16.msra.mxu0 %v5925
    %8575 = vmatprep.subr.bf16.mxu0 %v5934
    %8576 = vmatpush1.bf16.msra.mxu0 %v5933
    %8577 = vmatprep.subr.bf16.mxu0 %v5942
    %8578 = vmatpush1.bf16.msra.mxu0 %v5941
    %8579 = vmatprep.subr.bf16.mxu0 %v5950
    %8580 = vmatpush1.bf16.msra.mxu0 %v5949
    %8581 = vmatprep.subr.bf16.mxu0 %v5958
    %8582 = vmatpush1.bf16.msra.mxu0 %v5957
    %8583 = vmatprep.subr.bf16.mxu0 %v5966
    %8584 = vmatpush1.bf16.msra.mxu0 %v5965
    %8585 = vmatprep.subr.bf16.mxu0 %v5974
    %8586 = vmatpush1.bf16.msra.mxu0 %v5973
    %8587 = vmatprep.subr.bf16.mxu0 %v5982
    %8588 = vmatpush1.bf16.msra.mxu0 %v5981
    %8589 = vmatprep.subr.bf16.mxu0 %v5990
    %8590 = vmatpush1.bf16.msra.mxu0 %v5989
    %8591 = vmatprep.subr.bf16.mxu0 %v5998
    %8592 = vmatpush1.bf16.msra.mxu0 %v5997
    %8593 = vmatprep.subr.bf16.mxu0 %v6006
    %8594 = vmatpush1.bf16.msra.mxu0 %v6005
    %8595 = vmatprep.mubr.bf16.mxu0 %v1222
    %8596 = vmatmul.mubr.bf16.gmra.mrb[0].mxu0 %v1221
    %v8597 = vpop.f32.mrb[0].mxu0
    %v8598 = vadd.f32 %v8557, %v8597
    %v8599 = vpop.f32.mrb[0].mxu0
    %v8600 = vadd.f32 %v8559, %v8599
    %v8601 = vpop.f32.mrb[0].mxu0
    %v8602 = vpop.f32.mrb[0].mxu0
    %8603 = vdwg.mxu0
    %8604 = vmatprep.subr.bf16.mxu0 %v6014
    %8605 = vmatpush1.bf16.msra.mxu0 %v6013
    %8606 = vmatprep.subr.bf16.mxu0 %v6022
    %8607 = vmatpush1.bf16.msra.mxu0 %v6021
    %8608 = vmatprep.subr.bf16.mxu0 %v6030
    %8609 = vmatpush1.bf16.msra.mxu0 %v6029
    %8610 = vmatprep.subr.bf16.mxu0 %v6038
    %8611 = vmatpush1.bf16.msra.mxu0 %v6037
    %8612 = vmatprep.subr.bf16.mxu0 %v6046
    %8613 = vmatpush1.bf16.msra.mxu0 %v6045
    %8614 = vmatprep.subr.bf16.mxu0 %v6054
    %8615 = vmatpush1.bf16.msra.mxu0 %v6053
    %8616 = vmatprep.subr.bf16.mxu0 %v6062
    %8617 = vmatpush1.bf16.msra.mxu0 %v6061
    %8618 = vmatprep.subr.bf16.mxu0 %v6070
    %8619 = vmatpush1.bf16.msra.mxu0 %v6069
    %8620 = vmatprep.subr.bf16.mxu0 %v6078
    %8621 = vmatpush1.bf16.msra.mxu0 %v6077
    %8622 = vmatprep.subr.bf16.mxu0 %v6086
    %8623 = vmatpush1.bf16.msra.mxu0 %v6085
    %8624 = vmatprep.subr.bf16.mxu0 %v6094
    %8625 = vmatpush1.bf16.msra.mxu0 %v6093
    %8626 = vmatprep.subr.bf16.mxu0 %v6102
    %8627 = vmatpush1.bf16.msra.mxu0 %v6101
    %8628 = vmatprep.subr.bf16.mxu0 %v6110
    %8629 = vmatpush1.bf16.msra.mxu0 %v6109
    %8630 = vmatprep.subr.bf16.mxu0 %v6118
    %8631 = vmatpush1.bf16.msra.mxu0 %v6117
    %8632 = vmatprep.subr.bf16.mxu0 %v6126
    %8633 = vmatpush1.bf16.msra.mxu0 %v6125
    %8634 = vmatprep.subr.bf16.mxu0 %v6134
    %8635 = vmatpush1.bf16.msra.mxu0 %v6133
    %8636 = vmatprep.mubr.bf16.mxu0 %v1224
    %8637 = vmatmul.mubr.bf16.gmra.mrb[0].mxu0 %v1223
    %v8638 = vpop.f32.mrb[0].mxu0
    %v8639 = vadd.f32 %v8598, %v8638
    %v8640 = vpop.f32.mrb[0].mxu0
    %v8641 = vadd.f32 %v8600, %v8640
    %v8642 = vpop.f32.mrb[0].mxu0
    %v8643 = vpop.f32.mrb[0].mxu0
    %8644 = vdwg.mxu0
    %8645 = vmatprep.subr.bf16.mxu0 %v6142
    %8646 = vmatpush1.bf16.msra.mxu0 %v6141
    %8647 = vmatprep.subr.bf16.mxu0 %v6150
    %8648 = vmatpush1.bf16.msra.mxu0 %v6149
    %8649 = vmatprep.subr.bf16.mxu0 %v6158
    %8650 = vmatpush1.bf16.msra.mxu0 %v6157
    %8651 = vmatprep.subr.bf16.mxu0 %v6166
    %8652 = vmatpush1.bf16.msra.mxu0 %v6165
    %8653 = vmatprep.subr.bf16.mxu0 %v6174
    %8654 = vmatpush1.bf16.msra.mxu0 %v6173
    %8655 = vmatprep.subr.bf16.mxu0 %v6182
    %8656 = vmatpush1.bf16.msra.mxu0 %v6181
    %8657 = vmatprep.subr.bf16.mxu0 %v6190
    %8658 = vmatpush1.bf16.msra.mxu0 %v6189
    %8659 = vmatprep.subr.bf16.mxu0 %v6198
    %8660 = vmatpush1.bf16.msra.mxu0 %v6197
    %8661 = vmatprep.subr.bf16.mxu0 %v6206
    %8662 = vmatpush1.bf16.msra.mxu0 %v6205
    %8663 = vmatprep.subr.bf16.mxu0 %v6214
    %8664 = vmatpush1.bf16.msra.mxu0 %v6213
    %8665 = vmatprep.subr.bf16.mxu0 %v6222
    %8666 = vmatpush1.bf16.msra.mxu0 %v6221
    %8667 = vmatprep.subr.bf16.mxu0 %v6230
    %8668 = vmatpush1.bf16.msra.mxu0 %v6229
    %8669 = vmatprep.subr.bf16.mxu0 %v6238
    %8670 = vmatpush1.bf16.msra.mxu0 %v6237
    %8671 = vmatprep.subr.bf16.mxu0 %v6246
    %8672 = vmatpush1.bf16.msra.mxu0 %v6245
    %8673 = vmatprep.subr.bf16.mxu0 %v6254
    %8674 = vmatpush1.bf16.msra.mxu0 %v6253
    %8675 = vmatprep.subr.bf16.mxu0 %v6262
    %8676 = vmatpush1.bf16.msra.mxu0 %v6261
    %8677 = vmatprep.mubr.bf16.mxu0 %v1226
    %8678 = vmatmul.mubr.bf16.gmra.mrb[0].mxu0 %v1225
    %v8679 = vpop.f32.mrb[0].mxu0
    %v8680 = vadd.f32 %v8639, %v8679
    %v8681 = vpop.f32.mrb[0].mxu0
    %v8682 = vadd.f32 %v8641, %v8681
    %v8683 = vpop.f32.mrb[0].mxu0
    %v8684 = vpop.f32.mrb[0].mxu0
    %8685 = vdwg.mxu0
    %8686 = vmatprep.subr.bf16.mxu0 %v6270
    %8687 = vmatpush1.bf16.msra.mxu0 %v6269
    %8688 = vmatprep.subr.bf16.mxu0 %v6278
    %8689 = vmatpush1.bf16.msra.mxu0 %v6277
    %8690 = vmatprep.subr.bf16.mxu0 %v6286
    %8691 = vmatpush1.bf16.msra.mxu0 %v6285
    %8692 = vmatprep.subr.bf16.mxu0 %v6294
    %8693 = vmatpush1.bf16.msra.mxu0 %v6293
    %8694 = vmatprep.subr.bf16.mxu0 %v6302
    %8695 = vmatpush1.bf16.msra.mxu0 %v6301
    %8696 = vmatprep.subr.bf16.mxu0 %v6310
    %8697 = vmatpush1.bf16.msra.mxu0 %v6309
    %8698 = vmatprep.subr.bf16.mxu0 %v6318
    %8699 = vmatpush1.bf16.msra.mxu0 %v6317
    %8700 = vmatprep.subr.bf16.mxu0 %v6326
    %8701 = vmatpush1.bf16.msra.mxu0 %v6325
    %8702 = vmatprep.subr.bf16.mxu0 %v6334
    %8703 = vmatpush1.bf16.msra.mxu0 %v6333
    %8704 = vmatprep.subr.bf16.mxu0 %v6342
    %8705 = vmatpush1.bf16.msra.mxu0 %v6341
    %8706 = vmatprep.subr.bf16.mxu0 %v6350
    %8707 = vmatpush1.bf16.msra.mxu0 %v6349
    %8708 = vmatprep.subr.bf16.mxu0 %v6358
    %8709 = vmatpush1.bf16.msra.mxu0 %v6357
    %8710 = vmatprep.subr.bf16.mxu0 %v6366
    %8711 = vmatpush1.bf16.msra.mxu0 %v6365
    %8712 = vmatprep.subr.bf16.mxu0 %v6374
    %8713 = vmatpush1.bf16.msra.mxu0 %v6373
    %8714 = vmatprep.subr.bf16.mxu0 %v6382
    %8715 = vmatpush1.bf16.msra.mxu0 %v6381
    %8716 = vmatprep.subr.bf16.mxu0 %v6390
    %8717 = vmatpush1.bf16.msra.mxu0 %v6389
    %8718 = vmatprep.mubr.bf16.mxu0 %v1228
    %8719 = vmatmul.mubr.bf16.gmra.mrb[0].mxu0 %v1227
    %v8720 = vpop.f32.mrb[0].mxu0
    %v8721 = vadd.f32 %v8680, %v8720
    %v8722 = vpop.f32.mrb[0].mxu0
    %v8723 = vadd.f32 %v8682, %v8722
    %v8724 = vpop.f32.mrb[0].mxu0
    %v8725 = vpop.f32.mrb[0].mxu0
    %8726 = vdwg.mxu0
    %v8727 = vmax.f32 %v7737, 0.0
    %v8728 = vmax.f32 %v7739, 0.0
    %v8729 = vmax.f32 %v8065, 0.0
    %v8730 = vmax.f32 %v8067, 0.0
    %v8731 = vmax.f32 %v8393, 0.0
    %v8732 = vmax.f32 %v8395, 0.0
    %v8733 = vmax.f32 %v8721, 0.0
    %v8734 = vmax.f32 %v8723, 0.0
    %v8735 = vpack.c.bf16 %v8727, %v8727
    %v8736 = vpack.c.bf16 %v8728, %v8728
    %v8737 = vpack.c.bf16 %v8729, %v8729
    %v8738 = vpack.c.bf16 %v8730, %v8730
    %v8739 = vpack.c.bf16 %v8731, %v8731
    %v8740 = vpack.c.bf16 %v8732, %v8732
    %v8741 = vpack.c.bf16 %v8733, %v8733
    %v8742 = vpack.c.bf16 %v8734, %v8734
    %v8743 = vld [vmem:[#allocation11] sm:$0xf]
    %v8744 = vld [vmem:[#allocation11 + $0x4] sm:$0xf]
    %v8745 = vld [vmem:[#allocation11 + $0x8] sm:$0xf]
    %v8746 = vld [vmem:[#allocation11 + $0xc] sm:$0xf]
    %v8747 = vld [vmem:[#allocation11 + $0x10] sm:$0xf]
    %v8748 = vld [vmem:[#allocation11 + $0x14] sm:$0xf]
    %v8749 = vld [vmem:[#allocation11 + $0x18] sm:$0xf]
    %v8750 = vld [vmem:[#allocation11 + $0x1c] sm:$0xf]
    %v8751 = vld [vmem:[#allocation11 + $0x20] sm:$0xf]
    %v8752 = vld [vmem:[#allocation11 + $0x24] sm:$0xf]
    %v8753 = vld [vmem:[#allocation11 + $0x28] sm:$0xf]
    %v8754 = vld [vmem:[#allocation11 + $0x2c] sm:$0xf]
    %v8755 = vld [vmem:[#allocation11 + $0x30] sm:$0xf]
    %v8756 = vld [vmem:[#allocation11 + $0x34] sm:$0xf]
    %v8757 = vld [vmem:[#allocation11 + $0x38] sm:$0xf]
    %v8758 = vld [vmem:[#allocation11 + $0x3c] sm:$0xf]
    %v8759 = vld [vmem:[#allocation11 + $0x40] sm:$0xf]
    %v8760 = vld [vmem:[#allocation11 + $0x44] sm:$0xf]
    %v8761 = vld [vmem:[#allocation11 + $0x48] sm:$0xf]
    %v8762 = vld [vmem:[#allocation11 + $0x4c] sm:$0xf]
    %v8763 = vld [vmem:[#allocation11 + $0x50] sm:$0xf]
    %v8764 = vld [vmem:[#allocation11 + $0x54] sm:$0xf]
    %v8765 = vld [vmem:[#allocation11 + $0x58] sm:$0xf]
    %v8766 = vld [vmem:[#allocation11 + $0x5c] sm:$0xf]
    %v8767 = vld [vmem:[#allocation11 + $0x60] sm:$0xf]
    %v8768 = vld [vmem:[#allocation11 + $0x64] sm:$0xf]
    %v8769 = vld [vmem:[#allocation11 + $0x68] sm:$0xf]
    %v8770 = vld [vmem:[#allocation11 + $0x6c] sm:$0xf]
    %v8771 = vld [vmem:[#allocation11 + $0x70] sm:$0xf]
    %v8772 = vld [vmem:[#allocation11 + $0x74] sm:$0xf]
    %v8773 = vld [vmem:[#allocation11 + $0x78] sm:$0xf]
    %v8774 = vld [vmem:[#allocation11 + $0x7c] sm:$0xf]
    %v8775 = vld [vmem:[#allocation11 + $0x80] sm:$0xf]
    %v8776 = vld [vmem:[#allocation11 + $0x84] sm:$0xf]
    %v8777 = vld [vmem:[#allocation11 + $0x88] sm:$0xf]
    %v8778 = vld [vmem:[#allocation11 + $0x8c] sm:$0xf]
    %v8779 = vld [vmem:[#allocation11 + $0x90] sm:$0xf]
    %v8780 = vld [vmem:[#allocation11 + $0x94] sm:$0xf]
    %v8781 = vld [vmem:[#allocation11 + $0x98] sm:$0xf]
    %v8782 = vld [vmem:[#allocation11 + $0x9c] sm:$0xf]
    %v8783 = vld [vmem:[#allocation11 + $0xa0] sm:$0xf]
    %v8784 = vld [vmem:[#allocation11 + $0xa4] sm:$0xf]
    %v8785 = vld [vmem:[#allocation11 + $0xa8] sm:$0xf]
    %v8786 = vld [vmem:[#allocation11 + $0xac] sm:$0xf]
    %v8787 = vld [vmem:[#allocation11 + $0xb0] sm:$0xf]
    %v8788 = vld [vmem:[#allocation11 + $0xb4] sm:$0xf]
    %v8789 = vld [vmem:[#allocation11 + $0xb8] sm:$0xf]
    %v8790 = vld [vmem:[#allocation11 + $0xbc] sm:$0xf]
    %v8791 = vld [vmem:[#allocation11 + $0xc0] sm:$0xf]
    %v8792 = vld [vmem:[#allocation11 + $0xc4] sm:$0xf]
    %v8793 = vld [vmem:[#allocation11 + $0xc8] sm:$0xf]
    %v8794 = vld [vmem:[#allocation11 + $0xcc] sm:$0xf]
    %v8795 = vld [vmem:[#allocation11 + $0xd0] sm:$0xf]
    %v8796 = vld [vmem:[#allocation11 + $0xd4] sm:$0xf]
    %v8797 = vld [vmem:[#allocation11 + $0xd8] sm:$0xf]
    %v8798 = vld [vmem:[#allocation11 + $0xdc] sm:$0xf]
    %v8799 = vld [vmem:[#allocation11 + $0xe0] sm:$0xf]
    %v8800 = vld [vmem:[#allocation11 + $0xe4] sm:$0xf]
    %v8801 = vld [vmem:[#allocation11 + $0xe8] sm:$0xf]
    %v8802 = vld [vmem:[#allocation11 + $0xec] sm:$0xf]
    %v8803 = vld [vmem:[#allocation11 + $0xf0] sm:$0xf]
    %v8804 = vld [vmem:[#allocation11 + $0xf4] sm:$0xf]
    %v8805 = vld [vmem:[#allocation11 + $0xf8] sm:$0xf]
    %v8806 = vld [vmem:[#allocation11 + $0xfc] sm:$0xf]
    %v8807 = vld [vmem:[#allocation11 + $0x100] sm:$0xf]
    %v8808 = vld [vmem:[#allocation11 + $0x104] sm:$0xf]
    %v8809 = vld [vmem:[#allocation11 + $0x108] sm:$0xf]
    %v8810 = vld [vmem:[#allocation11 + $0x10c] sm:$0xf]
    %v8811 = vld [vmem:[#allocation11 + $0x110] sm:$0xf]
    %v8812 = vld [vmem:[#allocation11 + $0x114] sm:$0xf]
    %v8813 = vld [vmem:[#allocation11 + $0x118] sm:$0xf]
    %v8814 = vld [vmem:[#allocation11 + $0x11c] sm:$0xf]
    %v8815 = vld [vmem:[#allocation11 + $0x120] sm:$0xf]
    %v8816 = vld [vmem:[#allocation11 + $0x124] sm:$0xf]
    %v8817 = vld [vmem:[#allocation11 + $0x128] sm:$0xf]
    %v8818 = vld [vmem:[#allocation11 + $0x12c] sm:$0xf]
    %v8819 = vld [vmem:[#allocation11 + $0x130] sm:$0xf]
    %v8820 = vld [vmem:[#allocation11 + $0x134] sm:$0xf]
    %v8821 = vld [vmem:[#allocation11 + $0x138] sm:$0xf]
    %v8822 = vld [vmem:[#allocation11 + $0x13c] sm:$0xf]
    %v8823 = vld [vmem:[#allocation11 + $0x140] sm:$0xf]
    %v8824 = vld [vmem:[#allocation11 + $0x144] sm:$0xf]
    %v8825 = vld [vmem:[#allocation11 + $0x148] sm:$0xf]
    %v8826 = vld [vmem:[#allocation11 + $0x14c] sm:$0xf]
    %v8827 = vld [vmem:[#allocation11 + $0x150] sm:$0xf]
    %v8828 = vld [vmem:[#allocation11 + $0x154] sm:$0xf]
    %v8829 = vld [vmem:[#allocation11 + $0x158] sm:$0xf]
    %v8830 = vld [vmem:[#allocation11 + $0x15c] sm:$0xf]
    %v8831 = vld [vmem:[#allocation11 + $0x160] sm:$0xf]
    %v8832 = vld [vmem:[#allocation11 + $0x164] sm:$0xf]
    %v8833 = vld [vmem:[#allocation11 + $0x168] sm:$0xf]
    %v8834 = vld [vmem:[#allocation11 + $0x16c] sm:$0xf]
    %v8835 = vld [vmem:[#allocation11 + $0x170] sm:$0xf]
    %v8836 = vld [vmem:[#allocation11 + $0x174] sm:$0xf]
    %v8837 = vld [vmem:[#allocation11 + $0x178] sm:$0xf]
    %v8838 = vld [vmem:[#allocation11 + $0x17c] sm:$0xf]
    %v8839 = vld [vmem:[#allocation11 + $0x180] sm:$0xf]
    %v8840 = vld [vmem:[#allocation11 + $0x184] sm:$0xf]
    %v8841 = vld [vmem:[#allocation11 + $0x188] sm:$0xf]
    %v8842 = vld [vmem:[#allocation11 + $0x18c] sm:$0xf]
    %v8843 = vld [vmem:[#allocation11 + $0x190] sm:$0xf]
    %v8844 = vld [vmem:[#allocation11 + $0x194] sm:$0xf]
    %v8845 = vld [vmem:[#allocation11 + $0x198] sm:$0xf]
    %v8846 = vld [vmem:[#allocation11 + $0x19c] sm:$0xf]
    %v8847 = vld [vmem:[#allocation11 + $0x1a0] sm:$0xf]
    %v8848 = vld [vmem:[#allocation11 + $0x1a4] sm:$0xf]
    %v8849 = vld [vmem:[#allocation11 + $0x1a8] sm:$0xf]
    %v8850 = vld [vmem:[#allocation11 + $0x1ac] sm:$0xf]
    %v8851 = vld [vmem:[#allocation11 + $0x1b0] sm:$0xf]
    %v8852 = vld [vmem:[#allocation11 + $0x1b4] sm:$0xf]
    %v8853 = vld [vmem:[#allocation11 + $0x1b8] sm:$0xf]
    %v8854 = vld [vmem:[#allocation11 + $0x1bc] sm:$0xf]
    %v8855 = vld [vmem:[#allocation11 + $0x1c0] sm:$0xf]
    %v8856 = vld [vmem:[#allocation11 + $0x1c4] sm:$0xf]
    %v8857 = vld [vmem:[#allocation11 + $0x1c8] sm:$0xf]
    %v8858 = vld [vmem:[#allocation11 + $0x1cc] sm:$0xf]
    %v8859 = vld [vmem:[#allocation11 + $0x1d0] sm:$0xf]
    %v8860 = vld [vmem:[#allocation11 + $0x1d4] sm:$0xf]
    %v8861 = vld [vmem:[#allocation11 + $0x1d8] sm:$0xf]
    %v8862 = vld [vmem:[#allocation11 + $0x1dc] sm:$0xf]
    %v8863 = vld [vmem:[#allocation11 + $0x1e0] sm:$0xf]
    %v8864 = vld [vmem:[#allocation11 + $0x1e4] sm:$0xf]
    %v8865 = vld [vmem:[#allocation11 + $0x1e8] sm:$0xf]
    %v8866 = vld [vmem:[#allocation11 + $0x1ec] sm:$0xf]
    %v8867 = vld [vmem:[#allocation11 + $0x1f0] sm:$0xf]
    %v8868 = vld [vmem:[#allocation11 + $0x1f4] sm:$0xf]
    %v8869 = vld [vmem:[#allocation11 + $0x1f8] sm:$0xf]
    %v8870 = vld [vmem:[#allocation11 + $0x1fc] sm:$0xf]
    %v8871 = vld [vmem:[#allocation13] sm:$0x1]
    %v8873 = vlaneseq
    %v8874 = vshrl.u32 %v8873, 7
    %v8875 = vsub.s32 0, %v8874
    %v8876 = vrot.slane %v8871, %v8875
    %v9006 = vunpack.c.l.b16 %v8743
    %v9007 = vunpack.c.l.b16 %v8744
    %v9008 = vunpack.c.l.b16 %v8745
    %v9009 = vunpack.c.l.b16 %v8746
    %v9010 = vunpack.c.l.b16 %v8747
    %v9011 = vunpack.c.l.b16 %v8748
    %v9012 = vunpack.c.l.b16 %v8749
    %v9013 = vunpack.c.l.b16 %v8750
    %v9014 = vunpack.c.l.b16 %v8751
    %v9015 = vunpack.c.l.b16 %v8752
    %v9016 = vunpack.c.l.b16 %v8753
    %v9017 = vunpack.c.l.b16 %v8754
    %v9018 = vunpack.c.l.b16 %v8755
    %v9019 = vunpack.c.l.b16 %v8756
    %v9020 = vunpack.c.l.b16 %v8757
    %v9021 = vunpack.c.l.b16 %v8758
    %v9022 = vunpack.c.l.b16 %v8759
    %v9023 = vunpack.c.l.b16 %v8760
    %v9024 = vunpack.c.l.b16 %v8761
    %v9025 = vunpack.c.l.b16 %v8762
    %v9026 = vunpack.c.l.b16 %v8763
    %v9027 = vunpack.c.l.b16 %v8764
    %v9028 = vunpack.c.l.b16 %v8765
    %v9029 = vunpack.c.l.b16 %v8766
    %v9030 = vunpack.c.l.b16 %v8767
    %v9031 = vunpack.c.l.b16 %v8768
    %v9032 = vunpack.c.l.b16 %v8769
    %v9033 = vunpack.c.l.b16 %v8770
    %v9034 = vunpack.c.l.b16 %v8771
    %v9035 = vunpack.c.l.b16 %v8772
    %v9036 = vunpack.c.l.b16 %v8773
    %v9037 = vunpack.c.l.b16 %v8774
    %v9038 = vunpack.c.l.b16 %v8775
    %v9039 = vunpack.c.l.b16 %v8776
    %v9040 = vunpack.c.l.b16 %v8777
    %v9041 = vunpack.c.l.b16 %v8778
    %v9042 = vunpack.c.l.b16 %v8779
    %v9043 = vunpack.c.l.b16 %v8780
    %v9044 = vunpack.c.l.b16 %v8781
    %v9045 = vunpack.c.l.b16 %v8782
    %v9046 = vunpack.c.l.b16 %v8783
    %v9047 = vunpack.c.l.b16 %v8784
    %v9048 = vunpack.c.l.b16 %v8785
    %v9049 = vunpack.c.l.b16 %v8786
    %v9050 = vunpack.c.l.b16 %v8787
    %v9051 = vunpack.c.l.b16 %v8788
    %v9052 = vunpack.c.l.b16 %v8789
    %v9053 = vunpack.c.l.b16 %v8790
    %v9054 = vunpack.c.l.b16 %v8791
    %v9055 = vunpack.c.l.b16 %v8792
    %v9056 = vunpack.c.l.b16 %v8793
    %v9057 = vunpack.c.l.b16 %v8794
    %v9058 = vunpack.c.l.b16 %v8795
    %v9059 = vunpack.c.l.b16 %v8796
    %v9060 = vunpack.c.l.b16 %v8797
    %v9061 = vunpack.c.l.b16 %v8798
    %v9062 = vunpack.c.l.b16 %v8799
    %v9063 = vunpack.c.l.b16 %v8800
    %v9064 = vunpack.c.l.b16 %v8801
    %v9065 = vunpack.c.l.b16 %v8802
    %v9066 = vunpack.c.l.b16 %v8803
    %v9067 = vunpack.c.l.b16 %v8804
    %v9068 = vunpack.c.l.b16 %v8805
    %v9069 = vunpack.c.l.b16 %v8806
    %v9070 = vunpack.c.l.b16 %v8807
    %v9071 = vunpack.c.l.b16 %v8808
    %v9072 = vunpack.c.l.b16 %v8809
    %v9073 = vunpack.c.l.b16 %v8810
    %v9074 = vunpack.c.l.b16 %v8811
    %v9075 = vunpack.c.l.b16 %v8812
    %v9076 = vunpack.c.l.b16 %v8813
    %v9077 = vunpack.c.l.b16 %v8814
    %v9078 = vunpack.c.l.b16 %v8815
    %v9079 = vunpack.c.l.b16 %v8816
    %v9080 = vunpack.c.l.b16 %v8817
    %v9081 = vunpack.c.l.b16 %v8818
    %v9082 = vunpack.c.l.b16 %v8819
    %v9083 = vunpack.c.l.b16 %v8820
    %v9084 = vunpack.c.l.b16 %v8821
    %v9085 = vunpack.c.l.b16 %v8822
    %v9086 = vunpack.c.l.b16 %v8823
    %v9087 = vunpack.c.l.b16 %v8824
    %v9088 = vunpack.c.l.b16 %v8825
    %v9089 = vunpack.c.l.b16 %v8826
    %v9090 = vunpack.c.l.b16 %v8827
    %v9091 = vunpack.c.l.b16 %v8828
    %v9092 = vunpack.c.l.b16 %v8829
    %v9093 = vunpack.c.l.b16 %v8830
    %v9094 = vunpack.c.l.b16 %v8831
    %v9095 = vunpack.c.l.b16 %v8832
    %v9096 = vunpack.c.l.b16 %v8833
    %v9097 = vunpack.c.l.b16 %v8834
    %v9098 = vunpack.c.l.b16 %v8835
    %v9099 = vunpack.c.l.b16 %v8836
    %v9100 = vunpack.c.l.b16 %v8837
    %v9101 = vunpack.c.l.b16 %v8838
    %v9102 = vunpack.c.l.b16 %v8839
    %v9103 = vunpack.c.l.b16 %v8840
    %v9104 = vunpack.c.l.b16 %v8841
    %v9105 = vunpack.c.l.b16 %v8842
    %v9106 = vunpack.c.l.b16 %v8843
    %v9107 = vunpack.c.l.b16 %v8844
    %v9108 = vunpack.c.l.b16 %v8845
    %v9109 = vunpack.c.l.b16 %v8846
    %v9110 = vunpack.c.l.b16 %v8847
    %v9111 = vunpack.c.l.b16 %v8848
    %v9112 = vunpack.c.l.b16 %v8849
    %v9113 = vunpack.c.l.b16 %v8850
    %v9114 = vunpack.c.l.b16 %v8851
    %v9115 = vunpack.c.l.b16 %v8852
    %v9116 = vunpack.c.l.b16 %v8853
    %v9117 = vunpack.c.l.b16 %v8854
    %v9118 = vunpack.c.l.b16 %v8855
    %v9119 = vunpack.c.l.b16 %v8856
    %v9120 = vunpack.c.l.b16 %v8857
    %v9121 = vunpack.c.l.b16 %v8858
    %v9122 = vunpack.c.l.b16 %v8859
    %v9123 = vunpack.c.l.b16 %v8860
    %v9124 = vunpack.c.l.b16 %v8861
    %v9125 = vunpack.c.l.b16 %v8862
    %v9126 = vunpack.c.l.b16 %v8863
    %v9127 = vunpack.c.l.b16 %v8864
    %v9128 = vunpack.c.l.b16 %v8865
    %v9129 = vunpack.c.l.b16 %v8866
    %v9130 = vunpack.c.l.b16 %v8867
    %v9131 = vunpack.c.l.b16 %v8868
    %v9132 = vunpack.c.l.b16 %v8869
    %v9133 = vunpack.c.l.b16 %v8870
    %v9134 = vpack.c.b16 %v9007, %v9006
    %v9135 = vpack.c.b16 %v9009, %v9008
    %v9136 = vpack.c.b16 %v9011, %v9010
    %v9137 = vpack.c.b16 %v9013, %v9012
    %v9138 = vpack.c.b16 %v9015, %v9014
    %v9139 = vpack.c.b16 %v9017, %v9016
    %v9140 = vpack.c.b16 %v9019, %v9018
    %v9141 = vpack.c.b16 %v9021, %v9020
    %v9142 = vpack.c.b16 %v9023, %v9022
    %v9143 = vpack.c.b16 %v9025, %v9024
    %v9144 = vpack.c.b16 %v9027, %v9026
    %v9145 = vpack.c.b16 %v9029, %v9028
    %v9146 = vpack.c.b16 %v9031, %v9030
    %v9147 = vpack.c.b16 %v9033, %v9032
    %v9148 = vpack.c.b16 %v9035, %v9034
    %v9149 = vpack.c.b16 %v9037, %v9036
    %v9150 = vpack.c.b16 %v9039, %v9038
    %v9151 = vpack.c.b16 %v9041, %v9040
    %v9152 = vpack.c.b16 %v9043, %v9042
    %v9153 = vpack.c.b16 %v9045, %v9044
    %v9154 = vpack.c.b16 %v9047, %v9046
    %v9155 = vpack.c.b16 %v9049, %v9048
    %v9156 = vpack.c.b16 %v9051, %v9050
    %v9157 = vpack.c.b16 %v9053, %v9052
    %v9158 = vpack.c.b16 %v9055, %v9054
    %v9159 = vpack.c.b16 %v9057, %v9056
    %v9160 = vpack.c.b16 %v9059, %v9058
    %v9161 = vpack.c.b16 %v9061, %v9060
    %v9162 = vpack.c.b16 %v9063, %v9062
    %v9163 = vpack.c.b16 %v9065, %v9064
    %v9164 = vpack.c.b16 %v9067, %v9066
    %v9165 = vpack.c.b16 %v9069, %v9068
    %v9166 = vpack.c.b16 %v9071, %v9070
    %v9167 = vpack.c.b16 %v9073, %v9072
    %v9168 = vpack.c.b16 %v9075, %v9074
    %v9169 = vpack.c.b16 %v9077, %v9076
    %v9170 = vpack.c.b16 %v9079, %v9078
    %v9171 = vpack.c.b16 %v9081, %v9080
    %v9172 = vpack.c.b16 %v9083, %v9082
    %v9173 = vpack.c.b16 %v9085, %v9084
    %v9174 = vpack.c.b16 %v9087, %v9086
    %v9175 = vpack.c.b16 %v9089, %v9088
    %v9176 = vpack.c.b16 %v9091, %v9090
    %v9177 = vpack.c.b16 %v9093, %v9092
    %v9178 = vpack.c.b16 %v9095, %v9094
    %v9179 = vpack.c.b16 %v9097, %v9096
    %v9180 = vpack.c.b16 %v9099, %v9098
    %v9181 = vpack.c.b16 %v9101, %v9100
    %v9182 = vpack.c.b16 %v9103, %v9102
    %v9183 = vpack.c.b16 %v9105, %v9104
    %v9184 = vpack.c.b16 %v9107, %v9106
    %v9185 = vpack.c.b16 %v9109, %v9108
    %v9186 = vpack.c.b16 %v9111, %v9110
    %v9187 = vpack.c.b16 %v9113, %v9112
    %v9188 = vpack.c.b16 %v9115, %v9114
    %v9189 = vpack.c.b16 %v9117, %v9116
    %v9190 = vpack.c.b16 %v9119, %v9118
    %v9191 = vpack.c.b16 %v9121, %v9120
    %v9192 = vpack.c.b16 %v9123, %v9122
    %v9193 = vpack.c.b16 %v9125, %v9124
    %v9194 = vpack.c.b16 %v9127, %v9126
    %v9195 = vpack.c.b16 %v9129, %v9128
    %v9196 = vpack.c.b16 %v9131, %v9130
    %v9197 = vpack.c.b16 %v9133, %v9132
    %9262 = vmatprep.subr.bf16.mxu0 0
    %9263 = vmatpush1.bf16.msra.mxu0 %v9134
    %9264 = vmatprep.subr.bf16.mxu0 0
    %9265 = vmatpush1.bf16.msra.mxu0 %v9135
    %9266 = vmatprep.subr.bf16.mxu0 0
    %9267 = vmatpush1.bf16.msra.mxu0 %v9136
    %9268 = vmatprep.subr.bf16.mxu0 0
    %9269 = vmatpush1.bf16.msra.mxu0 %v9137
    %9270 = vmatprep.subr.bf16.mxu0 0
    %9271 = vmatpush1.bf16.msra.mxu0 %v9138
    %9272 = vmatprep.subr.bf16.mxu0 0
    %9273 = vmatpush1.bf16.msra.mxu0 %v9139
    %9274 = vmatprep.subr.bf16.mxu0 0
    %9275 = vmatpush1.bf16.msra.mxu0 %v9140
    %9276 = vmatprep.subr.bf16.mxu0 0
    %9277 = vmatpush1.bf16.msra.mxu0 %v9141
    %9278 = vmatprep.subr.bf16.mxu0 0
    %9279 = vmatpush1.bf16.msra.mxu0 %v9142
    %9280 = vmatprep.subr.bf16.mxu0 0
    %9281 = vmatpush1.bf16.msra.mxu0 %v9143
    %9282 = vmatprep.subr.bf16.mxu0 0
    %9283 = vmatpush1.bf16.msra.mxu0 %v9144
    %9284 = vmatprep.subr.bf16.mxu0 0
    %9285 = vmatpush1.bf16.msra.mxu0 %v9145
    %9286 = vmatprep.subr.bf16.mxu0 0
    %9287 = vmatpush1.bf16.msra.mxu0 %v9146
    %9288 = vmatprep.subr.bf16.mxu0 0
    %9289 = vmatpush1.bf16.msra.mxu0 %v9147
    %9290 = vmatprep.subr.bf16.mxu0 0
    %9291 = vmatpush1.bf16.msra.mxu0 %v9148
    %9292 = vmatprep.subr.bf16.mxu0 0
    %9293 = vmatpush1.bf16.msra.mxu0 %v9149
    %9294 = vmatprep.mubr.bf16.mxu0 %v8736
    %9295 = vmatmul.mubr.bf16.gmra.mrb[0].mxu0 %v8735
    %v9296 = vpop.f32.mrb[0].mxu0
    %v9297 = vadd.f32 %v8876, %v9296
    %v9298 = vpop.f32.mrb[0].mxu0
    %v9299 = vpop.f32.mrb[0].mxu0
    %v9300 = vpop.f32.mrb[0].mxu0
    %9301 = vdwg.mxu0
    %9302 = vmatprep.subr.bf16.mxu0 0
    %9303 = vmatpush1.bf16.msra.mxu0 %v9150
    %9304 = vmatprep.subr.bf16.mxu0 0
    %9305 = vmatpush1.bf16.msra.mxu0 %v9151
    %9306 = vmatprep.subr.bf16.mxu0 0
    %9307 = vmatpush1.bf16.msra.mxu0 %v9152
    %9308 = vmatprep.subr.bf16.mxu0 0
    %9309 = vmatpush1.bf16.msra.mxu0 %v9153
    %9310 = vmatprep.subr.bf16.mxu0 0
    %9311 = vmatpush1.bf16.msra.mxu0 %v9154
    %9312 = vmatprep.subr.bf16.mxu0 0
    %9313 = vmatpush1.bf16.msra.mxu0 %v9155
    %9314 = vmatprep.subr.bf16.mxu0 0
    %9315 = vmatpush1.bf16.msra.mxu0 %v9156
    %9316 = vmatprep.subr.bf16.mxu0 0
    %9317 = vmatpush1.bf16.msra.mxu0 %v9157
    %9318 = vmatprep.subr.bf16.mxu0 0
    %9319 = vmatpush1.bf16.msra.mxu0 %v9158
    %9320 = vmatprep.subr.bf16.mxu0 0
    %9321 = vmatpush1.bf16.msra.mxu0 %v9159
    %9322 = vmatprep.subr.bf16.mxu0 0
    %9323 = vmatpush1.bf16.msra.mxu0 %v9160
    %9324 = vmatprep.subr.bf16.mxu0 0
    %9325 = vmatpush1.bf16.msra.mxu0 %v9161
    %9326 = vmatprep.subr.bf16.mxu0 0
    %9327 = vmatpush1.bf16.msra.mxu0 %v9162
    %9328 = vmatprep.subr.bf16.mxu0 0
    %9329 = vmatpush1.bf16.msra.mxu0 %v9163
    %9330 = vmatprep.subr.bf16.mxu0 0
    %9331 = vmatpush1.bf16.msra.mxu0 %v9164
    %9332 = vmatprep.subr.bf16.mxu0 0
    %9333 = vmatpush1.bf16.msra.mxu0 %v9165
    %9334 = vmatprep.mubr.bf16.mxu0 %v8738
    %9335 = vmatmul.mubr.bf16.gmra.mrb[0].mxu0 %v8737
    %v9336 = vpop.f32.mrb[0].mxu0
    %v9337 = vadd.f32 %v9297, %v9336
    %v9338 = vpop.f32.mrb[0].mxu0
    %v9339 = vpop.f32.mrb[0].mxu0
    %v9340 = vpop.f32.mrb[0].mxu0
    %9341 = vdwg.mxu0
    %9342 = vmatprep.subr.bf16.mxu0 0
    %9343 = vmatpush1.bf16.msra.mxu0 %v9166
    %9344 = vmatprep.subr.bf16.mxu0 0
    %9345 = vmatpush1.bf16.msra.mxu0 %v9167
    %9346 = vmatprep.subr.bf16.mxu0 0
    %9347 = vmatpush1.bf16.msra.mxu0 %v9168
    %9348 = vmatprep.subr.bf16.mxu0 0
    %9349 = vmatpush1.bf16.msra.mxu0 %v9169
    %9350 = vmatprep.subr.bf16.mxu0 0
    %9351 = vmatpush1.bf16.msra.mxu0 %v9170
    %9352 = vmatprep.subr.bf16.mxu0 0
    %9353 = vmatpush1.bf16.msra.mxu0 %v9171
    %9354 = vmatprep.subr.bf16.mxu0 0
    %9355 = vmatpush1.bf16.msra.mxu0 %v9172
    %9356 = vmatprep.subr.bf16.mxu0 0
    %9357 = vmatpush1.bf16.msra.mxu0 %v9173
    %9358 = vmatprep.subr.bf16.mxu0 0
    %9359 = vmatpush1.bf16.msra.mxu0 %v9174
    %9360 = vmatprep.subr.bf16.mxu0 0
    %9361 = vmatpush1.bf16.msra.mxu0 %v9175
    %9362 = vmatprep.subr.bf16.mxu0 0
    %9363 = vmatpush1.bf16.msra.mxu0 %v9176
    %9364 = vmatprep.subr.bf16.mxu0 0
    %9365 = vmatpush1.bf16.msra.mxu0 %v9177
    %9366 = vmatprep.subr.bf16.mxu0 0
    %9367 = vmatpush1.bf16.msra.mxu0 %v9178
    %9368 = vmatprep.subr.bf16.mxu0 0
    %9369 = vmatpush1.bf16.msra.mxu0 %v9179
    %9370 = vmatprep.subr.bf16.mxu0 0
    %9371 = vmatpush1.bf16.msra.mxu0 %v9180
    %9372 = vmatprep.subr.bf16.mxu0 0
    %9373 = vmatpush1.bf16.msra.mxu0 %v9181
    %9374 = vmatprep.mubr.bf16.mxu0 %v8740
    %9375 = vmatmul.mubr.bf16.gmra.mrb[0].mxu0 %v8739
    %v9376 = vpop.f32.mrb[0].mxu0
    %v9377 = vadd.f32 %v9337, %v9376
    %v9378 = vpop.f32.mrb[0].mxu0
    %v9379 = vpop.f32.mrb[0].mxu0
    %v9380 = vpop.f32.mrb[0].mxu0
    %9381 = vdwg.mxu0
    %9382 = vmatprep.subr.bf16.mxu0 0
    %9383 = vmatpush1.bf16.msra.mxu0 %v9182
    %9384 = vmatprep.subr.bf16.mxu0 0
    %9385 = vmatpush1.bf16.msra.mxu0 %v9183
    %9386 = vmatprep.subr.bf16.mxu0 0
    %9387 = vmatpush1.bf16.msra.mxu0 %v9184
    %9388 = vmatprep.subr.bf16.mxu0 0
    %9389 = vmatpush1.bf16.msra.mxu0 %v9185
    %9390 = vmatprep.subr.bf16.mxu0 0
    %9391 = vmatpush1.bf16.msra.mxu0 %v9186
    %9392 = vmatprep.subr.bf16.mxu0 0
    %9393 = vmatpush1.bf16.msra.mxu0 %v9187
    %9394 = vmatprep.subr.bf16.mxu0 0
    %9395 = vmatpush1.bf16.msra.mxu0 %v9188
    %9396 = vmatprep.subr.bf16.mxu0 0
    %9397 = vmatpush1.bf16.msra.mxu0 %v9189
    %9398 = vmatprep.subr.bf16.mxu0 0
    %9399 = vmatpush1.bf16.msra.mxu0 %v9190
    %9400 = vmatprep.subr.bf16.mxu0 0
    %9401 = vmatpush1.bf16.msra.mxu0 %v9191
    %9402 = vmatprep.subr.bf16.mxu0 0
    %9403 = vmatpush1.bf16.msra.mxu0 %v9192
    %9404 = vmatprep.subr.bf16.mxu0 0
    %9405 = vmatpush1.bf16.msra.mxu0 %v9193
    %9406 = vmatprep.subr.bf16.mxu0 0
    %9407 = vmatpush1.bf16.msra.mxu0 %v9194
    %9408 = vmatprep.subr.bf16.mxu0 0
    %9409 = vmatpush1.bf16.msra.mxu0 %v9195
    %9410 = vmatprep.subr.bf16.mxu0 0
    %9411 = vmatpush1.bf16.msra.mxu0 %v9196
    %9412 = vmatprep.subr.bf16.mxu0 0
    %9413 = vmatpush1.bf16.msra.mxu0 %v9197
    %9414 = vmatprep.mubr.bf16.mxu0 %v8742
    %9415 = vmatmul.mubr.bf16.gmra.mrb[0].mxu0 %v8741
    %v9416 = vpop.f32.mrb[0].mxu0
    %v9417 = vadd.f32 %v9377, %v9416
    %v9418 = vpop.f32.mrb[0].mxu0
    %v9419 = vpop.f32.mrb[0].mxu0
    %v9420 = vpop.f32.mrb[0].mxu0
    %9421 = vdwg.mxu0
    %9422 = vst [vmem:[#allocation14] sm:$0xff] %v9417
    // Predicated region
    $region62: #{tpu_custom_call.1} parent=1 // pred_check
      _
    $region63: #{tpu_custom_call.1} parent=1 // pred_check_branch
      %9424 = sbr.rel (0) target = $region65
    $region64: #{tpu_custom_call.1} parent=1 // pred_region
      %s9426 = ssub.s32 128, 128
      %9427 = vsyncadd [#allocation4], %s9426
      %s9429 = sshll.u32 [#allocation14], 4
      %s9430 = int_to_ptr.vmem [resolvable:$true] %s9429
      %9432 = dma.vmem_to_hbm [thread:$0]  %s9430, 128, %s8, [#allocation4]
    $region65: #{tpu_custom_call.1} parent=1 // pred_fallthru
      _
    // Predicated region
    $region66: #{tpu_custom_call.1} parent=1 // pred_check
      _
    $region67: #{tpu_custom_call.1} parent=1 // pred_check_branch
      %9434 = sbr.rel (0) target = $region69
    $region68: #{tpu_custom_call.1} parent=1 // pred_region
      %9435 = dma.done [#allocation4], 128
    $region69: #{tpu_custom_call.1} parent=1 // pred_fallthru
      _
    %9436 = vsyncpa [#allocation3], 1
    %9437 = vsyncpa [#allocation6], 1
    %9438 = vsyncpa [#allocation9], 1
    %9439 = vsyncpa [#allocation12], 1
    %9440 = vsyncpa [#allocation4], 1

</llo_original>
